<compile_context>
chip_gen: v7x
topology: tpu7x:2x2x1
jax: 0.10.0
libtpu: 0.0.40
codegen_flags: <defaults>
</compile_context>

<pallas_src>
import math
import functools

import jax
import jax.numpy as jnp
from jax.experimental import pallas as pl
from jax.experimental.pallas import tpu as pltpu


def _round_up(x, m):
    return ((x + m - 1) // m) * m


@functools.lru_cache(maxsize=None)
def _vmem_limit_bytes():
    """Per-generation scoped-VMEM budget: ~75% of physical, capped at 96 MiB."""
    try:
        cap = getattr(pltpu.get_tpu_info(), "vmem_capacity_bytes", None)
        if cap:
            return min(int(cap) * 3 // 4, 96 * 1024 * 1024)
    except Exception:
        pass
    return 48 * 1024 * 1024  # conservative fallback (safe on v7x's 64 MiB)


# ----------------------------------------------------------------------------
# Tiled linear kernel:  y = x @ w_t + b   (bf16 operands, f32 accumulation)
# ----------------------------------------------------------------------------

def _linear_kernel(x_ref, w_ref, b_ref, o_ref):
    y = jnp.dot(x_ref[...].astype(jnp.bfloat16), w_ref[...].astype(jnp.bfloat16),
                preferred_element_type=jnp.float32)
    o_ref[...] = (y + b_ref[...]).astype(o_ref.dtype)


def linear(x, w_t, b, *, out_dtype=jnp.bfloat16, tile_m=256, tile_n=512):
    """x: (M, K), w_t: (K, N) input-major bf16, b: (N,) f32 -> (M, N) bf16."""
    M, K = x.shape
    N = w_t.shape[1]

    tm = tile_m if M >= tile_m else _round_up(M, 8)
    M_pad = _round_up(M, tm)
    if M_pad != M:
        x = jnp.pad(x, ((0, M_pad - M), (0, 0)))
    tn = tile_n if N % tile_n == 0 else N
    # TODO(synk): K-tiled variant with a VMEM f32 accumulator for huge weights.

    out = pl.pallas_call(
        _linear_kernel,
        out_shape=jax.ShapeDtypeStruct((M_pad, N), out_dtype),
        grid=(M_pad // tm, N // tn),
        in_specs=[
            pl.BlockSpec((tm, K), lambda i, j: (i, 0)),
            pl.BlockSpec((K, tn), lambda i, j: (0, j)),
            pl.BlockSpec((1, tn), lambda i, j: (0, j)),
        ],
        out_specs=pl.BlockSpec((tm, tn), lambda i, j: (i, j)),
        compiler_params=pltpu.CompilerParams(
            dimension_semantics=("parallel", "parallel"),
            vmem_limit_bytes=_vmem_limit_bytes()),
    )(x, w_t, b.reshape(1, N))
    return out[:M] if M_pad != M else out


# ----------------------------------------------------------------------------
# Flash-style attention core over lane-dense (seq, h*d) slabs.
#   q: (b, nq, h*d_k) bf16, k: (b, nk, h*d_k) bf16, v: (b, nk, h*d_v) bf16
#   out: (b, nq, h*d_v) bf16
# Grid: (batch, q_tiles, kv_tiles); kv innermost ("arbitrary") with per-head
# online-softmax state (m, l, acc) in VMEM scratch.
# ----------------------------------------------------------------------------

def _flash_attn_kernel(q_ref, k_ref, v_ref, o_ref, m_ref, l_ref, acc_ref, *,
                       scale, h, d_k, d_v, nk_valid, mask_kv):
    kv = pl.program_id(2)

    @pl.when(kv == 0)
    def _init():
        m_ref[...] = jnp.full(m_ref.shape, -jnp.inf, m_ref.dtype)
        l_ref[...] = jnp.zeros(l_ref.shape, l_ref.dtype)
        acc_ref[...] = jnp.zeros(acc_ref.shape, acc_ref.dtype)

    tk = k_ref.shape[1]

    # Fold 1/sqrt(d_k) into Q once (tq x h*d_k elements, not tq x tk).
    q_slab = (q_ref[0].astype(jnp.float32) * scale).astype(jnp.bfloat16)  # (tq, h*d_k)
    k_slab = k_ref[0]                                                     # (tk, h*d_k)
    v_slab = v_ref[0]                                                     # (tk, h*d_v)

    if mask_kv:
        col = kv * tk + jax.lax.broadcasted_iota(jnp.int32, (1, tk), 1)
        col_ok = col < nk_valid                                           # (1, tk)

    for hd in range(h):
        qh = q_slab[:, hd * d_k:(hd + 1) * d_k]                           # (tq, d_k)
        kh = k_slab[:, hd * d_k:(hd + 1) * d_k]                           # (tk, d_k)
        vh = v_slab[:, hd * d_v:(hd + 1) * d_v]                           # (tk, d_v)

        # Scores: contract d_k of both operands (no explicit K transpose).
        s = jax.lax.dot_general(qh, kh, (((1,), (1,)), ((), ())),
                                preferred_element_type=jnp.float32)       # (tq, tk)
        if mask_kv:
            s = jnp.where(col_ok, s, -jnp.inf)

        m_prev = m_ref[hd]                                                # (tq, 1)
        l_prev = l_ref[hd]
        m_new = jnp.maximum(m_prev, jnp.max(s, axis=-1, keepdims=True))
        alpha = jnp.exp(m_prev - m_new)
        p = jnp.exp(s - m_new)
        l_ref[hd] = alpha * l_prev + jnp.sum(p, axis=-1, keepdims=True)
        pv = jax.lax.dot_general(p.astype(jnp.bfloat16), vh,
                                 (((1,), (0,)), ((), ())),
                                 preferred_element_type=jnp.float32)      # (tq, d_v)
        acc_ref[hd] = alpha * acc_ref[hd] + pv
        m_ref[hd] = m_new

    @pl.when(kv == pl.num_programs(2) - 1)
    def _finalize():
        outs = [acc_ref[hd] * pl.reciprocal(l_ref[hd], approx=True)
                for hd in range(h)]
        # One lane-dense (tq, h*d_v) store.
        o_ref[0] = jnp.concatenate(outs, axis=-1).astype(o_ref.dtype)


def attention_core(q, k, v, *, h, d_k, d_v, tile_q=256, tile_k=512):
    b, nq, hdk = q.shape
    nk = k.shape[1]
    hdv = v.shape[2]
    scale = 1.0 / math.sqrt(d_k)

    tq = min(tile_q, _round_up(nq, 8))
    nq_pad = _round_up(nq, tq)
    tk = min(tile_k, _round_up(nk, 128))
    nk_pad = _round_up(nk, tk)

    if nq_pad != nq:
        q = jnp.pad(q, ((0, 0), (0, nq_pad - nq), (0, 0)))
    if nk_pad != nk:
        k = jnp.pad(k, ((0, 0), (0, nk_pad - nk), (0, 0)))
        v = jnp.pad(v, ((0, 0), (0, nk_pad - nk), (0, 0)))

    kernel = functools.partial(
        _flash_attn_kernel, scale=scale, h=h, d_k=d_k, d_v=d_v,
        nk_valid=nk, mask_kv=(nk_pad != nk))

    out = pl.pallas_call(
        kernel,
        out_shape=jax.ShapeDtypeStruct((b, nq_pad, hdv), jnp.bfloat16),
        grid=(b, nq_pad // tq, nk_pad // tk),
        in_specs=[
            pl.BlockSpec((1, tq, hdk), lambda bi, qi, ki: (bi, qi, 0)),
            pl.BlockSpec((1, tk, hdk), lambda bi, qi, ki: (bi, ki, 0)),
            pl.BlockSpec((1, tk, hdv), lambda bi, qi, ki: (bi, ki, 0)),
        ],
        out_specs=pl.BlockSpec((1, tq, hdv), lambda bi, qi, ki: (bi, qi, 0)),
        scratch_shapes=[
            pltpu.VMEM((h, tq, 1), jnp.float32),     # running max   m
            pltpu.VMEM((h, tq, 1), jnp.float32),     # running denom l
            pltpu.VMEM((h, tq, d_v), jnp.float32),   # running output acc
        ],
        compiler_params=pltpu.CompilerParams(
            dimension_semantics=("parallel", "parallel", "arbitrary"),
            vmem_limit_bytes=_vmem_limit_bytes()),
    )(q, k, v)

    if nq_pad != nq:
        out = out[:, :nq]
    return out


# ----------------------------------------------------------------------------
# Fused fc_o + residual + LayerNorm kernel (LN axis = full d_model, M-tiled)
# ----------------------------------------------------------------------------

def _out_proj_ln_kernel(x_ref, w_ref, b_ref, res_ref, g_ref, beta_ref, o_ref, *, eps):
    y = jnp.dot(x_ref[...].astype(jnp.bfloat16), w_ref[...].astype(jnp.bfloat16),
                preferred_element_type=jnp.float32)
    y = y + b_ref[...] + res_ref[...].astype(jnp.float32)
    mean = jnp.mean(y, axis=-1, keepdims=True)
    d = y - mean
    var = jnp.mean(d * d, axis=-1, keepdims=True)
    inv = jax.lax.rsqrt(var + eps)
    o_ref[...] = (d * inv * g_ref[...] + beta_ref[...]).astype(o_ref.dtype)


def out_proj_residual_layernorm(x, w_t, b, res, gamma, beta, *, eps=1e-5, tile_m=256):
    """LayerNorm(res + x @ w_t + b).  x:(M,K) bf16, w_t:(K,N) bf16, res:(M,N) f32."""
    M, K = x.shape
    N = w_t.shape[1]
    tm = tile_m if M >= tile_m else _round_up(M, 8)
    M_pad = _round_up(M, tm)
    if M_pad != M:
        x = jnp.pad(x, ((0, M_pad - M), (0, 0)))
        res = jnp.pad(res, ((0, M_pad - M), (0, 0)))

    kernel = functools.partial(_out_proj_ln_kernel, eps=eps)
    out = pl.pallas_call(
        kernel,
        out_shape=jax.ShapeDtypeStruct((M_pad, N), res.dtype),
        grid=(M_pad // tm,),
        in_specs=[
            pl.BlockSpec((tm, K), lambda i: (i, 0)),
            pl.BlockSpec((K, N), lambda i: (0, 0)),
            pl.BlockSpec((1, N), lambda i: (0, 0)),
            pl.BlockSpec((tm, N), lambda i: (i, 0)),
            pl.BlockSpec((1, N), lambda i: (0, 0)),
            pl.BlockSpec((1, N), lambda i: (0, 0)),
        ],
        out_specs=pl.BlockSpec((tm, N), lambda i: (i, 0)),
        compiler_params=pltpu.CompilerParams(
            dimension_semantics=("parallel",),
            vmem_limit_bytes=_vmem_limit_bytes()),
    )(x, w_t, b.reshape(1, N), res, gamma.reshape(1, N), beta.reshape(1, N))
    return out[:M] if M_pad != M else out


# ----------------------------------------------------------------------------
# Parameters + forward
# ----------------------------------------------------------------------------

def xavier_uniform(key, out_features, in_features):
    bound = math.sqrt(6.0 / (in_features + out_features))
    w = jax.random.uniform(key, (out_features, in_features), jnp.float32, -bound, bound)
    return w.T  # stored input-major (in, out) so the forward needs no transpose


def init_params(key, d_model, d_k, d_v, h):
    """f32 master parameters (also used by the pure-JAX reference)."""
    ks = jax.random.split(key, 4)
    return {
        "wq_t": xavier_uniform(ks[0], h * d_k, d_model), "bq": jnp.zeros((h * d_k,), jnp.float32),
        "wk_t": xavier_uniform(ks[1], h * d_k, d_model), "bk": jnp.zeros((h * d_k,), jnp.float32),
        "wv_t": xavier_uniform(ks[2], h * d_v, d_model), "bv": jnp.zeros((h * d_v,), jnp.float32),
        "wo_t": xavier_uniform(ks[3], d_model, h * d_v), "bo": jnp.zeros((d_model,), jnp.float32),
        "ln_g": jnp.ones((d_model,), jnp.float32),
        "ln_b": jnp.zeros((d_model,), jnp.float32),
    }


def prepare_device_params(params):
    """bf16 weights in HBM + a fused QKV weight for the self-attention fast path."""
    bf = lambda a: a.astype(jnp.bfloat16)
    dev = {k: (bf(v) if k.startswith("w") else v) for k, v in params.items()}
    dev["w_qkv_t"] = bf(jnp.concatenate(
        [params["wq_t"], params["wk_t"], params["wv_t"]], axis=1))
    dev["b_qkv"] = jnp.concatenate([params["bq"], params["bk"], params["bv"]])
    return dev


def multi_head_attention(dev_params, queries, keys, values, *, d_k, d_v, h,
                         eps=1e-5, fused_qkv=False):
    """Matches MultiHeadAttention.forward with default flags in eval mode.

    fused_qkv=True is the self-attention fast path (queries == keys == values):
    Q, K, V are produced by a single fused projection matmul.
    """
    # TODO(synk): attention_mask / attention_weights, stateful running-KV cache,
    #             identity_map_reordering and training-mode dropout not implemented.
    b_s, nq, d_model = queries.shape
    nk = keys.shape[1]
    hdk, hdv = h * d_k, h * d_v

    if fused_qkv:
        qkv = linear(queries.reshape(b_s * nq, d_model),
                     dev_params["w_qkv_t"], dev_params["b_qkv"])
        q, k, v = qkv[:, :hdk], qkv[:, hdk:2 * hdk], qkv[:, 2 * hdk:]
        nk = nq
    else:
        q = linear(queries.reshape(b_s * nq, d_model), dev_params["wq_t"], dev_params["bq"])
        k = linear(keys.reshape(b_s * nk, d_model), dev_params["wk_t"], dev_params["bk"])
        v = linear(values.reshape(b_s * nk, d_model), dev_params["wv_t"], dev_params["bv"])

    # Lane-dense (seq, h*d) slabs; heads are split inside the attention kernel.
    q = q.reshape(b_s, nq, hdk)
    k = k.reshape(b_s, nk, hdk)
    v = v.reshape(b_s, nk, hdv)

    att = attention_core(q, k, v, h=h, d_k=d_k, d_v=d_v)   # (b_s, nq, h*d_v) bf16

    out = out_proj_residual_layernorm(
        att.reshape(b_s * nq, hdv),
        dev_params["wo_t"], dev_params["bo"],
        queries.reshape(b_s * nq, d_model),
        dev_params["ln_g"], dev_params["ln_b"], eps=eps)
    return out.reshape(b_s, nq, d_model)


# ----------------------------------------------------------------------------
# Pure-JAX f32 reference (for the numerical self-check)
# ----------------------------------------------------------------------------

def reference_forward(params, queries, keys, values, *, d_k, d_v, h, eps=1e-5):
    b_s, nq, d_model = queries.shape
    nk = keys.shape[1]
    q = (queries @ params["wq_t"] + params["bq"]).reshape(b_s, nq, h, d_k).transpose(0, 2, 1, 3)
    k = (keys @ params["wk_t"] + params["bk"]).reshape(b_s, nk, h, d_k).transpose(0, 2, 1, 3)
    v = (values @ params["wv_t"] + params["bv"]).reshape(b_s, nk, h, d_v).transpose(0, 2, 1, 3)
    att = jnp.einsum("bhqd,bhkd->bhqk", q, k) / math.sqrt(d_k)
    att = jax.nn.softmax(att, axis=-1)
    out = jnp.einsum("bhqk,bhkd->bhqd", att, v).transpose(0, 2, 1, 3).reshape(b_s, nq, h * d_v)
    out = out @ params["wo_t"] + params["bo"]
    y = queries + out
    mean = y.mean(-1, keepdims=True)
    var = ((y - mean) ** 2).mean(-1, keepdims=True)
    return (y - mean) / jnp.sqrt(var + eps) * params["ln_g"] + params["ln_b"]


# ----------------------------------------------------------------------------
# Demo / smoke test
# ----------------------------------------------------------------------------

if __name__ == "__main__":
    # Small but lane-dense shapes: h*d_k = h*d_v = d_model = 128, seq = 128.
    d_model, d_k, d_v, h = 128, 32, 32, 4
    b_s, seq = 2, 128

    key = jax.random.PRNGKey(0)
    kp, kx = jax.random.split(key)

    params = init_params(kp, d_model, d_k, d_v, h)
    dev_params = prepare_device_params(params)
    x = jax.random.normal(kx, (b_s, seq, d_model), jnp.float32)

    fwd = jax.jit(functools.partial(multi_head_attention,
                                    d_k=d_k, d_v=d_v, h=h, fused_qkv=True))
    out = jax.block_until_ready(fwd(dev_params, x, x, x))

    assert out.shape == (b_s, seq, d_model)
    assert bool(jnp.all(jnp.isfinite(out)))

    ref = reference_forward(params, x, x, x, d_k=d_k, d_v=d_v, h=h)
    err = float(jnp.max(jnp.abs(out - ref)))
    assert err < 1e-1, f"mismatch vs f32 reference: max abs err {err}"

    print("KERNEL_OK")
</pallas_src>

<mosaic_0001>
module attributes {stable_mosaic.version = 11 : i64} {
  func.func @_linear_kernel(%arg0: i32, %arg1: i32, %arg2: memref<256x128xf32, #tpu.memory_space<vmem>>, %arg3: memref<128x384xbf16, #tpu.memory_space<vmem>>, %arg4: memref<1x384xf32, #tpu.memory_space<vmem>>, %arg5: memref<256x384xbf16, #tpu.memory_space<vmem>>) attributes {dimension_semantics = [#tpu.dimension_semantics<parallel>, #tpu.dimension_semantics<parallel>], iteration_bounds = array<i64: 1, 1>, scalar_prefetch = 0 : i64, scratch_operands = 0 : i64, tpu.core_type = #tpu.core_type<tc>, window_params = [{transform_indices = @transform_0, window_bounds = array<i64: 256, 128>}, {transform_indices = @transform_1, window_bounds = array<i64: 128, 384>}, {transform_indices = @transform_2, window_bounds = array<i64: 1, 384>}, {transform_indices = @transform_3, window_bounds = array<i64: 256, 384>}]} {
    %c0 = arith.constant 0 : index
    %c0_0 = arith.constant 0 : index
    %0 = vector.load %arg2[%c0, %c0_0] : memref<256x128xf32, #tpu.memory_space<vmem>>, vector<256x128xf32>
    %1 = arith.truncf %0 : vector<256x128xf32> to vector<256x128xbf16>
    %c0_1 = arith.constant 0 : index
    %c0_2 = arith.constant 0 : index
    %2 = vector.load %arg3[%c0_1, %c0_2] : memref<128x384xbf16, #tpu.memory_space<vmem>>, vector<128x384xbf16>
    %cst = arith.constant dense<0.000000e+00> : vector<256x384xf32>
    %3 = tpu.matmul %1, %2, %cst {dimension_numbers = #tpu.dot_dimension_numbers<[1], [0], [0], [1], [0, 0, 1, 1], [], []>} : vector<256x128xbf16>, vector<128x384xbf16>, vector<256x384xf32> -> vector<256x384xf32>
    %c0_3 = arith.constant 0 : index
    %c0_4 = arith.constant 0 : index
    %4 = vector.load %arg4[%c0_3, %c0_4] : memref<1x384xf32, #tpu.memory_space<vmem>>, vector<1x384xf32>
    %5 = vector.broadcast %4 : vector<1x384xf32> to vector<256x384xf32>
    %6 = arith.addf %3, %5 : vector<256x384xf32>
    %7 = arith.truncf %6 : vector<256x384xf32> to vector<256x384xbf16>
    %c0_5 = arith.constant 0 : index
    %c0_6 = arith.constant 0 : index
    %8 = vector.load %arg5[%c0_5, %c0_6] : memref<256x384xbf16, #tpu.memory_space<vmem>>, vector<256x384xbf16>
    tpu.vector_store %arg5[%c0_5, %c0_6], %7 {strides = array<i32>} : memref<256x384xbf16, #tpu.memory_space<vmem>>, vector<256x384xbf16>,
    return
  }
  func.func @transform_0(%arg0: i32, %arg1: i32) -> (i32, i32) {
    %c0_i32 = arith.constant 0 : i32
    %c0_i32_0 = arith.constant 0 : i32
    return %arg0, %c0_i32 : i32, i32
  }
  func.func @transform_1(%arg0: i32, %arg1: i32) -> (i32, i32) {
    %c0_i32 = arith.constant 0 : i32
    %c0_i32_0 = arith.constant 0 : i32
    return %c0_i32, %arg1 : i32, i32
  }
  func.func @transform_2(%arg0: i32, %arg1: i32) -> (i32, i32) {
    %c0_i32 = arith.constant 0 : i32
    %c0_i32_0 = arith.constant 0 : i32
    return %c0_i32, %arg1 : i32, i32
  }
  func.func @transform_3(%arg0: i32, %arg1: i32) -> (i32, i32) {
    %c0_i32 = arith.constant 0 : i32
    return %arg0, %arg1 : i32, i32
  }
}

module attributes {stable_mosaic.version = 11 : i64} {
  func.func @_flash_attn_kernel(%arg0: i32, %arg1: i32, %arg2: i32, %arg3: memref<1x128x128xbf16, #tpu.memory_space<vmem>>, %arg4: memref<1x128x128xbf16, #tpu.memory_space<vmem>>, %arg5: memref<1x128x128xbf16, #tpu.memory_space<vmem>>, %arg6: memref<1x128x128xbf16, #tpu.memory_space<vmem>>, %arg7: memref<4x128x1xf32, #tpu.memory_space<vmem>>, %arg8: memref<4x128x1xf32, #tpu.memory_space<vmem>>, %arg9: memref<4x128x32xf32, #tpu.memory_space<vmem>>) attributes {dimension_semantics = [#tpu.dimension_semantics<parallel>, #tpu.dimension_semantics<parallel>, #tpu.dimension_semantics<arbitrary>], iteration_bounds = array<i64: 2, 1, 1>, scalar_prefetch = 0 : i64, scratch_operands = 3 : i64, tpu.core_type = #tpu.core_type<tc>, window_params = [{transform_indices = @transform_0, window_bounds = array<i64: 1, 128, 128>}, {transform_indices = @transform_1, window_bounds = array<i64: 1, 128, 128>}, {transform_indices = @transform_2, window_bounds = array<i64: 1, 128, 128>}, {transform_indices = @transform_3, window_bounds = array<i64: 1, 128, 128>}]} {
    %c0_i32 = arith.constant 0 : i32
    %0 = arith.cmpi eq, %arg2, %c0_i32 : i32
    %1 = arith.extui %0 : i1 to i32
    %c0_i32_0 = arith.constant 0 : i32
    %2 = arith.cmpi ne, %1, %c0_i32_0 : i32
    scf.if %2 {
      %cst_96 = arith.constant 0xFF800000 : f32
      %160 = vector.broadcast %cst_96 : f32 to vector<4x128x1xf32>
      %c0_97 = arith.constant 0 : index
      %c0_98 = arith.constant 0 : index
      %c0_99 = arith.constant 0 : index
      %161 = vector.load %arg7[%c0_97, %c0_98, %c0_99] : memref<4x128x1xf32, #tpu.memory_space<vmem>>, vector<4x128x1xf32>
      tpu.vector_store %arg7[%c0_97, %c0_98, %c0_99], %160 {strides = array<i32>} : memref<4x128x1xf32, #tpu.memory_space<vmem>>, vector<4x128x1xf32>,
      %cst_100 = arith.constant 0.000000e+00 : f32
      %162 = vector.broadcast %cst_100 : f32 to vector<4x128x1xf32>
      %c0_101 = arith.constant 0 : index
      %c0_102 = arith.constant 0 : index
      %c0_103 = arith.constant 0 : index
      %163 = vector.load %arg8[%c0_101, %c0_102, %c0_103] : memref<4x128x1xf32, #tpu.memory_space<vmem>>, vector<4x128x1xf32>
      tpu.vector_store %arg8[%c0_101, %c0_102, %c0_103], %162 {strides = array<i32>} : memref<4x128x1xf32, #tpu.memory_space<vmem>>, vector<4x128x1xf32>,
      %cst_104 = arith.constant 0.000000e+00 : f32
      %164 = vector.broadcast %cst_104 : f32 to vector<4x128x32xf32>
      %c0_105 = arith.constant 0 : index
      %c0_106 = arith.constant 0 : index
      %c0_107 = arith.constant 0 : index
      %165 = vector.load %arg9[%c0_105, %c0_106, %c0_107] : memref<4x128x32xf32, #tpu.memory_space<vmem>>, vector<4x128x32xf32>
      tpu.vector_store %arg9[%c0_105, %c0_106, %c0_107], %164 {strides = array<i32>} : memref<4x128x32xf32, #tpu.memory_space<vmem>>, vector<4x128x32xf32>,
    } else {
    }
    %c0 = arith.constant 0 : index
    %c0_1 = arith.constant 0 : index
    %c0_2 = arith.constant 0 : index
    %3 = vector.load %arg3[%c0, %c0_1, %c0_2] : memref<1x128x128xbf16, #tpu.memory_space<vmem>>, vector<1x128x128xbf16>
    %4 = vector.shape_cast %3 : vector<1x128x128xbf16> to vector<128x128xbf16>
    %5 = arith.extf %4 : vector<128x128xbf16> to vector<128x128xf32>
    %cst = arith.constant 0.176776692 : f32
    %6 = vector.broadcast %cst : f32 to vector<128x128xf32>
    %7 = arith.mulf %5, %6 : vector<128x128xf32>
    %8 = arith.truncf %7 : vector<128x128xf32> to vector<128x128xbf16>
    %c0_3 = arith.constant 0 : index
    %c0_4 = arith.constant 0 : index
    %c0_5 = arith.constant 0 : index
    %9 = vector.load %arg4[%c0_3, %c0_4, %c0_5] : memref<1x128x128xbf16, #tpu.memory_space<vmem>>, vector<1x128x128xbf16>
    %10 = vector.shape_cast %9 : vector<1x128x128xbf16> to vector<128x128xbf16>
    %c0_6 = arith.constant 0 : index
    %c0_7 = arith.constant 0 : index
    %c0_8 = arith.constant 0 : index
    %11 = vector.load %arg5[%c0_6, %c0_7, %c0_8] : memref<1x128x128xbf16, #tpu.memory_space<vmem>>, vector<1x128x128xbf16>
    %12 = vector.shape_cast %11 : vector<1x128x128xbf16> to vector<128x128xbf16>
    %13 = vector.extract_strided_slice %8 {offsets = [0, 0], sizes = [128, 32], strides = [1, 1]} : vector<128x128xbf16> to vector<128x32xbf16>
    %14 = vector.extract_strided_slice %10 {offsets = [0, 0], sizes = [128, 32], strides = [1, 1]} : vector<128x128xbf16> to vector<128x32xbf16>
    %15 = vector.extract_strided_slice %12 {offsets = [0, 0], sizes = [128, 32], strides = [1, 1]} : vector<128x128xbf16> to vector<128x32xbf16>
    %cst_9 = arith.constant dense<0.000000e+00> : vector<128x128xf32>
    %16 = tpu.matmul %13, %14, %cst_9 {dimension_numbers = #tpu.dot_dimension_numbers<[1], [1], [0], [0], [0, 0, 1, 0], [], []>} : vector<128x32xbf16>, vector<128x32xbf16>, vector<128x128xf32> -> vector<128x128xf32>
    %c0_10 = arith.constant 0 : index
    %c0_11 = arith.constant 0 : index
    %c0_12 = arith.constant 0 : index
    %17 = vector.load %arg7[%c0_10, %c0_11, %c0_12] : memref<4x128x1xf32, #tpu.memory_space<vmem>>, vector<1x128x1xf32>
    %18 = vector.shape_cast %17 : vector<1x128x1xf32> to vector<128x1xf32>
    %c0_13 = arith.constant 0 : index
    %c0_14 = arith.constant 0 : index
    %c0_15 = arith.constant 0 : index
    %19 = vector.load %arg8[%c0_13, %c0_14, %c0_15] : memref<4x128x1xf32, #tpu.memory_space<vmem>>, vector<1x128x1xf32>
    %20 = vector.shape_cast %19 : vector<1x128x1xf32> to vector<128x1xf32>
    %cst_16 = arith.constant dense<0xFF800000> : vector<128xf32>
    %21 = vector.multi_reduction <maximumf>, %16, %cst_16 [1] : vector<128x128xf32> to vector<128xf32>
    %22 = vector.shape_cast %21 : vector<128xf32> to vector<128x1xf32>
    %23 = arith.maximumf %18, %22 : vector<128x1xf32>
    %24 = arith.subf %18, %23 : vector<128x1xf32>
    %25 = math.exp %24 : vector<128x1xf32>
    %26 = vector.broadcast %23 : vector<128x1xf32> to vector<128x128xf32>
    %27 = arith.subf %16, %26 : vector<128x128xf32>
    %28 = math.exp %27 : vector<128x128xf32>
    %29 = arith.mulf %25, %20 : vector<128x1xf32>
    %cst_17 = arith.constant dense<0.000000e+00> : vector<128xf32>
    %30 = vector.multi_reduction <add>, %28, %cst_17 [1] : vector<128x128xf32> to vector<128xf32>
    %31 = vector.shape_cast %30 : vector<128xf32> to vector<128x1xf32>
    %32 = arith.addf %29, %31 : vector<128x1xf32>
    %c0_18 = arith.constant 0 : index
    %c0_19 = arith.constant 0 : index
    %c0_20 = arith.constant 0 : index
    %33 = vector.load %arg8[%c0_18, %c0_19, %c0_20] : memref<4x128x1xf32, #tpu.memory_space<vmem>>, vector<1x128x1xf32>
    %34 = vector.shape_cast %33 : vector<1x128x1xf32> to vector<128x1xf32>
    %35 = vector.shape_cast %32 : vector<128x1xf32> to vector<1x128x1xf32>
    tpu.vector_store %arg8[%c0_18, %c0_19, %c0_20], %35 {strides = array<i32>} : memref<4x128x1xf32, #tpu.memory_space<vmem>>, vector<1x128x1xf32>,
    %36 = arith.truncf %28 : vector<128x128xf32> to vector<128x128xbf16>
    %cst_21 = arith.constant dense<0.000000e+00> : vector<128x32xf32>
    %37 = tpu.matmul %36, %15, %cst_21 {dimension_numbers = #tpu.dot_dimension_numbers<[1], [0], [0], [1], [0, 0, 1, 1], [], []>} : vector<128x128xbf16>, vector<128x32xbf16>, vector<128x32xf32> -> vector<128x32xf32>
    %c0_22 = arith.constant 0 : index
    %c0_23 = arith.constant 0 : index
    %c0_24 = arith.constant 0 : index
    %38 = vector.load %arg9[%c0_22, %c0_23, %c0_24] : memref<4x128x32xf32, #tpu.memory_space<vmem>>, vector<1x128x32xf32>
    %39 = vector.shape_cast %38 : vector<1x128x32xf32> to vector<128x32xf32>
    %40 = vector.broadcast %25 : vector<128x1xf32> to vector<128x32xf32>
    %41 = arith.mulf %40, %39 : vector<128x32xf32>
    %42 = arith.addf %41, %37 : vector<128x32xf32>
    %c0_25 = arith.constant 0 : index
    %c0_26 = arith.constant 0 : index
    %c0_27 = arith.constant 0 : index
    %43 = vector.load %arg9[%c0_25, %c0_26, %c0_27] : memref<4x128x32xf32, #tpu.memory_space<vmem>>, vector<1x128x32xf32>
    %44 = vector.shape_cast %43 : vector<1x128x32xf32> to vector<128x32xf32>
    %45 = vector.shape_cast %42 : vector<128x32xf32> to vector<1x128x32xf32>
    tpu.vector_store %arg9[%c0_25, %c0_26, %c0_27], %45 {strides = array<i32>} : memref<4x128x32xf32, #tpu.memory_space<vmem>>, vector<1x128x32xf32>,
    %c0_28 = arith.constant 0 : index
    %c0_29 = arith.constant 0 : index
    %c0_30 = arith.constant 0 : index
    %46 = vector.load %arg7[%c0_28, %c0_29, %c0_30] : memref<4x128x1xf32, #tpu.memory_space<vmem>>, vector<1x128x1xf32>
    %47 = vector.shape_cast %46 : vector<1x128x1xf32> to vector<128x1xf32>
    %48 = vector.shape_cast %23 : vector<128x1xf32> to vector<1x128x1xf32>
    tpu.vector_store %arg7[%c0_28, %c0_29, %c0_30], %48 {strides = array<i32>} : memref<4x128x1xf32, #tpu.memory_space<vmem>>, vector<1x128x1xf32>,
    %49 = vector.extract_strided_slice %8 {offsets = [0, 32], sizes = [128, 32], strides = [1, 1]} : vector<128x128xbf16> to vector<128x32xbf16>
    %50 = vector.extract_strided_slice %10 {offsets = [0, 32], sizes = [128, 32], strides = [1, 1]} : vector<128x128xbf16> to vector<128x32xbf16>
    %51 = vector.extract_strided_slice %12 {offsets = [0, 32], sizes = [128, 32], strides = [1, 1]} : vector<128x128xbf16> to vector<128x32xbf16>
    %cst_31 = arith.constant dense<0.000000e+00> : vector<128x128xf32>
    %52 = tpu.matmul %49, %50, %cst_31 {dimension_numbers = #tpu.dot_dimension_numbers<[1], [1], [0], [0], [0, 0, 1, 0], [], []>} : vector<128x32xbf16>, vector<128x32xbf16>, vector<128x128xf32> -> vector<128x128xf32>
    %c1 = arith.constant 1 : index
    %c0_32 = arith.constant 0 : index
    %c0_33 = arith.constant 0 : index
    %53 = vector.load %arg7[%c1, %c0_32, %c0_33] : memref<4x128x1xf32, #tpu.memory_space<vmem>>, vector<1x128x1xf32>
    %54 = vector.shape_cast %53 : vector<1x128x1xf32> to vector<128x1xf32>
    %c1_34 = arith.constant 1 : index
    %c0_35 = arith.constant 0 : index
    %c0_36 = arith.constant 0 : index
    %55 = vector.load %arg8[%c1_34, %c0_35, %c0_36] : memref<4x128x1xf32, #tpu.memory_space<vmem>>, vector<1x128x1xf32>
    %56 = vector.shape_cast %55 : vector<1x128x1xf32> to vector<128x1xf32>
    %cst_37 = arith.constant dense<0xFF800000> : vector<128xf32>
    %57 = vector.multi_reduction <maximumf>, %52, %cst_37 [1] : vector<128x128xf32> to vector<128xf32>
    %58 = vector.shape_cast %57 : vector<128xf32> to vector<128x1xf32>
    %59 = arith.maximumf %54, %58 : vector<128x1xf32>
    %60 = arith.subf %54, %59 : vector<128x1xf32>
    %61 = math.exp %60 : vector<128x1xf32>
    %62 = vector.broadcast %59 : vector<128x1xf32> to vector<128x128xf32>
    %63 = arith.subf %52, %62 : vector<128x128xf32>
    %64 = math.exp %63 : vector<128x128xf32>
    %65 = arith.mulf %61, %56 : vector<128x1xf32>
    %cst_38 = arith.constant dense<0.000000e+00> : vector<128xf32>
    %66 = vector.multi_reduction <add>, %64, %cst_38 [1] : vector<128x128xf32> to vector<128xf32>
    %67 = vector.shape_cast %66 : vector<128xf32> to vector<128x1xf32>
    %68 = arith.addf %65, %67 : vector<128x1xf32>
    %c1_39 = arith.constant 1 : index
    %c0_40 = arith.constant 0 : index
    %c0_41 = arith.constant 0 : index
    %69 = vector.load %arg8[%c1_39, %c0_40, %c0_41] : memref<4x128x1xf32, #tpu.memory_space<vmem>>, vector<1x128x1xf32>
    %70 = vector.shape_cast %69 : vector<1x128x1xf32> to vector<128x1xf32>
    %71 = vector.shape_cast %68 : vector<128x1xf32> to vector<1x128x1xf32>
    tpu.vector_store %arg8[%c1_39, %c0_40, %c0_41], %71 {strides = array<i32>} : memref<4x128x1xf32, #tpu.memory_space<vmem>>, vector<1x128x1xf32>,
    %72 = arith.truncf %64 : vector<128x128xf32> to vector<128x128xbf16>
    %cst_42 = arith.constant dense<0.000000e+00> : vector<128x32xf32>
    %73 = tpu.matmul %72, %51, %cst_42 {dimension_numbers = #tpu.dot_dimension_numbers<[1], [0], [0], [1], [0, 0, 1, 1], [], []>} : vector<128x128xbf16>, vector<128x32xbf16>, vector<128x32xf32> -> vector<128x32xf32>
    %c1_43 = arith.constant 1 : index
    %c0_44 = arith.constant 0 : index
    %c0_45 = arith.constant 0 : index
    %74 = vector.load %arg9[%c1_43, %c0_44, %c0_45] : memref<4x128x32xf32, #tpu.memory_space<vmem>>, vector<1x128x32xf32>
    %75 = vector.shape_cast %74 : vector<1x128x32xf32> to vector<128x32xf32>
    %76 = vector.broadcast %61 : vector<128x1xf32> to vector<128x32xf32>
    %77 = arith.mulf %76, %75 : vector<128x32xf32>
    %78 = arith.addf %77, %73 : vector<128x32xf32>
    %c1_46 = arith.constant 1 : index
    %c0_47 = arith.constant 0 : index
    %c0_48 = arith.constant 0 : index
    %79 = vector.load %arg9[%c1_46, %c0_47, %c0_48] : memref<4x128x32xf32, #tpu.memory_space<vmem>>, vector<1x128x32xf32>
    %80 = vector.shape_cast %79 : vector<1x128x32xf32> to vector<128x32xf32>
    %81 = vector.shape_cast %78 : vector<128x32xf32> to vector<1x128x32xf32>
    tpu.vector_store %arg9[%c1_46, %c0_47, %c0_48], %81 {strides = array<i32>} : memref<4x128x32xf32, #tpu.memory_space<vmem>>, vector<1x128x32xf32>,
    %c1_49 = arith.constant 1 : index
    %c0_50 = arith.constant 0 : index
    %c0_51 = arith.constant 0 : index
    %82 = vector.load %arg7[%c1_49, %c0_50, %c0_51] : memref<4x128x1xf32, #tpu.memory_space<vmem>>, vector<1x128x1xf32>
    %83 = vector.shape_cast %82 : vector<1x128x1xf32> to vector<128x1xf32>
    %84 = vector.shape_cast %59 : vector<128x1xf32> to vector<1x128x1xf32>
    tpu.vector_store %arg7[%c1_49, %c0_50, %c0_51], %84 {strides = array<i32>} : memref<4x128x1xf32, #tpu.memory_space<vmem>>, vector<1x128x1xf32>,
    %85 = vector.extract_strided_slice %8 {offsets = [0, 64], sizes = [128, 32], strides = [1, 1]} : vector<128x128xbf16> to vector<128x32xbf16>
    %86 = vector.extract_strided_slice %10 {offsets = [0, 64], sizes = [128, 32], strides = [1, 1]} : vector<128x128xbf16> to vector<128x32xbf16>
    %87 = vector.extract_strided_slice %12 {offsets = [0, 64], sizes = [128, 32], strides = [1, 1]} : vector<128x128xbf16> to vector<128x32xbf16>
    %cst_52 = arith.constant dense<0.000000e+00> : vector<128x128xf32>
    %88 = tpu.matmul %85, %86, %cst_52 {dimension_numbers = #tpu.dot_dimension_numbers<[1], [1], [0], [0], [0, 0, 1, 0], [], []>} : vector<128x32xbf16>, vector<128x32xbf16>, vector<128x128xf32> -> vector<128x128xf32>
    %c2 = arith.constant 2 : index
    %c0_53 = arith.constant 0 : index
    %c0_54 = arith.constant 0 : index
    %89 = vector.load %arg7[%c2, %c0_53, %c0_54] : memref<4x128x1xf32, #tpu.memory_space<vmem>>, vector<1x128x1xf32>
    %90 = vector.shape_cast %89 : vector<1x128x1xf32> to vector<128x1xf32>
    %c2_55 = arith.constant 2 : index
    %c0_56 = arith.constant 0 : index
    %c0_57 = arith.constant 0 : index
    %91 = vector.load %arg8[%c2_55, %c0_56, %c0_57] : memref<4x128x1xf32, #tpu.memory_space<vmem>>, vector<1x128x1xf32>
    %92 = vector.shape_cast %91 : vector<1x128x1xf32> to vector<128x1xf32>
    %cst_58 = arith.constant dense<0xFF800000> : vector<128xf32>
    %93 = vector.multi_reduction <maximumf>, %88, %cst_58 [1] : vector<128x128xf32> to vector<128xf32>
    %94 = vector.shape_cast %93 : vector<128xf32> to vector<128x1xf32>
    %95 = arith.maximumf %90, %94 : vector<128x1xf32>
    %96 = arith.subf %90, %95 : vector<128x1xf32>
    %97 = math.exp %96 : vector<128x1xf32>
    %98 = vector.broadcast %95 : vector<128x1xf32> to vector<128x128xf32>
    %99 = arith.subf %88, %98 : vector<128x128xf32>
    %100 = math.exp %99 : vector<128x128xf32>
    %101 = arith.mulf %97, %92 : vector<128x1xf32>
    %cst_59 = arith.constant dense<0.000000e+00> : vector<128xf32>
    %102 = vector.multi_reduction <add>, %100, %cst_59 [1] : vector<128x128xf32> to vector<128xf32>
    %103 = vector.shape_cast %102 : vector<128xf32> to vector<128x1xf32>
    %104 = arith.addf %101, %103 : vector<128x1xf32>
    %c2_60 = arith.constant 2 : index
    %c0_61 = arith.constant 0 : index
    %c0_62 = arith.constant 0 : index
    %105 = vector.load %arg8[%c2_60, %c0_61, %c0_62] : memref<4x128x1xf32, #tpu.memory_space<vmem>>, vector<1x128x1xf32>
    %106 = vector.shape_cast %105 : vector<1x128x1xf32> to vector<128x1xf32>
    %107 = vector.shape_cast %104 : vector<128x1xf32> to vector<1x128x1xf32>
    tpu.vector_store %arg8[%c2_60, %c0_61, %c0_62], %107 {strides = array<i32>} : memref<4x128x1xf32, #tpu.memory_space<vmem>>, vector<1x128x1xf32>,
    %108 = arith.truncf %100 : vector<128x128xf32> to vector<128x128xbf16>
    %cst_63 = arith.constant dense<0.000000e+00> : vector<128x32xf32>
    %109 = tpu.matmul %108, %87, %cst_63 {dimension_numbers = #tpu.dot_dimension_numbers<[1], [0], [0], [1], [0, 0, 1, 1], [], []>} : vector<128x128xbf16>, vector<128x32xbf16>, vector<128x32xf32> -> vector<128x32xf32>
    %c2_64 = arith.constant 2 : index
    %c0_65 = arith.constant 0 : index
    %c0_66 = arith.constant 0 : index
    %110 = vector.load %arg9[%c2_64, %c0_65, %c0_66] : memref<4x128x32xf32, #tpu.memory_space<vmem>>, vector<1x128x32xf32>
    %111 = vector.shape_cast %110 : vector<1x128x32xf32> to vector<128x32xf32>
    %112 = vector.broadcast %97 : vector<128x1xf32> to vector<128x32xf32>
    %113 = arith.mulf %112, %111 : vector<128x32xf32>
    %114 = arith.addf %113, %109 : vector<128x32xf32>
    %c2_67 = arith.constant 2 : index
    %c0_68 = arith.constant 0 : index
    %c0_69 = arith.constant 0 : index
    %115 = vector.load %arg9[%c2_67, %c0_68, %c0_69] : memref<4x128x32xf32, #tpu.memory_space<vmem>>, vector<1x128x32xf32>
    %116 = vector.shape_cast %115 : vector<1x128x32xf32> to vector<128x32xf32>
    %117 = vector.shape_cast %114 : vector<128x32xf32> to vector<1x128x32xf32>
    tpu.vector_store %arg9[%c2_67, %c0_68, %c0_69], %117 {strides = array<i32>} : memref<4x128x32xf32, #tpu.memory_space<vmem>>, vector<1x128x32xf32>,
    %c2_70 = arith.constant 2 : index
    %c0_71 = arith.constant 0 : index
    %c0_72 = arith.constant 0 : index
    %118 = vector.load %arg7[%c2_70, %c0_71, %c0_72] : memref<4x128x1xf32, #tpu.memory_space<vmem>>, vector<1x128x1xf32>
    %119 = vector.shape_cast %118 : vector<1x128x1xf32> to vector<128x1xf32>
    %120 = vector.shape_cast %95 : vector<128x1xf32> to vector<1x128x1xf32>
    tpu.vector_store %arg7[%c2_70, %c0_71, %c0_72], %120 {strides = array<i32>} : memref<4x128x1xf32, #tpu.memory_space<vmem>>, vector<1x128x1xf32>,
    %121 = vector.extract_strided_slice %8 {offsets = [0, 96], sizes = [128, 32], strides = [1, 1]} : vector<128x128xbf16> to vector<128x32xbf16>
    %122 = vector.extract_strided_slice %10 {offsets = [0, 96], sizes = [128, 32], strides = [1, 1]} : vector<128x128xbf16> to vector<128x32xbf16>
    %123 = vector.extract_strided_slice %12 {offsets = [0, 96], sizes = [128, 32], strides = [1, 1]} : vector<128x128xbf16> to vector<128x32xbf16>
    %cst_73 = arith.constant dense<0.000000e+00> : vector<128x128xf32>
    %124 = tpu.matmul %121, %122, %cst_73 {dimension_numbers = #tpu.dot_dimension_numbers<[1], [1], [0], [0], [0, 0, 1, 0], [], []>} : vector<128x32xbf16>, vector<128x32xbf16>, vector<128x128xf32> -> vector<128x128xf32>
    %c3 = arith.constant 3 : index
    %c0_74 = arith.constant 0 : index
    %c0_75 = arith.constant 0 : index
    %125 = vector.load %arg7[%c3, %c0_74, %c0_75] : memref<4x128x1xf32, #tpu.memory_space<vmem>>, vector<1x128x1xf32>
    %126 = vector.shape_cast %125 : vector<1x128x1xf32> to vector<128x1xf32>
    %c3_76 = arith.constant 3 : index
    %c0_77 = arith.constant 0 : index
    %c0_78 = arith.constant 0 : index
    %127 = vector.load %arg8[%c3_76, %c0_77, %c0_78] : memref<4x128x1xf32, #tpu.memory_space<vmem>>, vector<1x128x1xf32>
    %128 = vector.shape_cast %127 : vector<1x128x1xf32> to vector<128x1xf32>
    %cst_79 = arith.constant dense<0xFF800000> : vector<128xf32>
    %129 = vector.multi_reduction <maximumf>, %124, %cst_79 [1] : vector<128x128xf32> to vector<128xf32>
    %130 = vector.shape_cast %129 : vector<128xf32> to vector<128x1xf32>
    %131 = arith.maximumf %126, %130 : vector<128x1xf32>
    %132 = arith.subf %126, %131 : vector<128x1xf32>
    %133 = math.exp %132 : vector<128x1xf32>
    %134 = vector.broadcast %131 : vector<128x1xf32> to vector<128x128xf32>
    %135 = arith.subf %124, %134 : vector<128x128xf32>
    %136 = math.exp %135 : vector<128x128xf32>
    %137 = arith.mulf %133, %128 : vector<128x1xf32>
    %cst_80 = arith.constant dense<0.000000e+00> : vector<128xf32>
    %138 = vector.multi_reduction <add>, %136, %cst_80 [1] : vector<128x128xf32> to vector<128xf32>
    %139 = vector.shape_cast %138 : vector<128xf32> to vector<128x1xf32>
    %140 = arith.addf %137, %139 : vector<128x1xf32>
    %c3_81 = arith.constant 3 : index
    %c0_82 = arith.constant 0 : index
    %c0_83 = arith.constant 0 : index
    %141 = vector.load %arg8[%c3_81, %c0_82, %c0_83] : memref<4x128x1xf32, #tpu.memory_space<vmem>>, vector<1x128x1xf32>
    %142 = vector.shape_cast %141 : vector<1x128x1xf32> to vector<128x1xf32>
    %143 = vector.shape_cast %140 : vector<128x1xf32> to vector<1x128x1xf32>
    tpu.vector_store %arg8[%c3_81, %c0_82, %c0_83], %143 {strides = array<i32>} : memref<4x128x1xf32, #tpu.memory_space<vmem>>, vector<1x128x1xf32>,
    %144 = arith.truncf %136 : vector<128x128xf32> to vector<128x128xbf16>
    %cst_84 = arith.constant dense<0.000000e+00> : vector<128x32xf32>
    %145 = tpu.matmul %144, %123, %cst_84 {dimension_numbers = #tpu.dot_dimension_numbers<[1], [0], [0], [1], [0, 0, 1, 1], [], []>} : vector<128x128xbf16>, vector<128x32xbf16>, vector<128x32xf32> -> vector<128x32xf32>
    %c3_85 = arith.constant 3 : index
    %c0_86 = arith.constant 0 : index
    %c0_87 = arith.constant 0 : index
    %146 = vector.load %arg9[%c3_85, %c0_86, %c0_87] : memref<4x128x32xf32, #tpu.memory_space<vmem>>, vector<1x128x32xf32>
    %147 = vector.shape_cast %146 : vector<1x128x32xf32> to vector<128x32xf32>
    %148 = vector.broadcast %133 : vector<128x1xf32> to vector<128x32xf32>
    %149 = arith.mulf %148, %147 : vector<128x32xf32>
    %150 = arith.addf %149, %145 : vector<128x32xf32>
    %c3_88 = arith.constant 3 : index
    %c0_89 = arith.constant 0 : index
    %c0_90 = arith.constant 0 : index
    %151 = vector.load %arg9[%c3_88, %c0_89, %c0_90] : memref<4x128x32xf32, #tpu.memory_space<vmem>>, vector<1x128x32xf32>
    %152 = vector.shape_cast %151 : vector<1x128x32xf32> to vector<128x32xf32>
    %153 = vector.shape_cast %150 : vector<128x32xf32> to vector<1x128x32xf32>
    tpu.vector_store %arg9[%c3_88, %c0_89, %c0_90], %153 {strides = array<i32>} : memref<4x128x32xf32, #tpu.memory_space<vmem>>, vector<1x128x32xf32>,
    %c3_91 = arith.constant 3 : index
    %c0_92 = arith.constant 0 : index
    %c0_93 = arith.constant 0 : index
    %154 = vector.load %arg7[%c3_91, %c0_92, %c0_93] : memref<4x128x1xf32, #tpu.memory_space<vmem>>, vector<1x128x1xf32>
    %155 = vector.shape_cast %154 : vector<1x128x1xf32> to vector<128x1xf32>
    %156 = vector.shape_cast %131 : vector<128x1xf32> to vector<1x128x1xf32>
    tpu.vector_store %arg7[%c3_91, %c0_92, %c0_93], %156 {strides = array<i32>} : memref<4x128x1xf32, #tpu.memory_space<vmem>>, vector<1x128x1xf32>,
    %c0_i32_94 = arith.constant 0 : i32
    %157 = arith.cmpi eq, %arg2, %c0_i32_94 : i32
    %158 = arith.extui %157 : i1 to i32
    %c0_i32_95 = arith.constant 0 : i32
    %159 = arith.cmpi ne, %158, %c0_i32_95 : i32
    scf.if %159 {
      %c0_96 = arith.constant 0 : index
      %c0_97 = arith.constant 0 : index
      %c0_98 = arith.constant 0 : index
      %160 = vector.load %arg9[%c0_96, %c0_97, %c0_98] : memref<4x128x32xf32, #tpu.memory_space<vmem>>, vector<1x128x32xf32>
      %161 = vector.shape_cast %160 : vector<1x128x32xf32> to vector<128x32xf32>
      %c0_99 = arith.constant 0 : index
      %c0_100 = arith.constant 0 : index
      %c0_101 = arith.constant 0 : index
      %162 = vector.load %arg8[%c0_99, %c0_100, %c0_101] : memref<4x128x1xf32, #tpu.memory_space<vmem>>, vector<1x128x1xf32>
      %163 = vector.shape_cast %162 : vector<1x128x1xf32> to vector<128x1xf32>
      %164 = tpu.reciprocal %163 {approx = true} : vector<128x1xf32> -> vector<128x1xf32>
      %165 = vector.broadcast %164 : vector<128x1xf32> to vector<128x32xf32>
      %166 = arith.mulf %161, %165 : vector<128x32xf32>
      %c1_102 = arith.constant 1 : index
      %c0_103 = arith.constant 0 : index
      %c0_104 = arith.constant 0 : index
      %167 = vector.load %arg9[%c1_102, %c0_103, %c0_104] : memref<4x128x32xf32, #tpu.memory_space<vmem>>, vector<1x128x32xf32>
      %168 = vector.shape_cast %167 : vector<1x128x32xf32> to vector<128x32xf32>
      %c1_105 = arith.constant 1 : index
      %c0_106 = arith.constant 0 : index
      %c0_107 = arith.constant 0 : index
      %169 = vector.load %arg8[%c1_105, %c0_106, %c0_107] : memref<4x128x1xf32, #tpu.memory_space<vmem>>, vector<1x128x1xf32>
      %170 = vector.shape_cast %169 : vector<1x128x1xf32> to vector<128x1xf32>
      %171 = tpu.reciprocal %170 {approx = true} : vector<128x1xf32> -> vector<128x1xf32>
      %172 = vector.broadcast %171 : vector<128x1xf32> to vector<128x32xf32>
      %173 = arith.mulf %168, %172 : vector<128x32xf32>
      %c2_108 = arith.constant 2 : index
      %c0_109 = arith.constant 0 : index
      %c0_110 = arith.constant 0 : index
      %174 = vector.load %arg9[%c2_108, %c0_109, %c0_110] : memref<4x128x32xf32, #tpu.memory_space<vmem>>, vector<1x128x32xf32>
      %175 = vector.shape_cast %174 : vector<1x128x32xf32> to vector<128x32xf32>
      %c2_111 = arith.constant 2 : index
      %c0_112 = arith.constant 0 : index
      %c0_113 = arith.constant 0 : index
      %176 = vector.load %arg8[%c2_111, %c0_112, %c0_113] : memref<4x128x1xf32, #tpu.memory_space<vmem>>, vector<1x128x1xf32>
      %177 = vector.shape_cast %176 : vector<1x128x1xf32> to vector<128x1xf32>
      %178 = tpu.reciprocal %177 {approx = true} : vector<128x1xf32> -> vector<128x1xf32>
      %179 = vector.broadcast %178 : vector<128x1xf32> to vector<128x32xf32>
      %180 = arith.mulf %175, %179 : vector<128x32xf32>
      %c3_114 = arith.constant 3 : index
      %c0_115 = arith.constant 0 : index
      %c0_116 = arith.constant 0 : index
      %181 = vector.load %arg9[%c3_114, %c0_115, %c0_116] : memref<4x128x32xf32, #tpu.memory_space<vmem>>, vector<1x128x32xf32>
      %182 = vector.shape_cast %181 : vector<1x128x32xf32> to vector<128x32xf32>
      %c3_117 = arith.constant 3 : index
      %c0_118 = arith.constant 0 : index
      %c0_119 = arith.constant 0 : index
      %183 = vector.load %arg8[%c3_117, %c0_118, %c0_119] : memref<4x128x1xf32, #tpu.memory_space<vmem>>, vector<1x128x1xf32>
      %184 = vector.shape_cast %183 : vector<1x128x1xf32> to vector<128x1xf32>
      %185 = tpu.reciprocal %184 {approx = true} : vector<128x1xf32> -> vector<128x1xf32>
      %186 = vector.broadcast %185 : vector<128x1xf32> to vector<128x32xf32>
      %187 = arith.mulf %182, %186 : vector<128x32xf32>
      %188 = tpu.concatenate %166, %173, %180, %187 in 1 : vector<128x32xf32>, vector<128x32xf32>, vector<128x32xf32>, vector<128x32xf32> -> vector<128x128xf32>
      %189 = arith.truncf %188 : vector<128x128xf32> to vector<128x128xbf16>
      %c0_120 = arith.constant 0 : index
      %c0_121 = arith.constant 0 : index
      %c0_122 = arith.constant 0 : index
      %190 = vector.load %arg6[%c0_120, %c0_121, %c0_122] : memref<1x128x128xbf16, #tpu.memory_space<vmem>>, vector<1x128x128xbf16>
      %191 = vector.shape_cast %190 : vector<1x128x128xbf16> to vector<128x128xbf16>
      %192 = vector.shape_cast %189 : vector<128x128xbf16> to vector<1x128x128xbf16>
      tpu.vector_store %arg6[%c0_120, %c0_121, %c0_122], %192 {strides = array<i32>} : memref<1x128x128xbf16, #tpu.memory_space<vmem>>, vector<1x128x128xbf16>,
    } else {
    }
    return
  }
  func.func @transform_0(%arg0: i32, %arg1: i32, %arg2: i32) -> (i32, i32, i32) {
    %c0_i32 = arith.constant 0 : i32
    %c0_i32_0 = arith.constant 0 : i32
    return %arg0, %arg1, %c0_i32 : i32, i32, i32
  }
  func.func @transform_1(%arg0: i32, %arg1: i32, %arg2: i32) -> (i32, i32, i32) {
    %c0_i32 = arith.constant 0 : i32
    %c0_i32_0 = arith.constant 0 : i32
    return %arg0, %arg2, %c0_i32 : i32, i32, i32
  }
  func.func @transform_2(%arg0: i32, %arg1: i32, %arg2: i32) -> (i32, i32, i32) {
    %c0_i32 = arith.constant 0 : i32
    %c0_i32_0 = arith.constant 0 : i32
    return %arg0, %arg2, %c0_i32 : i32, i32, i32
  }
  func.func @transform_3(%arg0: i32, %arg1: i32, %arg2: i32) -> (i32, i32, i32) {
    %c0_i32 = arith.constant 0 : i32
    %c0_i32_0 = arith.constant 0 : i32
    return %arg0, %arg1, %c0_i32 : i32, i32, i32
  }
}

module attributes {stable_mosaic.version = 11 : i64} {
  func.func @_out_proj_ln_kernel(%arg0: i32, %arg1: memref<256x128xbf16, #tpu.memory_space<vmem>>, %arg2: memref<128x128xbf16, #tpu.memory_space<vmem>>, %arg3: memref<1x128xf32, #tpu.memory_space<vmem>>, %arg4: memref<256x128xf32, #tpu.memory_space<vmem>>, %arg5: memref<1x128xf32, #tpu.memory_space<vmem>>, %arg6: memref<1x128xf32, #tpu.memory_space<vmem>>, %arg7: memref<256x128xf32, #tpu.memory_space<vmem>>) attributes {dimension_semantics = [#tpu.dimension_semantics<parallel>], iteration_bounds = array<i64: 1>, scalar_prefetch = 0 : i64, scratch_operands = 0 : i64, tpu.core_type = #tpu.core_type<tc>, window_params = [{transform_indices = @transform_0, window_bounds = array<i64: 256, 128>}, {pipeline_mode = #tpu.pipeline_mode<synchronous>, transform_indices = @transform_1, window_bounds = array<i64: 128, 128>}, {pipeline_mode = #tpu.pipeline_mode<synchronous>, transform_indices = @transform_2, window_bounds = array<i64: 1, 128>}, {transform_indices = @transform_3, window_bounds = array<i64: 256, 128>}, {pipeline_mode = #tpu.pipeline_mode<synchronous>, transform_indices = @transform_4, window_bounds = array<i64: 1, 128>}, {pipeline_mode = #tpu.pipeline_mode<synchronous>, transform_indices = @transform_5, window_bounds = array<i64: 1, 128>}, {transform_indices = @transform_6, window_bounds = array<i64: 256, 128>}]} {
    %c0 = arith.constant 0 : index
    %c0_0 = arith.constant 0 : index
    %0 = vector.load %arg1[%c0, %c0_0] : memref<256x128xbf16, #tpu.memory_space<vmem>>, vector<256x128xbf16>
    %c0_1 = arith.constant 0 : index
    %c0_2 = arith.constant 0 : index
    %1 = vector.load %arg2[%c0_1, %c0_2] : memref<128x128xbf16, #tpu.memory_space<vmem>>, vector<128x128xbf16>
    %cst = arith.constant dense<0.000000e+00> : vector<256x128xf32>
    %2 = tpu.matmul %0, %1, %cst {dimension_numbers = #tpu.dot_dimension_numbers<[1], [0], [0], [1], [0, 0, 1, 1], [], []>} : vector<256x128xbf16>, vector<128x128xbf16>, vector<256x128xf32> -> vector<256x128xf32>
    %c0_3 = arith.constant 0 : index
    %c0_4 = arith.constant 0 : index
    %3 = vector.load %arg3[%c0_3, %c0_4] : memref<1x128xf32, #tpu.memory_space<vmem>>, vector<1x128xf32>
    %4 = vector.broadcast %3 : vector<1x128xf32> to vector<256x128xf32>
    %5 = arith.addf %2, %4 : vector<256x128xf32>
    %c0_5 = arith.constant 0 : index
    %c0_6 = arith.constant 0 : index
    %6 = vector.load %arg4[%c0_5, %c0_6] : memref<256x128xf32, #tpu.memory_space<vmem>>, vector<256x128xf32>
    %7 = arith.addf %5, %6 : vector<256x128xf32>
    %cst_7 = arith.constant dense<0.000000e+00> : vector<256xf32>
    %8 = vector.multi_reduction <add>, %7, %cst_7 [1] : vector<256x128xf32> to vector<256xf32>
    %9 = vector.shape_cast %8 : vector<256xf32> to vector<256x1xf32>
    %cst_8 = arith.constant 1.280000e+02 : f32
    %10 = vector.broadcast %cst_8 : f32 to vector<256x1xf32>
    %11 = arith.divf %9, %10 : vector<256x1xf32>
    %12 = vector.broadcast %11 : vector<256x1xf32> to vector<256x128xf32>
    %13 = arith.subf %7, %12 : vector<256x128xf32>
    %14 = arith.mulf %13, %13 : vector<256x128xf32>
    %cst_9 = arith.constant dense<0.000000e+00> : vector<256xf32>
    %15 = vector.multi_reduction <add>, %14, %cst_9 [1] : vector<256x128xf32> to vector<256xf32>
    %16 = vector.shape_cast %15 : vector<256xf32> to vector<256x1xf32>
    %cst_10 = arith.constant 1.280000e+02 : f32
    %17 = vector.broadcast %cst_10 : f32 to vector<256x1xf32>
    %18 = arith.divf %16, %17 : vector<256x1xf32>
    %cst_11 = arith.constant 9.99999974E-6 : f32
    %19 = vector.broadcast %cst_11 : f32 to vector<256x1xf32>
    %20 = arith.addf %18, %19 : vector<256x1xf32>
    %21 = math.rsqrt %20 : vector<256x1xf32>
    %22 = vector.broadcast %21 : vector<256x1xf32> to vector<256x128xf32>
    %23 = arith.mulf %13, %22 : vector<256x128xf32>
    %c0_12 = arith.constant 0 : index
    %c0_13 = arith.constant 0 : index
    %24 = vector.load %arg5[%c0_12, %c0_13] : memref<1x128xf32, #tpu.memory_space<vmem>>, vector<1x128xf32>
    %25 = vector.broadcast %24 : vector<1x128xf32> to vector<256x128xf32>
    %26 = arith.mulf %23, %25 : vector<256x128xf32>
    %c0_14 = arith.constant 0 : index
    %c0_15 = arith.constant 0 : index
    %27 = vector.load %arg6[%c0_14, %c0_15] : memref<1x128xf32, #tpu.memory_space<vmem>>, vector<1x128xf32>
    %28 = vector.broadcast %27 : vector<1x128xf32> to vector<256x128xf32>
    %29 = arith.addf %26, %28 : vector<256x128xf32>
    %c0_16 = arith.constant 0 : index
    %c0_17 = arith.constant 0 : index
    %30 = vector.load %arg7[%c0_16, %c0_17] : memref<256x128xf32, #tpu.memory_space<vmem>>, vector<256x128xf32>
    tpu.vector_store %arg7[%c0_16, %c0_17], %29 {strides = array<i32>} : memref<256x128xf32, #tpu.memory_space<vmem>>, vector<256x128xf32>,
    return
  }
  func.func @transform_0(%arg0: i32) -> (i32, i32) {
    %c0_i32 = arith.constant 0 : i32
    %c0_i32_0 = arith.constant 0 : i32
    return %arg0, %c0_i32 : i32, i32
  }
  func.func @transform_1(%arg0: i32) -> (i32, i32) {
    %c0_i32 = arith.constant 0 : i32
    %c0_i32_0 = arith.constant 0 : i32
    %c0_i32_1 = arith.constant 0 : i32
    return %c0_i32, %c0_i32_0 : i32, i32
  }
  func.func @transform_2(%arg0: i32) -> (i32, i32) {
    %c0_i32 = arith.constant 0 : i32
    %c0_i32_0 = arith.constant 0 : i32
    %c0_i32_1 = arith.constant 0 : i32
    return %c0_i32, %c0_i32_0 : i32, i32
  }
  func.func @transform_3(%arg0: i32) -> (i32, i32) {
    %c0_i32 = arith.constant 0 : i32
    %c0_i32_0 = arith.constant 0 : i32
    return %arg0, %c0_i32 : i32, i32
  }
  func.func @transform_4(%arg0: i32) -> (i32, i32) {
    %c0_i32 = arith.constant 0 : i32
    %c0_i32_0 = arith.constant 0 : i32
    %c0_i32_1 = arith.constant 0 : i32
    return %c0_i32, %c0_i32_0 : i32, i32
  }
  func.func @transform_5(%arg0: i32) -> (i32, i32) {
    %c0_i32 = arith.constant 0 : i32
    %c0_i32_0 = arith.constant 0 : i32
    %c0_i32_1 = arith.constant 0 : i32
    return %c0_i32, %c0_i32_0 : i32, i32
  }
  func.func @transform_6(%arg0: i32) -> (i32, i32) {
    %c0_i32 = arith.constant 0 : i32
    %c0_i32_0 = arith.constant 0 : i32
    return %arg0, %c0_i32 : i32, i32
  }
}

</mosaic_0001>

<llo_original>
// kernel: multi_head_attention.5
$region0: #{multi_head_attention.5}
  #allocation0 [shape = 'u32[]', space=smem, size = 0x4, offset = 0x4, fixed_abs, tag = 'smem constant byte address 0x4 - core index']
  #allocation1 [shape = 'u32[144,128]{1,0:T(1,128)}', space=vmem, size = 0x12000, scoped, tag = 'internal scratch']
  %s0 = inlined_call_operand.vmem [shape: bf16[256,128], index: 0, kind: input, shape index: {}]
  %s1 = inlined_call_operand.vmem [shape: bf16[128,128], index: 1, kind: input, shape index: {}]
  %s2 = inlined_call_operand.vmem [shape: f32[1,128], index: 2, kind: input, shape index: {}]
  %s3 = inlined_call_operand.vmem [shape: f32[256,128], index: 3, kind: input, shape index: {}]
  %s4 = inlined_call_operand.vmem [shape: f32[1,128], index: 4, kind: input, shape index: {}]
  %s5 = inlined_call_operand.vmem [shape: f32[1,128], index: 5, kind: input, shape index: {}]
  %s6 = inlined_call_operand.hbm [shape: f32[256,128], index: 6, kind: output, shape index: {}]
  %s7 = sld [smem:[#allocation0]]
  $region34: #{multi_head_attention.5} parent=0
    _
  %s9 = ssub.s32 1, %s7
  %s10 = scalar_select 0, %s9, %s7
  $region1: #{multi_head_attention.5} parent=0
    #allocation2 [shape = 'u8[131072]{0}', space=vmem, size = 0x20000, scoped, tag = 'output window, operand 0, single buffered']
    #allocation3 [shape = 's32[1]{0}', space=sflag, size = 0x4, scoped, tag = 'scoped memory for multi_head_attention.5']
    %11 = vsyncpa [#allocation3], 0
    // Predicated region
    $region2: #{multi_head_attention.5} parent=1 // pred_check
      _
    $region3: #{multi_head_attention.5} parent=1 // pred_check_branch
      %13 = sbr.rel (0) target = $region5
    $region4: #{multi_head_attention.5} parent=1 // pred_region
      _
    $region5: #{multi_head_attention.5} parent=1 // pred_fallthru
      _
    // Predicated region
    $region6: #{multi_head_attention.5} parent=1 // pred_check
      _
    $region7: #{multi_head_attention.5} parent=1 // pred_check_branch
      %15 = sbr.rel (0) target = $region9
    $region8: #{multi_head_attention.5} parent=1 // pred_region
      _
    $region9: #{multi_head_attention.5} parent=1 // pred_fallthru
      _
    // Predicated region
    $region10: #{multi_head_attention.5} parent=1 // pred_check
      _
    $region11: #{multi_head_attention.5} parent=1 // pred_check_branch
      %17 = sbr.rel (0) target = $region13
    $region12: #{multi_head_attention.5} parent=1 // pred_region
      _
    $region13: #{multi_head_attention.5} parent=1 // pred_fallthru
      _
    // Predicated region
    $region14: #{multi_head_attention.5} parent=1 // pred_check
      _
    $region15: #{multi_head_attention.5} parent=1 // pred_check_branch
      %19 = sbr.rel (0) target = $region17
    $region16: #{multi_head_attention.5} parent=1 // pred_region
      _
    $region17: #{multi_head_attention.5} parent=1 // pred_fallthru
      _
    // Predicated region
    $region18: #{multi_head_attention.5} parent=1 // pred_check
      _
    $region19: #{multi_head_attention.5} parent=1 // pred_check_branch
      %21 = sbr.rel (0) target = $region21
    $region20: #{multi_head_attention.5} parent=1 // pred_region
      _
    $region21: #{multi_head_attention.5} parent=1 // pred_fallthru
      _
    // Predicated region
    $region22: #{multi_head_attention.5} parent=1 // pred_check
      _
    $region23: #{multi_head_attention.5} parent=1 // pred_check_branch
      %23 = sbr.rel (0) target = $region25
    $region24: #{multi_head_attention.5} parent=1 // pred_region
      _
    $region25: #{multi_head_attention.5} parent=1 // pred_fallthru
      _
    %v25 = vld [vmem:[%s0] sm:$0xf]
    %v26 = vld [vmem:[%s0 + $0x4] sm:$0xf]
    %v27 = vld [vmem:[%s0 + $0x8] sm:$0xf]
    %v28 = vld [vmem:[%s0 + $0xc] sm:$0xf]
    %v29 = vld [vmem:[%s0 + $0x10] sm:$0xf]
    %v30 = vld [vmem:[%s0 + $0x14] sm:$0xf]
    %v31 = vld [vmem:[%s0 + $0x18] sm:$0xf]
    %v32 = vld [vmem:[%s0 + $0x1c] sm:$0xf]
    %v33 = vld [vmem:[%s0 + $0x20] sm:$0xf]
    %v34 = vld [vmem:[%s0 + $0x24] sm:$0xf]
    %v35 = vld [vmem:[%s0 + $0x28] sm:$0xf]
    %v36 = vld [vmem:[%s0 + $0x2c] sm:$0xf]
    %v37 = vld [vmem:[%s0 + $0x30] sm:$0xf]
    %v38 = vld [vmem:[%s0 + $0x34] sm:$0xf]
    %v39 = vld [vmem:[%s0 + $0x38] sm:$0xf]
    %v40 = vld [vmem:[%s0 + $0x3c] sm:$0xf]
    %v41 = vld [vmem:[%s0 + $0x40] sm:$0xf]
    %v42 = vld [vmem:[%s0 + $0x44] sm:$0xf]
    %v43 = vld [vmem:[%s0 + $0x48] sm:$0xf]
    %v44 = vld [vmem:[%s0 + $0x4c] sm:$0xf]
    %v45 = vld [vmem:[%s0 + $0x50] sm:$0xf]
    %v46 = vld [vmem:[%s0 + $0x54] sm:$0xf]
    %v47 = vld [vmem:[%s0 + $0x58] sm:$0xf]
    %v48 = vld [vmem:[%s0 + $0x5c] sm:$0xf]
    %v49 = vld [vmem:[%s0 + $0x60] sm:$0xf]
    %v50 = vld [vmem:[%s0 + $0x64] sm:$0xf]
    %v51 = vld [vmem:[%s0 + $0x68] sm:$0xf]
    %v52 = vld [vmem:[%s0 + $0x6c] sm:$0xf]
    %v53 = vld [vmem:[%s0 + $0x70] sm:$0xf]
    %v54 = vld [vmem:[%s0 + $0x74] sm:$0xf]
    %v55 = vld [vmem:[%s0 + $0x78] sm:$0xf]
    %v56 = vld [vmem:[%s0 + $0x7c] sm:$0xf]
    %v57 = vld [vmem:[%s1] sm:$0xf]
    %v58 = vld [vmem:[%s1 + $0x4] sm:$0xf]
    %v59 = vld [vmem:[%s1 + $0x8] sm:$0xf]
    %v60 = vld [vmem:[%s1 + $0xc] sm:$0xf]
    %v61 = vld [vmem:[%s1 + $0x10] sm:$0xf]
    %v62 = vld [vmem:[%s1 + $0x14] sm:$0xf]
    %v63 = vld [vmem:[%s1 + $0x18] sm:$0xf]
    %v64 = vld [vmem:[%s1 + $0x1c] sm:$0xf]
    %v65 = vld [vmem:[%s1 + $0x20] sm:$0xf]
    %v66 = vld [vmem:[%s1 + $0x24] sm:$0xf]
    %v67 = vld [vmem:[%s1 + $0x28] sm:$0xf]
    %v68 = vld [vmem:[%s1 + $0x2c] sm:$0xf]
    %v69 = vld [vmem:[%s1 + $0x30] sm:$0xf]
    %v70 = vld [vmem:[%s1 + $0x34] sm:$0xf]
    %v71 = vld [vmem:[%s1 + $0x38] sm:$0xf]
    %v72 = vld [vmem:[%s1 + $0x3c] sm:$0xf]
    %v73 = vld [vmem:[%s2] sm:$0x1]
    %v75 = vlaneseq
    %v76 = vshrl.u32 %v75, 7
    %v77 = vsub.s32 0, %v76
    %v78 = vrot.slane %v73, %v77
    %v112 = vunpack.c.l.b16 %v25
    %v113 = vunpack.c.l.b16 %v26
    %v114 = vunpack.c.l.b16 %v27
    %v115 = vunpack.c.l.b16 %v28
    %v116 = vunpack.c.l.b16 %v29
    %v117 = vunpack.c.l.b16 %v30
    %v118 = vunpack.c.l.b16 %v31
    %v119 = vunpack.c.l.b16 %v32
    %v120 = vunpack.c.l.b16 %v33
    %v121 = vunpack.c.l.b16 %v34
    %v122 = vunpack.c.l.b16 %v35
    %v123 = vunpack.c.l.b16 %v36
    %v124 = vunpack.c.l.b16 %v37
    %v125 = vunpack.c.l.b16 %v38
    %v126 = vunpack.c.l.b16 %v39
    %v127 = vunpack.c.l.b16 %v40
    %v128 = vunpack.c.l.b16 %v41
    %v129 = vunpack.c.l.b16 %v42
    %v130 = vunpack.c.l.b16 %v43
    %v131 = vunpack.c.l.b16 %v44
    %v132 = vunpack.c.l.b16 %v45
    %v133 = vunpack.c.l.b16 %v46
    %v134 = vunpack.c.l.b16 %v47
    %v135 = vunpack.c.l.b16 %v48
    %v136 = vunpack.c.l.b16 %v49
    %v137 = vunpack.c.l.b16 %v50
    %v138 = vunpack.c.l.b16 %v51
    %v139 = vunpack.c.l.b16 %v52
    %v140 = vunpack.c.l.b16 %v53
    %v141 = vunpack.c.l.b16 %v54
    %v142 = vunpack.c.l.b16 %v55
    %v143 = vunpack.c.l.b16 %v56
    %v144 = vpack.c.b16 %v113, %v112
    %v145 = vpack.c.b16 %v115, %v114
    %v146 = vpack.c.b16 %v117, %v116
    %v147 = vpack.c.b16 %v119, %v118
    %v148 = vpack.c.b16 %v121, %v120
    %v149 = vpack.c.b16 %v123, %v122
    %v150 = vpack.c.b16 %v125, %v124
    %v151 = vpack.c.b16 %v127, %v126
    %v152 = vpack.c.b16 %v129, %v128
    %v153 = vpack.c.b16 %v131, %v130
    %v154 = vpack.c.b16 %v133, %v132
    %v155 = vpack.c.b16 %v135, %v134
    %v156 = vpack.c.b16 %v137, %v136
    %v157 = vpack.c.b16 %v139, %v138
    %v158 = vpack.c.b16 %v141, %v140
    %v159 = vpack.c.b16 %v143, %v142
    %v192 = vunpack.c.l.b16 %v57
    %v193 = vunpack.c.l.b16 %v58
    %v194 = vunpack.c.l.b16 %v59
    %v195 = vunpack.c.l.b16 %v60
    %v196 = vunpack.c.l.b16 %v61
    %v197 = vunpack.c.l.b16 %v62
    %v198 = vunpack.c.l.b16 %v63
    %v199 = vunpack.c.l.b16 %v64
    %v200 = vunpack.c.l.b16 %v65
    %v201 = vunpack.c.l.b16 %v66
    %v202 = vunpack.c.l.b16 %v67
    %v203 = vunpack.c.l.b16 %v68
    %v204 = vunpack.c.l.b16 %v69
    %v205 = vunpack.c.l.b16 %v70
    %v206 = vunpack.c.l.b16 %v71
    %v207 = vunpack.c.l.b16 %v72
    %v208 = vpack.c.b16 %v193, %v192
    %v209 = vpack.c.b16 %v195, %v194
    %v210 = vpack.c.b16 %v197, %v196
    %v211 = vpack.c.b16 %v199, %v198
    %v212 = vpack.c.b16 %v201, %v200
    %v213 = vpack.c.b16 %v203, %v202
    %v214 = vpack.c.b16 %v205, %v204
    %v215 = vpack.c.b16 %v207, %v206
    %224 = vmatprep.subr.bf16.mxu0 0
    %225 = vmatpush1.bf16.msra.mxu0 %v208
    %226 = vmatprep.subr.bf16.mxu0 0
    %227 = vmatpush1.bf16.msra.mxu0 %v209
    %228 = vmatprep.subr.bf16.mxu0 0
    %229 = vmatpush1.bf16.msra.mxu0 %v210
    %230 = vmatprep.subr.bf16.mxu0 0
    %231 = vmatpush1.bf16.msra.mxu0 %v211
    %232 = vmatprep.subr.bf16.mxu0 0
    %233 = vmatpush1.bf16.msra.mxu0 %v212
    %234 = vmatprep.subr.bf16.mxu0 0
    %235 = vmatpush1.bf16.msra.mxu0 %v213
    %236 = vmatprep.subr.bf16.mxu0 0
    %237 = vmatpush1.bf16.msra.mxu0 %v214
    %238 = vmatprep.subr.bf16.mxu0 0
    %239 = vmatpush1.bf16.msra.mxu0 %v215
    %240 = vmatprep.subr.bf16.mxu0 0
    %241 = vmatpush1.bf16.msra.mxu0 0
    %242 = vmatprep.subr.bf16.mxu0 0
    %243 = vmatpush1.bf16.msra.mxu0 0
    %244 = vmatprep.subr.bf16.mxu0 0
    %245 = vmatpush1.bf16.msra.mxu0 0
    %246 = vmatprep.subr.bf16.mxu0 0
    %247 = vmatpush1.bf16.msra.mxu0 0
    %248 = vmatprep.subr.bf16.mxu0 0
    %249 = vmatpush1.bf16.msra.mxu0 0
    %250 = vmatprep.subr.bf16.mxu0 0
    %251 = vmatpush1.bf16.msra.mxu0 0
    %252 = vmatprep.subr.bf16.mxu0 0
    %253 = vmatpush1.bf16.msra.mxu0 0
    %254 = vmatprep.subr.bf16.mxu0 0
    %255 = vmatpush1.bf16.msra.mxu0 0
    %256 = vmatprep.mubr.bf16.mxu0 0
    %257 = vmatmul.mubr.bf16.gmra.mrb[0].mxu0 %v144
    %v258 = vpop.f32.mrb[0].mxu0
    %v259 = vadd.f32 %v78, %v258
    %v260 = vpop.f32.mrb[0].mxu0
    %v261 = vpop.f32.mrb[0].mxu0
    %v262 = vadd.f32 %v78, %v261
    %v263 = vpop.f32.mrb[0].mxu0
    %264 = vmatprep.mubr.bf16.mxu0 0
    %265 = vmatmul.mubr.bf16.gmra.mrb[0].mxu0 %v145
    %v266 = vpop.f32.mrb[0].mxu0
    %v267 = vadd.f32 %v78, %v266
    %v268 = vpop.f32.mrb[0].mxu0
    %v269 = vpop.f32.mrb[0].mxu0
    %v270 = vadd.f32 %v78, %v269
    %v271 = vpop.f32.mrb[0].mxu0
    %272 = vmatprep.mubr.bf16.mxu0 0
    %273 = vmatmul.mubr.bf16.gmra.mrb[0].mxu0 %v146
    %v274 = vpop.f32.mrb[0].mxu0
    %v275 = vadd.f32 %v78, %v274
    %v276 = vpop.f32.mrb[0].mxu0
    %v277 = vpop.f32.mrb[0].mxu0
    %v278 = vadd.f32 %v78, %v277
    %v279 = vpop.f32.mrb[0].mxu0
    %280 = vmatprep.mubr.bf16.mxu0 0
    %281 = vmatmul.mubr.bf16.gmra.mrb[0].mxu0 %v147
    %v282 = vpop.f32.mrb[0].mxu0
    %v283 = vadd.f32 %v78, %v282
    %v284 = vpop.f32.mrb[0].mxu0
    %v285 = vpop.f32.mrb[0].mxu0
    %v286 = vadd.f32 %v78, %v285
    %v287 = vpop.f32.mrb[0].mxu0
    %288 = vmatprep.mubr.bf16.mxu0 0
    %289 = vmatmul.mubr.bf16.gmra.mrb[0].mxu0 %v148
    %v290 = vpop.f32.mrb[0].mxu0
    %v291 = vadd.f32 %v78, %v290
    %v292 = vpop.f32.mrb[0].mxu0
    %v293 = vpop.f32.mrb[0].mxu0
    %v294 = vadd.f32 %v78, %v293
    %v295 = vpop.f32.mrb[0].mxu0
    %296 = vmatprep.mubr.bf16.mxu0 0
    %297 = vmatmul.mubr.bf16.gmra.mrb[0].mxu0 %v149
    %v298 = vpop.f32.mrb[0].mxu0
    %v299 = vadd.f32 %v78, %v298
    %v300 = vpop.f32.mrb[0].mxu0
    %v301 = vpop.f32.mrb[0].mxu0
    %v302 = vadd.f32 %v78, %v301
    %v303 = vpop.f32.mrb[0].mxu0
    %304 = vmatprep.mubr.bf16.mxu0 0
    %305 = vmatmul.mubr.bf16.gmra.mrb[0].mxu0 %v150
    %v306 = vpop.f32.mrb[0].mxu0
    %v307 = vadd.f32 %v78, %v306
    %v308 = vpop.f32.mrb[0].mxu0
    %v309 = vpop.f32.mrb[0].mxu0
    %v310 = vadd.f32 %v78, %v309
    %v311 = vpop.f32.mrb[0].mxu0
    %312 = vmatprep.mubr.bf16.mxu0 0
    %313 = vmatmul.mubr.bf16.gmra.mrb[0].mxu0 %v151
    %v314 = vpop.f32.mrb[0].mxu0
    %v315 = vadd.f32 %v78, %v314
    %v316 = vpop.f32.mrb[0].mxu0
    %v317 = vpop.f32.mrb[0].mxu0
    %v318 = vadd.f32 %v78, %v317
    %v319 = vpop.f32.mrb[0].mxu0
    %320 = vmatprep.mubr.bf16.mxu0 0
    %321 = vmatmul.mubr.bf16.gmra.mrb[0].mxu0 %v152
    %v322 = vpop.f32.mrb[0].mxu0
    %v323 = vadd.f32 %v78, %v322
    %v324 = vpop.f32.mrb[0].mxu0
    %v325 = vpop.f32.mrb[0].mxu0
    %v326 = vadd.f32 %v78, %v325
    %v327 = vpop.f32.mrb[0].mxu0
    %328 = vmatprep.mubr.bf16.mxu0 0
    %329 = vmatmul.mubr.bf16.gmra.mrb[0].mxu0 %v153
    %v330 = vpop.f32.mrb[0].mxu0
    %v331 = vadd.f32 %v78, %v330
    %v332 = vpop.f32.mrb[0].mxu0
    %v333 = vpop.f32.mrb[0].mxu0
    %v334 = vadd.f32 %v78, %v333
    %v335 = vpop.f32.mrb[0].mxu0
    %336 = vmatprep.mubr.bf16.mxu0 0
    %337 = vmatmul.mubr.bf16.gmra.mrb[0].mxu0 %v154
    %v338 = vpop.f32.mrb[0].mxu0
    %v339 = vadd.f32 %v78, %v338
    %v340 = vpop.f32.mrb[0].mxu0
    %v341 = vpop.f32.mrb[0].mxu0
    %v342 = vadd.f32 %v78, %v341
    %v343 = vpop.f32.mrb[0].mxu0
    %344 = vmatprep.mubr.bf16.mxu0 0
    %345 = vmatmul.mubr.bf16.gmra.mrb[0].mxu0 %v155
    %v346 = vpop.f32.mrb[0].mxu0
    %v347 = vadd.f32 %v78, %v346
    %v348 = vpop.f32.mrb[0].mxu0
    %v349 = vpop.f32.mrb[0].mxu0
    %v350 = vadd.f32 %v78, %v349
    %v351 = vpop.f32.mrb[0].mxu0
    %352 = vmatprep.mubr.bf16.mxu0 0
    %353 = vmatmul.mubr.bf16.gmra.mrb[0].mxu0 %v156
    %v354 = vpop.f32.mrb[0].mxu0
    %v355 = vadd.f32 %v78, %v354
    %v356 = vpop.f32.mrb[0].mxu0
    %v357 = vpop.f32.mrb[0].mxu0
    %v358 = vadd.f32 %v78, %v357
    %v359 = vpop.f32.mrb[0].mxu0
    %360 = vmatprep.mubr.bf16.mxu0 0
    %361 = vmatmul.mubr.bf16.gmra.mrb[0].mxu0 %v157
    %v362 = vpop.f32.mrb[0].mxu0
    %v363 = vadd.f32 %v78, %v362
    %v364 = vpop.f32.mrb[0].mxu0
    %v365 = vpop.f32.mrb[0].mxu0
    %v366 = vadd.f32 %v78, %v365
    %v367 = vpop.f32.mrb[0].mxu0
    %368 = vmatprep.mubr.bf16.mxu0 0
    %369 = vmatmul.mubr.bf16.gmra.mrb[0].mxu0 %v158
    %v370 = vpop.f32.mrb[0].mxu0
    %v371 = vadd.f32 %v78, %v370
    %v372 = vpop.f32.mrb[0].mxu0
    %v373 = vpop.f32.mrb[0].mxu0
    %v374 = vadd.f32 %v78, %v373
    %v375 = vpop.f32.mrb[0].mxu0
    %376 = vmatprep.mubr.bf16.mxu0 0
    %377 = vmatmul.mubr.bf16.gmra.mrb[0].mxu0 %v159
    %v378 = vpop.f32.mrb[0].mxu0
    %v379 = vadd.f32 %v78, %v378
    %v380 = vpop.f32.mrb[0].mxu0
    %v381 = vpop.f32.mrb[0].mxu0
    %v382 = vadd.f32 %v78, %v381
    %v383 = vpop.f32.mrb[0].mxu0
    %384 = vdwg.mxu0
    %v385 = vld [vmem:[%s3] sm:$0xff]
    %v386 = vld [vmem:[%s3 + $0x8] sm:$0xff]
    %v387 = vld [vmem:[%s3 + $0x10] sm:$0xff]
    %v388 = vld [vmem:[%s3 + $0x18] sm:$0xff]
    %v389 = vld [vmem:[%s3 + $0x20] sm:$0xff]
    %v390 = vld [vmem:[%s3 + $0x28] sm:$0xff]
    %v391 = vld [vmem:[%s3 + $0x30] sm:$0xff]
    %v392 = vld [vmem:[%s3 + $0x38] sm:$0xff]
    %v393 = vld [vmem:[%s3 + $0x40] sm:$0xff]
    %v394 = vld [vmem:[%s3 + $0x48] sm:$0xff]
    %v395 = vld [vmem:[%s3 + $0x50] sm:$0xff]
    %v396 = vld [vmem:[%s3 + $0x58] sm:$0xff]
    %v397 = vld [vmem:[%s3 + $0x60] sm:$0xff]
    %v398 = vld [vmem:[%s3 + $0x68] sm:$0xff]
    %v399 = vld [vmem:[%s3 + $0x70] sm:$0xff]
    %v400 = vld [vmem:[%s3 + $0x78] sm:$0xff]
    %v401 = vld [vmem:[%s3 + $0x80] sm:$0xff]
    %v402 = vld [vmem:[%s3 + $0x88] sm:$0xff]
    %v403 = vld [vmem:[%s3 + $0x90] sm:$0xff]
    %v404 = vld [vmem:[%s3 + $0x98] sm:$0xff]
    %v405 = vld [vmem:[%s3 + $0xa0] sm:$0xff]
    %v406 = vld [vmem:[%s3 + $0xa8] sm:$0xff]
    %v407 = vld [vmem:[%s3 + $0xb0] sm:$0xff]
    %v408 = vld [vmem:[%s3 + $0xb8] sm:$0xff]
    %v409 = vld [vmem:[%s3 + $0xc0] sm:$0xff]
    %v410 = vld [vmem:[%s3 + $0xc8] sm:$0xff]
    %v411 = vld [vmem:[%s3 + $0xd0] sm:$0xff]
    %v412 = vld [vmem:[%s3 + $0xd8] sm:$0xff]
    %v413 = vld [vmem:[%s3 + $0xe0] sm:$0xff]
    %v414 = vld [vmem:[%s3 + $0xe8] sm:$0xff]
    %v415 = vld [vmem:[%s3 + $0xf0] sm:$0xff]
    %v416 = vld [vmem:[%s3 + $0xf8] sm:$0xff]
    %v417 = vadd.f32 %v259, %v385
    %v418 = vadd.f32 %v262, %v386
    %v419 = vadd.f32 %v267, %v387
    %v420 = vadd.f32 %v270, %v388
    %v421 = vadd.f32 %v275, %v389
    %v422 = vadd.f32 %v278, %v390
    %v423 = vadd.f32 %v283, %v391
    %v424 = vadd.f32 %v286, %v392
    %v425 = vadd.f32 %v291, %v393
    %v426 = vadd.f32 %v294, %v394
    %v427 = vadd.f32 %v299, %v395
    %v428 = vadd.f32 %v302, %v396
    %v429 = vadd.f32 %v307, %v397
    %v430 = vadd.f32 %v310, %v398
    %v431 = vadd.f32 %v315, %v399
    %v432 = vadd.f32 %v318, %v400
    %v433 = vadd.f32 %v323, %v401
    %v434 = vadd.f32 %v326, %v402
    %v435 = vadd.f32 %v331, %v403
    %v436 = vadd.f32 %v334, %v404
    %v437 = vadd.f32 %v339, %v405
    %v438 = vadd.f32 %v342, %v406
    %v439 = vadd.f32 %v347, %v407
    %v440 = vadd.f32 %v350, %v408
    %v441 = vadd.f32 %v355, %v409
    %v442 = vadd.f32 %v358, %v410
    %v443 = vadd.f32 %v363, %v411
    %v444 = vadd.f32 %v366, %v412
    %v445 = vadd.f32 %v371, %v413
    %v446 = vadd.f32 %v374, %v414
    %v447 = vadd.f32 %v379, %v415
    %v448 = vadd.f32 %v382, %v416
    %449 = vadd.xlane.f32.xlu0 %v417
    %v450 = vpop.xlane.xlu0 %449
    %451 = vadd.xlane.f32.xlu0 %v418
    %v452 = vpop.xlane.xlu0 %451
    %453 = vadd.xlane.f32.xlu0 %v419
    %v454 = vpop.xlane.xlu0 %453
    %455 = vadd.xlane.f32.xlu0 %v420
    %v456 = vpop.xlane.xlu0 %455
    %457 = vadd.xlane.f32.xlu0 %v421
    %v458 = vpop.xlane.xlu0 %457
    %459 = vadd.xlane.f32.xlu0 %v422
    %v460 = vpop.xlane.xlu0 %459
    %461 = vadd.xlane.f32.xlu0 %v423
    %v462 = vpop.xlane.xlu0 %461
    %463 = vadd.xlane.f32.xlu0 %v424
    %v464 = vpop.xlane.xlu0 %463
    %465 = vadd.xlane.f32.xlu0 %v425
    %v466 = vpop.xlane.xlu0 %465
    %467 = vadd.xlane.f32.xlu0 %v426
    %v468 = vpop.xlane.xlu0 %467
    %469 = vadd.xlane.f32.xlu0 %v427
    %v470 = vpop.xlane.xlu0 %469
    %471 = vadd.xlane.f32.xlu0 %v428
    %v472 = vpop.xlane.xlu0 %471
    %473 = vadd.xlane.f32.xlu0 %v429
    %v474 = vpop.xlane.xlu0 %473
    %475 = vadd.xlane.f32.xlu0 %v430
    %v476 = vpop.xlane.xlu0 %475
    %477 = vadd.xlane.f32.xlu0 %v431
    %v478 = vpop.xlane.xlu0 %477
    %479 = vadd.xlane.f32.xlu0 %v432
    %v480 = vpop.xlane.xlu0 %479
    %481 = vadd.xlane.f32.xlu0 %v433
    %v482 = vpop.xlane.xlu0 %481
    %483 = vadd.xlane.f32.xlu0 %v434
    %v484 = vpop.xlane.xlu0 %483
    %485 = vadd.xlane.f32.xlu0 %v435
    %v486 = vpop.xlane.xlu0 %485
    %487 = vadd.xlane.f32.xlu0 %v436
    %v488 = vpop.xlane.xlu0 %487
    %489 = vadd.xlane.f32.xlu0 %v437
    %v490 = vpop.xlane.xlu0 %489
    %491 = vadd.xlane.f32.xlu0 %v438
    %v492 = vpop.xlane.xlu0 %491
    %493 = vadd.xlane.f32.xlu0 %v439
    %v494 = vpop.xlane.xlu0 %493
    %495 = vadd.xlane.f32.xlu0 %v440
    %v496 = vpop.xlane.xlu0 %495
    %497 = vadd.xlane.f32.xlu0 %v441
    %v498 = vpop.xlane.xlu0 %497
    %499 = vadd.xlane.f32.xlu0 %v442
    %v500 = vpop.xlane.xlu0 %499
    %501 = vadd.xlane.f32.xlu0 %v443
    %v502 = vpop.xlane.xlu0 %501
    %503 = vadd.xlane.f32.xlu0 %v444
    %v504 = vpop.xlane.xlu0 %503
    %505 = vadd.xlane.f32.xlu0 %v445
    %v506 = vpop.xlane.xlu0 %505
    %507 = vadd.xlane.f32.xlu0 %v446
    %v508 = vpop.xlane.xlu0 %507
    %509 = vadd.xlane.f32.xlu0 %v447
    %v510 = vpop.xlane.xlu0 %509
    %511 = vadd.xlane.f32.xlu0 %v448
    %v512 = vpop.xlane.xlu0 %511
    %v513 = vrcp.pop 128.0
    %v514 = vmul.f32 %v450, %v513
    %v515 = vmul.f32 %v452, %v513
    %v516 = vmul.f32 %v454, %v513
    %v517 = vmul.f32 %v456, %v513
    %v518 = vmul.f32 %v458, %v513
    %v519 = vmul.f32 %v460, %v513
    %v520 = vmul.f32 %v462, %v513
    %v521 = vmul.f32 %v464, %v513
    %v522 = vmul.f32 %v466, %v513
    %v523 = vmul.f32 %v468, %v513
    %v524 = vmul.f32 %v470, %v513
    %v525 = vmul.f32 %v472, %v513
    %v526 = vmul.f32 %v474, %v513
    %v527 = vmul.f32 %v476, %v513
    %v528 = vmul.f32 %v478, %v513
    %v529 = vmul.f32 %v480, %v513
    %v530 = vmul.f32 %v482, %v513
    %v531 = vmul.f32 %v484, %v513
    %v532 = vmul.f32 %v486, %v513
    %v533 = vmul.f32 %v488, %v513
    %v534 = vmul.f32 %v490, %v513
    %v535 = vmul.f32 %v492, %v513
    %v536 = vmul.f32 %v494, %v513
    %v537 = vmul.f32 %v496, %v513
    %v538 = vmul.f32 %v498, %v513
    %v539 = vmul.f32 %v500, %v513
    %v540 = vmul.f32 %v502, %v513
    %v541 = vmul.f32 %v504, %v513
    %v542 = vmul.f32 %v506, %v513
    %v543 = vmul.f32 %v508, %v513
    %v544 = vmul.f32 %v510, %v513
    %v545 = vmul.f32 %v512, %v513
    %v546 = vsub.f32 %v417, %v514
    %v547 = vsub.f32 %v418, %v515
    %v548 = vsub.f32 %v419, %v516
    %v549 = vsub.f32 %v420, %v517
    %v550 = vsub.f32 %v421, %v518
    %v551 = vsub.f32 %v422, %v519
    %v552 = vsub.f32 %v423, %v520
    %v553 = vsub.f32 %v424, %v521
    %v554 = vsub.f32 %v425, %v522
    %v555 = vsub.f32 %v426, %v523
    %v556 = vsub.f32 %v427, %v524
    %v557 = vsub.f32 %v428, %v525
    %v558 = vsub.f32 %v429, %v526
    %v559 = vsub.f32 %v430, %v527
    %v560 = vsub.f32 %v431, %v528
    %v561 = vsub.f32 %v432, %v529
    %v562 = vsub.f32 %v433, %v530
    %v563 = vsub.f32 %v434, %v531
    %v564 = vsub.f32 %v435, %v532
    %v565 = vsub.f32 %v436, %v533
    %v566 = vsub.f32 %v437, %v534
    %v567 = vsub.f32 %v438, %v535
    %v568 = vsub.f32 %v439, %v536
    %v569 = vsub.f32 %v440, %v537
    %v570 = vsub.f32 %v441, %v538
    %v571 = vsub.f32 %v442, %v539
    %v572 = vsub.f32 %v443, %v540
    %v573 = vsub.f32 %v444, %v541
    %v574 = vsub.f32 %v445, %v542
    %v575 = vsub.f32 %v446, %v543
    %v576 = vsub.f32 %v447, %v544
    %v577 = vsub.f32 %v448, %v545
    %v578 = vmul.f32 %v546, %v546
    %v579 = vmul.f32 %v547, %v547
    %v580 = vmul.f32 %v548, %v548
    %v581 = vmul.f32 %v549, %v549
    %v582 = vmul.f32 %v550, %v550
    %v583 = vmul.f32 %v551, %v551
    %v584 = vmul.f32 %v552, %v552
    %v585 = vmul.f32 %v553, %v553
    %v586 = vmul.f32 %v554, %v554
    %v587 = vmul.f32 %v555, %v555
    %v588 = vmul.f32 %v556, %v556
    %v589 = vmul.f32 %v557, %v557
    %v590 = vmul.f32 %v558, %v558
    %v591 = vmul.f32 %v559, %v559
    %v592 = vmul.f32 %v560, %v560
    %v593 = vmul.f32 %v561, %v561
    %v594 = vmul.f32 %v562, %v562
    %v595 = vmul.f32 %v563, %v563
    %v596 = vmul.f32 %v564, %v564
    %v597 = vmul.f32 %v565, %v565
    %v598 = vmul.f32 %v566, %v566
    %v599 = vmul.f32 %v567, %v567
    %v600 = vmul.f32 %v568, %v568
    %v601 = vmul.f32 %v569, %v569
    %v602 = vmul.f32 %v570, %v570
    %v603 = vmul.f32 %v571, %v571
    %v604 = vmul.f32 %v572, %v572
    %v605 = vmul.f32 %v573, %v573
    %v606 = vmul.f32 %v574, %v574
    %v607 = vmul.f32 %v575, %v575
    %v608 = vmul.f32 %v576, %v576
    %v609 = vmul.f32 %v577, %v577
    %610 = vadd.xlane.f32.xlu0 %v578
    %v611 = vpop.xlane.xlu0 %610
    %612 = vadd.xlane.f32.xlu0 %v579
    %v613 = vpop.xlane.xlu0 %612
    %614 = vadd.xlane.f32.xlu0 %v580
    %v615 = vpop.xlane.xlu0 %614
    %616 = vadd.xlane.f32.xlu0 %v581
    %v617 = vpop.xlane.xlu0 %616
    %618 = vadd.xlane.f32.xlu0 %v582
    %v619 = vpop.xlane.xlu0 %618
    %620 = vadd.xlane.f32.xlu0 %v583
    %v621 = vpop.xlane.xlu0 %620
    %622 = vadd.xlane.f32.xlu0 %v584
    %v623 = vpop.xlane.xlu0 %622
    %624 = vadd.xlane.f32.xlu0 %v585
    %v625 = vpop.xlane.xlu0 %624
    %626 = vadd.xlane.f32.xlu0 %v586
    %v627 = vpop.xlane.xlu0 %626
    %628 = vadd.xlane.f32.xlu0 %v587
    %v629 = vpop.xlane.xlu0 %628
    %630 = vadd.xlane.f32.xlu0 %v588
    %v631 = vpop.xlane.xlu0 %630
    %632 = vadd.xlane.f32.xlu0 %v589
    %v633 = vpop.xlane.xlu0 %632
    %634 = vadd.xlane.f32.xlu0 %v590
    %v635 = vpop.xlane.xlu0 %634
    %636 = vadd.xlane.f32.xlu0 %v591
    %v637 = vpop.xlane.xlu0 %636
    %638 = vadd.xlane.f32.xlu0 %v592
    %v639 = vpop.xlane.xlu0 %638
    %640 = vadd.xlane.f32.xlu0 %v593
    %v641 = vpop.xlane.xlu0 %640
    %642 = vadd.xlane.f32.xlu0 %v594
    %v643 = vpop.xlane.xlu0 %642
    %644 = vadd.xlane.f32.xlu0 %v595
    %v645 = vpop.xlane.xlu0 %644
    %646 = vadd.xlane.f32.xlu0 %v596
    %v647 = vpop.xlane.xlu0 %646
    %648 = vadd.xlane.f32.xlu0 %v597
    %v649 = vpop.xlane.xlu0 %648
    %650 = vadd.xlane.f32.xlu0 %v598
    %v651 = vpop.xlane.xlu0 %650
    %652 = vadd.xlane.f32.xlu0 %v599
    %v653 = vpop.xlane.xlu0 %652
    %654 = vadd.xlane.f32.xlu0 %v600
    %v655 = vpop.xlane.xlu0 %654
    %656 = vadd.xlane.f32.xlu0 %v601
    %v657 = vpop.xlane.xlu0 %656
    %658 = vadd.xlane.f32.xlu0 %v602
    %v659 = vpop.xlane.xlu0 %658
    %660 = vadd.xlane.f32.xlu0 %v603
    %v661 = vpop.xlane.xlu0 %660
    %662 = vadd.xlane.f32.xlu0 %v604
    %v663 = vpop.xlane.xlu0 %662
    %664 = vadd.xlane.f32.xlu0 %v605
    %v665 = vpop.xlane.xlu0 %664
    %666 = vadd.xlane.f32.xlu0 %v606
    %v667 = vpop.xlane.xlu0 %666
    %668 = vadd.xlane.f32.xlu0 %v607
    %v669 = vpop.xlane.xlu0 %668
    %670 = vadd.xlane.f32.xlu0 %v608
    %v671 = vpop.xlane.xlu0 %670
    %672 = vadd.xlane.f32.xlu0 %v609
    %v673 = vpop.xlane.xlu0 %672
    %v674 = vmul.f32 %v611, %v513
    %v675 = vmul.f32 %v613, %v513
    %v676 = vmul.f32 %v615, %v513
    %v677 = vmul.f32 %v617, %v513
    %v678 = vmul.f32 %v619, %v513
    %v679 = vmul.f32 %v621, %v513
    %v680 = vmul.f32 %v623, %v513
    %v681 = vmul.f32 %v625, %v513
    %v682 = vmul.f32 %v627, %v513
    %v683 = vmul.f32 %v629, %v513
    %v684 = vmul.f32 %v631, %v513
    %v685 = vmul.f32 %v633, %v513
    %v686 = vmul.f32 %v635, %v513
    %v687 = vmul.f32 %v637, %v513
    %v688 = vmul.f32 %v639, %v513
    %v689 = vmul.f32 %v641, %v513
    %v690 = vmul.f32 %v643, %v513
    %v691 = vmul.f32 %v645, %v513
    %v692 = vmul.f32 %v647, %v513
    %v693 = vmul.f32 %v649, %v513
    %v694 = vmul.f32 %v651, %v513
    %v695 = vmul.f32 %v653, %v513
    %v696 = vmul.f32 %v655, %v513
    %v697 = vmul.f32 %v657, %v513
    %v698 = vmul.f32 %v659, %v513
    %v699 = vmul.f32 %v661, %v513
    %v700 = vmul.f32 %v663, %v513
    %v701 = vmul.f32 %v665, %v513
    %v702 = vmul.f32 %v667, %v513
    %v703 = vmul.f32 %v669, %v513
    %v704 = vmul.f32 %v671, %v513
    %v705 = vmul.f32 %v673, %v513
    %v706 = vadd.f32 %v674, 1e-05
    %v707 = vadd.f32 %v675, 1e-05
    %v708 = vadd.f32 %v676, 1e-05
    %v709 = vadd.f32 %v677, 1e-05
    %v710 = vadd.f32 %v678, 1e-05
    %v711 = vadd.f32 %v679, 1e-05
    %v712 = vadd.f32 %v680, 1e-05
    %v713 = vadd.f32 %v681, 1e-05
    %v714 = vadd.f32 %v682, 1e-05
    %v715 = vadd.f32 %v683, 1e-05
    %v716 = vadd.f32 %v684, 1e-05
    %v717 = vadd.f32 %v685, 1e-05
    %v718 = vadd.f32 %v686, 1e-05
    %v719 = vadd.f32 %v687, 1e-05
    %v720 = vadd.f32 %v688, 1e-05
    %v721 = vadd.f32 %v689, 1e-05
    %v722 = vadd.f32 %v690, 1e-05
    %v723 = vadd.f32 %v691, 1e-05
    %v724 = vadd.f32 %v692, 1e-05
    %v725 = vadd.f32 %v693, 1e-05
    %v726 = vadd.f32 %v694, 1e-05
    %v727 = vadd.f32 %v695, 1e-05
    %v728 = vadd.f32 %v696, 1e-05
    %v729 = vadd.f32 %v697, 1e-05
    %v730 = vadd.f32 %v698, 1e-05
    %v731 = vadd.f32 %v699, 1e-05
    %v732 = vadd.f32 %v700, 1e-05
    %v733 = vadd.f32 %v701, 1e-05
    %v734 = vadd.f32 %v702, 1e-05
    %v735 = vadd.f32 %v703, 1e-05
    %v736 = vadd.f32 %v704, 1e-05
    %v737 = vadd.f32 %v705, 1e-05
    %v738 = vrsqrt.pop %v706
    %v739 = vrsqrt.pop %v707
    %v740 = vrsqrt.pop %v708
    %v741 = vrsqrt.pop %v709
    %v742 = vrsqrt.pop %v710
    %v743 = vrsqrt.pop %v711
    %v744 = vrsqrt.pop %v712
    %v745 = vrsqrt.pop %v713
    %v746 = vrsqrt.pop %v714
    %v747 = vrsqrt.pop %v715
    %v748 = vrsqrt.pop %v716
    %v749 = vrsqrt.pop %v717
    %v750 = vrsqrt.pop %v718
    %v751 = vrsqrt.pop %v719
    %v752 = vrsqrt.pop %v720
    %v753 = vrsqrt.pop %v721
    %v754 = vrsqrt.pop %v722
    %v755 = vrsqrt.pop %v723
    %v756 = vrsqrt.pop %v724
    %v757 = vrsqrt.pop %v725
    %v758 = vrsqrt.pop %v726
    %v759 = vrsqrt.pop %v727
    %v760 = vrsqrt.pop %v728
    %v761 = vrsqrt.pop %v729
    %v762 = vrsqrt.pop %v730
    %v763 = vrsqrt.pop %v731
    %v764 = vrsqrt.pop %v732
    %v765 = vrsqrt.pop %v733
    %v766 = vrsqrt.pop %v734
    %v767 = vrsqrt.pop %v735
    %v768 = vrsqrt.pop %v736
    %v769 = vrsqrt.pop %v737
    %v770 = vmul.f32 %v546, %v738
    %v771 = vmul.f32 %v547, %v739
    %v772 = vmul.f32 %v548, %v740
    %v773 = vmul.f32 %v549, %v741
    %v774 = vmul.f32 %v550, %v742
    %v775 = vmul.f32 %v551, %v743
    %v776 = vmul.f32 %v552, %v744
    %v777 = vmul.f32 %v553, %v745
    %v778 = vmul.f32 %v554, %v746
    %v779 = vmul.f32 %v555, %v747
    %v780 = vmul.f32 %v556, %v748
    %v781 = vmul.f32 %v557, %v749
    %v782 = vmul.f32 %v558, %v750
    %v783 = vmul.f32 %v559, %v751
    %v784 = vmul.f32 %v560, %v752
    %v785 = vmul.f32 %v561, %v753
    %v786 = vmul.f32 %v562, %v754
    %v787 = vmul.f32 %v563, %v755
    %v788 = vmul.f32 %v564, %v756
    %v789 = vmul.f32 %v565, %v757
    %v790 = vmul.f32 %v566, %v758
    %v791 = vmul.f32 %v567, %v759
    %v792 = vmul.f32 %v568, %v760
    %v793 = vmul.f32 %v569, %v761
    %v794 = vmul.f32 %v570, %v762
    %v795 = vmul.f32 %v571, %v763
    %v796 = vmul.f32 %v572, %v764
    %v797 = vmul.f32 %v573, %v765
    %v798 = vmul.f32 %v574, %v766
    %v799 = vmul.f32 %v575, %v767
    %v800 = vmul.f32 %v576, %v768
    %v801 = vmul.f32 %v577, %v769
    %v802 = vld [vmem:[%s4] sm:$0x1]
    %v804 = vlaneseq
    %v805 = vshrl.u32 %v804, 7
    %v806 = vsub.s32 0, %v805
    %v807 = vrot.slane %v802, %v806
    %v809 = vmul.f32 %v770, %v807
    %v810 = vmul.f32 %v771, %v807
    %v811 = vmul.f32 %v772, %v807
    %v812 = vmul.f32 %v773, %v807
    %v813 = vmul.f32 %v774, %v807
    %v814 = vmul.f32 %v775, %v807
    %v815 = vmul.f32 %v776, %v807
    %v816 = vmul.f32 %v777, %v807
    %v817 = vmul.f32 %v778, %v807
    %v818 = vmul.f32 %v779, %v807
    %v819 = vmul.f32 %v780, %v807
    %v820 = vmul.f32 %v781, %v807
    %v821 = vmul.f32 %v782, %v807
    %v822 = vmul.f32 %v783, %v807
    %v823 = vmul.f32 %v784, %v807
    %v824 = vmul.f32 %v785, %v807
    %v825 = vmul.f32 %v786, %v807
    %v826 = vmul.f32 %v787, %v807
    %v827 = vmul.f32 %v788, %v807
    %v828 = vmul.f32 %v789, %v807
    %v829 = vmul.f32 %v790, %v807
    %v830 = vmul.f32 %v791, %v807
    %v831 = vmul.f32 %v792, %v807
    %v832 = vmul.f32 %v793, %v807
    %v833 = vmul.f32 %v794, %v807
    %v834 = vmul.f32 %v795, %v807
    %v835 = vmul.f32 %v796, %v807
    %v836 = vmul.f32 %v797, %v807
    %v837 = vmul.f32 %v798, %v807
    %v838 = vmul.f32 %v799, %v807
    %v839 = vmul.f32 %v800, %v807
    %v840 = vmul.f32 %v801, %v807
    %v841 = vld [vmem:[%s5] sm:$0x1]
    %v843 = vlaneseq
    %v844 = vshrl.u32 %v843, 7
    %v845 = vsub.s32 0, %v844
    %v846 = vrot.slane %v841, %v845
    %v848 = vadd.f32 %v809, %v846
    %v849 = vadd.f32 %v810, %v846
    %v850 = vadd.f32 %v811, %v846
    %v851 = vadd.f32 %v812, %v846
    %v852 = vadd.f32 %v813, %v846
    %v853 = vadd.f32 %v814, %v846
    %v854 = vadd.f32 %v815, %v846
    %v855 = vadd.f32 %v816, %v846
    %v856 = vadd.f32 %v817, %v846
    %v857 = vadd.f32 %v818, %v846
    %v858 = vadd.f32 %v819, %v846
    %v859 = vadd.f32 %v820, %v846
    %v860 = vadd.f32 %v821, %v846
    %v861 = vadd.f32 %v822, %v846
    %v862 = vadd.f32 %v823, %v846
    %v863 = vadd.f32 %v824, %v846
    %v864 = vadd.f32 %v825, %v846
    %v865 = vadd.f32 %v826, %v846
    %v866 = vadd.f32 %v827, %v846
    %v867 = vadd.f32 %v828, %v846
    %v868 = vadd.f32 %v829, %v846
    %v869 = vadd.f32 %v830, %v846
    %v870 = vadd.f32 %v831, %v846
    %v871 = vadd.f32 %v832, %v846
    %v872 = vadd.f32 %v833, %v846
    %v873 = vadd.f32 %v834, %v846
    %v874 = vadd.f32 %v835, %v846
    %v875 = vadd.f32 %v836, %v846
    %v876 = vadd.f32 %v837, %v846
    %v877 = vadd.f32 %v838, %v846
    %v878 = vadd.f32 %v839, %v846
    %v879 = vadd.f32 %v840, %v846
    %880 = vst [vmem:[#allocation2] sm:$0xff] %v848
    %881 = vst [vmem:[#allocation2 + $0x8] sm:$0xff] %v849
    %882 = vst [vmem:[#allocation2 + $0x10] sm:$0xff] %v850
    %883 = vst [vmem:[#allocation2 + $0x18] sm:$0xff] %v851
    %884 = vst [vmem:[#allocation2 + $0x20] sm:$0xff] %v852
    %885 = vst [vmem:[#allocation2 + $0x28] sm:$0xff] %v853
    %886 = vst [vmem:[#allocation2 + $0x30] sm:$0xff] %v854
    %887 = vst [vmem:[#allocation2 + $0x38] sm:$0xff] %v855
    %888 = vst [vmem:[#allocation2 + $0x40] sm:$0xff] %v856
    %889 = vst [vmem:[#allocation2 + $0x48] sm:$0xff] %v857
    %890 = vst [vmem:[#allocation2 + $0x50] sm:$0xff] %v858
    %891 = vst [vmem:[#allocation2 + $0x58] sm:$0xff] %v859
    %892 = vst [vmem:[#allocation2 + $0x60] sm:$0xff] %v860
    %893 = vst [vmem:[#allocation2 + $0x68] sm:$0xff] %v861
    %894 = vst [vmem:[#allocation2 + $0x70] sm:$0xff] %v862
    %895 = vst [vmem:[#allocation2 + $0x78] sm:$0xff] %v863
    %896 = vst [vmem:[#allocation2 + $0x80] sm:$0xff] %v864
    %897 = vst [vmem:[#allocation2 + $0x88] sm:$0xff] %v865
    %898 = vst [vmem:[#allocation2 + $0x90] sm:$0xff] %v866
    %899 = vst [vmem:[#allocation2 + $0x98] sm:$0xff] %v867
    %900 = vst [vmem:[#allocation2 + $0xa0] sm:$0xff] %v868
    %901 = vst [vmem:[#allocation2 + $0xa8] sm:$0xff] %v869
    %902 = vst [vmem:[#allocation2 + $0xb0] sm:$0xff] %v870
    %903 = vst [vmem:[#allocation2 + $0xb8] sm:$0xff] %v871
    %904 = vst [vmem:[#allocation2 + $0xc0] sm:$0xff] %v872
    %905 = vst [vmem:[#allocation2 + $0xc8] sm:$0xff] %v873
    %906 = vst [vmem:[#allocation2 + $0xd0] sm:$0xff] %v874
    %907 = vst [vmem:[#allocation2 + $0xd8] sm:$0xff] %v875
    %908 = vst [vmem:[#allocation2 + $0xe0] sm:$0xff] %v876
    %909 = vst [vmem:[#allocation2 + $0xe8] sm:$0xff] %v877
    %910 = vst [vmem:[#allocation2 + $0xf0] sm:$0xff] %v878
    %911 = vst [vmem:[#allocation2 + $0xf8] sm:$0xff] %v879
    // Predicated region
    $region26: #{multi_head_attention.5} parent=1 // pred_check
      _
    $region27: #{multi_head_attention.5} parent=1 // pred_check_branch
      %913 = sbr.rel (0) target = $region29
    $region28: #{multi_head_attention.5} parent=1 // pred_region
      %s915 = ssub.s32 4096, 4096
      %916 = vsyncadd [#allocation3], %s915
      %s917 = sshll.u32 [#allocation2], 4
      %s918 = int_to_ptr.vmem [resolvable:$true] %s917
      %923 = dma.vmem_to_hbm [thread:$0]  %s918, 4096, %s6, [#allocation3], 128, 128, 8
    $region29: #{multi_head_attention.5} parent=1 // pred_fallthru
      _
    // Predicated region
    $region30: #{multi_head_attention.5} parent=1 // pred_check
      _
    $region31: #{multi_head_attention.5} parent=1 // pred_check_branch
      %925 = sbr.rel (0) target = $region33
    $region32: #{multi_head_attention.5} parent=1 // pred_region
      %926 = dma.done [#allocation3], 4096
    $region33: #{multi_head_attention.5} parent=1 // pred_fallthru
      _
    %927 = vsyncpa [#allocation3], 1

// kernel: multi_head_attention.3
$region0: #{multi_head_attention.3}
  #allocation0 [shape = 'u32[]', space=smem, size = 0x4, offset = 0x4, fixed_abs, tag = 'smem constant byte address 0x4 - core index']
  #allocation1 [shape = 'u32[144,128]{1,0:T(1,128)}', space=vmem, size = 0x12000, scoped, tag = 'internal scratch']
  %s0 = inlined_call_operand.hbm [shape: f32[256,128], index: 0, kind: input, shape index: {}]
  %s1 = inlined_call_operand.hbm [shape: bf16[128,384], index: 1, kind: input, shape index: {}]
  %s2 = inlined_call_operand.vmem [shape: f32[1,384], index: 2, kind: input, shape index: {}]
  %s3 = inlined_call_operand.vmem [shape: bf16[256,384], index: 3, kind: output, shape index: {}]
  %s4 = sld [smem:[#allocation0]]
  $region30: #{multi_head_attention.3} parent=0
    _
  %s6 = ssub.s32 1, %s4
  %s7 = scalar_select 0, %s6, %s4
  $region1: #{multi_head_attention.3} parent=0
    #allocation2 [shape = 'u8[131072]{0}', space=vmem, size = 0x20000, scoped, tag = 'input window, operand 0, single buffered']
    #allocation3 [shape = 's32[1]{0}', space=sflag, size = 0x4, scoped, tag = 'scoped memory for multi_head_attention.3']
    #allocation4 [shape = 'u8[98304]{0}', space=vmem, size = 0x18000, scoped, tag = 'input window, operand 1, single buffered']
    #allocation5 [shape = 's32[1]{0}', space=sflag, size = 0x4, scoped, tag = 'scoped memory for multi_head_attention.3']
    %8 = vsyncpa [#allocation3], 0
    %9 = vsyncpa [#allocation5], 0
    // Predicated region
    $region2: #{multi_head_attention.3} parent=1 // pred_check
      _
    $region3: #{multi_head_attention.3} parent=1 // pred_check_branch
      %11 = sbr.rel (0) target = $region5
    $region4: #{multi_head_attention.3} parent=1 // pred_region
      %s13 = ssub.s32 4096, 4096
      %14 = vsyncadd [#allocation3], %s13
      %s15 = sshll.u32 [#allocation2], 4
      %s16 = int_to_ptr.vmem [resolvable:$true] %s15
      %21 = dma.hbm_to_vmem [thread:$0]  %s0, 4096, %s16, [#allocation3], 128, 128, 8
    $region5: #{multi_head_attention.3} parent=1 // pred_fallthru
      _
    // Predicated region
    $region6: #{multi_head_attention.3} parent=1 // pred_check
      _
    $region7: #{multi_head_attention.3} parent=1 // pred_check_branch
      %23 = sbr.rel (0) target = $region9
    $region8: #{multi_head_attention.3} parent=1 // pred_region
      %s25 = ssub.s32 3072, 3072
      %26 = vsyncadd [#allocation5], %s25
      %s27 = sshll.u32 [#allocation4], 4
      %s28 = int_to_ptr.vmem [resolvable:$true] %s27
      %33 = dma.hbm_to_vmem [thread:$0]  %s1, 3072, %s28, [#allocation5], 192, 192, 12
    $region9: #{multi_head_attention.3} parent=1 // pred_fallthru
      _
    // Predicated region
    $region10: #{multi_head_attention.3} parent=1 // pred_check
      _
    $region11: #{multi_head_attention.3} parent=1 // pred_check_branch
      %35 = sbr.rel (0) target = $region13
    $region12: #{multi_head_attention.3} parent=1 // pred_region
      _
    $region13: #{multi_head_attention.3} parent=1 // pred_fallthru
      _
    // Predicated region
    $region14: #{multi_head_attention.3} parent=1 // pred_check
      _
    $region15: #{multi_head_attention.3} parent=1 // pred_check_branch
      %37 = sbr.rel (0) target = $region17
    $region16: #{multi_head_attention.3} parent=1 // pred_region
      %38 = dma.done [#allocation3], 4096
    $region17: #{multi_head_attention.3} parent=1 // pred_fallthru
      _
    // Predicated region
    $region18: #{multi_head_attention.3} parent=1 // pred_check
      _
    $region19: #{multi_head_attention.3} parent=1 // pred_check_branch
      %40 = sbr.rel (0) target = $region21
    $region20: #{multi_head_attention.3} parent=1 // pred_region
      %41 = dma.done [#allocation5], 3072
    $region21: #{multi_head_attention.3} parent=1 // pred_fallthru
      _
    %v43 = vld [vmem:[#allocation2] sm:$0xff]
    %v44 = vld [vmem:[#allocation2 + $0x8] sm:$0xff]
    %v45 = vld [vmem:[#allocation2 + $0x10] sm:$0xff]
    %v46 = vld [vmem:[#allocation2 + $0x18] sm:$0xff]
    %v47 = vld [vmem:[#allocation2 + $0x20] sm:$0xff]
    %v48 = vld [vmem:[#allocation2 + $0x28] sm:$0xff]
    %v49 = vld [vmem:[#allocation2 + $0x30] sm:$0xff]
    %v50 = vld [vmem:[#allocation2 + $0x38] sm:$0xff]
    %v51 = vld [vmem:[#allocation2 + $0x40] sm:$0xff]
    %v52 = vld [vmem:[#allocation2 + $0x48] sm:$0xff]
    %v53 = vld [vmem:[#allocation2 + $0x50] sm:$0xff]
    %v54 = vld [vmem:[#allocation2 + $0x58] sm:$0xff]
    %v55 = vld [vmem:[#allocation2 + $0x60] sm:$0xff]
    %v56 = vld [vmem:[#allocation2 + $0x68] sm:$0xff]
    %v57 = vld [vmem:[#allocation2 + $0x70] sm:$0xff]
    %v58 = vld [vmem:[#allocation2 + $0x78] sm:$0xff]
    %v59 = vld [vmem:[#allocation2 + $0x80] sm:$0xff]
    %v60 = vld [vmem:[#allocation2 + $0x88] sm:$0xff]
    %v61 = vld [vmem:[#allocation2 + $0x90] sm:$0xff]
    %v62 = vld [vmem:[#allocation2 + $0x98] sm:$0xff]
    %v63 = vld [vmem:[#allocation2 + $0xa0] sm:$0xff]
    %v64 = vld [vmem:[#allocation2 + $0xa8] sm:$0xff]
    %v65 = vld [vmem:[#allocation2 + $0xb0] sm:$0xff]
    %v66 = vld [vmem:[#allocation2 + $0xb8] sm:$0xff]
    %v67 = vld [vmem:[#allocation2 + $0xc0] sm:$0xff]
    %v68 = vld [vmem:[#allocation2 + $0xc8] sm:$0xff]
    %v69 = vld [vmem:[#allocation2 + $0xd0] sm:$0xff]
    %v70 = vld [vmem:[#allocation2 + $0xd8] sm:$0xff]
    %v71 = vld [vmem:[#allocation2 + $0xe0] sm:$0xff]
    %v72 = vld [vmem:[#allocation2 + $0xe8] sm:$0xff]
    %v73 = vld [vmem:[#allocation2 + $0xf0] sm:$0xff]
    %v74 = vld [vmem:[#allocation2 + $0xf8] sm:$0xff]
    %v75 = vpack.c.bf16 %v44, %v43
    %v76 = vpack.c.bf16 %v46, %v45
    %v77 = vpack.c.bf16 %v48, %v47
    %v78 = vpack.c.bf16 %v50, %v49
    %v79 = vpack.c.bf16 %v52, %v51
    %v80 = vpack.c.bf16 %v54, %v53
    %v81 = vpack.c.bf16 %v56, %v55
    %v82 = vpack.c.bf16 %v58, %v57
    %v83 = vpack.c.bf16 %v60, %v59
    %v84 = vpack.c.bf16 %v62, %v61
    %v85 = vpack.c.bf16 %v64, %v63
    %v86 = vpack.c.bf16 %v66, %v65
    %v87 = vpack.c.bf16 %v68, %v67
    %v88 = vpack.c.bf16 %v70, %v69
    %v89 = vpack.c.bf16 %v72, %v71
    %v90 = vpack.c.bf16 %v74, %v73
    %v91 = vld [vmem:[#allocation4] sm:$0xff]
    %v92 = vld [vmem:[#allocation4 + $0x8] sm:$0xf]
    %v93 = vld [vmem:[#allocation4 + $0xc] sm:$0xff]
    %v94 = vld [vmem:[#allocation4 + $0x14] sm:$0xf]
    %v95 = vld [vmem:[#allocation4 + $0x18] sm:$0xff]
    %v96 = vld [vmem:[#allocation4 + $0x20] sm:$0xf]
    %v97 = vld [vmem:[#allocation4 + $0x24] sm:$0xff]
    %v98 = vld [vmem:[#allocation4 + $0x2c] sm:$0xf]
    %v99 = vld [vmem:[#allocation4 + $0x30] sm:$0xff]
    %v100 = vld [vmem:[#allocation4 + $0x38] sm:$0xf]
    %v101 = vld [vmem:[#allocation4 + $0x3c] sm:$0xff]
    %v102 = vld [vmem:[#allocation4 + $0x44] sm:$0xf]
    %v103 = vld [vmem:[#allocation4 + $0x48] sm:$0xff]
    %v104 = vld [vmem:[#allocation4 + $0x50] sm:$0xf]
    %v105 = vld [vmem:[#allocation4 + $0x54] sm:$0xff]
    %v106 = vld [vmem:[#allocation4 + $0x5c] sm:$0xf]
    %v107 = vld [vmem:[#allocation4 + $0x60] sm:$0xff]
    %v108 = vld [vmem:[#allocation4 + $0x68] sm:$0xf]
    %v109 = vld [vmem:[#allocation4 + $0x6c] sm:$0xff]
    %v110 = vld [vmem:[#allocation4 + $0x74] sm:$0xf]
    %v111 = vld [vmem:[#allocation4 + $0x78] sm:$0xff]
    %v112 = vld [vmem:[#allocation4 + $0x80] sm:$0xf]
    %v113 = vld [vmem:[#allocation4 + $0x84] sm:$0xff]
    %v114 = vld [vmem:[#allocation4 + $0x8c] sm:$0xf]
    %v115 = vld [vmem:[#allocation4 + $0x90] sm:$0xff]
    %v116 = vld [vmem:[#allocation4 + $0x98] sm:$0xf]
    %v117 = vld [vmem:[#allocation4 + $0x9c] sm:$0xff]
    %v118 = vld [vmem:[#allocation4 + $0xa4] sm:$0xf]
    %v119 = vld [vmem:[#allocation4 + $0xa8] sm:$0xff]
    %v120 = vld [vmem:[#allocation4 + $0xb0] sm:$0xf]
    %v121 = vld [vmem:[#allocation4 + $0xb4] sm:$0xff]
    %v122 = vld [vmem:[#allocation4 + $0xbc] sm:$0xf]
    %v123 = vld [vmem:[%s2] sm:$0x7]
    %v125 = vlaneseq
    %v126 = vshrl.u32 %v125, 7
    %v127 = vsub.s32 0, %v126
    %v128 = vrot.slane %v123, %v127
    %v129 = vlaneseq
    %v130 = vshrl.u32 %v129, 7
    %v131 = vsub.s32 1, %v130
    %v132 = vrot.slane %v123, %v131
    %v133 = vlaneseq
    %v134 = vshrl.u32 %v133, 7
    %v135 = vsub.s32 2, %v134
    %v136 = vrot.slane %v123, %v135
    %v172 = vunpack.c.l.b16 %v91
    %v173 = vunpack.c.h.b16 %v91
    %v174 = vunpack.c.l.b16 %v92
    %v175 = vunpack.c.l.b16 %v93
    %v176 = vunpack.c.h.b16 %v93
    %v177 = vunpack.c.l.b16 %v94
    %v178 = vunpack.c.l.b16 %v95
    %v179 = vunpack.c.h.b16 %v95
    %v180 = vunpack.c.l.b16 %v96
    %v181 = vunpack.c.l.b16 %v97
    %v182 = vunpack.c.h.b16 %v97
    %v183 = vunpack.c.l.b16 %v98
    %v184 = vunpack.c.l.b16 %v99
    %v185 = vunpack.c.h.b16 %v99
    %v186 = vunpack.c.l.b16 %v100
    %v187 = vunpack.c.l.b16 %v101
    %v188 = vunpack.c.h.b16 %v101
    %v189 = vunpack.c.l.b16 %v102
    %v190 = vunpack.c.l.b16 %v103
    %v191 = vunpack.c.h.b16 %v103
    %v192 = vunpack.c.l.b16 %v104
    %v193 = vunpack.c.l.b16 %v105
    %v194 = vunpack.c.h.b16 %v105
    %v195 = vunpack.c.l.b16 %v106
    %v196 = vunpack.c.l.b16 %v107
    %v197 = vunpack.c.h.b16 %v107
    %v198 = vunpack.c.l.b16 %v108
    %v199 = vunpack.c.l.b16 %v109
    %v200 = vunpack.c.h.b16 %v109
    %v201 = vunpack.c.l.b16 %v110
    %v202 = vunpack.c.l.b16 %v111
    %v203 = vunpack.c.h.b16 %v111
    %v204 = vunpack.c.l.b16 %v112
    %v205 = vunpack.c.l.b16 %v113
    %v206 = vunpack.c.h.b16 %v113
    %v207 = vunpack.c.l.b16 %v114
    %v208 = vunpack.c.l.b16 %v115
    %v209 = vunpack.c.h.b16 %v115
    %v210 = vunpack.c.l.b16 %v116
    %v211 = vunpack.c.l.b16 %v117
    %v212 = vunpack.c.h.b16 %v117
    %v213 = vunpack.c.l.b16 %v118
    %v214 = vunpack.c.l.b16 %v119
    %v215 = vunpack.c.h.b16 %v119
    %v216 = vunpack.c.l.b16 %v120
    %v217 = vunpack.c.l.b16 %v121
    %v218 = vunpack.c.h.b16 %v121
    %v219 = vunpack.c.l.b16 %v122
    %v220 = vpack.c.b16 %v175, %v172
    %v221 = vpack.c.b16 %v176, %v173
    %v222 = vpack.c.b16 %v177, %v174
    %v223 = vpack.c.b16 %v181, %v178
    %v224 = vpack.c.b16 %v182, %v179
    %v225 = vpack.c.b16 %v183, %v180
    %v226 = vpack.c.b16 %v187, %v184
    %v227 = vpack.c.b16 %v188, %v185
    %v228 = vpack.c.b16 %v189, %v186
    %v229 = vpack.c.b16 %v193, %v190
    %v230 = vpack.c.b16 %v194, %v191
    %v231 = vpack.c.b16 %v195, %v192
    %v232 = vpack.c.b16 %v199, %v196
    %v233 = vpack.c.b16 %v200, %v197
    %v234 = vpack.c.b16 %v201, %v198
    %v235 = vpack.c.b16 %v205, %v202
    %v236 = vpack.c.b16 %v206, %v203
    %v237 = vpack.c.b16 %v207, %v204
    %v238 = vpack.c.b16 %v211, %v208
    %v239 = vpack.c.b16 %v212, %v209
    %v240 = vpack.c.b16 %v213, %v210
    %v241 = vpack.c.b16 %v217, %v214
    %v242 = vpack.c.b16 %v218, %v215
    %v243 = vpack.c.b16 %v219, %v216
    %268 = vmatprep.subr.bf16.mxu0 %v221
    %269 = vmatpush1.bf16.msra.mxu0 %v220
    %270 = vmatprep.subr.bf16.mxu0 %v224
    %271 = vmatpush1.bf16.msra.mxu0 %v223
    %272 = vmatprep.subr.bf16.mxu0 %v227
    %273 = vmatpush1.bf16.msra.mxu0 %v226
    %274 = vmatprep.subr.bf16.mxu0 %v230
    %275 = vmatpush1.bf16.msra.mxu0 %v229
    %276 = vmatprep.subr.bf16.mxu0 %v233
    %277 = vmatpush1.bf16.msra.mxu0 %v232
    %278 = vmatprep.subr.bf16.mxu0 %v236
    %279 = vmatpush1.bf16.msra.mxu0 %v235
    %280 = vmatprep.subr.bf16.mxu0 %v239
    %281 = vmatpush1.bf16.msra.mxu0 %v238
    %282 = vmatprep.subr.bf16.mxu0 %v242
    %283 = vmatpush1.bf16.msra.mxu0 %v241
    %284 = vmatprep.subr.bf16.mxu0 0
    %285 = vmatpush1.bf16.msra.mxu0 0
    %286 = vmatprep.subr.bf16.mxu0 0
    %287 = vmatpush1.bf16.msra.mxu0 0
    %288 = vmatprep.subr.bf16.mxu0 0
    %289 = vmatpush1.bf16.msra.mxu0 0
    %290 = vmatprep.subr.bf16.mxu0 0
    %291 = vmatpush1.bf16.msra.mxu0 0
    %292 = vmatprep.subr.bf16.mxu0 0
    %293 = vmatpush1.bf16.msra.mxu0 0
    %294 = vmatprep.subr.bf16.mxu0 0
    %295 = vmatpush1.bf16.msra.mxu0 0
    %296 = vmatprep.subr.bf16.mxu0 0
    %297 = vmatpush1.bf16.msra.mxu0 0
    %298 = vmatprep.subr.bf16.mxu0 0
    %299 = vmatpush1.bf16.msra.mxu0 0
    %300 = vmatprep.mubr.bf16.mxu0 0
    %301 = vmatmul.mubr.bf16.gmra.mrb[0].mxu0 %v75
    %v302 = vpop.f32.mrb[0].mxu0
    %v303 = vadd.f32 %v128, %v302
    %v304 = vpop.f32.mrb[0].mxu0
    %v305 = vadd.f32 %v132, %v304
    %v306 = vpop.f32.mrb[0].mxu0
    %v307 = vadd.f32 %v128, %v306
    %v308 = vpop.f32.mrb[0].mxu0
    %v309 = vadd.f32 %v132, %v308
    %310 = vmatprep.mubr.bf16.mxu0 0
    %311 = vmatmul.mubr.bf16.gmra.mrb[0].mxu0 %v76
    %v312 = vpop.f32.mrb[0].mxu0
    %v313 = vadd.f32 %v128, %v312
    %v314 = vpop.f32.mrb[0].mxu0
    %v315 = vadd.f32 %v132, %v314
    %v316 = vpop.f32.mrb[0].mxu0
    %v317 = vadd.f32 %v128, %v316
    %v318 = vpop.f32.mrb[0].mxu0
    %v319 = vadd.f32 %v132, %v318
    %320 = vmatprep.mubr.bf16.mxu0 0
    %321 = vmatmul.mubr.bf16.gmra.mrb[0].mxu0 %v77
    %v322 = vpop.f32.mrb[0].mxu0
    %v323 = vadd.f32 %v128, %v322
    %v324 = vpop.f32.mrb[0].mxu0
    %v325 = vadd.f32 %v132, %v324
    %v326 = vpop.f32.mrb[0].mxu0
    %v327 = vadd.f32 %v128, %v326
    %v328 = vpop.f32.mrb[0].mxu0
    %v329 = vadd.f32 %v132, %v328
    %330 = vmatprep.mubr.bf16.mxu0 0
    %331 = vmatmul.mubr.bf16.gmra.mrb[0].mxu0 %v78
    %v332 = vpop.f32.mrb[0].mxu0
    %v333 = vadd.f32 %v128, %v332
    %v334 = vpop.f32.mrb[0].mxu0
    %v335 = vadd.f32 %v132, %v334
    %v336 = vpop.f32.mrb[0].mxu0
    %v337 = vadd.f32 %v128, %v336
    %v338 = vpop.f32.mrb[0].mxu0
    %v339 = vadd.f32 %v132, %v338
    %340 = vmatprep.mubr.bf16.mxu0 0
    %341 = vmatmul.mubr.bf16.gmra.mrb[0].mxu0 %v79
    %v342 = vpop.f32.mrb[0].mxu0
    %v343 = vadd.f32 %v128, %v342
    %v344 = vpop.f32.mrb[0].mxu0
    %v345 = vadd.f32 %v132, %v344
    %v346 = vpop.f32.mrb[0].mxu0
    %v347 = vadd.f32 %v128, %v346
    %v348 = vpop.f32.mrb[0].mxu0
    %v349 = vadd.f32 %v132, %v348
    %350 = vmatprep.mubr.bf16.mxu0 0
    %351 = vmatmul.mubr.bf16.gmra.mrb[0].mxu0 %v80
    %v352 = vpop.f32.mrb[0].mxu0
    %v353 = vadd.f32 %v128, %v352
    %v354 = vpop.f32.mrb[0].mxu0
    %v355 = vadd.f32 %v132, %v354
    %v356 = vpop.f32.mrb[0].mxu0
    %v357 = vadd.f32 %v128, %v356
    %v358 = vpop.f32.mrb[0].mxu0
    %v359 = vadd.f32 %v132, %v358
    %360 = vmatprep.mubr.bf16.mxu0 0
    %361 = vmatmul.mubr.bf16.gmra.mrb[0].mxu0 %v81
    %v362 = vpop.f32.mrb[0].mxu0
    %v363 = vadd.f32 %v128, %v362
    %v364 = vpop.f32.mrb[0].mxu0
    %v365 = vadd.f32 %v132, %v364
    %v366 = vpop.f32.mrb[0].mxu0
    %v367 = vadd.f32 %v128, %v366
    %v368 = vpop.f32.mrb[0].mxu0
    %v369 = vadd.f32 %v132, %v368
    %370 = vmatprep.mubr.bf16.mxu0 0
    %371 = vmatmul.mubr.bf16.gmra.mrb[0].mxu0 %v82
    %v372 = vpop.f32.mrb[0].mxu0
    %v373 = vadd.f32 %v128, %v372
    %v374 = vpop.f32.mrb[0].mxu0
    %v375 = vadd.f32 %v132, %v374
    %v376 = vpop.f32.mrb[0].mxu0
    %v377 = vadd.f32 %v128, %v376
    %v378 = vpop.f32.mrb[0].mxu0
    %v379 = vadd.f32 %v132, %v378
    %380 = vmatprep.mubr.bf16.mxu0 0
    %381 = vmatmul.mubr.bf16.gmra.mrb[0].mxu0 %v83
    %v382 = vpop.f32.mrb[0].mxu0
    %v383 = vadd.f32 %v128, %v382
    %v384 = vpop.f32.mrb[0].mxu0
    %v385 = vadd.f32 %v132, %v384
    %v386 = vpop.f32.mrb[0].mxu0
    %v387 = vadd.f32 %v128, %v386
    %v388 = vpop.f32.mrb[0].mxu0
    %v389 = vadd.f32 %v132, %v388
    %390 = vmatprep.mubr.bf16.mxu0 0
    %391 = vmatmul.mubr.bf16.gmra.mrb[0].mxu0 %v84
    %v392 = vpop.f32.mrb[0].mxu0
    %v393 = vadd.f32 %v128, %v392
    %v394 = vpop.f32.mrb[0].mxu0
    %v395 = vadd.f32 %v132, %v394
    %v396 = vpop.f32.mrb[0].mxu0
    %v397 = vadd.f32 %v128, %v396
    %v398 = vpop.f32.mrb[0].mxu0
    %v399 = vadd.f32 %v132, %v398
    %400 = vmatprep.mubr.bf16.mxu0 0
    %401 = vmatmul.mubr.bf16.gmra.mrb[0].mxu0 %v85
    %v402 = vpop.f32.mrb[0].mxu0
    %v403 = vadd.f32 %v128, %v402
    %v404 = vpop.f32.mrb[0].mxu0
    %v405 = vadd.f32 %v132, %v404
    %v406 = vpop.f32.mrb[0].mxu0
    %v407 = vadd.f32 %v128, %v406
    %v408 = vpop.f32.mrb[0].mxu0
    %v409 = vadd.f32 %v132, %v408
    %410 = vmatprep.mubr.bf16.mxu0 0
    %411 = vmatmul.mubr.bf16.gmra.mrb[0].mxu0 %v86
    %v412 = vpop.f32.mrb[0].mxu0
    %v413 = vadd.f32 %v128, %v412
    %v414 = vpop.f32.mrb[0].mxu0
    %v415 = vadd.f32 %v132, %v414
    %v416 = vpop.f32.mrb[0].mxu0
    %v417 = vadd.f32 %v128, %v416
    %v418 = vpop.f32.mrb[0].mxu0
    %v419 = vadd.f32 %v132, %v418
    %420 = vmatprep.mubr.bf16.mxu0 0
    %421 = vmatmul.mubr.bf16.gmra.mrb[0].mxu0 %v87
    %v422 = vpop.f32.mrb[0].mxu0
    %v423 = vadd.f32 %v128, %v422
    %v424 = vpop.f32.mrb[0].mxu0
    %v425 = vadd.f32 %v132, %v424
    %v426 = vpop.f32.mrb[0].mxu0
    %v427 = vadd.f32 %v128, %v426
    %v428 = vpop.f32.mrb[0].mxu0
    %v429 = vadd.f32 %v132, %v428
    %430 = vmatprep.mubr.bf16.mxu0 0
    %431 = vmatmul.mubr.bf16.gmra.mrb[0].mxu0 %v88
    %v432 = vpop.f32.mrb[0].mxu0
    %v433 = vadd.f32 %v128, %v432
    %v434 = vpop.f32.mrb[0].mxu0
    %v435 = vadd.f32 %v132, %v434
    %v436 = vpop.f32.mrb[0].mxu0
    %v437 = vadd.f32 %v128, %v436
    %v438 = vpop.f32.mrb[0].mxu0
    %v439 = vadd.f32 %v132, %v438
    %440 = vmatprep.mubr.bf16.mxu0 0
    %441 = vmatmul.mubr.bf16.gmra.mrb[0].mxu0 %v89
    %v442 = vpop.f32.mrb[0].mxu0
    %v443 = vadd.f32 %v128, %v442
    %v444 = vpop.f32.mrb[0].mxu0
    %v445 = vadd.f32 %v132, %v444
    %v446 = vpop.f32.mrb[0].mxu0
    %v447 = vadd.f32 %v128, %v446
    %v448 = vpop.f32.mrb[0].mxu0
    %v449 = vadd.f32 %v132, %v448
    %450 = vmatprep.mubr.bf16.mxu0 0
    %451 = vmatmul.mubr.bf16.gmra.mrb[0].mxu0 %v90
    %v452 = vpop.f32.mrb[0].mxu0
    %v453 = vadd.f32 %v128, %v452
    %v454 = vpop.f32.mrb[0].mxu0
    %v455 = vadd.f32 %v132, %v454
    %v456 = vpop.f32.mrb[0].mxu0
    %v457 = vadd.f32 %v128, %v456
    %v458 = vpop.f32.mrb[0].mxu0
    %v459 = vadd.f32 %v132, %v458
    %460 = vdwg.mxu0
    %461 = vmatprep.subr.bf16.mxu0 0
    %462 = vmatpush1.bf16.msra.mxu0 %v222
    %463 = vmatprep.subr.bf16.mxu0 0
    %464 = vmatpush1.bf16.msra.mxu0 %v225
    %465 = vmatprep.subr.bf16.mxu0 0
    %466 = vmatpush1.bf16.msra.mxu0 %v228
    %467 = vmatprep.subr.bf16.mxu0 0
    %468 = vmatpush1.bf16.msra.mxu0 %v231
    %469 = vmatprep.subr.bf16.mxu0 0
    %470 = vmatpush1.bf16.msra.mxu0 %v234
    %471 = vmatprep.subr.bf16.mxu0 0
    %472 = vmatpush1.bf16.msra.mxu0 %v237
    %473 = vmatprep.subr.bf16.mxu0 0
    %474 = vmatpush1.bf16.msra.mxu0 %v240
    %475 = vmatprep.subr.bf16.mxu0 0
    %476 = vmatpush1.bf16.msra.mxu0 %v243
    %477 = vmatprep.subr.bf16.mxu0 0
    %478 = vmatpush1.bf16.msra.mxu0 0
    %479 = vmatprep.subr.bf16.mxu0 0
    %480 = vmatpush1.bf16.msra.mxu0 0
    %481 = vmatprep.subr.bf16.mxu0 0
    %482 = vmatpush1.bf16.msra.mxu0 0
    %483 = vmatprep.subr.bf16.mxu0 0
    %484 = vmatpush1.bf16.msra.mxu0 0
    %485 = vmatprep.subr.bf16.mxu0 0
    %486 = vmatpush1.bf16.msra.mxu0 0
    %487 = vmatprep.subr.bf16.mxu0 0
    %488 = vmatpush1.bf16.msra.mxu0 0
    %489 = vmatprep.subr.bf16.mxu0 0
    %490 = vmatpush1.bf16.msra.mxu0 0
    %491 = vmatprep.subr.bf16.mxu0 0
    %492 = vmatpush1.bf16.msra.mxu0 0
    %493 = vmatprep.mubr.bf16.mxu0 0
    %494 = vmatmul.mubr.bf16.gmra.mrb[0].mxu0 %v75
    %v495 = vpop.f32.mrb[0].mxu0
    %v496 = vadd.f32 %v136, %v495
    %v497 = vpop.f32.mrb[0].mxu0
    %v498 = vpop.f32.mrb[0].mxu0
    %v499 = vadd.f32 %v136, %v498
    %v500 = vpop.f32.mrb[0].mxu0
    %501 = vmatprep.mubr.bf16.mxu0 0
    %502 = vmatmul.mubr.bf16.gmra.mrb[0].mxu0 %v76
    %v503 = vpop.f32.mrb[0].mxu0
    %v504 = vadd.f32 %v136, %v503
    %v505 = vpop.f32.mrb[0].mxu0
    %v506 = vpop.f32.mrb[0].mxu0
    %v507 = vadd.f32 %v136, %v506
    %v508 = vpop.f32.mrb[0].mxu0
    %509 = vmatprep.mubr.bf16.mxu0 0
    %510 = vmatmul.mubr.bf16.gmra.mrb[0].mxu0 %v77
    %v511 = vpop.f32.mrb[0].mxu0
    %v512 = vadd.f32 %v136, %v511
    %v513 = vpop.f32.mrb[0].mxu0
    %v514 = vpop.f32.mrb[0].mxu0
    %v515 = vadd.f32 %v136, %v514
    %v516 = vpop.f32.mrb[0].mxu0
    %517 = vmatprep.mubr.bf16.mxu0 0
    %518 = vmatmul.mubr.bf16.gmra.mrb[0].mxu0 %v78
    %v519 = vpop.f32.mrb[0].mxu0
    %v520 = vadd.f32 %v136, %v519
    %v521 = vpop.f32.mrb[0].mxu0
    %v522 = vpop.f32.mrb[0].mxu0
    %v523 = vadd.f32 %v136, %v522
    %v524 = vpop.f32.mrb[0].mxu0
    %525 = vmatprep.mubr.bf16.mxu0 0
    %526 = vmatmul.mubr.bf16.gmra.mrb[0].mxu0 %v79
    %v527 = vpop.f32.mrb[0].mxu0
    %v528 = vadd.f32 %v136, %v527
    %v529 = vpop.f32.mrb[0].mxu0
    %v530 = vpop.f32.mrb[0].mxu0
    %v531 = vadd.f32 %v136, %v530
    %v532 = vpop.f32.mrb[0].mxu0
    %533 = vmatprep.mubr.bf16.mxu0 0
    %534 = vmatmul.mubr.bf16.gmra.mrb[0].mxu0 %v80
    %v535 = vpop.f32.mrb[0].mxu0
    %v536 = vadd.f32 %v136, %v535
    %v537 = vpop.f32.mrb[0].mxu0
    %v538 = vpop.f32.mrb[0].mxu0
    %v539 = vadd.f32 %v136, %v538
    %v540 = vpop.f32.mrb[0].mxu0
    %541 = vmatprep.mubr.bf16.mxu0 0
    %542 = vmatmul.mubr.bf16.gmra.mrb[0].mxu0 %v81
    %v543 = vpop.f32.mrb[0].mxu0
    %v544 = vadd.f32 %v136, %v543
    %v545 = vpop.f32.mrb[0].mxu0
    %v546 = vpop.f32.mrb[0].mxu0
    %v547 = vadd.f32 %v136, %v546
    %v548 = vpop.f32.mrb[0].mxu0
    %549 = vmatprep.mubr.bf16.mxu0 0
    %550 = vmatmul.mubr.bf16.gmra.mrb[0].mxu0 %v82
    %v551 = vpop.f32.mrb[0].mxu0
    %v552 = vadd.f32 %v136, %v551
    %v553 = vpop.f32.mrb[0].mxu0
    %v554 = vpop.f32.mrb[0].mxu0
    %v555 = vadd.f32 %v136, %v554
    %v556 = vpop.f32.mrb[0].mxu0
    %557 = vmatprep.mubr.bf16.mxu0 0
    %558 = vmatmul.mubr.bf16.gmra.mrb[0].mxu0 %v83
    %v559 = vpop.f32.mrb[0].mxu0
    %v560 = vadd.f32 %v136, %v559
    %v561 = vpop.f32.mrb[0].mxu0
    %v562 = vpop.f32.mrb[0].mxu0
    %v563 = vadd.f32 %v136, %v562
    %v564 = vpop.f32.mrb[0].mxu0
    %565 = vmatprep.mubr.bf16.mxu0 0
    %566 = vmatmul.mubr.bf16.gmra.mrb[0].mxu0 %v84
    %v567 = vpop.f32.mrb[0].mxu0
    %v568 = vadd.f32 %v136, %v567
    %v569 = vpop.f32.mrb[0].mxu0
    %v570 = vpop.f32.mrb[0].mxu0
    %v571 = vadd.f32 %v136, %v570
    %v572 = vpop.f32.mrb[0].mxu0
    %573 = vmatprep.mubr.bf16.mxu0 0
    %574 = vmatmul.mubr.bf16.gmra.mrb[0].mxu0 %v85
    %v575 = vpop.f32.mrb[0].mxu0
    %v576 = vadd.f32 %v136, %v575
    %v577 = vpop.f32.mrb[0].mxu0
    %v578 = vpop.f32.mrb[0].mxu0
    %v579 = vadd.f32 %v136, %v578
    %v580 = vpop.f32.mrb[0].mxu0
    %581 = vmatprep.mubr.bf16.mxu0 0
    %582 = vmatmul.mubr.bf16.gmra.mrb[0].mxu0 %v86
    %v583 = vpop.f32.mrb[0].mxu0
    %v584 = vadd.f32 %v136, %v583
    %v585 = vpop.f32.mrb[0].mxu0
    %v586 = vpop.f32.mrb[0].mxu0
    %v587 = vadd.f32 %v136, %v586
    %v588 = vpop.f32.mrb[0].mxu0
    %589 = vmatprep.mubr.bf16.mxu0 0
    %590 = vmatmul.mubr.bf16.gmra.mrb[0].mxu0 %v87
    %v591 = vpop.f32.mrb[0].mxu0
    %v592 = vadd.f32 %v136, %v591
    %v593 = vpop.f32.mrb[0].mxu0
    %v594 = vpop.f32.mrb[0].mxu0
    %v595 = vadd.f32 %v136, %v594
    %v596 = vpop.f32.mrb[0].mxu0
    %597 = vmatprep.mubr.bf16.mxu0 0
    %598 = vmatmul.mubr.bf16.gmra.mrb[0].mxu0 %v88
    %v599 = vpop.f32.mrb[0].mxu0
    %v600 = vadd.f32 %v136, %v599
    %v601 = vpop.f32.mrb[0].mxu0
    %v602 = vpop.f32.mrb[0].mxu0
    %v603 = vadd.f32 %v136, %v602
    %v604 = vpop.f32.mrb[0].mxu0
    %605 = vmatprep.mubr.bf16.mxu0 0
    %606 = vmatmul.mubr.bf16.gmra.mrb[0].mxu0 %v89
    %v607 = vpop.f32.mrb[0].mxu0
    %v608 = vadd.f32 %v136, %v607
    %v609 = vpop.f32.mrb[0].mxu0
    %v610 = vpop.f32.mrb[0].mxu0
    %v611 = vadd.f32 %v136, %v610
    %v612 = vpop.f32.mrb[0].mxu0
    %613 = vmatprep.mubr.bf16.mxu0 0
    %614 = vmatmul.mubr.bf16.gmra.mrb[0].mxu0 %v90
    %v615 = vpop.f32.mrb[0].mxu0
    %v616 = vadd.f32 %v136, %v615
    %v617 = vpop.f32.mrb[0].mxu0
    %v618 = vpop.f32.mrb[0].mxu0
    %v619 = vadd.f32 %v136, %v618
    %v620 = vpop.f32.mrb[0].mxu0
    %621 = vdwg.mxu0
    %v622 = vpack.c.bf16 %v307, %v303
    %v623 = vpack.c.bf16 %v309, %v305
    %v624 = vpack.c.bf16 %v499, %v496
    %v625 = vpack.c.bf16 %v317, %v313
    %v626 = vpack.c.bf16 %v319, %v315
    %v627 = vpack.c.bf16 %v507, %v504
    %v628 = vpack.c.bf16 %v327, %v323
    %v629 = vpack.c.bf16 %v329, %v325
    %v630 = vpack.c.bf16 %v515, %v512
    %v631 = vpack.c.bf16 %v337, %v333
    %v632 = vpack.c.bf16 %v339, %v335
    %v633 = vpack.c.bf16 %v523, %v520
    %v634 = vpack.c.bf16 %v347, %v343
    %v635 = vpack.c.bf16 %v349, %v345
    %v636 = vpack.c.bf16 %v531, %v528
    %v637 = vpack.c.bf16 %v357, %v353
    %v638 = vpack.c.bf16 %v359, %v355
    %v639 = vpack.c.bf16 %v539, %v536
    %v640 = vpack.c.bf16 %v367, %v363
    %v641 = vpack.c.bf16 %v369, %v365
    %v642 = vpack.c.bf16 %v547, %v544
    %v643 = vpack.c.bf16 %v377, %v373
    %v644 = vpack.c.bf16 %v379, %v375
    %v645 = vpack.c.bf16 %v555, %v552
    %v646 = vpack.c.bf16 %v387, %v383
    %v647 = vpack.c.bf16 %v389, %v385
    %v648 = vpack.c.bf16 %v563, %v560
    %v649 = vpack.c.bf16 %v397, %v393
    %v650 = vpack.c.bf16 %v399, %v395
    %v651 = vpack.c.bf16 %v571, %v568
    %v652 = vpack.c.bf16 %v407, %v403
    %v653 = vpack.c.bf16 %v409, %v405
    %v654 = vpack.c.bf16 %v579, %v576
    %v655 = vpack.c.bf16 %v417, %v413
    %v656 = vpack.c.bf16 %v419, %v415
    %v657 = vpack.c.bf16 %v587, %v584
    %v658 = vpack.c.bf16 %v427, %v423
    %v659 = vpack.c.bf16 %v429, %v425
    %v660 = vpack.c.bf16 %v595, %v592
    %v661 = vpack.c.bf16 %v437, %v433
    %v662 = vpack.c.bf16 %v439, %v435
    %v663 = vpack.c.bf16 %v603, %v600
    %v664 = vpack.c.bf16 %v447, %v443
    %v665 = vpack.c.bf16 %v449, %v445
    %v666 = vpack.c.bf16 %v611, %v608
    %v667 = vpack.c.bf16 %v457, %v453
    %v668 = vpack.c.bf16 %v459, %v455
    %v669 = vpack.c.bf16 %v619, %v616
    %v718 = vunpack.c.l.b16 %v622
    %v719 = vunpack.c.l.b16 %v623
    %v720 = vunpack.c.l.b16 %v624
    %v721 = vunpack.c.h.b16 %v622
    %v722 = vunpack.c.h.b16 %v623
    %v723 = vunpack.c.h.b16 %v624
    %v724 = vunpack.c.l.b16 %v625
    %v725 = vunpack.c.l.b16 %v626
    %v726 = vunpack.c.l.b16 %v627
    %v727 = vunpack.c.h.b16 %v625
    %v728 = vunpack.c.h.b16 %v626
    %v729 = vunpack.c.h.b16 %v627
    %v730 = vunpack.c.l.b16 %v628
    %v731 = vunpack.c.l.b16 %v629
    %v732 = vunpack.c.l.b16 %v630
    %v733 = vunpack.c.h.b16 %v628
    %v734 = vunpack.c.h.b16 %v629
    %v735 = vunpack.c.h.b16 %v630
    %v736 = vunpack.c.l.b16 %v631
    %v737 = vunpack.c.l.b16 %v632
    %v738 = vunpack.c.l.b16 %v633
    %v739 = vunpack.c.h.b16 %v631
    %v740 = vunpack.c.h.b16 %v632
    %v741 = vunpack.c.h.b16 %v633
    %v742 = vunpack.c.l.b16 %v634
    %v743 = vunpack.c.l.b16 %v635
    %v744 = vunpack.c.l.b16 %v636
    %v745 = vunpack.c.h.b16 %v634
    %v746 = vunpack.c.h.b16 %v635
    %v747 = vunpack.c.h.b16 %v636
    %v748 = vunpack.c.l.b16 %v637
    %v749 = vunpack.c.l.b16 %v638
    %v750 = vunpack.c.l.b16 %v639
    %v751 = vunpack.c.h.b16 %v637
    %v752 = vunpack.c.h.b16 %v638
    %v753 = vunpack.c.h.b16 %v639
    %v754 = vunpack.c.l.b16 %v640
    %v755 = vunpack.c.l.b16 %v641
    %v756 = vunpack.c.l.b16 %v642
    %v757 = vunpack.c.h.b16 %v640
    %v758 = vunpack.c.h.b16 %v641
    %v759 = vunpack.c.h.b16 %v642
    %v760 = vunpack.c.l.b16 %v643
    %v761 = vunpack.c.l.b16 %v644
    %v762 = vunpack.c.l.b16 %v645
    %v763 = vunpack.c.h.b16 %v643
    %v764 = vunpack.c.h.b16 %v644
    %v765 = vunpack.c.h.b16 %v645
    %v766 = vunpack.c.l.b16 %v646
    %v767 = vunpack.c.l.b16 %v647
    %v768 = vunpack.c.l.b16 %v648
    %v769 = vunpack.c.h.b16 %v646
    %v770 = vunpack.c.h.b16 %v647
    %v771 = vunpack.c.h.b16 %v648
    %v772 = vunpack.c.l.b16 %v649
    %v773 = vunpack.c.l.b16 %v650
    %v774 = vunpack.c.l.b16 %v651
    %v775 = vunpack.c.h.b16 %v649
    %v776 = vunpack.c.h.b16 %v650
    %v777 = vunpack.c.h.b16 %v651
    %v778 = vunpack.c.l.b16 %v652
    %v779 = vunpack.c.l.b16 %v653
    %v780 = vunpack.c.l.b16 %v654
    %v781 = vunpack.c.h.b16 %v652
    %v782 = vunpack.c.h.b16 %v653
    %v783 = vunpack.c.h.b16 %v654
    %v784 = vunpack.c.l.b16 %v655
    %v785 = vunpack.c.l.b16 %v656
    %v786 = vunpack.c.l.b16 %v657
    %v787 = vunpack.c.h.b16 %v655
    %v788 = vunpack.c.h.b16 %v656
    %v789 = vunpack.c.h.b16 %v657
    %v790 = vunpack.c.l.b16 %v658
    %v791 = vunpack.c.l.b16 %v659
    %v792 = vunpack.c.l.b16 %v660
    %v793 = vunpack.c.h.b16 %v658
    %v794 = vunpack.c.h.b16 %v659
    %v795 = vunpack.c.h.b16 %v660
    %v796 = vunpack.c.l.b16 %v661
    %v797 = vunpack.c.l.b16 %v662
    %v798 = vunpack.c.l.b16 %v663
    %v799 = vunpack.c.h.b16 %v661
    %v800 = vunpack.c.h.b16 %v662
    %v801 = vunpack.c.h.b16 %v663
    %v802 = vunpack.c.l.b16 %v664
    %v803 = vunpack.c.l.b16 %v665
    %v804 = vunpack.c.l.b16 %v666
    %v805 = vunpack.c.h.b16 %v664
    %v806 = vunpack.c.h.b16 %v665
    %v807 = vunpack.c.h.b16 %v666
    %v808 = vunpack.c.l.b16 %v667
    %v809 = vunpack.c.l.b16 %v668
    %v810 = vunpack.c.l.b16 %v669
    %v811 = vunpack.c.h.b16 %v667
    %v812 = vunpack.c.h.b16 %v668
    %v813 = vunpack.c.h.b16 %v669
    %v814 = vpack.c.b16 %v719, %v718
    %v815 = vpack.c.b16 %v720, %v720
    %v816 = vpack.c.b16 %v722, %v721
    %v817 = vpack.c.b16 %v723, %v723
    %v818 = vpack.c.b16 %v725, %v724
    %v819 = vpack.c.b16 %v726, %v726
    %v820 = vpack.c.b16 %v728, %v727
    %v821 = vpack.c.b16 %v729, %v729
    %v822 = vpack.c.b16 %v731, %v730
    %v823 = vpack.c.b16 %v732, %v732
    %v824 = vpack.c.b16 %v734, %v733
    %v825 = vpack.c.b16 %v735, %v735
    %v826 = vpack.c.b16 %v737, %v736
    %v827 = vpack.c.b16 %v738, %v738
    %v828 = vpack.c.b16 %v740, %v739
    %v829 = vpack.c.b16 %v741, %v741
    %v830 = vpack.c.b16 %v743, %v742
    %v831 = vpack.c.b16 %v744, %v744
    %v832 = vpack.c.b16 %v746, %v745
    %v833 = vpack.c.b16 %v747, %v747
    %v834 = vpack.c.b16 %v749, %v748
    %v835 = vpack.c.b16 %v750, %v750
    %v836 = vpack.c.b16 %v752, %v751
    %v837 = vpack.c.b16 %v753, %v753
    %v838 = vpack.c.b16 %v755, %v754
    %v839 = vpack.c.b16 %v756, %v756
    %v840 = vpack.c.b16 %v758, %v757
    %v841 = vpack.c.b16 %v759, %v759
    %v842 = vpack.c.b16 %v761, %v760
    %v843 = vpack.c.b16 %v762, %v762
    %v844 = vpack.c.b16 %v764, %v763
    %v845 = vpack.c.b16 %v765, %v765
    %v846 = vpack.c.b16 %v767, %v766
    %v847 = vpack.c.b16 %v768, %v768
    %v848 = vpack.c.b16 %v770, %v769
    %v849 = vpack.c.b16 %v771, %v771
    %v850 = vpack.c.b16 %v773, %v772
    %v851 = vpack.c.b16 %v774, %v774
    %v852 = vpack.c.b16 %v776, %v775
    %v853 = vpack.c.b16 %v777, %v777
    %v854 = vpack.c.b16 %v779, %v778
    %v855 = vpack.c.b16 %v780, %v780
    %v856 = vpack.c.b16 %v782, %v781
    %v857 = vpack.c.b16 %v783, %v783
    %v858 = vpack.c.b16 %v785, %v784
    %v859 = vpack.c.b16 %v786, %v786
    %v860 = vpack.c.b16 %v788, %v787
    %v861 = vpack.c.b16 %v789, %v789
    %v862 = vpack.c.b16 %v791, %v790
    %v863 = vpack.c.b16 %v792, %v792
    %v864 = vpack.c.b16 %v794, %v793
    %v865 = vpack.c.b16 %v795, %v795
    %v866 = vpack.c.b16 %v797, %v796
    %v867 = vpack.c.b16 %v798, %v798
    %v868 = vpack.c.b16 %v800, %v799
    %v869 = vpack.c.b16 %v801, %v801
    %v870 = vpack.c.b16 %v803, %v802
    %v871 = vpack.c.b16 %v804, %v804
    %v872 = vpack.c.b16 %v806, %v805
    %v873 = vpack.c.b16 %v807, %v807
    %v874 = vpack.c.b16 %v809, %v808
    %v875 = vpack.c.b16 %v810, %v810
    %v876 = vpack.c.b16 %v812, %v811
    %v877 = vpack.c.b16 %v813, %v813
    %942 = vst [vmem:[%s3] sm:$0xff] %v814
    %943 = vst [vmem:[%s3 + $0x8] sm:$0xf] %v815
    %944 = vst [vmem:[%s3 + $0xc] sm:$0xff] %v816
    %945 = vst [vmem:[%s3 + $0x14] sm:$0xf] %v817
    %946 = vst [vmem:[%s3 + $0x18] sm:$0xff] %v818
    %947 = vst [vmem:[%s3 + $0x20] sm:$0xf] %v819
    %948 = vst [vmem:[%s3 + $0x24] sm:$0xff] %v820
    %949 = vst [vmem:[%s3 + $0x2c] sm:$0xf] %v821
    %950 = vst [vmem:[%s3 + $0x30] sm:$0xff] %v822
    %951 = vst [vmem:[%s3 + $0x38] sm:$0xf] %v823
    %952 = vst [vmem:[%s3 + $0x3c] sm:$0xff] %v824
    %953 = vst [vmem:[%s3 + $0x44] sm:$0xf] %v825
    %954 = vst [vmem:[%s3 + $0x48] sm:$0xff] %v826
    %955 = vst [vmem:[%s3 + $0x50] sm:$0xf] %v827
    %956 = vst [vmem:[%s3 + $0x54] sm:$0xff] %v828
    %957 = vst [vmem:[%s3 + $0x5c] sm:$0xf] %v829
    %958 = vst [vmem:[%s3 + $0x60] sm:$0xff] %v830
    %959 = vst [vmem:[%s3 + $0x68] sm:$0xf] %v831
    %960 = vst [vmem:[%s3 + $0x6c] sm:$0xff] %v832
    %961 = vst [vmem:[%s3 + $0x74] sm:$0xf] %v833
    %962 = vst [vmem:[%s3 + $0x78] sm:$0xff] %v834
    %963 = vst [vmem:[%s3 + $0x80] sm:$0xf] %v835
    %964 = vst [vmem:[%s3 + $0x84] sm:$0xff] %v836
    %965 = vst [vmem:[%s3 + $0x8c] sm:$0xf] %v837
    %966 = vst [vmem:[%s3 + $0x90] sm:$0xff] %v838
    %967 = vst [vmem:[%s3 + $0x98] sm:$0xf] %v839
    %968 = vst [vmem:[%s3 + $0x9c] sm:$0xff] %v840
    %969 = vst [vmem:[%s3 + $0xa4] sm:$0xf] %v841
    %970 = vst [vmem:[%s3 + $0xa8] sm:$0xff] %v842
    %971 = vst [vmem:[%s3 + $0xb0] sm:$0xf] %v843
    %972 = vst [vmem:[%s3 + $0xb4] sm:$0xff] %v844
    %973 = vst [vmem:[%s3 + $0xbc] sm:$0xf] %v845
    %974 = vst [vmem:[%s3 + $0xc0] sm:$0xff] %v846
    %975 = vst [vmem:[%s3 + $0xc8] sm:$0xf] %v847
    %976 = vst [vmem:[%s3 + $0xcc] sm:$0xff] %v848
    %977 = vst [vmem:[%s3 + $0xd4] sm:$0xf] %v849
    %978 = vst [vmem:[%s3 + $0xd8] sm:$0xff] %v850
    %979 = vst [vmem:[%s3 + $0xe0] sm:$0xf] %v851
    %980 = vst [vmem:[%s3 + $0xe4] sm:$0xff] %v852
    %981 = vst [vmem:[%s3 + $0xec] sm:$0xf] %v853
    %982 = vst [vmem:[%s3 + $0xf0] sm:$0xff] %v854
    %983 = vst [vmem:[%s3 + $0xf8] sm:$0xf] %v855
    %984 = vst [vmem:[%s3 + $0xfc] sm:$0xff] %v856
    %985 = vst [vmem:[%s3 + $0x104] sm:$0xf] %v857
    %986 = vst [vmem:[%s3 + $0x108] sm:$0xff] %v858
    %987 = vst [vmem:[%s3 + $0x110] sm:$0xf] %v859
    %988 = vst [vmem:[%s3 + $0x114] sm:$0xff] %v860
    %989 = vst [vmem:[%s3 + $0x11c] sm:$0xf] %v861
    %990 = vst [vmem:[%s3 + $0x120] sm:$0xff] %v862
    %991 = vst [vmem:[%s3 + $0x128] sm:$0xf] %v863
    %992 = vst [vmem:[%s3 + $0x12c] sm:$0xff] %v864
    %993 = vst [vmem:[%s3 + $0x134] sm:$0xf] %v865
    %994 = vst [vmem:[%s3 + $0x138] sm:$0xff] %v866
    %995 = vst [vmem:[%s3 + $0x140] sm:$0xf] %v867
    %996 = vst [vmem:[%s3 + $0x144] sm:$0xff] %v868
    %997 = vst [vmem:[%s3 + $0x14c] sm:$0xf] %v869
    %998 = vst [vmem:[%s3 + $0x150] sm:$0xff] %v870
    %999 = vst [vmem:[%s3 + $0x158] sm:$0xf] %v871
    %1000 = vst [vmem:[%s3 + $0x15c] sm:$0xff] %v872
    %1001 = vst [vmem:[%s3 + $0x164] sm:$0xf] %v873
    %1002 = vst [vmem:[%s3 + $0x168] sm:$0xff] %v874
    %1003 = vst [vmem:[%s3 + $0x170] sm:$0xf] %v875
    %1004 = vst [vmem:[%s3 + $0x174] sm:$0xff] %v876
    %1005 = vst [vmem:[%s3 + $0x17c] sm:$0xf] %v877
    // Predicated region
    $region22: #{multi_head_attention.3} parent=1 // pred_check
      _
    $region23: #{multi_head_attention.3} parent=1 // pred_check_branch
      %1007 = sbr.rel (0) target = $region25
    $region24: #{multi_head_attention.3} parent=1 // pred_region
      _
    $region25: #{multi_head_attention.3} parent=1 // pred_fallthru
      _
    // Predicated region
    $region26: #{multi_head_attention.3} parent=1 // pred_check
      _
    $region27: #{multi_head_attention.3} parent=1 // pred_check_branch
      %1009 = sbr.rel (0) target = $region29
    $region28: #{multi_head_attention.3} parent=1 // pred_region
      _
    $region29: #{multi_head_attention.3} parent=1 // pred_fallthru
      _
    %1010 = vsyncpa [#allocation3], 1
    %1011 = vsyncpa [#allocation5], 1

// kernel: multi_head_attention.4
$region0: #{multi_head_attention.4}
  #allocation0 [shape = 'u32[]', space=smem, size = 0x4, offset = 0x4, fixed_abs, tag = 'smem constant byte address 0x4 - core index']
  #allocation1 [shape = 'u32[144,128]{1,0:T(1,128)}', space=vmem, size = 0x12000, scoped, tag = 'internal scratch']
  #allocation2 [shape = 'f32[4,128,1]{2,1,0:T(8,128)}', space=vmem, size = 0x40000, scoped, tag = 'scratch operand']
  #allocation3 [shape = 'f32[4,128,1]{2,1,0:T(8,128)}', space=vmem, size = 0x40000, scoped, tag = 'scratch operand']
  #allocation4 [shape = 'f32[4,128,32]{2,1,0:T(8,128)}', space=vmem, size = 0x40000, scoped, tag = 'scratch operand']
  %s0 = inlined_call_operand.vmem [shape: bf16[2,128,128], index: 0, kind: input, shape index: {}]
  %s1 = inlined_call_operand.vmem [shape: bf16[2,128,128], index: 1, kind: input, shape index: {}]
  %s2 = inlined_call_operand.vmem [shape: bf16[2,128,128], index: 2, kind: input, shape index: {}]
  %s3 = inlined_call_operand.vmem [shape: bf16[2,128,128], index: 3, kind: output, shape index: {}]
  %s4 = sld [smem:[#allocation0]]
  $region53: #{multi_head_attention.4} parent=0
    _
  %s6 = ssub.s32 1, %s4
  %s7 = scalar_select 0, %s6, %s4
  loop: start=0, step=1, limit=4
  $region2: #{multi_head_attention.4} parent=0 // loop_pre_header
    _
  $region3: #{multi_head_attention.4} parent=0 // loop_header
    %s9 = sphi 0, %s13
    %p10 = scmp.ge.s32.totalorder %s9, 4
    %s16 = sphi 0, %s35
    %s17 = sphi 0, %s31
    %s18 = sphi 0, %s27
    %s19 = sphi 0, %s16
    %s20 = sphi 0, %s17
    %s21 = sphi 0, %s18
    %s22 = sphi 0, %s19
    %s23 = sphi 0, %s20
    %s24 = sphi 0, %s21
    %s40 = sphi 0, %s42
    %s43 = sphi 0, %s40
    %s44 = sphi 0, %s43
    %s60 = sphi 0, %s44
    %s68 = sphi 0, %s70
    %s71 = sphi 0, %s68
    %s72 = sphi 0, %s71
    %s88 = sphi 0, %s72
    %s96 = sphi 0, %s98
    %s99 = sphi 0, %s96
    %s100 = sphi 0, %s99
    %s116 = sphi 0, %s100
    %s124 = sphi 0, %s126
    %s127 = sphi 0, %s124
    %s128 = sphi 0, %s127
    %s144 = sphi 0, %s128
  $region4: #{multi_head_attention.4} parent=0 // loop_header_branch
    %12 = sbr.rel (%p10) target = $region8
  $region5: #{multi_head_attention.4} parent=0 // loop_body
    %s14 = ssub.s32 %s9, 1
    %s15 = ssub.s32 %s9, 2
    %s25 = sadd.s32 1, %s18
    %p26 = scmp.ge.s32.totalorder %s25, 1
    %s27 = scalar_select %p26, 0, %s25
    %s28 = sadd.s32 1, %s17
    %s29 = scalar_select %p26, %s28, %s17
    %p30 = scmp.ge.s32.totalorder %s29, 1
    %s31 = scalar_select %p30, 0, %s29
    %s32 = sadd.s32 1, %s16
    %s33 = scalar_select %p30, %s32, %s16
    %p34 = scmp.ge.s32.totalorder %s33, 2
    %s35 = scalar_select %p34, 0, %s33
    %s36 = ssub.s32 %s16, %s35
    %s37 = ssub.s32 %s17, %s31
    %s38 = sor.u32 %s36, %s37
    %p39 = scmp.eq.s32.totalorder %s38, 0
    %s41 = sadd.s32 %s40, 1
    %s42 = scalar_select %p39, %s40, %s41
    %p45 = pneg %p39
    %p46 = scmp.eq.s32.totalorder %s9, 1
    %p47 = por %p45, %p46
    %p48 = scmp.ne.s32.totalorder %s40, %s43
    %p49 = scmp.eq.s32.totalorder %s9, 0
    %p50 = por %p48, %p49
    %p51 = scmp.ne.s32.totalorder %s40, %s43
    %p52 = scmp.eq.s32.totalorder %s14, 1
    %p53 = por %p51, %p52
    %p54 = scmp.ne.s32.totalorder %s43, %s44
    %p55 = scmp.eq.s32.totalorder %s14, 0
    %p56 = por %p54, %p55
    %p57 = scmp.ne.s32.totalorder %s43, %s44
    %p58 = scmp.eq.s32.totalorder %s15, 1
    %p59 = por %p57, %p58
    %p61 = scmp.ne.s32.totalorder %s44, %s60
    %p62 = scmp.eq.s32.totalorder %s15, 0
    %p63 = por %p61, %p62
    %s64 = ssub.s32 %s16, %s35
    %s65 = ssub.s32 %s18, %s27
    %s66 = sor.u32 %s64, %s65
    %p67 = scmp.eq.s32.totalorder %s66, 0
    %s69 = sadd.s32 %s68, 1
    %s70 = scalar_select %p67, %s68, %s69
    %p73 = pneg %p67
    %p74 = scmp.eq.s32.totalorder %s9, 1
    %p75 = por %p73, %p74
    %p76 = scmp.ne.s32.totalorder %s68, %s71
    %p77 = scmp.eq.s32.totalorder %s9, 0
    %p78 = por %p76, %p77
    %p79 = scmp.ne.s32.totalorder %s68, %s71
    %p80 = scmp.eq.s32.totalorder %s14, 1
    %p81 = por %p79, %p80
    %p82 = scmp.ne.s32.totalorder %s71, %s72
    %p83 = scmp.eq.s32.totalorder %s14, 0
    %p84 = por %p82, %p83
    %p85 = scmp.ne.s32.totalorder %s71, %s72
    %p86 = scmp.eq.s32.totalorder %s15, 1
    %p87 = por %p85, %p86
    %p89 = scmp.ne.s32.totalorder %s72, %s88
    %p90 = scmp.eq.s32.totalorder %s15, 0
    %p91 = por %p89, %p90
    %s92 = ssub.s32 %s16, %s35
    %s93 = ssub.s32 %s18, %s27
    %s94 = sor.u32 %s92, %s93
    %p95 = scmp.eq.s32.totalorder %s94, 0
    %s97 = sadd.s32 %s96, 1
    %s98 = scalar_select %p95, %s96, %s97
    %p101 = pneg %p95
    %p102 = scmp.eq.s32.totalorder %s9, 1
    %p103 = por %p101, %p102
    %p104 = scmp.ne.s32.totalorder %s96, %s99
    %p105 = scmp.eq.s32.totalorder %s9, 0
    %p106 = por %p104, %p105
    %p107 = scmp.ne.s32.totalorder %s96, %s99
    %p108 = scmp.eq.s32.totalorder %s14, 1
    %p109 = por %p107, %p108
    %p110 = scmp.ne.s32.totalorder %s99, %s100
    %p111 = scmp.eq.s32.totalorder %s14, 0
    %p112 = por %p110, %p111
    %p113 = scmp.ne.s32.totalorder %s99, %s100
    %p114 = scmp.eq.s32.totalorder %s15, 1
    %p115 = por %p113, %p114
    %p117 = scmp.ne.s32.totalorder %s100, %s116
    %p118 = scmp.eq.s32.totalorder %s15, 0
    %p119 = por %p117, %p118
    %s120 = ssub.s32 %s16, %s35
    %s121 = ssub.s32 %s17, %s31
    %s122 = sor.u32 %s120, %s121
    %p123 = scmp.eq.s32.totalorder %s122, 0
    %s125 = sadd.s32 %s124, 1
    %s126 = scalar_select %p123, %s124, %s125
    %p129 = pneg %p123
    %p130 = scmp.eq.s32.totalorder %s9, 1
    %p131 = por %p129, %p130
    %p132 = scmp.ne.s32.totalorder %s124, %s127
    %p133 = scmp.eq.s32.totalorder %s9, 0
    %p134 = por %p132, %p133
    %p135 = scmp.ne.s32.totalorder %s124, %s127
    %p136 = scmp.eq.s32.totalorder %s14, 1
    %p137 = por %p135, %p136
    %p138 = scmp.ne.s32.totalorder %s127, %s128
    %p139 = scmp.eq.s32.totalorder %s14, 0
    %p140 = por %p138, %p139
    %p141 = scmp.ne.s32.totalorder %s127, %s128
    %p142 = scmp.eq.s32.totalorder %s15, 1
    %p143 = por %p141, %p142
    %p145 = scmp.ne.s32.totalorder %s128, %s144
    %p146 = scmp.eq.s32.totalorder %s15, 0
    %p147 = por %p145, %p146
    %p148 = scmp.le.s32.totalorder 1, %s9
    %p149 = scmp.lt.s32.totalorder %s9, 3
    %p150 = pnand %p148, %p149
    %p151 = pneg %p150
    // Predicated region
    $region9: #{multi_head_attention.4} parent=5 // pred_check
      _
    $region10: #{multi_head_attention.4} parent=5 // pred_check_branch
      %153 = sbr.rel (%p150) target = $region12
    $region11: #{multi_head_attention.4} parent=5 // pred_region
      %s154 = ssub.s32 %s9, 1
    $region12: #{multi_head_attention.4} parent=5 // pred_fallthru
      _
    %p155 = scmp.lt.s32.totalorder %s9, 2
    // Predicated region
    $region13: #{multi_head_attention.4} parent=5 // pred_check
      %p156 = pneg %p155
    $region14: #{multi_head_attention.4} parent=5 // pred_check_branch
      %158 = sbr.rel (%p156) target = $region16
    $region15: #{multi_head_attention.4} parent=5 // pred_region
      // Predicated region
      $region17: #{multi_head_attention.4} parent=15 // pred_check
        %p159 = pneg %p50
      $region18: #{multi_head_attention.4} parent=15 // pred_check_branch
        %161 = sbr.rel (%p159) target = $region20
      $region19: #{multi_head_attention.4} parent=15 // pred_region
        %s162 = smul.u32 16, %s17
        %p163 = scmp.lt.s32.totalorder %s16, 1
        %s164 = scalar_select %p163, %s16, 1
        %p165 = scmp.lt.s32.totalorder %s162, 15
        %s166 = scalar_select %p165, %s162, 15
        %s167 = smul.addr %s164, 16
        %s168 = sadd.s32 %s166, %s167
        %s169 = smul.addr %s168, 4
        %s170 = scalar_lea.vmem %s0, %s169
        %s171 = smul.u32 16, %s17
      $region20: #{multi_head_attention.4} parent=15 // pred_fallthru
        _
      // Predicated region
      $region21: #{multi_head_attention.4} parent=15 // pred_check
        %p172 = pneg %p78
      $region22: #{multi_head_attention.4} parent=15 // pred_check_branch
        %174 = sbr.rel (%p172) target = $region24
      $region23: #{multi_head_attention.4} parent=15 // pred_region
        %s175 = smul.u32 16, %s18
        %p176 = scmp.lt.s32.totalorder %s16, 1
        %s177 = scalar_select %p176, %s16, 1
        %p178 = scmp.lt.s32.totalorder %s175, 15
        %s179 = scalar_select %p178, %s175, 15
        %s180 = smul.addr %s177, 16
        %s181 = sadd.s32 %s179, %s180
        %s182 = smul.addr %s181, 4
        %s183 = scalar_lea.vmem %s1, %s182
        %s184 = smul.u32 16, %s18
      $region24: #{multi_head_attention.4} parent=15 // pred_fallthru
        _
      // Predicated region
      $region25: #{multi_head_attention.4} parent=15 // pred_check
        %p185 = pneg %p106
      $region26: #{multi_head_attention.4} parent=15 // pred_check_branch
        %187 = sbr.rel (%p185) target = $region28
      $region27: #{multi_head_attention.4} parent=15 // pred_region
        %s188 = smul.u32 16, %s18
        %p189 = scmp.lt.s32.totalorder %s16, 1
        %s190 = scalar_select %p189, %s16, 1
        %p191 = scmp.lt.s32.totalorder %s188, 15
        %s192 = scalar_select %p191, %s188, 15
        %s193 = smul.addr %s190, 16
        %s194 = sadd.s32 %s192, %s193
        %s195 = smul.addr %s194, 4
        %s196 = scalar_lea.vmem %s2, %s195
        %s197 = smul.u32 16, %s18
      $region28: #{multi_head_attention.4} parent=15 // pred_fallthru
        _
    $region16: #{multi_head_attention.4} parent=5 // pred_fallthru
      _
    %p198 = scmp.le.s32.totalorder 1, %s9
    %p199 = scmp.lt.s32.totalorder %s9, 3
    %p200 = pnand %p198, %p199
    %p201 = pneg %p200
    // Predicated region
    $region29: #{multi_head_attention.4} parent=5 // pred_check
      _
    $region30: #{multi_head_attention.4} parent=5 // pred_check_branch
      %203 = sbr.rel (%p200) target = $region32
    $region31: #{multi_head_attention.4} parent=5 // pred_region
      %s204 = ssub.s32 %s9, 1
      %s205 = smul.u32 16, %s20
      %p206 = scmp.lt.s32.totalorder %s19, 1
      %s207 = scalar_select %p206, %s19, 1
      %p208 = scmp.lt.s32.totalorder %s205, 15
      %s209 = scalar_select %p208, %s205, 15
      %s210 = smul.addr %s207, 16
      %s211 = sadd.s32 %s209, %s210
      %s212 = smul.addr %s211, 4
      %s213 = scalar_lea.vmem %s0, %s212
      %p214 = pneg %p56
      %p215 = pneg %p53
      %s216 = smul.u32 16, %s21
      %p217 = scmp.lt.s32.totalorder %s19, 1
      %s218 = scalar_select %p217, %s19, 1
      %p219 = scmp.lt.s32.totalorder %s216, 15
      %s220 = scalar_select %p219, %s216, 15
      %s221 = smul.addr %s218, 16
      %s222 = sadd.s32 %s220, %s221
      %s223 = smul.addr %s222, 4
      %s224 = scalar_lea.vmem %s1, %s223
      %p225 = pneg %p84
      %p226 = pneg %p81
      %s227 = smul.u32 16, %s21
      %p228 = scmp.lt.s32.totalorder %s19, 1
      %s229 = scalar_select %p228, %s19, 1
      %p230 = scmp.lt.s32.totalorder %s227, 15
      %s231 = scalar_select %p230, %s227, 15
      %s232 = smul.addr %s229, 16
      %s233 = sadd.s32 %s231, %s232
      %s234 = smul.addr %s233, 4
      %s235 = scalar_lea.vmem %s2, %s234
      %p236 = pneg %p112
      %p237 = pneg %p109
      %p238 = pneg %p140
      %p239 = pneg %p137
      %s240 = smul.u32 16, %s20
      %p241 = scmp.lt.s32.totalorder %s19, 1
      %s242 = scalar_select %p241, %s19, 1
      %p243 = scmp.lt.s32.totalorder %s240, 15
      %s244 = scalar_select %p243, %s240, 15
      %s245 = smul.addr %s242, 16
      %s246 = sadd.s32 %s244, %s245
      %s247 = smul.addr %s246, 4
      %s248 = scalar_lea.vmem %s3, %s247
      %s249 = smul.u32 16, %s20
      %p250 = scmp.lt.s32.totalorder %s19, 1
      %s251 = scalar_select %p250, %s19, 1
      %p252 = scmp.lt.s32.totalorder %s249, 15
      %s253 = scalar_select %p252, %s249, 15
      %s254 = smul.addr %s251, 16
      %s255 = sadd.s32 %s253, %s254
      %s256 = smul.addr %s255, 4
      %s257 = scalar_lea.vmem %s0, %s256
      %s258 = smul.u32 16, %s20
      %s259 = smul.u32 16, %s21
      %p260 = scmp.lt.s32.totalorder %s19, 1
      %s261 = scalar_select %p260, %s19, 1
      %p262 = scmp.lt.s32.totalorder %s259, 15
      %s263 = scalar_select %p262, %s259, 15
      %s264 = smul.addr %s261, 16
      %s265 = sadd.s32 %s263, %s264
      %s266 = smul.addr %s265, 4
      %s267 = scalar_lea.vmem %s1, %s266
      %s268 = smul.u32 16, %s21
      %s269 = smul.u32 16, %s21
      %p270 = scmp.lt.s32.totalorder %s19, 1
      %s271 = scalar_select %p270, %s19, 1
      %p272 = scmp.lt.s32.totalorder %s269, 15
      %s273 = scalar_select %p272, %s269, 15
      %s274 = smul.addr %s271, 16
      %s275 = sadd.s32 %s273, %s274
      %s276 = smul.addr %s275, 4
      %s277 = scalar_lea.vmem %s2, %s276
      %s278 = smul.u32 16, %s21
      %s279 = smul.u32 16, %s20
      %p280 = scmp.lt.s32.totalorder %s19, 1
      %s281 = scalar_select %p280, %s19, 1
      %p282 = scmp.lt.s32.totalorder %s279, 15
      %s283 = scalar_select %p282, %s279, 15
      %s284 = smul.addr %s281, 16
      %s285 = sadd.s32 %s283, %s284
      %s286 = smul.addr %s285, 4
      %s287 = scalar_lea.vmem %s3, %s286
      %s288 = smul.u32 16, %s20
      %p290 = scmp.eq.s32.totalorder %s21, 0
      // Predicated region
      $region33: #{multi_head_attention.4} parent=31 // pred_check
        %p291 = pneg %p290
      $region34: #{multi_head_attention.4} parent=31 // pred_check_branch
        %293 = sbr.rel (%p291) target = $region36
      $region35: #{multi_head_attention.4} parent=31 // pred_region
        %vm294 = vcmask 7168
        %295 = vst.msk [vmem:[#allocation2] sm:$0xff] %vm294, -inf
        %296 = vst.msk [vmem:[#allocation2 + $0x8] sm:$0xff] %vm294, -inf
        %297 = vst.msk [vmem:[#allocation2 + $0x10] sm:$0xff] %vm294, -inf
        %298 = vst.msk [vmem:[#allocation2 + $0x18] sm:$0xff] %vm294, -inf
        %299 = vst.msk [vmem:[#allocation2 + $0x20] sm:$0xff] %vm294, -inf
        %300 = vst.msk [vmem:[#allocation2 + $0x28] sm:$0xff] %vm294, -inf
        %301 = vst.msk [vmem:[#allocation2 + $0x30] sm:$0xff] %vm294, -inf
        %302 = vst.msk [vmem:[#allocation2 + $0x38] sm:$0xff] %vm294, -inf
        %303 = vst.msk [vmem:[#allocation2 + $0x40] sm:$0xff] %vm294, -inf
        %304 = vst.msk [vmem:[#allocation2 + $0x48] sm:$0xff] %vm294, -inf
        %305 = vst.msk [vmem:[#allocation2 + $0x50] sm:$0xff] %vm294, -inf
        %306 = vst.msk [vmem:[#allocation2 + $0x58] sm:$0xff] %vm294, -inf
        %307 = vst.msk [vmem:[#allocation2 + $0x60] sm:$0xff] %vm294, -inf
        %308 = vst.msk [vmem:[#allocation2 + $0x68] sm:$0xff] %vm294, -inf
        %309 = vst.msk [vmem:[#allocation2 + $0x70] sm:$0xff] %vm294, -inf
        %310 = vst.msk [vmem:[#allocation2 + $0x78] sm:$0xff] %vm294, -inf
        %311 = vst.msk [vmem:[#allocation2 + $0x80] sm:$0xff] %vm294, -inf
        %312 = vst.msk [vmem:[#allocation2 + $0x88] sm:$0xff] %vm294, -inf
        %313 = vst.msk [vmem:[#allocation2 + $0x90] sm:$0xff] %vm294, -inf
        %314 = vst.msk [vmem:[#allocation2 + $0x98] sm:$0xff] %vm294, -inf
        %315 = vst.msk [vmem:[#allocation2 + $0xa0] sm:$0xff] %vm294, -inf
        %316 = vst.msk [vmem:[#allocation2 + $0xa8] sm:$0xff] %vm294, -inf
        %317 = vst.msk [vmem:[#allocation2 + $0xb0] sm:$0xff] %vm294, -inf
        %318 = vst.msk [vmem:[#allocation2 + $0xb8] sm:$0xff] %vm294, -inf
        %319 = vst.msk [vmem:[#allocation2 + $0xc0] sm:$0xff] %vm294, -inf
        %320 = vst.msk [vmem:[#allocation2 + $0xc8] sm:$0xff] %vm294, -inf
        %321 = vst.msk [vmem:[#allocation2 + $0xd0] sm:$0xff] %vm294, -inf
        %322 = vst.msk [vmem:[#allocation2 + $0xd8] sm:$0xff] %vm294, -inf
        %323 = vst.msk [vmem:[#allocation2 + $0xe0] sm:$0xff] %vm294, -inf
        %324 = vst.msk [vmem:[#allocation2 + $0xe8] sm:$0xff] %vm294, -inf
        %325 = vst.msk [vmem:[#allocation2 + $0xf0] sm:$0xff] %vm294, -inf
        %326 = vst.msk [vmem:[#allocation2 + $0xf8] sm:$0xff] %vm294, -inf
        %327 = vst.msk [vmem:[#allocation2 + $0x100] sm:$0xff] %vm294, -inf
        %328 = vst.msk [vmem:[#allocation2 + $0x108] sm:$0xff] %vm294, -inf
        %329 = vst.msk [vmem:[#allocation2 + $0x110] sm:$0xff] %vm294, -inf
        %330 = vst.msk [vmem:[#allocation2 + $0x118] sm:$0xff] %vm294, -inf
        %331 = vst.msk [vmem:[#allocation2 + $0x120] sm:$0xff] %vm294, -inf
        %332 = vst.msk [vmem:[#allocation2 + $0x128] sm:$0xff] %vm294, -inf
        %333 = vst.msk [vmem:[#allocation2 + $0x130] sm:$0xff] %vm294, -inf
        %334 = vst.msk [vmem:[#allocation2 + $0x138] sm:$0xff] %vm294, -inf
        %335 = vst.msk [vmem:[#allocation2 + $0x140] sm:$0xff] %vm294, -inf
        %336 = vst.msk [vmem:[#allocation2 + $0x148] sm:$0xff] %vm294, -inf
        %337 = vst.msk [vmem:[#allocation2 + $0x150] sm:$0xff] %vm294, -inf
        %338 = vst.msk [vmem:[#allocation2 + $0x158] sm:$0xff] %vm294, -inf
        %339 = vst.msk [vmem:[#allocation2 + $0x160] sm:$0xff] %vm294, -inf
        %340 = vst.msk [vmem:[#allocation2 + $0x168] sm:$0xff] %vm294, -inf
        %341 = vst.msk [vmem:[#allocation2 + $0x170] sm:$0xff] %vm294, -inf
        %342 = vst.msk [vmem:[#allocation2 + $0x178] sm:$0xff] %vm294, -inf
        %343 = vst.msk [vmem:[#allocation2 + $0x180] sm:$0xff] %vm294, -inf
        %344 = vst.msk [vmem:[#allocation2 + $0x188] sm:$0xff] %vm294, -inf
        %345 = vst.msk [vmem:[#allocation2 + $0x190] sm:$0xff] %vm294, -inf
        %346 = vst.msk [vmem:[#allocation2 + $0x198] sm:$0xff] %vm294, -inf
        %347 = vst.msk [vmem:[#allocation2 + $0x1a0] sm:$0xff] %vm294, -inf
        %348 = vst.msk [vmem:[#allocation2 + $0x1a8] sm:$0xff] %vm294, -inf
        %349 = vst.msk [vmem:[#allocation2 + $0x1b0] sm:$0xff] %vm294, -inf
        %350 = vst.msk [vmem:[#allocation2 + $0x1b8] sm:$0xff] %vm294, -inf
        %351 = vst.msk [vmem:[#allocation2 + $0x1c0] sm:$0xff] %vm294, -inf
        %352 = vst.msk [vmem:[#allocation2 + $0x1c8] sm:$0xff] %vm294, -inf
        %353 = vst.msk [vmem:[#allocation2 + $0x1d0] sm:$0xff] %vm294, -inf
        %354 = vst.msk [vmem:[#allocation2 + $0x1d8] sm:$0xff] %vm294, -inf
        %355 = vst.msk [vmem:[#allocation2 + $0x1e0] sm:$0xff] %vm294, -inf
        %356 = vst.msk [vmem:[#allocation2 + $0x1e8] sm:$0xff] %vm294, -inf
        %357 = vst.msk [vmem:[#allocation2 + $0x1f0] sm:$0xff] %vm294, -inf
        %358 = vst.msk [vmem:[#allocation2 + $0x1f8] sm:$0xff] %vm294, -inf
        %359 = vst.msk [vmem:[#allocation3] sm:$0xff] %vm294, 0.0
        %360 = vst.msk [vmem:[#allocation3 + $0x8] sm:$0xff] %vm294, 0.0
        %361 = vst.msk [vmem:[#allocation3 + $0x10] sm:$0xff] %vm294, 0.0
        %362 = vst.msk [vmem:[#allocation3 + $0x18] sm:$0xff] %vm294, 0.0
        %363 = vst.msk [vmem:[#allocation3 + $0x20] sm:$0xff] %vm294, 0.0
        %364 = vst.msk [vmem:[#allocation3 + $0x28] sm:$0xff] %vm294, 0.0
        %365 = vst.msk [vmem:[#allocation3 + $0x30] sm:$0xff] %vm294, 0.0
        %366 = vst.msk [vmem:[#allocation3 + $0x38] sm:$0xff] %vm294, 0.0
        %367 = vst.msk [vmem:[#allocation3 + $0x40] sm:$0xff] %vm294, 0.0
        %368 = vst.msk [vmem:[#allocation3 + $0x48] sm:$0xff] %vm294, 0.0
        %369 = vst.msk [vmem:[#allocation3 + $0x50] sm:$0xff] %vm294, 0.0
        %370 = vst.msk [vmem:[#allocation3 + $0x58] sm:$0xff] %vm294, 0.0
        %371 = vst.msk [vmem:[#allocation3 + $0x60] sm:$0xff] %vm294, 0.0
        %372 = vst.msk [vmem:[#allocation3 + $0x68] sm:$0xff] %vm294, 0.0
        %373 = vst.msk [vmem:[#allocation3 + $0x70] sm:$0xff] %vm294, 0.0
        %374 = vst.msk [vmem:[#allocation3 + $0x78] sm:$0xff] %vm294, 0.0
        %375 = vst.msk [vmem:[#allocation3 + $0x80] sm:$0xff] %vm294, 0.0
        %376 = vst.msk [vmem:[#allocation3 + $0x88] sm:$0xff] %vm294, 0.0
        %377 = vst.msk [vmem:[#allocation3 + $0x90] sm:$0xff] %vm294, 0.0
        %378 = vst.msk [vmem:[#allocation3 + $0x98] sm:$0xff] %vm294, 0.0
        %379 = vst.msk [vmem:[#allocation3 + $0xa0] sm:$0xff] %vm294, 0.0
        %380 = vst.msk [vmem:[#allocation3 + $0xa8] sm:$0xff] %vm294, 0.0
        %381 = vst.msk [vmem:[#allocation3 + $0xb0] sm:$0xff] %vm294, 0.0
        %382 = vst.msk [vmem:[#allocation3 + $0xb8] sm:$0xff] %vm294, 0.0
        %383 = vst.msk [vmem:[#allocation3 + $0xc0] sm:$0xff] %vm294, 0.0
        %384 = vst.msk [vmem:[#allocation3 + $0xc8] sm:$0xff] %vm294, 0.0
        %385 = vst.msk [vmem:[#allocation3 + $0xd0] sm:$0xff] %vm294, 0.0
        %386 = vst.msk [vmem:[#allocation3 + $0xd8] sm:$0xff] %vm294, 0.0
        %387 = vst.msk [vmem:[#allocation3 + $0xe0] sm:$0xff] %vm294, 0.0
        %388 = vst.msk [vmem:[#allocation3 + $0xe8] sm:$0xff] %vm294, 0.0
        %389 = vst.msk [vmem:[#allocation3 + $0xf0] sm:$0xff] %vm294, 0.0
        %390 = vst.msk [vmem:[#allocation3 + $0xf8] sm:$0xff] %vm294, 0.0
        %391 = vst.msk [vmem:[#allocation3 + $0x100] sm:$0xff] %vm294, 0.0
        %392 = vst.msk [vmem:[#allocation3 + $0x108] sm:$0xff] %vm294, 0.0
        %393 = vst.msk [vmem:[#allocation3 + $0x110] sm:$0xff] %vm294, 0.0
        %394 = vst.msk [vmem:[#allocation3 + $0x118] sm:$0xff] %vm294, 0.0
        %395 = vst.msk [vmem:[#allocation3 + $0x120] sm:$0xff] %vm294, 0.0
        %396 = vst.msk [vmem:[#allocation3 + $0x128] sm:$0xff] %vm294, 0.0
        %397 = vst.msk [vmem:[#allocation3 + $0x130] sm:$0xff] %vm294, 0.0
        %398 = vst.msk [vmem:[#allocation3 + $0x138] sm:$0xff] %vm294, 0.0
        %399 = vst.msk [vmem:[#allocation3 + $0x140] sm:$0xff] %vm294, 0.0
        %400 = vst.msk [vmem:[#allocation3 + $0x148] sm:$0xff] %vm294, 0.0
        %401 = vst.msk [vmem:[#allocation3 + $0x150] sm:$0xff] %vm294, 0.0
        %402 = vst.msk [vmem:[#allocation3 + $0x158] sm:$0xff] %vm294, 0.0
        %403 = vst.msk [vmem:[#allocation3 + $0x160] sm:$0xff] %vm294, 0.0
        %404 = vst.msk [vmem:[#allocation3 + $0x168] sm:$0xff] %vm294, 0.0
        %405 = vst.msk [vmem:[#allocation3 + $0x170] sm:$0xff] %vm294, 0.0
        %406 = vst.msk [vmem:[#allocation3 + $0x178] sm:$0xff] %vm294, 0.0
        %407 = vst.msk [vmem:[#allocation3 + $0x180] sm:$0xff] %vm294, 0.0
        %408 = vst.msk [vmem:[#allocation3 + $0x188] sm:$0xff] %vm294, 0.0
        %409 = vst.msk [vmem:[#allocation3 + $0x190] sm:$0xff] %vm294, 0.0
        %410 = vst.msk [vmem:[#allocation3 + $0x198] sm:$0xff] %vm294, 0.0
        %411 = vst.msk [vmem:[#allocation3 + $0x1a0] sm:$0xff] %vm294, 0.0
        %412 = vst.msk [vmem:[#allocation3 + $0x1a8] sm:$0xff] %vm294, 0.0
        %413 = vst.msk [vmem:[#allocation3 + $0x1b0] sm:$0xff] %vm294, 0.0
        %414 = vst.msk [vmem:[#allocation3 + $0x1b8] sm:$0xff] %vm294, 0.0
        %415 = vst.msk [vmem:[#allocation3 + $0x1c0] sm:$0xff] %vm294, 0.0
        %416 = vst.msk [vmem:[#allocation3 + $0x1c8] sm:$0xff] %vm294, 0.0
        %417 = vst.msk [vmem:[#allocation3 + $0x1d0] sm:$0xff] %vm294, 0.0
        %418 = vst.msk [vmem:[#allocation3 + $0x1d8] sm:$0xff] %vm294, 0.0
        %419 = vst.msk [vmem:[#allocation3 + $0x1e0] sm:$0xff] %vm294, 0.0
        %420 = vst.msk [vmem:[#allocation3 + $0x1e8] sm:$0xff] %vm294, 0.0
        %421 = vst.msk [vmem:[#allocation3 + $0x1f0] sm:$0xff] %vm294, 0.0
        %422 = vst.msk [vmem:[#allocation3 + $0x1f8] sm:$0xff] %vm294, 0.0
        %vm423 = vcmask 261120
        %424 = vst.msk [vmem:[#allocation4] sm:$0xff] %vm423, 0.0
        %425 = vst.msk [vmem:[#allocation4 + $0x8] sm:$0xff] %vm423, 0.0
        %426 = vst.msk [vmem:[#allocation4 + $0x10] sm:$0xff] %vm423, 0.0
        %427 = vst.msk [vmem:[#allocation4 + $0x18] sm:$0xff] %vm423, 0.0
        %428 = vst.msk [vmem:[#allocation4 + $0x20] sm:$0xff] %vm423, 0.0
        %429 = vst.msk [vmem:[#allocation4 + $0x28] sm:$0xff] %vm423, 0.0
        %430 = vst.msk [vmem:[#allocation4 + $0x30] sm:$0xff] %vm423, 0.0
        %431 = vst.msk [vmem:[#allocation4 + $0x38] sm:$0xff] %vm423, 0.0
        %432 = vst.msk [vmem:[#allocation4 + $0x40] sm:$0xff] %vm423, 0.0
        %433 = vst.msk [vmem:[#allocation4 + $0x48] sm:$0xff] %vm423, 0.0
        %434 = vst.msk [vmem:[#allocation4 + $0x50] sm:$0xff] %vm423, 0.0
        %435 = vst.msk [vmem:[#allocation4 + $0x58] sm:$0xff] %vm423, 0.0
        %436 = vst.msk [vmem:[#allocation4 + $0x60] sm:$0xff] %vm423, 0.0
        %437 = vst.msk [vmem:[#allocation4 + $0x68] sm:$0xff] %vm423, 0.0
        %438 = vst.msk [vmem:[#allocation4 + $0x70] sm:$0xff] %vm423, 0.0
        %439 = vst.msk [vmem:[#allocation4 + $0x78] sm:$0xff] %vm423, 0.0
        %440 = vst.msk [vmem:[#allocation4 + $0x80] sm:$0xff] %vm423, 0.0
        %441 = vst.msk [vmem:[#allocation4 + $0x88] sm:$0xff] %vm423, 0.0
        %442 = vst.msk [vmem:[#allocation4 + $0x90] sm:$0xff] %vm423, 0.0
        %443 = vst.msk [vmem:[#allocation4 + $0x98] sm:$0xff] %vm423, 0.0
        %444 = vst.msk [vmem:[#allocation4 + $0xa0] sm:$0xff] %vm423, 0.0
        %445 = vst.msk [vmem:[#allocation4 + $0xa8] sm:$0xff] %vm423, 0.0
        %446 = vst.msk [vmem:[#allocation4 + $0xb0] sm:$0xff] %vm423, 0.0
        %447 = vst.msk [vmem:[#allocation4 + $0xb8] sm:$0xff] %vm423, 0.0
        %448 = vst.msk [vmem:[#allocation4 + $0xc0] sm:$0xff] %vm423, 0.0
        %449 = vst.msk [vmem:[#allocation4 + $0xc8] sm:$0xff] %vm423, 0.0
        %450 = vst.msk [vmem:[#allocation4 + $0xd0] sm:$0xff] %vm423, 0.0
        %451 = vst.msk [vmem:[#allocation4 + $0xd8] sm:$0xff] %vm423, 0.0
        %452 = vst.msk [vmem:[#allocation4 + $0xe0] sm:$0xff] %vm423, 0.0
        %453 = vst.msk [vmem:[#allocation4 + $0xe8] sm:$0xff] %vm423, 0.0
        %454 = vst.msk [vmem:[#allocation4 + $0xf0] sm:$0xff] %vm423, 0.0
        %455 = vst.msk [vmem:[#allocation4 + $0xf8] sm:$0xff] %vm423, 0.0
        %456 = vst.msk [vmem:[#allocation4 + $0x100] sm:$0xff] %vm423, 0.0
        %457 = vst.msk [vmem:[#allocation4 + $0x108] sm:$0xff] %vm423, 0.0
        %458 = vst.msk [vmem:[#allocation4 + $0x110] sm:$0xff] %vm423, 0.0
        %459 = vst.msk [vmem:[#allocation4 + $0x118] sm:$0xff] %vm423, 0.0
        %460 = vst.msk [vmem:[#allocation4 + $0x120] sm:$0xff] %vm423, 0.0
        %461 = vst.msk [vmem:[#allocation4 + $0x128] sm:$0xff] %vm423, 0.0
        %462 = vst.msk [vmem:[#allocation4 + $0x130] sm:$0xff] %vm423, 0.0
        %463 = vst.msk [vmem:[#allocation4 + $0x138] sm:$0xff] %vm423, 0.0
        %464 = vst.msk [vmem:[#allocation4 + $0x140] sm:$0xff] %vm423, 0.0
        %465 = vst.msk [vmem:[#allocation4 + $0x148] sm:$0xff] %vm423, 0.0
        %466 = vst.msk [vmem:[#allocation4 + $0x150] sm:$0xff] %vm423, 0.0
        %467 = vst.msk [vmem:[#allocation4 + $0x158] sm:$0xff] %vm423, 0.0
        %468 = vst.msk [vmem:[#allocation4 + $0x160] sm:$0xff] %vm423, 0.0
        %469 = vst.msk [vmem:[#allocation4 + $0x168] sm:$0xff] %vm423, 0.0
        %470 = vst.msk [vmem:[#allocation4 + $0x170] sm:$0xff] %vm423, 0.0
        %471 = vst.msk [vmem:[#allocation4 + $0x178] sm:$0xff] %vm423, 0.0
        %472 = vst.msk [vmem:[#allocation4 + $0x180] sm:$0xff] %vm423, 0.0
        %473 = vst.msk [vmem:[#allocation4 + $0x188] sm:$0xff] %vm423, 0.0
        %474 = vst.msk [vmem:[#allocation4 + $0x190] sm:$0xff] %vm423, 0.0
        %475 = vst.msk [vmem:[#allocation4 + $0x198] sm:$0xff] %vm423, 0.0
        %476 = vst.msk [vmem:[#allocation4 + $0x1a0] sm:$0xff] %vm423, 0.0
        %477 = vst.msk [vmem:[#allocation4 + $0x1a8] sm:$0xff] %vm423, 0.0
        %478 = vst.msk [vmem:[#allocation4 + $0x1b0] sm:$0xff] %vm423, 0.0
        %479 = vst.msk [vmem:[#allocation4 + $0x1b8] sm:$0xff] %vm423, 0.0
        %480 = vst.msk [vmem:[#allocation4 + $0x1c0] sm:$0xff] %vm423, 0.0
        %481 = vst.msk [vmem:[#allocation4 + $0x1c8] sm:$0xff] %vm423, 0.0
        %482 = vst.msk [vmem:[#allocation4 + $0x1d0] sm:$0xff] %vm423, 0.0
        %483 = vst.msk [vmem:[#allocation4 + $0x1d8] sm:$0xff] %vm423, 0.0
        %484 = vst.msk [vmem:[#allocation4 + $0x1e0] sm:$0xff] %vm423, 0.0
        %485 = vst.msk [vmem:[#allocation4 + $0x1e8] sm:$0xff] %vm423, 0.0
        %486 = vst.msk [vmem:[#allocation4 + $0x1f0] sm:$0xff] %vm423, 0.0
        %487 = vst.msk [vmem:[#allocation4 + $0x1f8] sm:$0xff] %vm423, 0.0
      $region36: #{multi_head_attention.4} parent=31 // pred_fallthru
        _
      %v488 = vld [vmem:[%s257] sm:$0xf]
      %v489 = vld [vmem:[%s257 + $0x4] sm:$0xf]
      %v490 = vld [vmem:[%s257 + $0x8] sm:$0xf]
      %v491 = vld [vmem:[%s257 + $0xc] sm:$0xf]
      %v492 = vld [vmem:[%s257 + $0x10] sm:$0xf]
      %v493 = vld [vmem:[%s257 + $0x14] sm:$0xf]
      %v494 = vld [vmem:[%s257 + $0x18] sm:$0xf]
      %v495 = vld [vmem:[%s257 + $0x1c] sm:$0xf]
      %v496 = vld [vmem:[%s257 + $0x20] sm:$0xf]
      %v497 = vld [vmem:[%s257 + $0x24] sm:$0xf]
      %v498 = vld [vmem:[%s257 + $0x28] sm:$0xf]
      %v499 = vld [vmem:[%s257 + $0x2c] sm:$0xf]
      %v500 = vld [vmem:[%s257 + $0x30] sm:$0xf]
      %v501 = vld [vmem:[%s257 + $0x34] sm:$0xf]
      %v502 = vld [vmem:[%s257 + $0x38] sm:$0xf]
      %v503 = vld [vmem:[%s257 + $0x3c] sm:$0xf]
      %v504 = vunpack.c.l.bf16 %v488
      %v505 = vunpack.c.l.bf16 %v489
      %v506 = vunpack.c.l.bf16 %v490
      %v507 = vunpack.c.l.bf16 %v491
      %v508 = vunpack.c.l.bf16 %v492
      %v509 = vunpack.c.l.bf16 %v493
      %v510 = vunpack.c.l.bf16 %v494
      %v511 = vunpack.c.l.bf16 %v495
      %v512 = vunpack.c.l.bf16 %v496
      %v513 = vunpack.c.l.bf16 %v497
      %v514 = vunpack.c.l.bf16 %v498
      %v515 = vunpack.c.l.bf16 %v499
      %v516 = vunpack.c.l.bf16 %v500
      %v517 = vunpack.c.l.bf16 %v501
      %v518 = vunpack.c.l.bf16 %v502
      %v519 = vunpack.c.l.bf16 %v503
      %v520 = vmul.f32 %v504, 0.17677669
      %v521 = vmul.f32 %v505, 0.17677669
      %v522 = vmul.f32 %v506, 0.17677669
      %v523 = vmul.f32 %v507, 0.17677669
      %v524 = vmul.f32 %v508, 0.17677669
      %v525 = vmul.f32 %v509, 0.17677669
      %v526 = vmul.f32 %v510, 0.17677669
      %v527 = vmul.f32 %v511, 0.17677669
      %v528 = vmul.f32 %v512, 0.17677669
      %v529 = vmul.f32 %v513, 0.17677669
      %v530 = vmul.f32 %v514, 0.17677669
      %v531 = vmul.f32 %v515, 0.17677669
      %v532 = vmul.f32 %v516, 0.17677669
      %v533 = vmul.f32 %v517, 0.17677669
      %v534 = vmul.f32 %v518, 0.17677669
      %v535 = vmul.f32 %v519, 0.17677669
      %v536 = vpack.c.bf16 %v521, %v520
      %v537 = vpack.c.bf16 %v523, %v522
      %v538 = vpack.c.bf16 %v525, %v524
      %v539 = vpack.c.bf16 %v527, %v526
      %v540 = vpack.c.bf16 %v529, %v528
      %v541 = vpack.c.bf16 %v531, %v530
      %v542 = vpack.c.bf16 %v533, %v532
      %v543 = vpack.c.bf16 %v535, %v534
      %v544 = vld [vmem:[%s267] sm:$0xf]
      %v545 = vld [vmem:[%s267 + $0x4] sm:$0xf]
      %v546 = vld [vmem:[%s267 + $0x8] sm:$0xf]
      %v547 = vld [vmem:[%s267 + $0xc] sm:$0xf]
      %v548 = vld [vmem:[%s267 + $0x10] sm:$0xf]
      %v549 = vld [vmem:[%s267 + $0x14] sm:$0xf]
      %v550 = vld [vmem:[%s267 + $0x18] sm:$0xf]
      %v551 = vld [vmem:[%s267 + $0x1c] sm:$0xf]
      %v552 = vld [vmem:[%s267 + $0x20] sm:$0xf]
      %v553 = vld [vmem:[%s267 + $0x24] sm:$0xf]
      %v554 = vld [vmem:[%s267 + $0x28] sm:$0xf]
      %v555 = vld [vmem:[%s267 + $0x2c] sm:$0xf]
      %v556 = vld [vmem:[%s267 + $0x30] sm:$0xf]
      %v557 = vld [vmem:[%s267 + $0x34] sm:$0xf]
      %v558 = vld [vmem:[%s267 + $0x38] sm:$0xf]
      %v559 = vld [vmem:[%s267 + $0x3c] sm:$0xf]
      %v560 = vld [vmem:[%s277] sm:$0xf]
      %v561 = vld [vmem:[%s277 + $0x4] sm:$0xf]
      %v562 = vld [vmem:[%s277 + $0x8] sm:$0xf]
      %v563 = vld [vmem:[%s277 + $0xc] sm:$0xf]
      %v564 = vld [vmem:[%s277 + $0x10] sm:$0xf]
      %v565 = vld [vmem:[%s277 + $0x14] sm:$0xf]
      %v566 = vld [vmem:[%s277 + $0x18] sm:$0xf]
      %v567 = vld [vmem:[%s277 + $0x1c] sm:$0xf]
      %v568 = vld [vmem:[%s277 + $0x20] sm:$0xf]
      %v569 = vld [vmem:[%s277 + $0x24] sm:$0xf]
      %v570 = vld [vmem:[%s277 + $0x28] sm:$0xf]
      %v571 = vld [vmem:[%s277 + $0x2c] sm:$0xf]
      %v572 = vld [vmem:[%s277 + $0x30] sm:$0xf]
      %v573 = vld [vmem:[%s277 + $0x34] sm:$0xf]
      %v574 = vld [vmem:[%s277 + $0x38] sm:$0xf]
      %v575 = vld [vmem:[%s277 + $0x3c] sm:$0xf]
      %v592 = vunpack.c.l.b16 %v544
      %v593 = vunpack.c.l.b16 %v545
      %v594 = vunpack.c.l.b16 %v546
      %v595 = vunpack.c.l.b16 %v547
      %v596 = vunpack.c.l.b16 %v548
      %v597 = vunpack.c.l.b16 %v549
      %v598 = vunpack.c.l.b16 %v550
      %v599 = vunpack.c.l.b16 %v551
      %v600 = vunpack.c.l.b16 %v552
      %v601 = vunpack.c.l.b16 %v553
      %v602 = vunpack.c.l.b16 %v554
      %v603 = vunpack.c.l.b16 %v555
      %v604 = vunpack.c.l.b16 %v556
      %v605 = vunpack.c.l.b16 %v557
      %v606 = vunpack.c.l.b16 %v558
      %v607 = vunpack.c.l.b16 %v559
      %v608 = vpack.c.b16 %v593, %v592
      %v609 = vpack.c.b16 %v595, %v594
      %v610 = vpack.c.b16 %v597, %v596
      %v611 = vpack.c.b16 %v599, %v598
      %v612 = vpack.c.b16 %v601, %v600
      %v613 = vpack.c.b16 %v603, %v602
      %v614 = vpack.c.b16 %v605, %v604
      %v615 = vpack.c.b16 %v607, %v606
      %vm616 = vcmask 261120
      %v618 = vsel %vm616, %v536, 0
      %v621 = vsel %vm616, %v537, 0
      %v624 = vsel %vm616, %v538, 0
      %v627 = vsel %vm616, %v539, 0
      %v630 = vsel %vm616, %v540, 0
      %v633 = vsel %vm616, %v541, 0
      %v636 = vsel %vm616, %v542, 0
      %v639 = vsel %vm616, %v543, 0
      %v642 = vsel %vm616, %v608, 0
      %v645 = vsel %vm616, %v609, 0
      %v648 = vsel %vm616, %v610, 0
      %v651 = vsel %vm616, %v611, 0
      %v654 = vsel %vm616, %v612, 0
      %v657 = vsel %vm616, %v613, 0
      %v660 = vsel %vm616, %v614, 0
      %v663 = vsel %vm616, %v615, 0
      %665 = vmatprep.subr.bf16.mxu0 0
      %666 = vmatpush1.bf16.xpose.msra.mxu0 %v642
      %667 = vmatprep.subr.bf16.mxu0 0
      %668 = vmatpush1.bf16.xpose.msra.mxu0 %v645
      %669 = vmatprep.subr.bf16.mxu0 0
      %670 = vmatpush1.bf16.xpose.msra.mxu0 %v648
      %671 = vmatprep.subr.bf16.mxu0 0
      %672 = vmatpush1.bf16.xpose.msra.mxu0 %v651
      %673 = vmatprep.subr.bf16.mxu0 0
      %674 = vmatpush1.bf16.xpose.msra.mxu0 %v654
      %675 = vmatprep.subr.bf16.mxu0 0
      %676 = vmatpush1.bf16.xpose.msra.mxu0 %v657
      %677 = vmatprep.subr.bf16.mxu0 0
      %678 = vmatpush1.bf16.xpose.msra.mxu0 %v660
      %679 = vmatprep.subr.bf16.mxu0 0
      %680 = vmatpush1.bf16.xpose.msra.mxu0 %v663
      %681 = vmatprep.subr.bf16.mxu0 0
      %682 = vmatpush1.bf16.xpose.msra.mxu0 0
      %683 = vmatprep.subr.bf16.mxu0 0
      %684 = vmatpush1.bf16.xpose.msra.mxu0 0
      %685 = vmatprep.subr.bf16.mxu0 0
      %686 = vmatpush1.bf16.xpose.msra.mxu0 0
      %687 = vmatprep.subr.bf16.mxu0 0
      %688 = vmatpush1.bf16.xpose.msra.mxu0 0
      %689 = vmatprep.subr.bf16.mxu0 0
      %690 = vmatpush1.bf16.xpose.msra.mxu0 0
      %691 = vmatprep.subr.bf16.mxu0 0
      %692 = vmatpush1.bf16.xpose.msra.mxu0 0
      %693 = vmatprep.subr.bf16.mxu0 0
      %694 = vmatpush1.bf16.xpose.msra.mxu0 0
      %695 = vmatprep.subr.bf16.mxu0 0
      %696 = vmatpush1.bf16.xpose.msra.mxu0 0
      %697 = vmatprep.mubr.bf16.mxu0 0
      %698 = vmatmul.mubr.bf16.gmra.mrb[0].mxu0 %v618
      %v699 = vpop.f32.mrb[0].mxu0
      %v700 = vadd.f32 0.0, %v699
      %v701 = vpop.f32.mrb[0].mxu0
      %v702 = vpop.f32.mrb[0].mxu0
      %v703 = vadd.f32 0.0, %v702
      %v704 = vpop.f32.mrb[0].mxu0
      %705 = vmatprep.mubr.bf16.mxu0 0
      %706 = vmatmul.mubr.bf16.gmra.mrb[0].mxu0 %v621
      %v707 = vpop.f32.mrb[0].mxu0
      %v708 = vadd.f32 0.0, %v707
      %v709 = vpop.f32.mrb[0].mxu0
      %v710 = vpop.f32.mrb[0].mxu0
      %v711 = vadd.f32 0.0, %v710
      %v712 = vpop.f32.mrb[0].mxu0
      %713 = vmatprep.mubr.bf16.mxu0 0
      %714 = vmatmul.mubr.bf16.gmra.mrb[0].mxu0 %v624
      %v715 = vpop.f32.mrb[0].mxu0
      %v716 = vadd.f32 0.0, %v715
      %v717 = vpop.f32.mrb[0].mxu0
      %v718 = vpop.f32.mrb[0].mxu0
      %v719 = vadd.f32 0.0, %v718
      %v720 = vpop.f32.mrb[0].mxu0
      %721 = vmatprep.mubr.bf16.mxu0 0
      %722 = vmatmul.mubr.bf16.gmra.mrb[0].mxu0 %v627
      %v723 = vpop.f32.mrb[0].mxu0
      %v724 = vadd.f32 0.0, %v723
      %v725 = vpop.f32.mrb[0].mxu0
      %v726 = vpop.f32.mrb[0].mxu0
      %v727 = vadd.f32 0.0, %v726
      %v728 = vpop.f32.mrb[0].mxu0
      %729 = vmatprep.mubr.bf16.mxu0 0
      %730 = vmatmul.mubr.bf16.gmra.mrb[0].mxu0 %v630
      %v731 = vpop.f32.mrb[0].mxu0
      %v732 = vadd.f32 0.0, %v731
      %v733 = vpop.f32.mrb[0].mxu0
      %v734 = vpop.f32.mrb[0].mxu0
      %v735 = vadd.f32 0.0, %v734
      %v736 = vpop.f32.mrb[0].mxu0
      %737 = vmatprep.mubr.bf16.mxu0 0
      %738 = vmatmul.mubr.bf16.gmra.mrb[0].mxu0 %v633
      %v739 = vpop.f32.mrb[0].mxu0
      %v740 = vadd.f32 0.0, %v739
      %v741 = vpop.f32.mrb[0].mxu0
      %v742 = vpop.f32.mrb[0].mxu0
      %v743 = vadd.f32 0.0, %v742
      %v744 = vpop.f32.mrb[0].mxu0
      %745 = vmatprep.mubr.bf16.mxu0 0
      %746 = vmatmul.mubr.bf16.gmra.mrb[0].mxu0 %v636
      %v747 = vpop.f32.mrb[0].mxu0
      %v748 = vadd.f32 0.0, %v747
      %v749 = vpop.f32.mrb[0].mxu0
      %v750 = vpop.f32.mrb[0].mxu0
      %v751 = vadd.f32 0.0, %v750
      %v752 = vpop.f32.mrb[0].mxu0
      %753 = vmatprep.mubr.bf16.mxu0 0
      %754 = vmatmul.mubr.bf16.gmra.mrb[0].mxu0 %v639
      %v755 = vpop.f32.mrb[0].mxu0
      %v756 = vadd.f32 0.0, %v755
      %v757 = vpop.f32.mrb[0].mxu0
      %v758 = vpop.f32.mrb[0].mxu0
      %v759 = vadd.f32 0.0, %v758
      %v760 = vpop.f32.mrb[0].mxu0
      %761 = vdwg.mxu0
      %v762 = vld [vmem:[#allocation2] sm:$0xff]
      %v763 = vld [vmem:[#allocation2 + $0x8] sm:$0xff]
      %v764 = vld [vmem:[#allocation2 + $0x10] sm:$0xff]
      %v765 = vld [vmem:[#allocation2 + $0x18] sm:$0xff]
      %v766 = vld [vmem:[#allocation2 + $0x20] sm:$0xff]
      %v767 = vld [vmem:[#allocation2 + $0x28] sm:$0xff]
      %v768 = vld [vmem:[#allocation2 + $0x30] sm:$0xff]
      %v769 = vld [vmem:[#allocation2 + $0x38] sm:$0xff]
      %v770 = vld [vmem:[#allocation2 + $0x40] sm:$0xff]
      %v771 = vld [vmem:[#allocation2 + $0x48] sm:$0xff]
      %v772 = vld [vmem:[#allocation2 + $0x50] sm:$0xff]
      %v773 = vld [vmem:[#allocation2 + $0x58] sm:$0xff]
      %v774 = vld [vmem:[#allocation2 + $0x60] sm:$0xff]
      %v775 = vld [vmem:[#allocation2 + $0x68] sm:$0xff]
      %v776 = vld [vmem:[#allocation2 + $0x70] sm:$0xff]
      %v777 = vld [vmem:[#allocation2 + $0x78] sm:$0xff]
      %v778 = vld [vmem:[#allocation3] sm:$0xff]
      %v779 = vld [vmem:[#allocation3 + $0x8] sm:$0xff]
      %v780 = vld [vmem:[#allocation3 + $0x10] sm:$0xff]
      %v781 = vld [vmem:[#allocation3 + $0x18] sm:$0xff]
      %v782 = vld [vmem:[#allocation3 + $0x20] sm:$0xff]
      %v783 = vld [vmem:[#allocation3 + $0x28] sm:$0xff]
      %v784 = vld [vmem:[#allocation3 + $0x30] sm:$0xff]
      %v785 = vld [vmem:[#allocation3 + $0x38] sm:$0xff]
      %v786 = vld [vmem:[#allocation3 + $0x40] sm:$0xff]
      %v787 = vld [vmem:[#allocation3 + $0x48] sm:$0xff]
      %v788 = vld [vmem:[#allocation3 + $0x50] sm:$0xff]
      %v789 = vld [vmem:[#allocation3 + $0x58] sm:$0xff]
      %v790 = vld [vmem:[#allocation3 + $0x60] sm:$0xff]
      %v791 = vld [vmem:[#allocation3 + $0x68] sm:$0xff]
      %v792 = vld [vmem:[#allocation3 + $0x70] sm:$0xff]
      %v793 = vld [vmem:[#allocation3 + $0x78] sm:$0xff]
      %794 = vmax.xlane.f32.xlu0 %v700
      %v795 = vpop.xlane.xlu0 %794
      %796 = vmax.xlane.f32.xlu0 %v703
      %v797 = vpop.xlane.xlu0 %796
      %798 = vmax.xlane.f32.xlu0 %v708
      %v799 = vpop.xlane.xlu0 %798
      %800 = vmax.xlane.f32.xlu0 %v711
      %v801 = vpop.xlane.xlu0 %800
      %802 = vmax.xlane.f32.xlu0 %v716
      %v803 = vpop.xlane.xlu0 %802
      %804 = vmax.xlane.f32.xlu0 %v719
      %v805 = vpop.xlane.xlu0 %804
      %806 = vmax.xlane.f32.xlu0 %v724
      %v807 = vpop.xlane.xlu0 %806
      %808 = vmax.xlane.f32.xlu0 %v727
      %v809 = vpop.xlane.xlu0 %808
      %810 = vmax.xlane.f32.xlu0 %v732
      %v811 = vpop.xlane.xlu0 %810
      %812 = vmax.xlane.f32.xlu0 %v735
      %v813 = vpop.xlane.xlu0 %812
      %814 = vmax.xlane.f32.xlu0 %v740
      %v815 = vpop.xlane.xlu0 %814
      %816 = vmax.xlane.f32.xlu0 %v743
      %v817 = vpop.xlane.xlu0 %816
      %818 = vmax.xlane.f32.xlu0 %v748
      %v819 = vpop.xlane.xlu0 %818
      %820 = vmax.xlane.f32.xlu0 %v751
      %v821 = vpop.xlane.xlu0 %820
      %822 = vmax.xlane.f32.xlu0 %v756
      %v823 = vpop.xlane.xlu0 %822
      %824 = vmax.xlane.f32.xlu0 %v759
      %v825 = vpop.xlane.xlu0 %824
      %v826 = vmax.f32 %v762, %v795
      %v827 = vmax.f32 %v763, %v797
      %v828 = vmax.f32 %v764, %v799
      %v829 = vmax.f32 %v765, %v801
      %v830 = vmax.f32 %v766, %v803
      %v831 = vmax.f32 %v767, %v805
      %v832 = vmax.f32 %v768, %v807
      %v833 = vmax.f32 %v769, %v809
      %v834 = vmax.f32 %v770, %v811
      %v835 = vmax.f32 %v771, %v813
      %v836 = vmax.f32 %v772, %v815
      %v837 = vmax.f32 %v773, %v817
      %v838 = vmax.f32 %v774, %v819
      %v839 = vmax.f32 %v775, %v821
      %v840 = vmax.f32 %v776, %v823
      %v841 = vmax.f32 %v777, %v825
      %v842 = vsub.f32 %v762, %v826
      %v843 = vsub.f32 %v763, %v827
      %v844 = vsub.f32 %v764, %v828
      %v845 = vsub.f32 %v765, %v829
      %v846 = vsub.f32 %v766, %v830
      %v847 = vsub.f32 %v767, %v831
      %v848 = vsub.f32 %v768, %v832
      %v849 = vsub.f32 %v769, %v833
      %v850 = vsub.f32 %v770, %v834
      %v851 = vsub.f32 %v771, %v835
      %v852 = vsub.f32 %v772, %v836
      %v853 = vsub.f32 %v773, %v837
      %v854 = vsub.f32 %v774, %v838
      %v855 = vsub.f32 %v775, %v839
      %v856 = vsub.f32 %v776, %v840
      %v857 = vsub.f32 %v777, %v841
      %v858 = vmul.f32 %v842, 1.442695
      %v859 = vpow.pop %v858
      %v860 = vmul.f32 %v843, 1.442695
      %v861 = vpow.pop %v860
      %v862 = vmul.f32 %v844, 1.442695
      %v863 = vpow.pop %v862
      %v864 = vmul.f32 %v845, 1.442695
      %v865 = vpow.pop %v864
      %v866 = vmul.f32 %v846, 1.442695
      %v867 = vpow.pop %v866
      %v868 = vmul.f32 %v847, 1.442695
      %v869 = vpow.pop %v868
      %v870 = vmul.f32 %v848, 1.442695
      %v871 = vpow.pop %v870
      %v872 = vmul.f32 %v849, 1.442695
      %v873 = vpow.pop %v872
      %v874 = vmul.f32 %v850, 1.442695
      %v875 = vpow.pop %v874
      %v876 = vmul.f32 %v851, 1.442695
      %v877 = vpow.pop %v876
      %v878 = vmul.f32 %v852, 1.442695
      %v879 = vpow.pop %v878
      %v880 = vmul.f32 %v853, 1.442695
      %v881 = vpow.pop %v880
      %v882 = vmul.f32 %v854, 1.442695
      %v883 = vpow.pop %v882
      %v884 = vmul.f32 %v855, 1.442695
      %v885 = vpow.pop %v884
      %v886 = vmul.f32 %v856, 1.442695
      %v887 = vpow.pop %v886
      %v888 = vmul.f32 %v857, 1.442695
      %v889 = vpow.pop %v888
      %891 = vset.pattern.permute.xlu0 0
      %892 = vperm.xlu0 %891, %v826
      %v893 = vpop.permute.xlu0 %892
      %896 = vset.pattern.permute.xlu0 0
      %897 = vperm.xlu0 %896, %v827
      %v898 = vpop.permute.xlu0 %897
      %901 = vset.pattern.permute.xlu0 0
      %902 = vperm.xlu0 %901, %v828
      %v903 = vpop.permute.xlu0 %902
      %906 = vset.pattern.permute.xlu0 0
      %907 = vperm.xlu0 %906, %v829
      %v908 = vpop.permute.xlu0 %907
      %911 = vset.pattern.permute.xlu0 0
      %912 = vperm.xlu0 %911, %v830
      %v913 = vpop.permute.xlu0 %912
      %916 = vset.pattern.permute.xlu0 0
      %917 = vperm.xlu0 %916, %v831
      %v918 = vpop.permute.xlu0 %917
      %921 = vset.pattern.permute.xlu0 0
      %922 = vperm.xlu0 %921, %v832
      %v923 = vpop.permute.xlu0 %922
      %926 = vset.pattern.permute.xlu0 0
      %927 = vperm.xlu0 %926, %v833
      %v928 = vpop.permute.xlu0 %927
      %931 = vset.pattern.permute.xlu0 0
      %932 = vperm.xlu0 %931, %v834
      %v933 = vpop.permute.xlu0 %932
      %936 = vset.pattern.permute.xlu0 0
      %937 = vperm.xlu0 %936, %v835
      %v938 = vpop.permute.xlu0 %937
      %941 = vset.pattern.permute.xlu0 0
      %942 = vperm.xlu0 %941, %v836
      %v943 = vpop.permute.xlu0 %942
      %946 = vset.pattern.permute.xlu0 0
      %947 = vperm.xlu0 %946, %v837
      %v948 = vpop.permute.xlu0 %947
      %951 = vset.pattern.permute.xlu0 0
      %952 = vperm.xlu0 %951, %v838
      %v953 = vpop.permute.xlu0 %952
      %956 = vset.pattern.permute.xlu0 0
      %957 = vperm.xlu0 %956, %v839
      %v958 = vpop.permute.xlu0 %957
      %961 = vset.pattern.permute.xlu0 0
      %962 = vperm.xlu0 %961, %v840
      %v963 = vpop.permute.xlu0 %962
      %966 = vset.pattern.permute.xlu0 0
      %967 = vperm.xlu0 %966, %v841
      %v968 = vpop.permute.xlu0 %967
      %v970 = vsub.f32 %v700, %v893
      %v971 = vsub.f32 %v703, %v898
      %v972 = vsub.f32 %v708, %v903
      %v973 = vsub.f32 %v711, %v908
      %v974 = vsub.f32 %v716, %v913
      %v975 = vsub.f32 %v719, %v918
      %v976 = vsub.f32 %v724, %v923
      %v977 = vsub.f32 %v727, %v928
      %v978 = vsub.f32 %v732, %v933
      %v979 = vsub.f32 %v735, %v938
      %v980 = vsub.f32 %v740, %v943
      %v981 = vsub.f32 %v743, %v948
      %v982 = vsub.f32 %v748, %v953
      %v983 = vsub.f32 %v751, %v958
      %v984 = vsub.f32 %v756, %v963
      %v985 = vsub.f32 %v759, %v968
      %v986 = vmul.f32 %v970, 1.442695
      %v987 = vpow.pop %v986
      %v988 = vmul.f32 %v971, 1.442695
      %v989 = vpow.pop %v988
      %v990 = vmul.f32 %v972, 1.442695
      %v991 = vpow.pop %v990
      %v992 = vmul.f32 %v973, 1.442695
      %v993 = vpow.pop %v992
      %v994 = vmul.f32 %v974, 1.442695
      %v995 = vpow.pop %v994
      %v996 = vmul.f32 %v975, 1.442695
      %v997 = vpow.pop %v996
      %v998 = vmul.f32 %v976, 1.442695
      %v999 = vpow.pop %v998
      %v1000 = vmul.f32 %v977, 1.442695
      %v1001 = vpow.pop %v1000
      %v1002 = vmul.f32 %v978, 1.442695
      %v1003 = vpow.pop %v1002
      %v1004 = vmul.f32 %v979, 1.442695
      %v1005 = vpow.pop %v1004
      %v1006 = vmul.f32 %v980, 1.442695
      %v1007 = vpow.pop %v1006
      %v1008 = vmul.f32 %v981, 1.442695
      %v1009 = vpow.pop %v1008
      %v1010 = vmul.f32 %v982, 1.442695
      %v1011 = vpow.pop %v1010
      %v1012 = vmul.f32 %v983, 1.442695
      %v1013 = vpow.pop %v1012
      %v1014 = vmul.f32 %v984, 1.442695
      %v1015 = vpow.pop %v1014
      %v1016 = vmul.f32 %v985, 1.442695
      %v1017 = vpow.pop %v1016
      %v1018 = vmul.f32 %v859, %v778
      %v1019 = vmul.f32 %v861, %v779
      %v1020 = vmul.f32 %v863, %v780
      %v1021 = vmul.f32 %v865, %v781
      %v1022 = vmul.f32 %v867, %v782
      %v1023 = vmul.f32 %v869, %v783
      %v1024 = vmul.f32 %v871, %v784
      %v1025 = vmul.f32 %v873, %v785
      %v1026 = vmul.f32 %v875, %v786
      %v1027 = vmul.f32 %v877, %v787
      %v1028 = vmul.f32 %v879, %v788
      %v1029 = vmul.f32 %v881, %v789
      %v1030 = vmul.f32 %v883, %v790
      %v1031 = vmul.f32 %v885, %v791
      %v1032 = vmul.f32 %v887, %v792
      %v1033 = vmul.f32 %v889, %v793
      %1034 = vadd.xlane.f32.xlu0 %v987
      %v1035 = vpop.xlane.xlu0 %1034
      %1036 = vadd.xlane.f32.xlu0 %v989
      %v1037 = vpop.xlane.xlu0 %1036
      %1038 = vadd.xlane.f32.xlu0 %v991
      %v1039 = vpop.xlane.xlu0 %1038
      %1040 = vadd.xlane.f32.xlu0 %v993
      %v1041 = vpop.xlane.xlu0 %1040
      %1042 = vadd.xlane.f32.xlu0 %v995
      %v1043 = vpop.xlane.xlu0 %1042
      %1044 = vadd.xlane.f32.xlu0 %v997
      %v1045 = vpop.xlane.xlu0 %1044
      %1046 = vadd.xlane.f32.xlu0 %v999
      %v1047 = vpop.xlane.xlu0 %1046
      %1048 = vadd.xlane.f32.xlu0 %v1001
      %v1049 = vpop.xlane.xlu0 %1048
      %1050 = vadd.xlane.f32.xlu0 %v1003
      %v1051 = vpop.xlane.xlu0 %1050
      %1052 = vadd.xlane.f32.xlu0 %v1005
      %v1053 = vpop.xlane.xlu0 %1052
      %1054 = vadd.xlane.f32.xlu0 %v1007
      %v1055 = vpop.xlane.xlu0 %1054
      %1056 = vadd.xlane.f32.xlu0 %v1009
      %v1057 = vpop.xlane.xlu0 %1056
      %1058 = vadd.xlane.f32.xlu0 %v1011
      %v1059 = vpop.xlane.xlu0 %1058
      %1060 = vadd.xlane.f32.xlu0 %v1013
      %v1061 = vpop.xlane.xlu0 %1060
      %1062 = vadd.xlane.f32.xlu0 %v1015
      %v1063 = vpop.xlane.xlu0 %1062
      %1064 = vadd.xlane.f32.xlu0 %v1017
      %v1065 = vpop.xlane.xlu0 %1064
      %v1066 = vadd.f32 %v1018, %v1035
      %v1067 = vadd.f32 %v1019, %v1037
      %v1068 = vadd.f32 %v1020, %v1039
      %v1069 = vadd.f32 %v1021, %v1041
      %v1070 = vadd.f32 %v1022, %v1043
      %v1071 = vadd.f32 %v1023, %v1045
      %v1072 = vadd.f32 %v1024, %v1047
      %v1073 = vadd.f32 %v1025, %v1049
      %v1074 = vadd.f32 %v1026, %v1051
      %v1075 = vadd.f32 %v1027, %v1053
      %v1076 = vadd.f32 %v1028, %v1055
      %v1077 = vadd.f32 %v1029, %v1057
      %v1078 = vadd.f32 %v1030, %v1059
      %v1079 = vadd.f32 %v1031, %v1061
      %v1080 = vadd.f32 %v1032, %v1063
      %v1081 = vadd.f32 %v1033, %v1065
      %vm1082 = vcmask 7168
      %1083 = vst.msk [vmem:[#allocation3] sm:$0xff] %vm1082, %v1066
      %1084 = vst.msk [vmem:[#allocation3 + $0x8] sm:$0xff] %vm1082, %v1067
      %1085 = vst.msk [vmem:[#allocation3 + $0x10] sm:$0xff] %vm1082, %v1068
      %1086 = vst.msk [vmem:[#allocation3 + $0x18] sm:$0xff] %vm1082, %v1069
      %1087 = vst.msk [vmem:[#allocation3 + $0x20] sm:$0xff] %vm1082, %v1070
      %1088 = vst.msk [vmem:[#allocation3 + $0x28] sm:$0xff] %vm1082, %v1071
      %1089 = vst.msk [vmem:[#allocation3 + $0x30] sm:$0xff] %vm1082, %v1072
      %1090 = vst.msk [vmem:[#allocation3 + $0x38] sm:$0xff] %vm1082, %v1073
      %1091 = vst.msk [vmem:[#allocation3 + $0x40] sm:$0xff] %vm1082, %v1074
      %1092 = vst.msk [vmem:[#allocation3 + $0x48] sm:$0xff] %vm1082, %v1075
      %1093 = vst.msk [vmem:[#allocation3 + $0x50] sm:$0xff] %vm1082, %v1076
      %1094 = vst.msk [vmem:[#allocation3 + $0x58] sm:$0xff] %vm1082, %v1077
      %1095 = vst.msk [vmem:[#allocation3 + $0x60] sm:$0xff] %vm1082, %v1078
      %1096 = vst.msk [vmem:[#allocation3 + $0x68] sm:$0xff] %vm1082, %v1079
      %1097 = vst.msk [vmem:[#allocation3 + $0x70] sm:$0xff] %vm1082, %v1080
      %1098 = vst.msk [vmem:[#allocation3 + $0x78] sm:$0xff] %vm1082, %v1081
      %v1099 = vpack.c.bf16 %v989, %v987
      %v1100 = vpack.c.bf16 %v993, %v991
      %v1101 = vpack.c.bf16 %v997, %v995
      %v1102 = vpack.c.bf16 %v1001, %v999
      %v1103 = vpack.c.bf16 %v1005, %v1003
      %v1104 = vpack.c.bf16 %v1009, %v1007
      %v1105 = vpack.c.bf16 %v1013, %v1011
      %v1106 = vpack.c.bf16 %v1017, %v1015
      %v1123 = vunpack.c.l.b16 %v560
      %v1124 = vunpack.c.l.b16 %v561
      %v1125 = vunpack.c.l.b16 %v562
      %v1126 = vunpack.c.l.b16 %v563
      %v1127 = vunpack.c.l.b16 %v564
      %v1128 = vunpack.c.l.b16 %v565
      %v1129 = vunpack.c.l.b16 %v566
      %v1130 = vunpack.c.l.b16 %v567
      %v1131 = vunpack.c.l.b16 %v568
      %v1132 = vunpack.c.l.b16 %v569
      %v1133 = vunpack.c.l.b16 %v570
      %v1134 = vunpack.c.l.b16 %v571
      %v1135 = vunpack.c.l.b16 %v572
      %v1136 = vunpack.c.l.b16 %v573
      %v1137 = vunpack.c.l.b16 %v574
      %v1138 = vunpack.c.l.b16 %v575
      %v1139 = vpack.c.b16 %v1124, %v1123
      %v1140 = vpack.c.b16 %v1126, %v1125
      %v1141 = vpack.c.b16 %v1128, %v1127
      %v1142 = vpack.c.b16 %v1130, %v1129
      %v1143 = vpack.c.b16 %v1132, %v1131
      %v1144 = vpack.c.b16 %v1134, %v1133
      %v1145 = vpack.c.b16 %v1136, %v1135
      %v1146 = vpack.c.b16 %v1138, %v1137
      %1155 = vmatprep.subr.bf16.mxu0 0
      %1156 = vmatpush1.bf16.msra.mxu0 %v1139
      %1157 = vmatprep.subr.bf16.mxu0 0
      %1158 = vmatpush1.bf16.msra.mxu0 %v1140
      %1159 = vmatprep.subr.bf16.mxu0 0
      %1160 = vmatpush1.bf16.msra.mxu0 %v1141
      %1161 = vmatprep.subr.bf16.mxu0 0
      %1162 = vmatpush1.bf16.msra.mxu0 %v1142
      %1163 = vmatprep.subr.bf16.mxu0 0
      %1164 = vmatpush1.bf16.msra.mxu0 %v1143
      %1165 = vmatprep.subr.bf16.mxu0 0
      %1166 = vmatpush1.bf16.msra.mxu0 %v1144
      %1167 = vmatprep.subr.bf16.mxu0 0
      %1168 = vmatpush1.bf16.msra.mxu0 %v1145
      %1169 = vmatprep.subr.bf16.mxu0 0
      %1170 = vmatpush1.bf16.msra.mxu0 %v1146
      %1171 = vmatprep.subr.bf16.mxu0 0
      %1172 = vmatpush1.bf16.msra.mxu0 0
      %1173 = vmatprep.subr.bf16.mxu0 0
      %1174 = vmatpush1.bf16.msra.mxu0 0
      %1175 = vmatprep.subr.bf16.mxu0 0
      %1176 = vmatpush1.bf16.msra.mxu0 0
      %1177 = vmatprep.subr.bf16.mxu0 0
      %1178 = vmatpush1.bf16.msra.mxu0 0
      %1179 = vmatprep.subr.bf16.mxu0 0
      %1180 = vmatpush1.bf16.msra.mxu0 0
      %1181 = vmatprep.subr.bf16.mxu0 0
      %1182 = vmatpush1.bf16.msra.mxu0 0
      %1183 = vmatprep.subr.bf16.mxu0 0
      %1184 = vmatpush1.bf16.msra.mxu0 0
      %1185 = vmatprep.subr.bf16.mxu0 0
      %1186 = vmatpush1.bf16.msra.mxu0 0
      %1187 = vmatprep.mubr.bf16.mxu0 0
      %1188 = vmatmul.mubr.bf16.gmra.mrb[0].mxu0 %v1099
      %v1189 = vpop.f32.mrb[0].mxu0
      %v1190 = vadd.f32 0.0, %v1189
      %v1191 = vpop.f32.mrb[0].mxu0
      %v1192 = vpop.f32.mrb[0].mxu0
      %v1193 = vadd.f32 0.0, %v1192
      %v1194 = vpop.f32.mrb[0].mxu0
      %1195 = vmatprep.mubr.bf16.mxu0 0
      %1196 = vmatmul.mubr.bf16.gmra.mrb[0].mxu0 %v1100
      %v1197 = vpop.f32.mrb[0].mxu0
      %v1198 = vadd.f32 0.0, %v1197
      %v1199 = vpop.f32.mrb[0].mxu0
      %v1200 = vpop.f32.mrb[0].mxu0
      %v1201 = vadd.f32 0.0, %v1200
      %v1202 = vpop.f32.mrb[0].mxu0
      %1203 = vmatprep.mubr.bf16.mxu0 0
      %1204 = vmatmul.mubr.bf16.gmra.mrb[0].mxu0 %v1101
      %v1205 = vpop.f32.mrb[0].mxu0
      %v1206 = vadd.f32 0.0, %v1205
      %v1207 = vpop.f32.mrb[0].mxu0
      %v1208 = vpop.f32.mrb[0].mxu0
      %v1209 = vadd.f32 0.0, %v1208
      %v1210 = vpop.f32.mrb[0].mxu0
      %1211 = vmatprep.mubr.bf16.mxu0 0
      %1212 = vmatmul.mubr.bf16.gmra.mrb[0].mxu0 %v1102
      %v1213 = vpop.f32.mrb[0].mxu0
      %v1214 = vadd.f32 0.0, %v1213
      %v1215 = vpop.f32.mrb[0].mxu0
      %v1216 = vpop.f32.mrb[0].mxu0
      %v1217 = vadd.f32 0.0, %v1216
      %v1218 = vpop.f32.mrb[0].mxu0
      %1219 = vmatprep.mubr.bf16.mxu0 0
      %1220 = vmatmul.mubr.bf16.gmra.mrb[0].mxu0 %v1103
      %v1221 = vpop.f32.mrb[0].mxu0
      %v1222 = vadd.f32 0.0, %v1221
      %v1223 = vpop.f32.mrb[0].mxu0
      %v1224 = vpop.f32.mrb[0].mxu0
      %v1225 = vadd.f32 0.0, %v1224
      %v1226 = vpop.f32.mrb[0].mxu0
      %1227 = vmatprep.mubr.bf16.mxu0 0
      %1228 = vmatmul.mubr.bf16.gmra.mrb[0].mxu0 %v1104
      %v1229 = vpop.f32.mrb[0].mxu0
      %v1230 = vadd.f32 0.0, %v1229
      %v1231 = vpop.f32.mrb[0].mxu0
      %v1232 = vpop.f32.mrb[0].mxu0
      %v1233 = vadd.f32 0.0, %v1232
      %v1234 = vpop.f32.mrb[0].mxu0
      %1235 = vmatprep.mubr.bf16.mxu0 0
      %1236 = vmatmul.mubr.bf16.gmra.mrb[0].mxu0 %v1105
      %v1237 = vpop.f32.mrb[0].mxu0
      %v1238 = vadd.f32 0.0, %v1237
      %v1239 = vpop.f32.mrb[0].mxu0
      %v1240 = vpop.f32.mrb[0].mxu0
      %v1241 = vadd.f32 0.0, %v1240
      %v1242 = vpop.f32.mrb[0].mxu0
      %1243 = vmatprep.mubr.bf16.mxu0 0
      %1244 = vmatmul.mubr.bf16.gmra.mrb[0].mxu0 %v1106
      %v1245 = vpop.f32.mrb[0].mxu0
      %v1246 = vadd.f32 0.0, %v1245
      %v1247 = vpop.f32.mrb[0].mxu0
      %v1248 = vpop.f32.mrb[0].mxu0
      %v1249 = vadd.f32 0.0, %v1248
      %v1250 = vpop.f32.mrb[0].mxu0
      %1251 = vdwg.mxu0
      %v1252 = vld [vmem:[#allocation4] sm:$0xff]
      %v1253 = vld [vmem:[#allocation4 + $0x8] sm:$0xff]
      %v1254 = vld [vmem:[#allocation4 + $0x10] sm:$0xff]
      %v1255 = vld [vmem:[#allocation4 + $0x18] sm:$0xff]
      %v1256 = vld [vmem:[#allocation4 + $0x20] sm:$0xff]
      %v1257 = vld [vmem:[#allocation4 + $0x28] sm:$0xff]
      %v1258 = vld [vmem:[#allocation4 + $0x30] sm:$0xff]
      %v1259 = vld [vmem:[#allocation4 + $0x38] sm:$0xff]
      %v1260 = vld [vmem:[#allocation4 + $0x40] sm:$0xff]
      %v1261 = vld [vmem:[#allocation4 + $0x48] sm:$0xff]
      %v1262 = vld [vmem:[#allocation4 + $0x50] sm:$0xff]
      %v1263 = vld [vmem:[#allocation4 + $0x58] sm:$0xff]
      %v1264 = vld [vmem:[#allocation4 + $0x60] sm:$0xff]
      %v1265 = vld [vmem:[#allocation4 + $0x68] sm:$0xff]
      %v1266 = vld [vmem:[#allocation4 + $0x70] sm:$0xff]
      %v1267 = vld [vmem:[#allocation4 + $0x78] sm:$0xff]
      %1269 = vset.pattern.permute.xlu0 0
      %1270 = vperm.xlu0 %1269, %v859
      %v1271 = vpop.permute.xlu0 %1270
      %1274 = vset.pattern.permute.xlu0 0
      %1275 = vperm.xlu0 %1274, %v861
      %v1276 = vpop.permute.xlu0 %1275
      %1279 = vset.pattern.permute.xlu0 0
      %1280 = vperm.xlu0 %1279, %v863
      %v1281 = vpop.permute.xlu0 %1280
      %1284 = vset.pattern.permute.xlu0 0
      %1285 = vperm.xlu0 %1284, %v865
      %v1286 = vpop.permute.xlu0 %1285
      %1289 = vset.pattern.permute.xlu0 0
      %1290 = vperm.xlu0 %1289, %v867
      %v1291 = vpop.permute.xlu0 %1290
      %1294 = vset.pattern.permute.xlu0 0
      %1295 = vperm.xlu0 %1294, %v869
      %v1296 = vpop.permute.xlu0 %1295
      %1299 = vset.pattern.permute.xlu0 0
      %1300 = vperm.xlu0 %1299, %v871
      %v1301 = vpop.permute.xlu0 %1300
      %1304 = vset.pattern.permute.xlu0 0
      %1305 = vperm.xlu0 %1304, %v873
      %v1306 = vpop.permute.xlu0 %1305
      %1309 = vset.pattern.permute.xlu0 0
      %1310 = vperm.xlu0 %1309, %v875
      %v1311 = vpop.permute.xlu0 %1310
      %1314 = vset.pattern.permute.xlu0 0
      %1315 = vperm.xlu0 %1314, %v877
      %v1316 = vpop.permute.xlu0 %1315
      %1319 = vset.pattern.permute.xlu0 0
      %1320 = vperm.xlu0 %1319, %v879
      %v1321 = vpop.permute.xlu0 %1320
      %1324 = vset.pattern.permute.xlu0 0
      %1325 = vperm.xlu0 %1324, %v881
      %v1326 = vpop.permute.xlu0 %1325
      %1329 = vset.pattern.permute.xlu0 0
      %1330 = vperm.xlu0 %1329, %v883
      %v1331 = vpop.permute.xlu0 %1330
      %1334 = vset.pattern.permute.xlu0 0
      %1335 = vperm.xlu0 %1334, %v885
      %v1336 = vpop.permute.xlu0 %1335
      %1339 = vset.pattern.permute.xlu0 0
      %1340 = vperm.xlu0 %1339, %v887
      %v1341 = vpop.permute.xlu0 %1340
      %1344 = vset.pattern.permute.xlu0 0
      %1345 = vperm.xlu0 %1344, %v889
      %v1346 = vpop.permute.xlu0 %1345
      %v1348 = vmul.f32 %v1271, %v1252
      %v1349 = vmul.f32 %v1276, %v1253
      %v1350 = vmul.f32 %v1281, %v1254
      %v1351 = vmul.f32 %v1286, %v1255
      %v1352 = vmul.f32 %v1291, %v1256
      %v1353 = vmul.f32 %v1296, %v1257
      %v1354 = vmul.f32 %v1301, %v1258
      %v1355 = vmul.f32 %v1306, %v1259
      %v1356 = vmul.f32 %v1311, %v1260
      %v1357 = vmul.f32 %v1316, %v1261
      %v1358 = vmul.f32 %v1321, %v1262
      %v1359 = vmul.f32 %v1326, %v1263
      %v1360 = vmul.f32 %v1331, %v1264
      %v1361 = vmul.f32 %v1336, %v1265
      %v1362 = vmul.f32 %v1341, %v1266
      %v1363 = vmul.f32 %v1346, %v1267
      %v1364 = vadd.f32 %v1348, %v1190
      %v1365 = vadd.f32 %v1349, %v1193
      %v1366 = vadd.f32 %v1350, %v1198
      %v1367 = vadd.f32 %v1351, %v1201
      %v1368 = vadd.f32 %v1352, %v1206
      %v1369 = vadd.f32 %v1353, %v1209
      %v1370 = vadd.f32 %v1354, %v1214
      %v1371 = vadd.f32 %v1355, %v1217
      %v1372 = vadd.f32 %v1356, %v1222
      %v1373 = vadd.f32 %v1357, %v1225
      %v1374 = vadd.f32 %v1358, %v1230
      %v1375 = vadd.f32 %v1359, %v1233
      %v1376 = vadd.f32 %v1360, %v1238
      %v1377 = vadd.f32 %v1361, %v1241
      %v1378 = vadd.f32 %v1362, %v1246
      %v1379 = vadd.f32 %v1363, %v1249
      %1380 = vst.msk [vmem:[#allocation4] sm:$0xff] %vm616, %v1364
      %1381 = vst.msk [vmem:[#allocation4 + $0x8] sm:$0xff] %vm616, %v1365
      %1382 = vst.msk [vmem:[#allocation4 + $0x10] sm:$0xff] %vm616, %v1366
      %1383 = vst.msk [vmem:[#allocation4 + $0x18] sm:$0xff] %vm616, %v1367
      %1384 = vst.msk [vmem:[#allocation4 + $0x20] sm:$0xff] %vm616, %v1368
      %1385 = vst.msk [vmem:[#allocation4 + $0x28] sm:$0xff] %vm616, %v1369
      %1386 = vst.msk [vmem:[#allocation4 + $0x30] sm:$0xff] %vm616, %v1370
      %1387 = vst.msk [vmem:[#allocation4 + $0x38] sm:$0xff] %vm616, %v1371
      %1388 = vst.msk [vmem:[#allocation4 + $0x40] sm:$0xff] %vm616, %v1372
      %1389 = vst.msk [vmem:[#allocation4 + $0x48] sm:$0xff] %vm616, %v1373
      %1390 = vst.msk [vmem:[#allocation4 + $0x50] sm:$0xff] %vm616, %v1374
      %1391 = vst.msk [vmem:[#allocation4 + $0x58] sm:$0xff] %vm616, %v1375
      %1392 = vst.msk [vmem:[#allocation4 + $0x60] sm:$0xff] %vm616, %v1376
      %1393 = vst.msk [vmem:[#allocation4 + $0x68] sm:$0xff] %vm616, %v1377
      %1394 = vst.msk [vmem:[#allocation4 + $0x70] sm:$0xff] %vm616, %v1378
      %1395 = vst.msk [vmem:[#allocation4 + $0x78] sm:$0xff] %vm616, %v1379
      %1396 = vst.msk [vmem:[#allocation2] sm:$0xff] %vm1082, %v826
      %1397 = vst.msk [vmem:[#allocation2 + $0x8] sm:$0xff] %vm1082, %v827
      %1398 = vst.msk [vmem:[#allocation2 + $0x10] sm:$0xff] %vm1082, %v828
      %1399 = vst.msk [vmem:[#allocation2 + $0x18] sm:$0xff] %vm1082, %v829
      %1400 = vst.msk [vmem:[#allocation2 + $0x20] sm:$0xff] %vm1082, %v830
      %1401 = vst.msk [vmem:[#allocation2 + $0x28] sm:$0xff] %vm1082, %v831
      %1402 = vst.msk [vmem:[#allocation2 + $0x30] sm:$0xff] %vm1082, %v832
      %1403 = vst.msk [vmem:[#allocation2 + $0x38] sm:$0xff] %vm1082, %v833
      %1404 = vst.msk [vmem:[#allocation2 + $0x40] sm:$0xff] %vm1082, %v834
      %1405 = vst.msk [vmem:[#allocation2 + $0x48] sm:$0xff] %vm1082, %v835
      %1406 = vst.msk [vmem:[#allocation2 + $0x50] sm:$0xff] %vm1082, %v836
      %1407 = vst.msk [vmem:[#allocation2 + $0x58] sm:$0xff] %vm1082, %v837
      %1408 = vst.msk [vmem:[#allocation2 + $0x60] sm:$0xff] %vm1082, %v838
      %1409 = vst.msk [vmem:[#allocation2 + $0x68] sm:$0xff] %vm1082, %v839
      %1410 = vst.msk [vmem:[#allocation2 + $0x70] sm:$0xff] %vm1082, %v840
      %1411 = vst.msk [vmem:[#allocation2 + $0x78] sm:$0xff] %vm1082, %v841
      %1420 = vrot.lane.b32.xlu0 %v536, 96
      %v1421 = vpop.permute.xlu0 %1420
      %1422 = vrot.lane.b32.xlu0 %v537, 96
      %v1423 = vpop.permute.xlu0 %1422
      %1424 = vrot.lane.b32.xlu0 %v538, 96
      %v1425 = vpop.permute.xlu0 %1424
      %1426 = vrot.lane.b32.xlu0 %v539, 96
      %v1427 = vpop.permute.xlu0 %1426
      %1428 = vrot.lane.b32.xlu0 %v540, 96
      %v1429 = vpop.permute.xlu0 %1428
      %1430 = vrot.lane.b32.xlu0 %v541, 96
      %v1431 = vpop.permute.xlu0 %1430
      %1432 = vrot.lane.b32.xlu0 %v542, 96
      %v1433 = vpop.permute.xlu0 %1432
      %1434 = vrot.lane.b32.xlu0 %v543, 96
      %v1435 = vpop.permute.xlu0 %1434
      %1436 = vrot.lane.b32.xlu0 %v608, 96
      %v1437 = vpop.permute.xlu0 %1436
      %1438 = vrot.lane.b32.xlu0 %v609, 96
      %v1439 = vpop.permute.xlu0 %1438
      %1440 = vrot.lane.b32.xlu0 %v610, 96
      %v1441 = vpop.permute.xlu0 %1440
      %1442 = vrot.lane.b32.xlu0 %v611, 96
      %v1443 = vpop.permute.xlu0 %1442
      %1444 = vrot.lane.b32.xlu0 %v612, 96
      %v1445 = vpop.permute.xlu0 %1444
      %1446 = vrot.lane.b32.xlu0 %v613, 96
      %v1447 = vpop.permute.xlu0 %1446
      %1448 = vrot.lane.b32.xlu0 %v614, 96
      %v1449 = vpop.permute.xlu0 %1448
      %1450 = vrot.lane.b32.xlu0 %v615, 96
      %v1451 = vpop.permute.xlu0 %1450
      %v1453 = vsel %vm616, %v1421, 0
      %v1456 = vsel %vm616, %v1423, 0
      %v1459 = vsel %vm616, %v1425, 0
      %v1462 = vsel %vm616, %v1427, 0
      %v1465 = vsel %vm616, %v1429, 0
      %v1468 = vsel %vm616, %v1431, 0
      %v1471 = vsel %vm616, %v1433, 0
      %v1474 = vsel %vm616, %v1435, 0
      %v1477 = vsel %vm616, %v1437, 0
      %v1480 = vsel %vm616, %v1439, 0
      %v1483 = vsel %vm616, %v1441, 0
      %v1486 = vsel %vm616, %v1443, 0
      %v1489 = vsel %vm616, %v1445, 0
      %v1492 = vsel %vm616, %v1447, 0
      %v1495 = vsel %vm616, %v1449, 0
      %v1498 = vsel %vm616, %v1451, 0
      %1500 = vmatprep.subr.bf16.mxu0 0
      %1501 = vmatpush1.bf16.xpose.msra.mxu0 %v1477
      %1502 = vmatprep.subr.bf16.mxu0 0
      %1503 = vmatpush1.bf16.xpose.msra.mxu0 %v1480
      %1504 = vmatprep.subr.bf16.mxu0 0
      %1505 = vmatpush1.bf16.xpose.msra.mxu0 %v1483
      %1506 = vmatprep.subr.bf16.mxu0 0
      %1507 = vmatpush1.bf16.xpose.msra.mxu0 %v1486
      %1508 = vmatprep.subr.bf16.mxu0 0
      %1509 = vmatpush1.bf16.xpose.msra.mxu0 %v1489
      %1510 = vmatprep.subr.bf16.mxu0 0
      %1511 = vmatpush1.bf16.xpose.msra.mxu0 %v1492
      %1512 = vmatprep.subr.bf16.mxu0 0
      %1513 = vmatpush1.bf16.xpose.msra.mxu0 %v1495
      %1514 = vmatprep.subr.bf16.mxu0 0
      %1515 = vmatpush1.bf16.xpose.msra.mxu0 %v1498
      %1516 = vmatprep.subr.bf16.mxu0 0
      %1517 = vmatpush1.bf16.xpose.msra.mxu0 0
      %1518 = vmatprep.subr.bf16.mxu0 0
      %1519 = vmatpush1.bf16.xpose.msra.mxu0 0
      %1520 = vmatprep.subr.bf16.mxu0 0
      %1521 = vmatpush1.bf16.xpose.msra.mxu0 0
      %1522 = vmatprep.subr.bf16.mxu0 0
      %1523 = vmatpush1.bf16.xpose.msra.mxu0 0
      %1524 = vmatprep.subr.bf16.mxu0 0
      %1525 = vmatpush1.bf16.xpose.msra.mxu0 0
      %1526 = vmatprep.subr.bf16.mxu0 0
      %1527 = vmatpush1.bf16.xpose.msra.mxu0 0
      %1528 = vmatprep.subr.bf16.mxu0 0
      %1529 = vmatpush1.bf16.xpose.msra.mxu0 0
      %1530 = vmatprep.subr.bf16.mxu0 0
      %1531 = vmatpush1.bf16.xpose.msra.mxu0 0
      %1532 = vmatprep.mubr.bf16.mxu0 0
      %1533 = vmatmul.mubr.bf16.gmra.mrb[0].mxu0 %v1453
      %v1534 = vpop.f32.mrb[0].mxu0
      %v1535 = vadd.f32 0.0, %v1534
      %v1536 = vpop.f32.mrb[0].mxu0
      %v1537 = vpop.f32.mrb[0].mxu0
      %v1538 = vadd.f32 0.0, %v1537
      %v1539 = vpop.f32.mrb[0].mxu0
      %1540 = vmatprep.mubr.bf16.mxu0 0
      %1541 = vmatmul.mubr.bf16.gmra.mrb[0].mxu0 %v1456
      %v1542 = vpop.f32.mrb[0].mxu0
      %v1543 = vadd.f32 0.0, %v1542
      %v1544 = vpop.f32.mrb[0].mxu0
      %v1545 = vpop.f32.mrb[0].mxu0
      %v1546 = vadd.f32 0.0, %v1545
      %v1547 = vpop.f32.mrb[0].mxu0
      %1548 = vmatprep.mubr.bf16.mxu0 0
      %1549 = vmatmul.mubr.bf16.gmra.mrb[0].mxu0 %v1459
      %v1550 = vpop.f32.mrb[0].mxu0
      %v1551 = vadd.f32 0.0, %v1550
      %v1552 = vpop.f32.mrb[0].mxu0
      %v1553 = vpop.f32.mrb[0].mxu0
      %v1554 = vadd.f32 0.0, %v1553
      %v1555 = vpop.f32.mrb[0].mxu0
      %1556 = vmatprep.mubr.bf16.mxu0 0
      %1557 = vmatmul.mubr.bf16.gmra.mrb[0].mxu0 %v1462
      %v1558 = vpop.f32.mrb[0].mxu0
      %v1559 = vadd.f32 0.0, %v1558
      %v1560 = vpop.f32.mrb[0].mxu0
      %v1561 = vpop.f32.mrb[0].mxu0
      %v1562 = vadd.f32 0.0, %v1561
      %v1563 = vpop.f32.mrb[0].mxu0
      %1564 = vmatprep.mubr.bf16.mxu0 0
      %1565 = vmatmul.mubr.bf16.gmra.mrb[0].mxu0 %v1465
      %v1566 = vpop.f32.mrb[0].mxu0
      %v1567 = vadd.f32 0.0, %v1566
      %v1568 = vpop.f32.mrb[0].mxu0
      %v1569 = vpop.f32.mrb[0].mxu0
      %v1570 = vadd.f32 0.0, %v1569
      %v1571 = vpop.f32.mrb[0].mxu0
      %1572 = vmatprep.mubr.bf16.mxu0 0
      %1573 = vmatmul.mubr.bf16.gmra.mrb[0].mxu0 %v1468
      %v1574 = vpop.f32.mrb[0].mxu0
      %v1575 = vadd.f32 0.0, %v1574
      %v1576 = vpop.f32.mrb[0].mxu0
      %v1577 = vpop.f32.mrb[0].mxu0
      %v1578 = vadd.f32 0.0, %v1577
      %v1579 = vpop.f32.mrb[0].mxu0
      %1580 = vmatprep.mubr.bf16.mxu0 0
      %1581 = vmatmul.mubr.bf16.gmra.mrb[0].mxu0 %v1471
      %v1582 = vpop.f32.mrb[0].mxu0
      %v1583 = vadd.f32 0.0, %v1582
      %v1584 = vpop.f32.mrb[0].mxu0
      %v1585 = vpop.f32.mrb[0].mxu0
      %v1586 = vadd.f32 0.0, %v1585
      %v1587 = vpop.f32.mrb[0].mxu0
      %1588 = vmatprep.mubr.bf16.mxu0 0
      %1589 = vmatmul.mubr.bf16.gmra.mrb[0].mxu0 %v1474
      %v1590 = vpop.f32.mrb[0].mxu0
      %v1591 = vadd.f32 0.0, %v1590
      %v1592 = vpop.f32.mrb[0].mxu0
      %v1593 = vpop.f32.mrb[0].mxu0
      %v1594 = vadd.f32 0.0, %v1593
      %v1595 = vpop.f32.mrb[0].mxu0
      %1596 = vdwg.mxu0
      %s1597 = scalar_lea.vmem [#allocation2], 128
      %v1598 = vld [vmem:[%s1597] sm:$0xff]
      %v1599 = vld [vmem:[%s1597 + $0x8] sm:$0xff]
      %v1600 = vld [vmem:[%s1597 + $0x10] sm:$0xff]
      %v1601 = vld [vmem:[%s1597 + $0x18] sm:$0xff]
      %v1602 = vld [vmem:[%s1597 + $0x20] sm:$0xff]
      %v1603 = vld [vmem:[%s1597 + $0x28] sm:$0xff]
      %v1604 = vld [vmem:[%s1597 + $0x30] sm:$0xff]
      %v1605 = vld [vmem:[%s1597 + $0x38] sm:$0xff]
      %v1606 = vld [vmem:[%s1597 + $0x40] sm:$0xff]
      %v1607 = vld [vmem:[%s1597 + $0x48] sm:$0xff]
      %v1608 = vld [vmem:[%s1597 + $0x50] sm:$0xff]
      %v1609 = vld [vmem:[%s1597 + $0x58] sm:$0xff]
      %v1610 = vld [vmem:[%s1597 + $0x60] sm:$0xff]
      %v1611 = vld [vmem:[%s1597 + $0x68] sm:$0xff]
      %v1612 = vld [vmem:[%s1597 + $0x70] sm:$0xff]
      %v1613 = vld [vmem:[%s1597 + $0x78] sm:$0xff]
      %s1614 = scalar_lea.vmem [#allocation3], 128
      %v1615 = vld [vmem:[%s1614] sm:$0xff]
      %v1616 = vld [vmem:[%s1614 + $0x8] sm:$0xff]
      %v1617 = vld [vmem:[%s1614 + $0x10] sm:$0xff]
      %v1618 = vld [vmem:[%s1614 + $0x18] sm:$0xff]
      %v1619 = vld [vmem:[%s1614 + $0x20] sm:$0xff]
      %v1620 = vld [vmem:[%s1614 + $0x28] sm:$0xff]
      %v1621 = vld [vmem:[%s1614 + $0x30] sm:$0xff]
      %v1622 = vld [vmem:[%s1614 + $0x38] sm:$0xff]
      %v1623 = vld [vmem:[%s1614 + $0x40] sm:$0xff]
      %v1624 = vld [vmem:[%s1614 + $0x48] sm:$0xff]
      %v1625 = vld [vmem:[%s1614 + $0x50] sm:$0xff]
      %v1626 = vld [vmem:[%s1614 + $0x58] sm:$0xff]
      %v1627 = vld [vmem:[%s1614 + $0x60] sm:$0xff]
      %v1628 = vld [vmem:[%s1614 + $0x68] sm:$0xff]
      %v1629 = vld [vmem:[%s1614 + $0x70] sm:$0xff]
      %v1630 = vld [vmem:[%s1614 + $0x78] sm:$0xff]
      %1631 = vmax.xlane.f32.xlu0 %v1535
      %v1632 = vpop.xlane.xlu0 %1631
      %1633 = vmax.xlane.f32.xlu0 %v1538
      %v1634 = vpop.xlane.xlu0 %1633
      %1635 = vmax.xlane.f32.xlu0 %v1543
      %v1636 = vpop.xlane.xlu0 %1635
      %1637 = vmax.xlane.f32.xlu0 %v1546
      %v1638 = vpop.xlane.xlu0 %1637
      %1639 = vmax.xlane.f32.xlu0 %v1551
      %v1640 = vpop.xlane.xlu0 %1639
      %1641 = vmax.xlane.f32.xlu0 %v1554
      %v1642 = vpop.xlane.xlu0 %1641
      %1643 = vmax.xlane.f32.xlu0 %v1559
      %v1644 = vpop.xlane.xlu0 %1643
      %1645 = vmax.xlane.f32.xlu0 %v1562
      %v1646 = vpop.xlane.xlu0 %1645
      %1647 = vmax.xlane.f32.xlu0 %v1567
      %v1648 = vpop.xlane.xlu0 %1647
      %1649 = vmax.xlane.f32.xlu0 %v1570
      %v1650 = vpop.xlane.xlu0 %1649
      %1651 = vmax.xlane.f32.xlu0 %v1575
      %v1652 = vpop.xlane.xlu0 %1651
      %1653 = vmax.xlane.f32.xlu0 %v1578
      %v1654 = vpop.xlane.xlu0 %1653
      %1655 = vmax.xlane.f32.xlu0 %v1583
      %v1656 = vpop.xlane.xlu0 %1655
      %1657 = vmax.xlane.f32.xlu0 %v1586
      %v1658 = vpop.xlane.xlu0 %1657
      %1659 = vmax.xlane.f32.xlu0 %v1591
      %v1660 = vpop.xlane.xlu0 %1659
      %1661 = vmax.xlane.f32.xlu0 %v1594
      %v1662 = vpop.xlane.xlu0 %1661
      %v1663 = vmax.f32 %v1598, %v1632
      %v1664 = vmax.f32 %v1599, %v1634
      %v1665 = vmax.f32 %v1600, %v1636
      %v1666 = vmax.f32 %v1601, %v1638
      %v1667 = vmax.f32 %v1602, %v1640
      %v1668 = vmax.f32 %v1603, %v1642
      %v1669 = vmax.f32 %v1604, %v1644
      %v1670 = vmax.f32 %v1605, %v1646
      %v1671 = vmax.f32 %v1606, %v1648
      %v1672 = vmax.f32 %v1607, %v1650
      %v1673 = vmax.f32 %v1608, %v1652
      %v1674 = vmax.f32 %v1609, %v1654
      %v1675 = vmax.f32 %v1610, %v1656
      %v1676 = vmax.f32 %v1611, %v1658
      %v1677 = vmax.f32 %v1612, %v1660
      %v1678 = vmax.f32 %v1613, %v1662
      %v1679 = vsub.f32 %v1598, %v1663
      %v1680 = vsub.f32 %v1599, %v1664
      %v1681 = vsub.f32 %v1600, %v1665
      %v1682 = vsub.f32 %v1601, %v1666
      %v1683 = vsub.f32 %v1602, %v1667
      %v1684 = vsub.f32 %v1603, %v1668
      %v1685 = vsub.f32 %v1604, %v1669
      %v1686 = vsub.f32 %v1605, %v1670
      %v1687 = vsub.f32 %v1606, %v1671
      %v1688 = vsub.f32 %v1607, %v1672
      %v1689 = vsub.f32 %v1608, %v1673
      %v1690 = vsub.f32 %v1609, %v1674
      %v1691 = vsub.f32 %v1610, %v1675
      %v1692 = vsub.f32 %v1611, %v1676
      %v1693 = vsub.f32 %v1612, %v1677
      %v1694 = vsub.f32 %v1613, %v1678
      %v1695 = vmul.f32 %v1679, 1.442695
      %v1696 = vpow.pop %v1695
      %v1697 = vmul.f32 %v1680, 1.442695
      %v1698 = vpow.pop %v1697
      %v1699 = vmul.f32 %v1681, 1.442695
      %v1700 = vpow.pop %v1699
      %v1701 = vmul.f32 %v1682, 1.442695
      %v1702 = vpow.pop %v1701
      %v1703 = vmul.f32 %v1683, 1.442695
      %v1704 = vpow.pop %v1703
      %v1705 = vmul.f32 %v1684, 1.442695
      %v1706 = vpow.pop %v1705
      %v1707 = vmul.f32 %v1685, 1.442695
      %v1708 = vpow.pop %v1707
      %v1709 = vmul.f32 %v1686, 1.442695
      %v1710 = vpow.pop %v1709
      %v1711 = vmul.f32 %v1687, 1.442695
      %v1712 = vpow.pop %v1711
      %v1713 = vmul.f32 %v1688, 1.442695
      %v1714 = vpow.pop %v1713
      %v1715 = vmul.f32 %v1689, 1.442695
      %v1716 = vpow.pop %v1715
      %v1717 = vmul.f32 %v1690, 1.442695
      %v1718 = vpow.pop %v1717
      %v1719 = vmul.f32 %v1691, 1.442695
      %v1720 = vpow.pop %v1719
      %v1721 = vmul.f32 %v1692, 1.442695
      %v1722 = vpow.pop %v1721
      %v1723 = vmul.f32 %v1693, 1.442695
      %v1724 = vpow.pop %v1723
      %v1725 = vmul.f32 %v1694, 1.442695
      %v1726 = vpow.pop %v1725
      %1728 = vset.pattern.permute.xlu0 0
      %1729 = vperm.xlu0 %1728, %v1663
      %v1730 = vpop.permute.xlu0 %1729
      %1733 = vset.pattern.permute.xlu0 0
      %1734 = vperm.xlu0 %1733, %v1664
      %v1735 = vpop.permute.xlu0 %1734
      %1738 = vset.pattern.permute.xlu0 0
      %1739 = vperm.xlu0 %1738, %v1665
      %v1740 = vpop.permute.xlu0 %1739
      %1743 = vset.pattern.permute.xlu0 0
      %1744 = vperm.xlu0 %1743, %v1666
      %v1745 = vpop.permute.xlu0 %1744
      %1748 = vset.pattern.permute.xlu0 0
      %1749 = vperm.xlu0 %1748, %v1667
      %v1750 = vpop.permute.xlu0 %1749
      %1753 = vset.pattern.permute.xlu0 0
      %1754 = vperm.xlu0 %1753, %v1668
      %v1755 = vpop.permute.xlu0 %1754
      %1758 = vset.pattern.permute.xlu0 0
      %1759 = vperm.xlu0 %1758, %v1669
      %v1760 = vpop.permute.xlu0 %1759
      %1763 = vset.pattern.permute.xlu0 0
      %1764 = vperm.xlu0 %1763, %v1670
      %v1765 = vpop.permute.xlu0 %1764
      %1768 = vset.pattern.permute.xlu0 0
      %1769 = vperm.xlu0 %1768, %v1671
      %v1770 = vpop.permute.xlu0 %1769
      %1773 = vset.pattern.permute.xlu0 0
      %1774 = vperm.xlu0 %1773, %v1672
      %v1775 = vpop.permute.xlu0 %1774
      %1778 = vset.pattern.permute.xlu0 0
      %1779 = vperm.xlu0 %1778, %v1673
      %v1780 = vpop.permute.xlu0 %1779
      %1783 = vset.pattern.permute.xlu0 0
      %1784 = vperm.xlu0 %1783, %v1674
      %v1785 = vpop.permute.xlu0 %1784
      %1788 = vset.pattern.permute.xlu0 0
      %1789 = vperm.xlu0 %1788, %v1675
      %v1790 = vpop.permute.xlu0 %1789
      %1793 = vset.pattern.permute.xlu0 0
      %1794 = vperm.xlu0 %1793, %v1676
      %v1795 = vpop.permute.xlu0 %1794
      %1798 = vset.pattern.permute.xlu0 0
      %1799 = vperm.xlu0 %1798, %v1677
      %v1800 = vpop.permute.xlu0 %1799
      %1803 = vset.pattern.permute.xlu0 0
      %1804 = vperm.xlu0 %1803, %v1678
      %v1805 = vpop.permute.xlu0 %1804
      %v1807 = vsub.f32 %v1535, %v1730
      %v1808 = vsub.f32 %v1538, %v1735
      %v1809 = vsub.f32 %v1543, %v1740
      %v1810 = vsub.f32 %v1546, %v1745
      %v1811 = vsub.f32 %v1551, %v1750
      %v1812 = vsub.f32 %v1554, %v1755
      %v1813 = vsub.f32 %v1559, %v1760
      %v1814 = vsub.f32 %v1562, %v1765
      %v1815 = vsub.f32 %v1567, %v1770
      %v1816 = vsub.f32 %v1570, %v1775
      %v1817 = vsub.f32 %v1575, %v1780
      %v1818 = vsub.f32 %v1578, %v1785
      %v1819 = vsub.f32 %v1583, %v1790
      %v1820 = vsub.f32 %v1586, %v1795
      %v1821 = vsub.f32 %v1591, %v1800
      %v1822 = vsub.f32 %v1594, %v1805
      %v1823 = vmul.f32 %v1807, 1.442695
      %v1824 = vpow.pop %v1823
      %v1825 = vmul.f32 %v1808, 1.442695
      %v1826 = vpow.pop %v1825
      %v1827 = vmul.f32 %v1809, 1.442695
      %v1828 = vpow.pop %v1827
      %v1829 = vmul.f32 %v1810, 1.442695
      %v1830 = vpow.pop %v1829
      %v1831 = vmul.f32 %v1811, 1.442695
      %v1832 = vpow.pop %v1831
      %v1833 = vmul.f32 %v1812, 1.442695
      %v1834 = vpow.pop %v1833
      %v1835 = vmul.f32 %v1813, 1.442695
      %v1836 = vpow.pop %v1835
      %v1837 = vmul.f32 %v1814, 1.442695
      %v1838 = vpow.pop %v1837
      %v1839 = vmul.f32 %v1815, 1.442695
      %v1840 = vpow.pop %v1839
      %v1841 = vmul.f32 %v1816, 1.442695
      %v1842 = vpow.pop %v1841
      %v1843 = vmul.f32 %v1817, 1.442695
      %v1844 = vpow.pop %v1843
      %v1845 = vmul.f32 %v1818, 1.442695
      %v1846 = vpow.pop %v1845
      %v1847 = vmul.f32 %v1819, 1.442695
      %v1848 = vpow.pop %v1847
      %v1849 = vmul.f32 %v1820, 1.442695
      %v1850 = vpow.pop %v1849
      %v1851 = vmul.f32 %v1821, 1.442695
      %v1852 = vpow.pop %v1851
      %v1853 = vmul.f32 %v1822, 1.442695
      %v1854 = vpow.pop %v1853
      %v1855 = vmul.f32 %v1696, %v1615
      %v1856 = vmul.f32 %v1698, %v1616
      %v1857 = vmul.f32 %v1700, %v1617
      %v1858 = vmul.f32 %v1702, %v1618
      %v1859 = vmul.f32 %v1704, %v1619
      %v1860 = vmul.f32 %v1706, %v1620
      %v1861 = vmul.f32 %v1708, %v1621
      %v1862 = vmul.f32 %v1710, %v1622
      %v1863 = vmul.f32 %v1712, %v1623
      %v1864 = vmul.f32 %v1714, %v1624
      %v1865 = vmul.f32 %v1716, %v1625
      %v1866 = vmul.f32 %v1718, %v1626
      %v1867 = vmul.f32 %v1720, %v1627
      %v1868 = vmul.f32 %v1722, %v1628
      %v1869 = vmul.f32 %v1724, %v1629
      %v1870 = vmul.f32 %v1726, %v1630
      %1871 = vadd.xlane.f32.xlu0 %v1824
      %v1872 = vpop.xlane.xlu0 %1871
      %1873 = vadd.xlane.f32.xlu0 %v1826
      %v1874 = vpop.xlane.xlu0 %1873
      %1875 = vadd.xlane.f32.xlu0 %v1828
      %v1876 = vpop.xlane.xlu0 %1875
      %1877 = vadd.xlane.f32.xlu0 %v1830
      %v1878 = vpop.xlane.xlu0 %1877
      %1879 = vadd.xlane.f32.xlu0 %v1832
      %v1880 = vpop.xlane.xlu0 %1879
      %1881 = vadd.xlane.f32.xlu0 %v1834
      %v1882 = vpop.xlane.xlu0 %1881
      %1883 = vadd.xlane.f32.xlu0 %v1836
      %v1884 = vpop.xlane.xlu0 %1883
      %1885 = vadd.xlane.f32.xlu0 %v1838
      %v1886 = vpop.xlane.xlu0 %1885
      %1887 = vadd.xlane.f32.xlu0 %v1840
      %v1888 = vpop.xlane.xlu0 %1887
      %1889 = vadd.xlane.f32.xlu0 %v1842
      %v1890 = vpop.xlane.xlu0 %1889
      %1891 = vadd.xlane.f32.xlu0 %v1844
      %v1892 = vpop.xlane.xlu0 %1891
      %1893 = vadd.xlane.f32.xlu0 %v1846
      %v1894 = vpop.xlane.xlu0 %1893
      %1895 = vadd.xlane.f32.xlu0 %v1848
      %v1896 = vpop.xlane.xlu0 %1895
      %1897 = vadd.xlane.f32.xlu0 %v1850
      %v1898 = vpop.xlane.xlu0 %1897
      %1899 = vadd.xlane.f32.xlu0 %v1852
      %v1900 = vpop.xlane.xlu0 %1899
      %1901 = vadd.xlane.f32.xlu0 %v1854
      %v1902 = vpop.xlane.xlu0 %1901
      %v1903 = vadd.f32 %v1855, %v1872
      %v1904 = vadd.f32 %v1856, %v1874
      %v1905 = vadd.f32 %v1857, %v1876
      %v1906 = vadd.f32 %v1858, %v1878
      %v1907 = vadd.f32 %v1859, %v1880
      %v1908 = vadd.f32 %v1860, %v1882
      %v1909 = vadd.f32 %v1861, %v1884
      %v1910 = vadd.f32 %v1862, %v1886
      %v1911 = vadd.f32 %v1863, %v1888
      %v1912 = vadd.f32 %v1864, %v1890
      %v1913 = vadd.f32 %v1865, %v1892
      %v1914 = vadd.f32 %v1866, %v1894
      %v1915 = vadd.f32 %v1867, %v1896
      %v1916 = vadd.f32 %v1868, %v1898
      %v1917 = vadd.f32 %v1869, %v1900
      %v1918 = vadd.f32 %v1870, %v1902
      %1919 = vst.msk [vmem:[%s1614] sm:$0xff] %vm1082, %v1903
      %1920 = vst.msk [vmem:[%s1614 + $0x8] sm:$0xff] %vm1082, %v1904
      %1921 = vst.msk [vmem:[%s1614 + $0x10] sm:$0xff] %vm1082, %v1905
      %1922 = vst.msk [vmem:[%s1614 + $0x18] sm:$0xff] %vm1082, %v1906
      %1923 = vst.msk [vmem:[%s1614 + $0x20] sm:$0xff] %vm1082, %v1907
      %1924 = vst.msk [vmem:[%s1614 + $0x28] sm:$0xff] %vm1082, %v1908
      %1925 = vst.msk [vmem:[%s1614 + $0x30] sm:$0xff] %vm1082, %v1909
      %1926 = vst.msk [vmem:[%s1614 + $0x38] sm:$0xff] %vm1082, %v1910
      %1927 = vst.msk [vmem:[%s1614 + $0x40] sm:$0xff] %vm1082, %v1911
      %1928 = vst.msk [vmem:[%s1614 + $0x48] sm:$0xff] %vm1082, %v1912
      %1929 = vst.msk [vmem:[%s1614 + $0x50] sm:$0xff] %vm1082, %v1913
      %1930 = vst.msk [vmem:[%s1614 + $0x58] sm:$0xff] %vm1082, %v1914
      %1931 = vst.msk [vmem:[%s1614 + $0x60] sm:$0xff] %vm1082, %v1915
      %1932 = vst.msk [vmem:[%s1614 + $0x68] sm:$0xff] %vm1082, %v1916
      %1933 = vst.msk [vmem:[%s1614 + $0x70] sm:$0xff] %vm1082, %v1917
      %1934 = vst.msk [vmem:[%s1614 + $0x78] sm:$0xff] %vm1082, %v1918
      %v1935 = vpack.c.bf16 %v1826, %v1824
      %v1936 = vpack.c.bf16 %v1830, %v1828
      %v1937 = vpack.c.bf16 %v1834, %v1832
      %v1938 = vpack.c.bf16 %v1838, %v1836
      %v1939 = vpack.c.bf16 %v1842, %v1840
      %v1940 = vpack.c.bf16 %v1846, %v1844
      %v1941 = vpack.c.bf16 %v1850, %v1848
      %v1942 = vpack.c.bf16 %v1854, %v1852
      %1943 = vrot.lane.b32.xlu0 %v1139, 96
      %v1944 = vpop.permute.xlu0 %1943
      %1945 = vrot.lane.b32.xlu0 %v1140, 96
      %v1946 = vpop.permute.xlu0 %1945
      %1947 = vrot.lane.b32.xlu0 %v1141, 96
      %v1948 = vpop.permute.xlu0 %1947
      %1949 = vrot.lane.b32.xlu0 %v1142, 96
      %v1950 = vpop.permute.xlu0 %1949
      %1951 = vrot.lane.b32.xlu0 %v1143, 96
      %v1952 = vpop.permute.xlu0 %1951
      %1953 = vrot.lane.b32.xlu0 %v1144, 96
      %v1954 = vpop.permute.xlu0 %1953
      %1955 = vrot.lane.b32.xlu0 %v1145, 96
      %v1956 = vpop.permute.xlu0 %1955
      %1957 = vrot.lane.b32.xlu0 %v1146, 96
      %v1958 = vpop.permute.xlu0 %1957
      %1967 = vmatprep.subr.bf16.mxu0 0
      %1968 = vmatpush1.bf16.msra.mxu0 %v1944
      %1969 = vmatprep.subr.bf16.mxu0 0
      %1970 = vmatpush1.bf16.msra.mxu0 %v1946
      %1971 = vmatprep.subr.bf16.mxu0 0
      %1972 = vmatpush1.bf16.msra.mxu0 %v1948
      %1973 = vmatprep.subr.bf16.mxu0 0
      %1974 = vmatpush1.bf16.msra.mxu0 %v1950
      %1975 = vmatprep.subr.bf16.mxu0 0
      %1976 = vmatpush1.bf16.msra.mxu0 %v1952
      %1977 = vmatprep.subr.bf16.mxu0 0
      %1978 = vmatpush1.bf16.msra.mxu0 %v1954
      %1979 = vmatprep.subr.bf16.mxu0 0
      %1980 = vmatpush1.bf16.msra.mxu0 %v1956
      %1981 = vmatprep.subr.bf16.mxu0 0
      %1982 = vmatpush1.bf16.msra.mxu0 %v1958
      %1983 = vmatprep.subr.bf16.mxu0 0
      %1984 = vmatpush1.bf16.msra.mxu0 0
      %1985 = vmatprep.subr.bf16.mxu0 0
      %1986 = vmatpush1.bf16.msra.mxu0 0
      %1987 = vmatprep.subr.bf16.mxu0 0
      %1988 = vmatpush1.bf16.msra.mxu0 0
      %1989 = vmatprep.subr.bf16.mxu0 0
      %1990 = vmatpush1.bf16.msra.mxu0 0
      %1991 = vmatprep.subr.bf16.mxu0 0
      %1992 = vmatpush1.bf16.msra.mxu0 0
      %1993 = vmatprep.subr.bf16.mxu0 0
      %1994 = vmatpush1.bf16.msra.mxu0 0
      %1995 = vmatprep.subr.bf16.mxu0 0
      %1996 = vmatpush1.bf16.msra.mxu0 0
      %1997 = vmatprep.subr.bf16.mxu0 0
      %1998 = vmatpush1.bf16.msra.mxu0 0
      %1999 = vmatprep.mubr.bf16.mxu0 0
      %2000 = vmatmul.mubr.bf16.gmra.mrb[0].mxu0 %v1935
      %v2001 = vpop.f32.mrb[0].mxu0
      %v2002 = vadd.f32 0.0, %v2001
      %v2003 = vpop.f32.mrb[0].mxu0
      %v2004 = vpop.f32.mrb[0].mxu0
      %v2005 = vadd.f32 0.0, %v2004
      %v2006 = vpop.f32.mrb[0].mxu0
      %2007 = vmatprep.mubr.bf16.mxu0 0
      %2008 = vmatmul.mubr.bf16.gmra.mrb[0].mxu0 %v1936
      %v2009 = vpop.f32.mrb[0].mxu0
      %v2010 = vadd.f32 0.0, %v2009
      %v2011 = vpop.f32.mrb[0].mxu0
      %v2012 = vpop.f32.mrb[0].mxu0
      %v2013 = vadd.f32 0.0, %v2012
      %v2014 = vpop.f32.mrb[0].mxu0
      %2015 = vmatprep.mubr.bf16.mxu0 0
      %2016 = vmatmul.mubr.bf16.gmra.mrb[0].mxu0 %v1937
      %v2017 = vpop.f32.mrb[0].mxu0
      %v2018 = vadd.f32 0.0, %v2017
      %v2019 = vpop.f32.mrb[0].mxu0
      %v2020 = vpop.f32.mrb[0].mxu0
      %v2021 = vadd.f32 0.0, %v2020
      %v2022 = vpop.f32.mrb[0].mxu0
      %2023 = vmatprep.mubr.bf16.mxu0 0
      %2024 = vmatmul.mubr.bf16.gmra.mrb[0].mxu0 %v1938
      %v2025 = vpop.f32.mrb[0].mxu0
      %v2026 = vadd.f32 0.0, %v2025
      %v2027 = vpop.f32.mrb[0].mxu0
      %v2028 = vpop.f32.mrb[0].mxu0
      %v2029 = vadd.f32 0.0, %v2028
      %v2030 = vpop.f32.mrb[0].mxu0
      %2031 = vmatprep.mubr.bf16.mxu0 0
      %2032 = vmatmul.mubr.bf16.gmra.mrb[0].mxu0 %v1939
      %v2033 = vpop.f32.mrb[0].mxu0
      %v2034 = vadd.f32 0.0, %v2033
      %v2035 = vpop.f32.mrb[0].mxu0
      %v2036 = vpop.f32.mrb[0].mxu0
      %v2037 = vadd.f32 0.0, %v2036
      %v2038 = vpop.f32.mrb[0].mxu0
      %2039 = vmatprep.mubr.bf16.mxu0 0
      %2040 = vmatmul.mubr.bf16.gmra.mrb[0].mxu0 %v1940
      %v2041 = vpop.f32.mrb[0].mxu0
      %v2042 = vadd.f32 0.0, %v2041
      %v2043 = vpop.f32.mrb[0].mxu0
      %v2044 = vpop.f32.mrb[0].mxu0
      %v2045 = vadd.f32 0.0, %v2044
      %v2046 = vpop.f32.mrb[0].mxu0
      %2047 = vmatprep.mubr.bf16.mxu0 0
      %2048 = vmatmul.mubr.bf16.gmra.mrb[0].mxu0 %v1941
      %v2049 = vpop.f32.mrb[0].mxu0
      %v2050 = vadd.f32 0.0, %v2049
      %v2051 = vpop.f32.mrb[0].mxu0
      %v2052 = vpop.f32.mrb[0].mxu0
      %v2053 = vadd.f32 0.0, %v2052
      %v2054 = vpop.f32.mrb[0].mxu0
      %2055 = vmatprep.mubr.bf16.mxu0 0
      %2056 = vmatmul.mubr.bf16.gmra.mrb[0].mxu0 %v1942
      %v2057 = vpop.f32.mrb[0].mxu0
      %v2058 = vadd.f32 0.0, %v2057
      %v2059 = vpop.f32.mrb[0].mxu0
      %v2060 = vpop.f32.mrb[0].mxu0
      %v2061 = vadd.f32 0.0, %v2060
      %v2062 = vpop.f32.mrb[0].mxu0
      %2063 = vdwg.mxu0
      %s2064 = scalar_lea.vmem [#allocation4], 128
      %v2065 = vld [vmem:[%s2064] sm:$0xff]
      %v2066 = vld [vmem:[%s2064 + $0x8] sm:$0xff]
      %v2067 = vld [vmem:[%s2064 + $0x10] sm:$0xff]
      %v2068 = vld [vmem:[%s2064 + $0x18] sm:$0xff]
      %v2069 = vld [vmem:[%s2064 + $0x20] sm:$0xff]
      %v2070 = vld [vmem:[%s2064 + $0x28] sm:$0xff]
      %v2071 = vld [vmem:[%s2064 + $0x30] sm:$0xff]
      %v2072 = vld [vmem:[%s2064 + $0x38] sm:$0xff]
      %v2073 = vld [vmem:[%s2064 + $0x40] sm:$0xff]
      %v2074 = vld [vmem:[%s2064 + $0x48] sm:$0xff]
      %v2075 = vld [vmem:[%s2064 + $0x50] sm:$0xff]
      %v2076 = vld [vmem:[%s2064 + $0x58] sm:$0xff]
      %v2077 = vld [vmem:[%s2064 + $0x60] sm:$0xff]
      %v2078 = vld [vmem:[%s2064 + $0x68] sm:$0xff]
      %v2079 = vld [vmem:[%s2064 + $0x70] sm:$0xff]
      %v2080 = vld [vmem:[%s2064 + $0x78] sm:$0xff]
      %2082 = vset.pattern.permute.xlu0 0
      %2083 = vperm.xlu0 %2082, %v1696
      %v2084 = vpop.permute.xlu0 %2083
      %2087 = vset.pattern.permute.xlu0 0
      %2088 = vperm.xlu0 %2087, %v1698
      %v2089 = vpop.permute.xlu0 %2088
      %2092 = vset.pattern.permute.xlu0 0
      %2093 = vperm.xlu0 %2092, %v1700
      %v2094 = vpop.permute.xlu0 %2093
      %2097 = vset.pattern.permute.xlu0 0
      %2098 = vperm.xlu0 %2097, %v1702
      %v2099 = vpop.permute.xlu0 %2098
      %2102 = vset.pattern.permute.xlu0 0
      %2103 = vperm.xlu0 %2102, %v1704
      %v2104 = vpop.permute.xlu0 %2103
      %2107 = vset.pattern.permute.xlu0 0
      %2108 = vperm.xlu0 %2107, %v1706
      %v2109 = vpop.permute.xlu0 %2108
      %2112 = vset.pattern.permute.xlu0 0
      %2113 = vperm.xlu0 %2112, %v1708
      %v2114 = vpop.permute.xlu0 %2113
      %2117 = vset.pattern.permute.xlu0 0
      %2118 = vperm.xlu0 %2117, %v1710
      %v2119 = vpop.permute.xlu0 %2118
      %2122 = vset.pattern.permute.xlu0 0
      %2123 = vperm.xlu0 %2122, %v1712
      %v2124 = vpop.permute.xlu0 %2123
      %2127 = vset.pattern.permute.xlu0 0
      %2128 = vperm.xlu0 %2127, %v1714
      %v2129 = vpop.permute.xlu0 %2128
      %2132 = vset.pattern.permute.xlu0 0
      %2133 = vperm.xlu0 %2132, %v1716
      %v2134 = vpop.permute.xlu0 %2133
      %2137 = vset.pattern.permute.xlu0 0
      %2138 = vperm.xlu0 %2137, %v1718
      %v2139 = vpop.permute.xlu0 %2138
      %2142 = vset.pattern.permute.xlu0 0
      %2143 = vperm.xlu0 %2142, %v1720
      %v2144 = vpop.permute.xlu0 %2143
      %2147 = vset.pattern.permute.xlu0 0
      %2148 = vperm.xlu0 %2147, %v1722
      %v2149 = vpop.permute.xlu0 %2148
      %2152 = vset.pattern.permute.xlu0 0
      %2153 = vperm.xlu0 %2152, %v1724
      %v2154 = vpop.permute.xlu0 %2153
      %2157 = vset.pattern.permute.xlu0 0
      %2158 = vperm.xlu0 %2157, %v1726
      %v2159 = vpop.permute.xlu0 %2158
      %v2161 = vmul.f32 %v2084, %v2065
      %v2162 = vmul.f32 %v2089, %v2066
      %v2163 = vmul.f32 %v2094, %v2067
      %v2164 = vmul.f32 %v2099, %v2068
      %v2165 = vmul.f32 %v2104, %v2069
      %v2166 = vmul.f32 %v2109, %v2070
      %v2167 = vmul.f32 %v2114, %v2071
      %v2168 = vmul.f32 %v2119, %v2072
      %v2169 = vmul.f32 %v2124, %v2073
      %v2170 = vmul.f32 %v2129, %v2074
      %v2171 = vmul.f32 %v2134, %v2075
      %v2172 = vmul.f32 %v2139, %v2076
      %v2173 = vmul.f32 %v2144, %v2077
      %v2174 = vmul.f32 %v2149, %v2078
      %v2175 = vmul.f32 %v2154, %v2079
      %v2176 = vmul.f32 %v2159, %v2080
      %v2177 = vadd.f32 %v2161, %v2002
      %v2178 = vadd.f32 %v2162, %v2005
      %v2179 = vadd.f32 %v2163, %v2010
      %v2180 = vadd.f32 %v2164, %v2013
      %v2181 = vadd.f32 %v2165, %v2018
      %v2182 = vadd.f32 %v2166, %v2021
      %v2183 = vadd.f32 %v2167, %v2026
      %v2184 = vadd.f32 %v2168, %v2029
      %v2185 = vadd.f32 %v2169, %v2034
      %v2186 = vadd.f32 %v2170, %v2037
      %v2187 = vadd.f32 %v2171, %v2042
      %v2188 = vadd.f32 %v2172, %v2045
      %v2189 = vadd.f32 %v2173, %v2050
      %v2190 = vadd.f32 %v2174, %v2053
      %v2191 = vadd.f32 %v2175, %v2058
      %v2192 = vadd.f32 %v2176, %v2061
      %2193 = vst.msk [vmem:[%s2064] sm:$0xff] %vm616, %v2177
      %2194 = vst.msk [vmem:[%s2064 + $0x8] sm:$0xff] %vm616, %v2178
      %2195 = vst.msk [vmem:[%s2064 + $0x10] sm:$0xff] %vm616, %v2179
      %2196 = vst.msk [vmem:[%s2064 + $0x18] sm:$0xff] %vm616, %v2180
      %2197 = vst.msk [vmem:[%s2064 + $0x20] sm:$0xff] %vm616, %v2181
      %2198 = vst.msk [vmem:[%s2064 + $0x28] sm:$0xff] %vm616, %v2182
      %2199 = vst.msk [vmem:[%s2064 + $0x30] sm:$0xff] %vm616, %v2183
      %2200 = vst.msk [vmem:[%s2064 + $0x38] sm:$0xff] %vm616, %v2184
      %2201 = vst.msk [vmem:[%s2064 + $0x40] sm:$0xff] %vm616, %v2185
      %2202 = vst.msk [vmem:[%s2064 + $0x48] sm:$0xff] %vm616, %v2186
      %2203 = vst.msk [vmem:[%s2064 + $0x50] sm:$0xff] %vm616, %v2187
      %2204 = vst.msk [vmem:[%s2064 + $0x58] sm:$0xff] %vm616, %v2188
      %2205 = vst.msk [vmem:[%s2064 + $0x60] sm:$0xff] %vm616, %v2189
      %2206 = vst.msk [vmem:[%s2064 + $0x68] sm:$0xff] %vm616, %v2190
      %2207 = vst.msk [vmem:[%s2064 + $0x70] sm:$0xff] %vm616, %v2191
      %2208 = vst.msk [vmem:[%s2064 + $0x78] sm:$0xff] %vm616, %v2192
      %2209 = vst.msk [vmem:[%s1597] sm:$0xff] %vm1082, %v1663
      %2210 = vst.msk [vmem:[%s1597 + $0x8] sm:$0xff] %vm1082, %v1664
      %2211 = vst.msk [vmem:[%s1597 + $0x10] sm:$0xff] %vm1082, %v1665
      %2212 = vst.msk [vmem:[%s1597 + $0x18] sm:$0xff] %vm1082, %v1666
      %2213 = vst.msk [vmem:[%s1597 + $0x20] sm:$0xff] %vm1082, %v1667
      %2214 = vst.msk [vmem:[%s1597 + $0x28] sm:$0xff] %vm1082, %v1668
      %2215 = vst.msk [vmem:[%s1597 + $0x30] sm:$0xff] %vm1082, %v1669
      %2216 = vst.msk [vmem:[%s1597 + $0x38] sm:$0xff] %vm1082, %v1670
      %2217 = vst.msk [vmem:[%s1597 + $0x40] sm:$0xff] %vm1082, %v1671
      %2218 = vst.msk [vmem:[%s1597 + $0x48] sm:$0xff] %vm1082, %v1672
      %2219 = vst.msk [vmem:[%s1597 + $0x50] sm:$0xff] %vm1082, %v1673
      %2220 = vst.msk [vmem:[%s1597 + $0x58] sm:$0xff] %vm1082, %v1674
      %2221 = vst.msk [vmem:[%s1597 + $0x60] sm:$0xff] %vm1082, %v1675
      %2222 = vst.msk [vmem:[%s1597 + $0x68] sm:$0xff] %vm1082, %v1676
      %2223 = vst.msk [vmem:[%s1597 + $0x70] sm:$0xff] %vm1082, %v1677
      %2224 = vst.msk [vmem:[%s1597 + $0x78] sm:$0xff] %vm1082, %v1678
      %2225 = vrot.lane.b32.xlu0 %v536, 64
      %v2226 = vpop.permute.xlu0 %2225
      %2227 = vrot.lane.b32.xlu0 %v537, 64
      %v2228 = vpop.permute.xlu0 %2227
      %2229 = vrot.lane.b32.xlu0 %v538, 64
      %v2230 = vpop.permute.xlu0 %2229
      %2231 = vrot.lane.b32.xlu0 %v539, 64
      %v2232 = vpop.permute.xlu0 %2231
      %2233 = vrot.lane.b32.xlu0 %v540, 64
      %v2234 = vpop.permute.xlu0 %2233
      %2235 = vrot.lane.b32.xlu0 %v541, 64
      %v2236 = vpop.permute.xlu0 %2235
      %2237 = vrot.lane.b32.xlu0 %v542, 64
      %v2238 = vpop.permute.xlu0 %2237
      %2239 = vrot.lane.b32.xlu0 %v543, 64
      %v2240 = vpop.permute.xlu0 %2239
      %2241 = vrot.lane.b32.xlu0 %v608, 64
      %v2242 = vpop.permute.xlu0 %2241
      %2243 = vrot.lane.b32.xlu0 %v609, 64
      %v2244 = vpop.permute.xlu0 %2243
      %2245 = vrot.lane.b32.xlu0 %v610, 64
      %v2246 = vpop.permute.xlu0 %2245
      %2247 = vrot.lane.b32.xlu0 %v611, 64
      %v2248 = vpop.permute.xlu0 %2247
      %2249 = vrot.lane.b32.xlu0 %v612, 64
      %v2250 = vpop.permute.xlu0 %2249
      %2251 = vrot.lane.b32.xlu0 %v613, 64
      %v2252 = vpop.permute.xlu0 %2251
      %2253 = vrot.lane.b32.xlu0 %v614, 64
      %v2254 = vpop.permute.xlu0 %2253
      %2255 = vrot.lane.b32.xlu0 %v615, 64
      %v2256 = vpop.permute.xlu0 %2255
      %v2258 = vsel %vm616, %v2226, 0
      %v2261 = vsel %vm616, %v2228, 0
      %v2264 = vsel %vm616, %v2230, 0
      %v2267 = vsel %vm616, %v2232, 0
      %v2270 = vsel %vm616, %v2234, 0
      %v2273 = vsel %vm616, %v2236, 0
      %v2276 = vsel %vm616, %v2238, 0
      %v2279 = vsel %vm616, %v2240, 0
      %v2282 = vsel %vm616, %v2242, 0
      %v2285 = vsel %vm616, %v2244, 0
      %v2288 = vsel %vm616, %v2246, 0
      %v2291 = vsel %vm616, %v2248, 0
      %v2294 = vsel %vm616, %v2250, 0
      %v2297 = vsel %vm616, %v2252, 0
      %v2300 = vsel %vm616, %v2254, 0
      %v2303 = vsel %vm616, %v2256, 0
      %2305 = vmatprep.subr.bf16.mxu0 0
      %2306 = vmatpush1.bf16.xpose.msra.mxu0 %v2282
      %2307 = vmatprep.subr.bf16.mxu0 0
      %2308 = vmatpush1.bf16.xpose.msra.mxu0 %v2285
      %2309 = vmatprep.subr.bf16.mxu0 0
      %2310 = vmatpush1.bf16.xpose.msra.mxu0 %v2288
      %2311 = vmatprep.subr.bf16.mxu0 0
      %2312 = vmatpush1.bf16.xpose.msra.mxu0 %v2291
      %2313 = vmatprep.subr.bf16.mxu0 0
      %2314 = vmatpush1.bf16.xpose.msra.mxu0 %v2294
      %2315 = vmatprep.subr.bf16.mxu0 0
      %2316 = vmatpush1.bf16.xpose.msra.mxu0 %v2297
      %2317 = vmatprep.subr.bf16.mxu0 0
      %2318 = vmatpush1.bf16.xpose.msra.mxu0 %v2300
      %2319 = vmatprep.subr.bf16.mxu0 0
      %2320 = vmatpush1.bf16.xpose.msra.mxu0 %v2303
      %2321 = vmatprep.subr.bf16.mxu0 0
      %2322 = vmatpush1.bf16.xpose.msra.mxu0 0
      %2323 = vmatprep.subr.bf16.mxu0 0
      %2324 = vmatpush1.bf16.xpose.msra.mxu0 0
      %2325 = vmatprep.subr.bf16.mxu0 0
      %2326 = vmatpush1.bf16.xpose.msra.mxu0 0
      %2327 = vmatprep.subr.bf16.mxu0 0
      %2328 = vmatpush1.bf16.xpose.msra.mxu0 0
      %2329 = vmatprep.subr.bf16.mxu0 0
      %2330 = vmatpush1.bf16.xpose.msra.mxu0 0
      %2331 = vmatprep.subr.bf16.mxu0 0
      %2332 = vmatpush1.bf16.xpose.msra.mxu0 0
      %2333 = vmatprep.subr.bf16.mxu0 0
      %2334 = vmatpush1.bf16.xpose.msra.mxu0 0
      %2335 = vmatprep.subr.bf16.mxu0 0
      %2336 = vmatpush1.bf16.xpose.msra.mxu0 0
      %2337 = vmatprep.mubr.bf16.mxu0 0
      %2338 = vmatmul.mubr.bf16.gmra.mrb[0].mxu0 %v2258
      %v2339 = vpop.f32.mrb[0].mxu0
      %v2340 = vadd.f32 0.0, %v2339
      %v2341 = vpop.f32.mrb[0].mxu0
      %v2342 = vpop.f32.mrb[0].mxu0
      %v2343 = vadd.f32 0.0, %v2342
      %v2344 = vpop.f32.mrb[0].mxu0
      %2345 = vmatprep.mubr.bf16.mxu0 0
      %2346 = vmatmul.mubr.bf16.gmra.mrb[0].mxu0 %v2261
      %v2347 = vpop.f32.mrb[0].mxu0
      %v2348 = vadd.f32 0.0, %v2347
      %v2349 = vpop.f32.mrb[0].mxu0
      %v2350 = vpop.f32.mrb[0].mxu0
      %v2351 = vadd.f32 0.0, %v2350
      %v2352 = vpop.f32.mrb[0].mxu0
      %2353 = vmatprep.mubr.bf16.mxu0 0
      %2354 = vmatmul.mubr.bf16.gmra.mrb[0].mxu0 %v2264
      %v2355 = vpop.f32.mrb[0].mxu0
      %v2356 = vadd.f32 0.0, %v2355
      %v2357 = vpop.f32.mrb[0].mxu0
      %v2358 = vpop.f32.mrb[0].mxu0
      %v2359 = vadd.f32 0.0, %v2358
      %v2360 = vpop.f32.mrb[0].mxu0
      %2361 = vmatprep.mubr.bf16.mxu0 0
      %2362 = vmatmul.mubr.bf16.gmra.mrb[0].mxu0 %v2267
      %v2363 = vpop.f32.mrb[0].mxu0
      %v2364 = vadd.f32 0.0, %v2363
      %v2365 = vpop.f32.mrb[0].mxu0
      %v2366 = vpop.f32.mrb[0].mxu0
      %v2367 = vadd.f32 0.0, %v2366
      %v2368 = vpop.f32.mrb[0].mxu0
      %2369 = vmatprep.mubr.bf16.mxu0 0
      %2370 = vmatmul.mubr.bf16.gmra.mrb[0].mxu0 %v2270
      %v2371 = vpop.f32.mrb[0].mxu0
      %v2372 = vadd.f32 0.0, %v2371
      %v2373 = vpop.f32.mrb[0].mxu0
      %v2374 = vpop.f32.mrb[0].mxu0
      %v2375 = vadd.f32 0.0, %v2374
      %v2376 = vpop.f32.mrb[0].mxu0
      %2377 = vmatprep.mubr.bf16.mxu0 0
      %2378 = vmatmul.mubr.bf16.gmra.mrb[0].mxu0 %v2273
      %v2379 = vpop.f32.mrb[0].mxu0
      %v2380 = vadd.f32 0.0, %v2379
      %v2381 = vpop.f32.mrb[0].mxu0
      %v2382 = vpop.f32.mrb[0].mxu0
      %v2383 = vadd.f32 0.0, %v2382
      %v2384 = vpop.f32.mrb[0].mxu0
      %2385 = vmatprep.mubr.bf16.mxu0 0
      %2386 = vmatmul.mubr.bf16.gmra.mrb[0].mxu0 %v2276
      %v2387 = vpop.f32.mrb[0].mxu0
      %v2388 = vadd.f32 0.0, %v2387
      %v2389 = vpop.f32.mrb[0].mxu0
      %v2390 = vpop.f32.mrb[0].mxu0
      %v2391 = vadd.f32 0.0, %v2390
      %v2392 = vpop.f32.mrb[0].mxu0
      %2393 = vmatprep.mubr.bf16.mxu0 0
      %2394 = vmatmul.mubr.bf16.gmra.mrb[0].mxu0 %v2279
      %v2395 = vpop.f32.mrb[0].mxu0
      %v2396 = vadd.f32 0.0, %v2395
      %v2397 = vpop.f32.mrb[0].mxu0
      %v2398 = vpop.f32.mrb[0].mxu0
      %v2399 = vadd.f32 0.0, %v2398
      %v2400 = vpop.f32.mrb[0].mxu0
      %2401 = vdwg.mxu0
      %s2402 = scalar_lea.vmem [#allocation2], 256
      %v2403 = vld [vmem:[%s2402] sm:$0xff]
      %v2404 = vld [vmem:[%s2402 + $0x8] sm:$0xff]
      %v2405 = vld [vmem:[%s2402 + $0x10] sm:$0xff]
      %v2406 = vld [vmem:[%s2402 + $0x18] sm:$0xff]
      %v2407 = vld [vmem:[%s2402 + $0x20] sm:$0xff]
      %v2408 = vld [vmem:[%s2402 + $0x28] sm:$0xff]
      %v2409 = vld [vmem:[%s2402 + $0x30] sm:$0xff]
      %v2410 = vld [vmem:[%s2402 + $0x38] sm:$0xff]
      %v2411 = vld [vmem:[%s2402 + $0x40] sm:$0xff]
      %v2412 = vld [vmem:[%s2402 + $0x48] sm:$0xff]
      %v2413 = vld [vmem:[%s2402 + $0x50] sm:$0xff]
      %v2414 = vld [vmem:[%s2402 + $0x58] sm:$0xff]
      %v2415 = vld [vmem:[%s2402 + $0x60] sm:$0xff]
      %v2416 = vld [vmem:[%s2402 + $0x68] sm:$0xff]
      %v2417 = vld [vmem:[%s2402 + $0x70] sm:$0xff]
      %v2418 = vld [vmem:[%s2402 + $0x78] sm:$0xff]
      %s2419 = scalar_lea.vmem [#allocation3], 256
      %v2420 = vld [vmem:[%s2419] sm:$0xff]
      %v2421 = vld [vmem:[%s2419 + $0x8] sm:$0xff]
      %v2422 = vld [vmem:[%s2419 + $0x10] sm:$0xff]
      %v2423 = vld [vmem:[%s2419 + $0x18] sm:$0xff]
      %v2424 = vld [vmem:[%s2419 + $0x20] sm:$0xff]
      %v2425 = vld [vmem:[%s2419 + $0x28] sm:$0xff]
      %v2426 = vld [vmem:[%s2419 + $0x30] sm:$0xff]
      %v2427 = vld [vmem:[%s2419 + $0x38] sm:$0xff]
      %v2428 = vld [vmem:[%s2419 + $0x40] sm:$0xff]
      %v2429 = vld [vmem:[%s2419 + $0x48] sm:$0xff]
      %v2430 = vld [vmem:[%s2419 + $0x50] sm:$0xff]
      %v2431 = vld [vmem:[%s2419 + $0x58] sm:$0xff]
      %v2432 = vld [vmem:[%s2419 + $0x60] sm:$0xff]
      %v2433 = vld [vmem:[%s2419 + $0x68] sm:$0xff]
      %v2434 = vld [vmem:[%s2419 + $0x70] sm:$0xff]
      %v2435 = vld [vmem:[%s2419 + $0x78] sm:$0xff]
      %2436 = vmax.xlane.f32.xlu0 %v2340
      %v2437 = vpop.xlane.xlu0 %2436
      %2438 = vmax.xlane.f32.xlu0 %v2343
      %v2439 = vpop.xlane.xlu0 %2438
      %2440 = vmax.xlane.f32.xlu0 %v2348
      %v2441 = vpop.xlane.xlu0 %2440
      %2442 = vmax.xlane.f32.xlu0 %v2351
      %v2443 = vpop.xlane.xlu0 %2442
      %2444 = vmax.xlane.f32.xlu0 %v2356
      %v2445 = vpop.xlane.xlu0 %2444
      %2446 = vmax.xlane.f32.xlu0 %v2359
      %v2447 = vpop.xlane.xlu0 %2446
      %2448 = vmax.xlane.f32.xlu0 %v2364
      %v2449 = vpop.xlane.xlu0 %2448
      %2450 = vmax.xlane.f32.xlu0 %v2367
      %v2451 = vpop.xlane.xlu0 %2450
      %2452 = vmax.xlane.f32.xlu0 %v2372
      %v2453 = vpop.xlane.xlu0 %2452
      %2454 = vmax.xlane.f32.xlu0 %v2375
      %v2455 = vpop.xlane.xlu0 %2454
      %2456 = vmax.xlane.f32.xlu0 %v2380
      %v2457 = vpop.xlane.xlu0 %2456
      %2458 = vmax.xlane.f32.xlu0 %v2383
      %v2459 = vpop.xlane.xlu0 %2458
      %2460 = vmax.xlane.f32.xlu0 %v2388
      %v2461 = vpop.xlane.xlu0 %2460
      %2462 = vmax.xlane.f32.xlu0 %v2391
      %v2463 = vpop.xlane.xlu0 %2462
      %2464 = vmax.xlane.f32.xlu0 %v2396
      %v2465 = vpop.xlane.xlu0 %2464
      %2466 = vmax.xlane.f32.xlu0 %v2399
      %v2467 = vpop.xlane.xlu0 %2466
      %v2468 = vmax.f32 %v2403, %v2437
      %v2469 = vmax.f32 %v2404, %v2439
      %v2470 = vmax.f32 %v2405, %v2441
      %v2471 = vmax.f32 %v2406, %v2443
      %v2472 = vmax.f32 %v2407, %v2445
      %v2473 = vmax.f32 %v2408, %v2447
      %v2474 = vmax.f32 %v2409, %v2449
      %v2475 = vmax.f32 %v2410, %v2451
      %v2476 = vmax.f32 %v2411, %v2453
      %v2477 = vmax.f32 %v2412, %v2455
      %v2478 = vmax.f32 %v2413, %v2457
      %v2479 = vmax.f32 %v2414, %v2459
      %v2480 = vmax.f32 %v2415, %v2461
      %v2481 = vmax.f32 %v2416, %v2463
      %v2482 = vmax.f32 %v2417, %v2465
      %v2483 = vmax.f32 %v2418, %v2467
      %v2484 = vsub.f32 %v2403, %v2468
      %v2485 = vsub.f32 %v2404, %v2469
      %v2486 = vsub.f32 %v2405, %v2470
      %v2487 = vsub.f32 %v2406, %v2471
      %v2488 = vsub.f32 %v2407, %v2472
      %v2489 = vsub.f32 %v2408, %v2473
      %v2490 = vsub.f32 %v2409, %v2474
      %v2491 = vsub.f32 %v2410, %v2475
      %v2492 = vsub.f32 %v2411, %v2476
      %v2493 = vsub.f32 %v2412, %v2477
      %v2494 = vsub.f32 %v2413, %v2478
      %v2495 = vsub.f32 %v2414, %v2479
      %v2496 = vsub.f32 %v2415, %v2480
      %v2497 = vsub.f32 %v2416, %v2481
      %v2498 = vsub.f32 %v2417, %v2482
      %v2499 = vsub.f32 %v2418, %v2483
      %v2500 = vmul.f32 %v2484, 1.442695
      %v2501 = vpow.pop %v2500
      %v2502 = vmul.f32 %v2485, 1.442695
      %v2503 = vpow.pop %v2502
      %v2504 = vmul.f32 %v2486, 1.442695
      %v2505 = vpow.pop %v2504
      %v2506 = vmul.f32 %v2487, 1.442695
      %v2507 = vpow.pop %v2506
      %v2508 = vmul.f32 %v2488, 1.442695
      %v2509 = vpow.pop %v2508
      %v2510 = vmul.f32 %v2489, 1.442695
      %v2511 = vpow.pop %v2510
      %v2512 = vmul.f32 %v2490, 1.442695
      %v2513 = vpow.pop %v2512
      %v2514 = vmul.f32 %v2491, 1.442695
      %v2515 = vpow.pop %v2514
      %v2516 = vmul.f32 %v2492, 1.442695
      %v2517 = vpow.pop %v2516
      %v2518 = vmul.f32 %v2493, 1.442695
      %v2519 = vpow.pop %v2518
      %v2520 = vmul.f32 %v2494, 1.442695
      %v2521 = vpow.pop %v2520
      %v2522 = vmul.f32 %v2495, 1.442695
      %v2523 = vpow.pop %v2522
      %v2524 = vmul.f32 %v2496, 1.442695
      %v2525 = vpow.pop %v2524
      %v2526 = vmul.f32 %v2497, 1.442695
      %v2527 = vpow.pop %v2526
      %v2528 = vmul.f32 %v2498, 1.442695
      %v2529 = vpow.pop %v2528
      %v2530 = vmul.f32 %v2499, 1.442695
      %v2531 = vpow.pop %v2530
      %2533 = vset.pattern.permute.xlu0 0
      %2534 = vperm.xlu0 %2533, %v2468
      %v2535 = vpop.permute.xlu0 %2534
      %2538 = vset.pattern.permute.xlu0 0
      %2539 = vperm.xlu0 %2538, %v2469
      %v2540 = vpop.permute.xlu0 %2539
      %2543 = vset.pattern.permute.xlu0 0
      %2544 = vperm.xlu0 %2543, %v2470
      %v2545 = vpop.permute.xlu0 %2544
      %2548 = vset.pattern.permute.xlu0 0
      %2549 = vperm.xlu0 %2548, %v2471
      %v2550 = vpop.permute.xlu0 %2549
      %2553 = vset.pattern.permute.xlu0 0
      %2554 = vperm.xlu0 %2553, %v2472
      %v2555 = vpop.permute.xlu0 %2554
      %2558 = vset.pattern.permute.xlu0 0
      %2559 = vperm.xlu0 %2558, %v2473
      %v2560 = vpop.permute.xlu0 %2559
      %2563 = vset.pattern.permute.xlu0 0
      %2564 = vperm.xlu0 %2563, %v2474
      %v2565 = vpop.permute.xlu0 %2564
      %2568 = vset.pattern.permute.xlu0 0
      %2569 = vperm.xlu0 %2568, %v2475
      %v2570 = vpop.permute.xlu0 %2569
      %2573 = vset.pattern.permute.xlu0 0
      %2574 = vperm.xlu0 %2573, %v2476
      %v2575 = vpop.permute.xlu0 %2574
      %2578 = vset.pattern.permute.xlu0 0
      %2579 = vperm.xlu0 %2578, %v2477
      %v2580 = vpop.permute.xlu0 %2579
      %2583 = vset.pattern.permute.xlu0 0
      %2584 = vperm.xlu0 %2583, %v2478
      %v2585 = vpop.permute.xlu0 %2584
      %2588 = vset.pattern.permute.xlu0 0
      %2589 = vperm.xlu0 %2588, %v2479
      %v2590 = vpop.permute.xlu0 %2589
      %2593 = vset.pattern.permute.xlu0 0
      %2594 = vperm.xlu0 %2593, %v2480
      %v2595 = vpop.permute.xlu0 %2594
      %2598 = vset.pattern.permute.xlu0 0
      %2599 = vperm.xlu0 %2598, %v2481
      %v2600 = vpop.permute.xlu0 %2599
      %2603 = vset.pattern.permute.xlu0 0
      %2604 = vperm.xlu0 %2603, %v2482
      %v2605 = vpop.permute.xlu0 %2604
      %2608 = vset.pattern.permute.xlu0 0
      %2609 = vperm.xlu0 %2608, %v2483
      %v2610 = vpop.permute.xlu0 %2609
      %v2612 = vsub.f32 %v2340, %v2535
      %v2613 = vsub.f32 %v2343, %v2540
      %v2614 = vsub.f32 %v2348, %v2545
      %v2615 = vsub.f32 %v2351, %v2550
      %v2616 = vsub.f32 %v2356, %v2555
      %v2617 = vsub.f32 %v2359, %v2560
      %v2618 = vsub.f32 %v2364, %v2565
      %v2619 = vsub.f32 %v2367, %v2570
      %v2620 = vsub.f32 %v2372, %v2575
      %v2621 = vsub.f32 %v2375, %v2580
      %v2622 = vsub.f32 %v2380, %v2585
      %v2623 = vsub.f32 %v2383, %v2590
      %v2624 = vsub.f32 %v2388, %v2595
      %v2625 = vsub.f32 %v2391, %v2600
      %v2626 = vsub.f32 %v2396, %v2605
      %v2627 = vsub.f32 %v2399, %v2610
      %v2628 = vmul.f32 %v2612, 1.442695
      %v2629 = vpow.pop %v2628
      %v2630 = vmul.f32 %v2613, 1.442695
      %v2631 = vpow.pop %v2630
      %v2632 = vmul.f32 %v2614, 1.442695
      %v2633 = vpow.pop %v2632
      %v2634 = vmul.f32 %v2615, 1.442695
      %v2635 = vpow.pop %v2634
      %v2636 = vmul.f32 %v2616, 1.442695
      %v2637 = vpow.pop %v2636
      %v2638 = vmul.f32 %v2617, 1.442695
      %v2639 = vpow.pop %v2638
      %v2640 = vmul.f32 %v2618, 1.442695
      %v2641 = vpow.pop %v2640
      %v2642 = vmul.f32 %v2619, 1.442695
      %v2643 = vpow.pop %v2642
      %v2644 = vmul.f32 %v2620, 1.442695
      %v2645 = vpow.pop %v2644
      %v2646 = vmul.f32 %v2621, 1.442695
      %v2647 = vpow.pop %v2646
      %v2648 = vmul.f32 %v2622, 1.442695
      %v2649 = vpow.pop %v2648
      %v2650 = vmul.f32 %v2623, 1.442695
      %v2651 = vpow.pop %v2650
      %v2652 = vmul.f32 %v2624, 1.442695
      %v2653 = vpow.pop %v2652
      %v2654 = vmul.f32 %v2625, 1.442695
      %v2655 = vpow.pop %v2654
      %v2656 = vmul.f32 %v2626, 1.442695
      %v2657 = vpow.pop %v2656
      %v2658 = vmul.f32 %v2627, 1.442695
      %v2659 = vpow.pop %v2658
      %v2660 = vmul.f32 %v2501, %v2420
      %v2661 = vmul.f32 %v2503, %v2421
      %v2662 = vmul.f32 %v2505, %v2422
      %v2663 = vmul.f32 %v2507, %v2423
      %v2664 = vmul.f32 %v2509, %v2424
      %v2665 = vmul.f32 %v2511, %v2425
      %v2666 = vmul.f32 %v2513, %v2426
      %v2667 = vmul.f32 %v2515, %v2427
      %v2668 = vmul.f32 %v2517, %v2428
      %v2669 = vmul.f32 %v2519, %v2429
      %v2670 = vmul.f32 %v2521, %v2430
      %v2671 = vmul.f32 %v2523, %v2431
      %v2672 = vmul.f32 %v2525, %v2432
      %v2673 = vmul.f32 %v2527, %v2433
      %v2674 = vmul.f32 %v2529, %v2434
      %v2675 = vmul.f32 %v2531, %v2435
      %2676 = vadd.xlane.f32.xlu0 %v2629
      %v2677 = vpop.xlane.xlu0 %2676
      %2678 = vadd.xlane.f32.xlu0 %v2631
      %v2679 = vpop.xlane.xlu0 %2678
      %2680 = vadd.xlane.f32.xlu0 %v2633
      %v2681 = vpop.xlane.xlu0 %2680
      %2682 = vadd.xlane.f32.xlu0 %v2635
      %v2683 = vpop.xlane.xlu0 %2682
      %2684 = vadd.xlane.f32.xlu0 %v2637
      %v2685 = vpop.xlane.xlu0 %2684
      %2686 = vadd.xlane.f32.xlu0 %v2639
      %v2687 = vpop.xlane.xlu0 %2686
      %2688 = vadd.xlane.f32.xlu0 %v2641
      %v2689 = vpop.xlane.xlu0 %2688
      %2690 = vadd.xlane.f32.xlu0 %v2643
      %v2691 = vpop.xlane.xlu0 %2690
      %2692 = vadd.xlane.f32.xlu0 %v2645
      %v2693 = vpop.xlane.xlu0 %2692
      %2694 = vadd.xlane.f32.xlu0 %v2647
      %v2695 = vpop.xlane.xlu0 %2694
      %2696 = vadd.xlane.f32.xlu0 %v2649
      %v2697 = vpop.xlane.xlu0 %2696
      %2698 = vadd.xlane.f32.xlu0 %v2651
      %v2699 = vpop.xlane.xlu0 %2698
      %2700 = vadd.xlane.f32.xlu0 %v2653
      %v2701 = vpop.xlane.xlu0 %2700
      %2702 = vadd.xlane.f32.xlu0 %v2655
      %v2703 = vpop.xlane.xlu0 %2702
      %2704 = vadd.xlane.f32.xlu0 %v2657
      %v2705 = vpop.xlane.xlu0 %2704
      %2706 = vadd.xlane.f32.xlu0 %v2659
      %v2707 = vpop.xlane.xlu0 %2706
      %v2708 = vadd.f32 %v2660, %v2677
      %v2709 = vadd.f32 %v2661, %v2679
      %v2710 = vadd.f32 %v2662, %v2681
      %v2711 = vadd.f32 %v2663, %v2683
      %v2712 = vadd.f32 %v2664, %v2685
      %v2713 = vadd.f32 %v2665, %v2687
      %v2714 = vadd.f32 %v2666, %v2689
      %v2715 = vadd.f32 %v2667, %v2691
      %v2716 = vadd.f32 %v2668, %v2693
      %v2717 = vadd.f32 %v2669, %v2695
      %v2718 = vadd.f32 %v2670, %v2697
      %v2719 = vadd.f32 %v2671, %v2699
      %v2720 = vadd.f32 %v2672, %v2701
      %v2721 = vadd.f32 %v2673, %v2703
      %v2722 = vadd.f32 %v2674, %v2705
      %v2723 = vadd.f32 %v2675, %v2707
      %2724 = vst.msk [vmem:[%s2419] sm:$0xff] %vm1082, %v2708
      %2725 = vst.msk [vmem:[%s2419 + $0x8] sm:$0xff] %vm1082, %v2709
      %2726 = vst.msk [vmem:[%s2419 + $0x10] sm:$0xff] %vm1082, %v2710
      %2727 = vst.msk [vmem:[%s2419 + $0x18] sm:$0xff] %vm1082, %v2711
      %2728 = vst.msk [vmem:[%s2419 + $0x20] sm:$0xff] %vm1082, %v2712
      %2729 = vst.msk [vmem:[%s2419 + $0x28] sm:$0xff] %vm1082, %v2713
      %2730 = vst.msk [vmem:[%s2419 + $0x30] sm:$0xff] %vm1082, %v2714
      %2731 = vst.msk [vmem:[%s2419 + $0x38] sm:$0xff] %vm1082, %v2715
      %2732 = vst.msk [vmem:[%s2419 + $0x40] sm:$0xff] %vm1082, %v2716
      %2733 = vst.msk [vmem:[%s2419 + $0x48] sm:$0xff] %vm1082, %v2717
      %2734 = vst.msk [vmem:[%s2419 + $0x50] sm:$0xff] %vm1082, %v2718
      %2735 = vst.msk [vmem:[%s2419 + $0x58] sm:$0xff] %vm1082, %v2719
      %2736 = vst.msk [vmem:[%s2419 + $0x60] sm:$0xff] %vm1082, %v2720
      %2737 = vst.msk [vmem:[%s2419 + $0x68] sm:$0xff] %vm1082, %v2721
      %2738 = vst.msk [vmem:[%s2419 + $0x70] sm:$0xff] %vm1082, %v2722
      %2739 = vst.msk [vmem:[%s2419 + $0x78] sm:$0xff] %vm1082, %v2723
      %v2740 = vpack.c.bf16 %v2631, %v2629
      %v2741 = vpack.c.bf16 %v2635, %v2633
      %v2742 = vpack.c.bf16 %v2639, %v2637
      %v2743 = vpack.c.bf16 %v2643, %v2641
      %v2744 = vpack.c.bf16 %v2647, %v2645
      %v2745 = vpack.c.bf16 %v2651, %v2649
      %v2746 = vpack.c.bf16 %v2655, %v2653
      %v2747 = vpack.c.bf16 %v2659, %v2657
      %2748 = vrot.lane.b32.xlu0 %v1139, 64
      %v2749 = vpop.permute.xlu0 %2748
      %2750 = vrot.lane.b32.xlu0 %v1140, 64
      %v2751 = vpop.permute.xlu0 %2750
      %2752 = vrot.lane.b32.xlu0 %v1141, 64
      %v2753 = vpop.permute.xlu0 %2752
      %2754 = vrot.lane.b32.xlu0 %v1142, 64
      %v2755 = vpop.permute.xlu0 %2754
      %2756 = vrot.lane.b32.xlu0 %v1143, 64
      %v2757 = vpop.permute.xlu0 %2756
      %2758 = vrot.lane.b32.xlu0 %v1144, 64
      %v2759 = vpop.permute.xlu0 %2758
      %2760 = vrot.lane.b32.xlu0 %v1145, 64
      %v2761 = vpop.permute.xlu0 %2760
      %2762 = vrot.lane.b32.xlu0 %v1146, 64
      %v2763 = vpop.permute.xlu0 %2762
      %2772 = vmatprep.subr.bf16.mxu0 0
      %2773 = vmatpush1.bf16.msra.mxu0 %v2749
      %2774 = vmatprep.subr.bf16.mxu0 0
      %2775 = vmatpush1.bf16.msra.mxu0 %v2751
      %2776 = vmatprep.subr.bf16.mxu0 0
      %2777 = vmatpush1.bf16.msra.mxu0 %v2753
      %2778 = vmatprep.subr.bf16.mxu0 0
      %2779 = vmatpush1.bf16.msra.mxu0 %v2755
      %2780 = vmatprep.subr.bf16.mxu0 0
      %2781 = vmatpush1.bf16.msra.mxu0 %v2757
      %2782 = vmatprep.subr.bf16.mxu0 0
      %2783 = vmatpush1.bf16.msra.mxu0 %v2759
      %2784 = vmatprep.subr.bf16.mxu0 0
      %2785 = vmatpush1.bf16.msra.mxu0 %v2761
      %2786 = vmatprep.subr.bf16.mxu0 0
      %2787 = vmatpush1.bf16.msra.mxu0 %v2763
      %2788 = vmatprep.subr.bf16.mxu0 0
      %2789 = vmatpush1.bf16.msra.mxu0 0
      %2790 = vmatprep.subr.bf16.mxu0 0
      %2791 = vmatpush1.bf16.msra.mxu0 0
      %2792 = vmatprep.subr.bf16.mxu0 0
      %2793 = vmatpush1.bf16.msra.mxu0 0
      %2794 = vmatprep.subr.bf16.mxu0 0
      %2795 = vmatpush1.bf16.msra.mxu0 0
      %2796 = vmatprep.subr.bf16.mxu0 0
      %2797 = vmatpush1.bf16.msra.mxu0 0
      %2798 = vmatprep.subr.bf16.mxu0 0
      %2799 = vmatpush1.bf16.msra.mxu0 0
      %2800 = vmatprep.subr.bf16.mxu0 0
      %2801 = vmatpush1.bf16.msra.mxu0 0
      %2802 = vmatprep.subr.bf16.mxu0 0
      %2803 = vmatpush1.bf16.msra.mxu0 0
      %2804 = vmatprep.mubr.bf16.mxu0 0
      %2805 = vmatmul.mubr.bf16.gmra.mrb[0].mxu0 %v2740
      %v2806 = vpop.f32.mrb[0].mxu0
      %v2807 = vadd.f32 0.0, %v2806
      %v2808 = vpop.f32.mrb[0].mxu0
      %v2809 = vpop.f32.mrb[0].mxu0
      %v2810 = vadd.f32 0.0, %v2809
      %v2811 = vpop.f32.mrb[0].mxu0
      %2812 = vmatprep.mubr.bf16.mxu0 0
      %2813 = vmatmul.mubr.bf16.gmra.mrb[0].mxu0 %v2741
      %v2814 = vpop.f32.mrb[0].mxu0
      %v2815 = vadd.f32 0.0, %v2814
      %v2816 = vpop.f32.mrb[0].mxu0
      %v2817 = vpop.f32.mrb[0].mxu0
      %v2818 = vadd.f32 0.0, %v2817
      %v2819 = vpop.f32.mrb[0].mxu0
      %2820 = vmatprep.mubr.bf16.mxu0 0
      %2821 = vmatmul.mubr.bf16.gmra.mrb[0].mxu0 %v2742
      %v2822 = vpop.f32.mrb[0].mxu0
      %v2823 = vadd.f32 0.0, %v2822
      %v2824 = vpop.f32.mrb[0].mxu0
      %v2825 = vpop.f32.mrb[0].mxu0
      %v2826 = vadd.f32 0.0, %v2825
      %v2827 = vpop.f32.mrb[0].mxu0
      %2828 = vmatprep.mubr.bf16.mxu0 0
      %2829 = vmatmul.mubr.bf16.gmra.mrb[0].mxu0 %v2743
      %v2830 = vpop.f32.mrb[0].mxu0
      %v2831 = vadd.f32 0.0, %v2830
      %v2832 = vpop.f32.mrb[0].mxu0
      %v2833 = vpop.f32.mrb[0].mxu0
      %v2834 = vadd.f32 0.0, %v2833
      %v2835 = vpop.f32.mrb[0].mxu0
      %2836 = vmatprep.mubr.bf16.mxu0 0
      %2837 = vmatmul.mubr.bf16.gmra.mrb[0].mxu0 %v2744
      %v2838 = vpop.f32.mrb[0].mxu0
      %v2839 = vadd.f32 0.0, %v2838
      %v2840 = vpop.f32.mrb[0].mxu0
      %v2841 = vpop.f32.mrb[0].mxu0
      %v2842 = vadd.f32 0.0, %v2841
      %v2843 = vpop.f32.mrb[0].mxu0
      %2844 = vmatprep.mubr.bf16.mxu0 0
      %2845 = vmatmul.mubr.bf16.gmra.mrb[0].mxu0 %v2745
      %v2846 = vpop.f32.mrb[0].mxu0
      %v2847 = vadd.f32 0.0, %v2846
      %v2848 = vpop.f32.mrb[0].mxu0
      %v2849 = vpop.f32.mrb[0].mxu0
      %v2850 = vadd.f32 0.0, %v2849
      %v2851 = vpop.f32.mrb[0].mxu0
      %2852 = vmatprep.mubr.bf16.mxu0 0
      %2853 = vmatmul.mubr.bf16.gmra.mrb[0].mxu0 %v2746
      %v2854 = vpop.f32.mrb[0].mxu0
      %v2855 = vadd.f32 0.0, %v2854
      %v2856 = vpop.f32.mrb[0].mxu0
      %v2857 = vpop.f32.mrb[0].mxu0
      %v2858 = vadd.f32 0.0, %v2857
      %v2859 = vpop.f32.mrb[0].mxu0
      %2860 = vmatprep.mubr.bf16.mxu0 0
      %2861 = vmatmul.mubr.bf16.gmra.mrb[0].mxu0 %v2747
      %v2862 = vpop.f32.mrb[0].mxu0
      %v2863 = vadd.f32 0.0, %v2862
      %v2864 = vpop.f32.mrb[0].mxu0
      %v2865 = vpop.f32.mrb[0].mxu0
      %v2866 = vadd.f32 0.0, %v2865
      %v2867 = vpop.f32.mrb[0].mxu0
      %2868 = vdwg.mxu0
      %s2869 = scalar_lea.vmem [#allocation4], 256
      %v2870 = vld [vmem:[%s2869] sm:$0xff]
      %v2871 = vld [vmem:[%s2869 + $0x8] sm:$0xff]
      %v2872 = vld [vmem:[%s2869 + $0x10] sm:$0xff]
      %v2873 = vld [vmem:[%s2869 + $0x18] sm:$0xff]
      %v2874 = vld [vmem:[%s2869 + $0x20] sm:$0xff]
      %v2875 = vld [vmem:[%s2869 + $0x28] sm:$0xff]
      %v2876 = vld [vmem:[%s2869 + $0x30] sm:$0xff]
      %v2877 = vld [vmem:[%s2869 + $0x38] sm:$0xff]
      %v2878 = vld [vmem:[%s2869 + $0x40] sm:$0xff]
      %v2879 = vld [vmem:[%s2869 + $0x48] sm:$0xff]
      %v2880 = vld [vmem:[%s2869 + $0x50] sm:$0xff]
      %v2881 = vld [vmem:[%s2869 + $0x58] sm:$0xff]
      %v2882 = vld [vmem:[%s2869 + $0x60] sm:$0xff]
      %v2883 = vld [vmem:[%s2869 + $0x68] sm:$0xff]
      %v2884 = vld [vmem:[%s2869 + $0x70] sm:$0xff]
      %v2885 = vld [vmem:[%s2869 + $0x78] sm:$0xff]
      %2887 = vset.pattern.permute.xlu0 0
      %2888 = vperm.xlu0 %2887, %v2501
      %v2889 = vpop.permute.xlu0 %2888
      %2892 = vset.pattern.permute.xlu0 0
      %2893 = vperm.xlu0 %2892, %v2503
      %v2894 = vpop.permute.xlu0 %2893
      %2897 = vset.pattern.permute.xlu0 0
      %2898 = vperm.xlu0 %2897, %v2505
      %v2899 = vpop.permute.xlu0 %2898
      %2902 = vset.pattern.permute.xlu0 0
      %2903 = vperm.xlu0 %2902, %v2507
      %v2904 = vpop.permute.xlu0 %2903
      %2907 = vset.pattern.permute.xlu0 0
      %2908 = vperm.xlu0 %2907, %v2509
      %v2909 = vpop.permute.xlu0 %2908
      %2912 = vset.pattern.permute.xlu0 0
      %2913 = vperm.xlu0 %2912, %v2511
      %v2914 = vpop.permute.xlu0 %2913
      %2917 = vset.pattern.permute.xlu0 0
      %2918 = vperm.xlu0 %2917, %v2513
      %v2919 = vpop.permute.xlu0 %2918
      %2922 = vset.pattern.permute.xlu0 0
      %2923 = vperm.xlu0 %2922, %v2515
      %v2924 = vpop.permute.xlu0 %2923
      %2927 = vset.pattern.permute.xlu0 0
      %2928 = vperm.xlu0 %2927, %v2517
      %v2929 = vpop.permute.xlu0 %2928
      %2932 = vset.pattern.permute.xlu0 0
      %2933 = vperm.xlu0 %2932, %v2519
      %v2934 = vpop.permute.xlu0 %2933
      %2937 = vset.pattern.permute.xlu0 0
      %2938 = vperm.xlu0 %2937, %v2521
      %v2939 = vpop.permute.xlu0 %2938
      %2942 = vset.pattern.permute.xlu0 0
      %2943 = vperm.xlu0 %2942, %v2523
      %v2944 = vpop.permute.xlu0 %2943
      %2947 = vset.pattern.permute.xlu0 0
      %2948 = vperm.xlu0 %2947, %v2525
      %v2949 = vpop.permute.xlu0 %2948
      %2952 = vset.pattern.permute.xlu0 0
      %2953 = vperm.xlu0 %2952, %v2527
      %v2954 = vpop.permute.xlu0 %2953
      %2957 = vset.pattern.permute.xlu0 0
      %2958 = vperm.xlu0 %2957, %v2529
      %v2959 = vpop.permute.xlu0 %2958
      %2962 = vset.pattern.permute.xlu0 0
      %2963 = vperm.xlu0 %2962, %v2531
      %v2964 = vpop.permute.xlu0 %2963
      %v2966 = vmul.f32 %v2889, %v2870
      %v2967 = vmul.f32 %v2894, %v2871
      %v2968 = vmul.f32 %v2899, %v2872
      %v2969 = vmul.f32 %v2904, %v2873
      %v2970 = vmul.f32 %v2909, %v2874
      %v2971 = vmul.f32 %v2914, %v2875
      %v2972 = vmul.f32 %v2919, %v2876
      %v2973 = vmul.f32 %v2924, %v2877
      %v2974 = vmul.f32 %v2929, %v2878
      %v2975 = vmul.f32 %v2934, %v2879
      %v2976 = vmul.f32 %v2939, %v2880
      %v2977 = vmul.f32 %v2944, %v2881
      %v2978 = vmul.f32 %v2949, %v2882
      %v2979 = vmul.f32 %v2954, %v2883
      %v2980 = vmul.f32 %v2959, %v2884
      %v2981 = vmul.f32 %v2964, %v2885
      %v2982 = vadd.f32 %v2966, %v2807
      %v2983 = vadd.f32 %v2967, %v2810
      %v2984 = vadd.f32 %v2968, %v2815
      %v2985 = vadd.f32 %v2969, %v2818
      %v2986 = vadd.f32 %v2970, %v2823
      %v2987 = vadd.f32 %v2971, %v2826
      %v2988 = vadd.f32 %v2972, %v2831
      %v2989 = vadd.f32 %v2973, %v2834
      %v2990 = vadd.f32 %v2974, %v2839
      %v2991 = vadd.f32 %v2975, %v2842
      %v2992 = vadd.f32 %v2976, %v2847
      %v2993 = vadd.f32 %v2977, %v2850
      %v2994 = vadd.f32 %v2978, %v2855
      %v2995 = vadd.f32 %v2979, %v2858
      %v2996 = vadd.f32 %v2980, %v2863
      %v2997 = vadd.f32 %v2981, %v2866
      %2998 = vst.msk [vmem:[%s2869] sm:$0xff] %vm616, %v2982
      %2999 = vst.msk [vmem:[%s2869 + $0x8] sm:$0xff] %vm616, %v2983
      %3000 = vst.msk [vmem:[%s2869 + $0x10] sm:$0xff] %vm616, %v2984
      %3001 = vst.msk [vmem:[%s2869 + $0x18] sm:$0xff] %vm616, %v2985
      %3002 = vst.msk [vmem:[%s2869 + $0x20] sm:$0xff] %vm616, %v2986
      %3003 = vst.msk [vmem:[%s2869 + $0x28] sm:$0xff] %vm616, %v2987
      %3004 = vst.msk [vmem:[%s2869 + $0x30] sm:$0xff] %vm616, %v2988
      %3005 = vst.msk [vmem:[%s2869 + $0x38] sm:$0xff] %vm616, %v2989
      %3006 = vst.msk [vmem:[%s2869 + $0x40] sm:$0xff] %vm616, %v2990
      %3007 = vst.msk [vmem:[%s2869 + $0x48] sm:$0xff] %vm616, %v2991
      %3008 = vst.msk [vmem:[%s2869 + $0x50] sm:$0xff] %vm616, %v2992
      %3009 = vst.msk [vmem:[%s2869 + $0x58] sm:$0xff] %vm616, %v2993
      %3010 = vst.msk [vmem:[%s2869 + $0x60] sm:$0xff] %vm616, %v2994
      %3011 = vst.msk [vmem:[%s2869 + $0x68] sm:$0xff] %vm616, %v2995
      %3012 = vst.msk [vmem:[%s2869 + $0x70] sm:$0xff] %vm616, %v2996
      %3013 = vst.msk [vmem:[%s2869 + $0x78] sm:$0xff] %vm616, %v2997
      %3014 = vst.msk [vmem:[%s2402] sm:$0xff] %vm1082, %v2468
      %3015 = vst.msk [vmem:[%s2402 + $0x8] sm:$0xff] %vm1082, %v2469
      %3016 = vst.msk [vmem:[%s2402 + $0x10] sm:$0xff] %vm1082, %v2470
      %3017 = vst.msk [vmem:[%s2402 + $0x18] sm:$0xff] %vm1082, %v2471
      %3018 = vst.msk [vmem:[%s2402 + $0x20] sm:$0xff] %vm1082, %v2472
      %3019 = vst.msk [vmem:[%s2402 + $0x28] sm:$0xff] %vm1082, %v2473
      %3020 = vst.msk [vmem:[%s2402 + $0x30] sm:$0xff] %vm1082, %v2474
      %3021 = vst.msk [vmem:[%s2402 + $0x38] sm:$0xff] %vm1082, %v2475
      %3022 = vst.msk [vmem:[%s2402 + $0x40] sm:$0xff] %vm1082, %v2476
      %3023 = vst.msk [vmem:[%s2402 + $0x48] sm:$0xff] %vm1082, %v2477
      %3024 = vst.msk [vmem:[%s2402 + $0x50] sm:$0xff] %vm1082, %v2478
      %3025 = vst.msk [vmem:[%s2402 + $0x58] sm:$0xff] %vm1082, %v2479
      %3026 = vst.msk [vmem:[%s2402 + $0x60] sm:$0xff] %vm1082, %v2480
      %3027 = vst.msk [vmem:[%s2402 + $0x68] sm:$0xff] %vm1082, %v2481
      %3028 = vst.msk [vmem:[%s2402 + $0x70] sm:$0xff] %vm1082, %v2482
      %3029 = vst.msk [vmem:[%s2402 + $0x78] sm:$0xff] %vm1082, %v2483
      %3030 = vrot.lane.b32.xlu0 %v536, 32
      %v3031 = vpop.permute.xlu0 %3030
      %3032 = vrot.lane.b32.xlu0 %v537, 32
      %v3033 = vpop.permute.xlu0 %3032
      %3034 = vrot.lane.b32.xlu0 %v538, 32
      %v3035 = vpop.permute.xlu0 %3034
      %3036 = vrot.lane.b32.xlu0 %v539, 32
      %v3037 = vpop.permute.xlu0 %3036
      %3038 = vrot.lane.b32.xlu0 %v540, 32
      %v3039 = vpop.permute.xlu0 %3038
      %3040 = vrot.lane.b32.xlu0 %v541, 32
      %v3041 = vpop.permute.xlu0 %3040
      %3042 = vrot.lane.b32.xlu0 %v542, 32
      %v3043 = vpop.permute.xlu0 %3042
      %3044 = vrot.lane.b32.xlu0 %v543, 32
      %v3045 = vpop.permute.xlu0 %3044
      %3046 = vrot.lane.b32.xlu0 %v608, 32
      %v3047 = vpop.permute.xlu0 %3046
      %3048 = vrot.lane.b32.xlu0 %v609, 32
      %v3049 = vpop.permute.xlu0 %3048
      %3050 = vrot.lane.b32.xlu0 %v610, 32
      %v3051 = vpop.permute.xlu0 %3050
      %3052 = vrot.lane.b32.xlu0 %v611, 32
      %v3053 = vpop.permute.xlu0 %3052
      %3054 = vrot.lane.b32.xlu0 %v612, 32
      %v3055 = vpop.permute.xlu0 %3054
      %3056 = vrot.lane.b32.xlu0 %v613, 32
      %v3057 = vpop.permute.xlu0 %3056
      %3058 = vrot.lane.b32.xlu0 %v614, 32
      %v3059 = vpop.permute.xlu0 %3058
      %3060 = vrot.lane.b32.xlu0 %v615, 32
      %v3061 = vpop.permute.xlu0 %3060
      %v3063 = vsel %vm616, %v3031, 0
      %v3066 = vsel %vm616, %v3033, 0
      %v3069 = vsel %vm616, %v3035, 0
      %v3072 = vsel %vm616, %v3037, 0
      %v3075 = vsel %vm616, %v3039, 0
      %v3078 = vsel %vm616, %v3041, 0
      %v3081 = vsel %vm616, %v3043, 0
      %v3084 = vsel %vm616, %v3045, 0
      %v3087 = vsel %vm616, %v3047, 0
      %v3090 = vsel %vm616, %v3049, 0
      %v3093 = vsel %vm616, %v3051, 0
      %v3096 = vsel %vm616, %v3053, 0
      %v3099 = vsel %vm616, %v3055, 0
      %v3102 = vsel %vm616, %v3057, 0
      %v3105 = vsel %vm616, %v3059, 0
      %v3108 = vsel %vm616, %v3061, 0
      %3110 = vmatprep.subr.bf16.mxu0 0
      %3111 = vmatpush1.bf16.xpose.msra.mxu0 %v3087
      %3112 = vmatprep.subr.bf16.mxu0 0
      %3113 = vmatpush1.bf16.xpose.msra.mxu0 %v3090
      %3114 = vmatprep.subr.bf16.mxu0 0
      %3115 = vmatpush1.bf16.xpose.msra.mxu0 %v3093
      %3116 = vmatprep.subr.bf16.mxu0 0
      %3117 = vmatpush1.bf16.xpose.msra.mxu0 %v3096
      %3118 = vmatprep.subr.bf16.mxu0 0
      %3119 = vmatpush1.bf16.xpose.msra.mxu0 %v3099
      %3120 = vmatprep.subr.bf16.mxu0 0
      %3121 = vmatpush1.bf16.xpose.msra.mxu0 %v3102
      %3122 = vmatprep.subr.bf16.mxu0 0
      %3123 = vmatpush1.bf16.xpose.msra.mxu0 %v3105
      %3124 = vmatprep.subr.bf16.mxu0 0
      %3125 = vmatpush1.bf16.xpose.msra.mxu0 %v3108
      %3126 = vmatprep.subr.bf16.mxu0 0
      %3127 = vmatpush1.bf16.xpose.msra.mxu0 0
      %3128 = vmatprep.subr.bf16.mxu0 0
      %3129 = vmatpush1.bf16.xpose.msra.mxu0 0
      %3130 = vmatprep.subr.bf16.mxu0 0
      %3131 = vmatpush1.bf16.xpose.msra.mxu0 0
      %3132 = vmatprep.subr.bf16.mxu0 0
      %3133 = vmatpush1.bf16.xpose.msra.mxu0 0
      %3134 = vmatprep.subr.bf16.mxu0 0
      %3135 = vmatpush1.bf16.xpose.msra.mxu0 0
      %3136 = vmatprep.subr.bf16.mxu0 0
      %3137 = vmatpush1.bf16.xpose.msra.mxu0 0
      %3138 = vmatprep.subr.bf16.mxu0 0
      %3139 = vmatpush1.bf16.xpose.msra.mxu0 0
      %3140 = vmatprep.subr.bf16.mxu0 0
      %3141 = vmatpush1.bf16.xpose.msra.mxu0 0
      %3142 = vmatprep.mubr.bf16.mxu0 0
      %3143 = vmatmul.mubr.bf16.gmra.mrb[0].mxu0 %v3063
      %v3144 = vpop.f32.mrb[0].mxu0
      %v3145 = vadd.f32 0.0, %v3144
      %v3146 = vpop.f32.mrb[0].mxu0
      %v3147 = vpop.f32.mrb[0].mxu0
      %v3148 = vadd.f32 0.0, %v3147
      %v3149 = vpop.f32.mrb[0].mxu0
      %3150 = vmatprep.mubr.bf16.mxu0 0
      %3151 = vmatmul.mubr.bf16.gmra.mrb[0].mxu0 %v3066
      %v3152 = vpop.f32.mrb[0].mxu0
      %v3153 = vadd.f32 0.0, %v3152
      %v3154 = vpop.f32.mrb[0].mxu0
      %v3155 = vpop.f32.mrb[0].mxu0
      %v3156 = vadd.f32 0.0, %v3155
      %v3157 = vpop.f32.mrb[0].mxu0
      %3158 = vmatprep.mubr.bf16.mxu0 0
      %3159 = vmatmul.mubr.bf16.gmra.mrb[0].mxu0 %v3069
      %v3160 = vpop.f32.mrb[0].mxu0
      %v3161 = vadd.f32 0.0, %v3160
      %v3162 = vpop.f32.mrb[0].mxu0
      %v3163 = vpop.f32.mrb[0].mxu0
      %v3164 = vadd.f32 0.0, %v3163
      %v3165 = vpop.f32.mrb[0].mxu0
      %3166 = vmatprep.mubr.bf16.mxu0 0
      %3167 = vmatmul.mubr.bf16.gmra.mrb[0].mxu0 %v3072
      %v3168 = vpop.f32.mrb[0].mxu0
      %v3169 = vadd.f32 0.0, %v3168
      %v3170 = vpop.f32.mrb[0].mxu0
      %v3171 = vpop.f32.mrb[0].mxu0
      %v3172 = vadd.f32 0.0, %v3171
      %v3173 = vpop.f32.mrb[0].mxu0
      %3174 = vmatprep.mubr.bf16.mxu0 0
      %3175 = vmatmul.mubr.bf16.gmra.mrb[0].mxu0 %v3075
      %v3176 = vpop.f32.mrb[0].mxu0
      %v3177 = vadd.f32 0.0, %v3176
      %v3178 = vpop.f32.mrb[0].mxu0
      %v3179 = vpop.f32.mrb[0].mxu0
      %v3180 = vadd.f32 0.0, %v3179
      %v3181 = vpop.f32.mrb[0].mxu0
      %3182 = vmatprep.mubr.bf16.mxu0 0
      %3183 = vmatmul.mubr.bf16.gmra.mrb[0].mxu0 %v3078
      %v3184 = vpop.f32.mrb[0].mxu0
      %v3185 = vadd.f32 0.0, %v3184
      %v3186 = vpop.f32.mrb[0].mxu0
      %v3187 = vpop.f32.mrb[0].mxu0
      %v3188 = vadd.f32 0.0, %v3187
      %v3189 = vpop.f32.mrb[0].mxu0
      %3190 = vmatprep.mubr.bf16.mxu0 0
      %3191 = vmatmul.mubr.bf16.gmra.mrb[0].mxu0 %v3081
      %v3192 = vpop.f32.mrb[0].mxu0
      %v3193 = vadd.f32 0.0, %v3192
      %v3194 = vpop.f32.mrb[0].mxu0
      %v3195 = vpop.f32.mrb[0].mxu0
      %v3196 = vadd.f32 0.0, %v3195
      %v3197 = vpop.f32.mrb[0].mxu0
      %3198 = vmatprep.mubr.bf16.mxu0 0
      %3199 = vmatmul.mubr.bf16.gmra.mrb[0].mxu0 %v3084
      %v3200 = vpop.f32.mrb[0].mxu0
      %v3201 = vadd.f32 0.0, %v3200
      %v3202 = vpop.f32.mrb[0].mxu0
      %v3203 = vpop.f32.mrb[0].mxu0
      %v3204 = vadd.f32 0.0, %v3203
      %v3205 = vpop.f32.mrb[0].mxu0
      %3206 = vdwg.mxu0
      %s3207 = scalar_lea.vmem [#allocation2], 384
      %v3208 = vld [vmem:[%s3207] sm:$0xff]
      %v3209 = vld [vmem:[%s3207 + $0x8] sm:$0xff]
      %v3210 = vld [vmem:[%s3207 + $0x10] sm:$0xff]
      %v3211 = vld [vmem:[%s3207 + $0x18] sm:$0xff]
      %v3212 = vld [vmem:[%s3207 + $0x20] sm:$0xff]
      %v3213 = vld [vmem:[%s3207 + $0x28] sm:$0xff]
      %v3214 = vld [vmem:[%s3207 + $0x30] sm:$0xff]
      %v3215 = vld [vmem:[%s3207 + $0x38] sm:$0xff]
      %v3216 = vld [vmem:[%s3207 + $0x40] sm:$0xff]
      %v3217 = vld [vmem:[%s3207 + $0x48] sm:$0xff]
      %v3218 = vld [vmem:[%s3207 + $0x50] sm:$0xff]
      %v3219 = vld [vmem:[%s3207 + $0x58] sm:$0xff]
      %v3220 = vld [vmem:[%s3207 + $0x60] sm:$0xff]
      %v3221 = vld [vmem:[%s3207 + $0x68] sm:$0xff]
      %v3222 = vld [vmem:[%s3207 + $0x70] sm:$0xff]
      %v3223 = vld [vmem:[%s3207 + $0x78] sm:$0xff]
      %s3224 = scalar_lea.vmem [#allocation3], 384
      %v3225 = vld [vmem:[%s3224] sm:$0xff]
      %v3226 = vld [vmem:[%s3224 + $0x8] sm:$0xff]
      %v3227 = vld [vmem:[%s3224 + $0x10] sm:$0xff]
      %v3228 = vld [vmem:[%s3224 + $0x18] sm:$0xff]
      %v3229 = vld [vmem:[%s3224 + $0x20] sm:$0xff]
      %v3230 = vld [vmem:[%s3224 + $0x28] sm:$0xff]
      %v3231 = vld [vmem:[%s3224 + $0x30] sm:$0xff]
      %v3232 = vld [vmem:[%s3224 + $0x38] sm:$0xff]
      %v3233 = vld [vmem:[%s3224 + $0x40] sm:$0xff]
      %v3234 = vld [vmem:[%s3224 + $0x48] sm:$0xff]
      %v3235 = vld [vmem:[%s3224 + $0x50] sm:$0xff]
      %v3236 = vld [vmem:[%s3224 + $0x58] sm:$0xff]
      %v3237 = vld [vmem:[%s3224 + $0x60] sm:$0xff]
      %v3238 = vld [vmem:[%s3224 + $0x68] sm:$0xff]
      %v3239 = vld [vmem:[%s3224 + $0x70] sm:$0xff]
      %v3240 = vld [vmem:[%s3224 + $0x78] sm:$0xff]
      %3241 = vmax.xlane.f32.xlu0 %v3145
      %v3242 = vpop.xlane.xlu0 %3241
      %3243 = vmax.xlane.f32.xlu0 %v3148
      %v3244 = vpop.xlane.xlu0 %3243
      %3245 = vmax.xlane.f32.xlu0 %v3153
      %v3246 = vpop.xlane.xlu0 %3245
      %3247 = vmax.xlane.f32.xlu0 %v3156
      %v3248 = vpop.xlane.xlu0 %3247
      %3249 = vmax.xlane.f32.xlu0 %v3161
      %v3250 = vpop.xlane.xlu0 %3249
      %3251 = vmax.xlane.f32.xlu0 %v3164
      %v3252 = vpop.xlane.xlu0 %3251
      %3253 = vmax.xlane.f32.xlu0 %v3169
      %v3254 = vpop.xlane.xlu0 %3253
      %3255 = vmax.xlane.f32.xlu0 %v3172
      %v3256 = vpop.xlane.xlu0 %3255
      %3257 = vmax.xlane.f32.xlu0 %v3177
      %v3258 = vpop.xlane.xlu0 %3257
      %3259 = vmax.xlane.f32.xlu0 %v3180
      %v3260 = vpop.xlane.xlu0 %3259
      %3261 = vmax.xlane.f32.xlu0 %v3185
      %v3262 = vpop.xlane.xlu0 %3261
      %3263 = vmax.xlane.f32.xlu0 %v3188
      %v3264 = vpop.xlane.xlu0 %3263
      %3265 = vmax.xlane.f32.xlu0 %v3193
      %v3266 = vpop.xlane.xlu0 %3265
      %3267 = vmax.xlane.f32.xlu0 %v3196
      %v3268 = vpop.xlane.xlu0 %3267
      %3269 = vmax.xlane.f32.xlu0 %v3201
      %v3270 = vpop.xlane.xlu0 %3269
      %3271 = vmax.xlane.f32.xlu0 %v3204
      %v3272 = vpop.xlane.xlu0 %3271
      %v3273 = vmax.f32 %v3208, %v3242
      %v3274 = vmax.f32 %v3209, %v3244
      %v3275 = vmax.f32 %v3210, %v3246
      %v3276 = vmax.f32 %v3211, %v3248
      %v3277 = vmax.f32 %v3212, %v3250
      %v3278 = vmax.f32 %v3213, %v3252
      %v3279 = vmax.f32 %v3214, %v3254
      %v3280 = vmax.f32 %v3215, %v3256
      %v3281 = vmax.f32 %v3216, %v3258
      %v3282 = vmax.f32 %v3217, %v3260
      %v3283 = vmax.f32 %v3218, %v3262
      %v3284 = vmax.f32 %v3219, %v3264
      %v3285 = vmax.f32 %v3220, %v3266
      %v3286 = vmax.f32 %v3221, %v3268
      %v3287 = vmax.f32 %v3222, %v3270
      %v3288 = vmax.f32 %v3223, %v3272
      %v3289 = vsub.f32 %v3208, %v3273
      %v3290 = vsub.f32 %v3209, %v3274
      %v3291 = vsub.f32 %v3210, %v3275
      %v3292 = vsub.f32 %v3211, %v3276
      %v3293 = vsub.f32 %v3212, %v3277
      %v3294 = vsub.f32 %v3213, %v3278
      %v3295 = vsub.f32 %v3214, %v3279
      %v3296 = vsub.f32 %v3215, %v3280
      %v3297 = vsub.f32 %v3216, %v3281
      %v3298 = vsub.f32 %v3217, %v3282
      %v3299 = vsub.f32 %v3218, %v3283
      %v3300 = vsub.f32 %v3219, %v3284
      %v3301 = vsub.f32 %v3220, %v3285
      %v3302 = vsub.f32 %v3221, %v3286
      %v3303 = vsub.f32 %v3222, %v3287
      %v3304 = vsub.f32 %v3223, %v3288
      %v3305 = vmul.f32 %v3289, 1.442695
      %v3306 = vpow.pop %v3305
      %v3307 = vmul.f32 %v3290, 1.442695
      %v3308 = vpow.pop %v3307
      %v3309 = vmul.f32 %v3291, 1.442695
      %v3310 = vpow.pop %v3309
      %v3311 = vmul.f32 %v3292, 1.442695
      %v3312 = vpow.pop %v3311
      %v3313 = vmul.f32 %v3293, 1.442695
      %v3314 = vpow.pop %v3313
      %v3315 = vmul.f32 %v3294, 1.442695
      %v3316 = vpow.pop %v3315
      %v3317 = vmul.f32 %v3295, 1.442695
      %v3318 = vpow.pop %v3317
      %v3319 = vmul.f32 %v3296, 1.442695
      %v3320 = vpow.pop %v3319
      %v3321 = vmul.f32 %v3297, 1.442695
      %v3322 = vpow.pop %v3321
      %v3323 = vmul.f32 %v3298, 1.442695
      %v3324 = vpow.pop %v3323
      %v3325 = vmul.f32 %v3299, 1.442695
      %v3326 = vpow.pop %v3325
      %v3327 = vmul.f32 %v3300, 1.442695
      %v3328 = vpow.pop %v3327
      %v3329 = vmul.f32 %v3301, 1.442695
      %v3330 = vpow.pop %v3329
      %v3331 = vmul.f32 %v3302, 1.442695
      %v3332 = vpow.pop %v3331
      %v3333 = vmul.f32 %v3303, 1.442695
      %v3334 = vpow.pop %v3333
      %v3335 = vmul.f32 %v3304, 1.442695
      %v3336 = vpow.pop %v3335
      %3338 = vset.pattern.permute.xlu0 0
      %3339 = vperm.xlu0 %3338, %v3273
      %v3340 = vpop.permute.xlu0 %3339
      %3343 = vset.pattern.permute.xlu0 0
      %3344 = vperm.xlu0 %3343, %v3274
      %v3345 = vpop.permute.xlu0 %3344
      %3348 = vset.pattern.permute.xlu0 0
      %3349 = vperm.xlu0 %3348, %v3275
      %v3350 = vpop.permute.xlu0 %3349
      %3353 = vset.pattern.permute.xlu0 0
      %3354 = vperm.xlu0 %3353, %v3276
      %v3355 = vpop.permute.xlu0 %3354
      %3358 = vset.pattern.permute.xlu0 0
      %3359 = vperm.xlu0 %3358, %v3277
      %v3360 = vpop.permute.xlu0 %3359
      %3363 = vset.pattern.permute.xlu0 0
      %3364 = vperm.xlu0 %3363, %v3278
      %v3365 = vpop.permute.xlu0 %3364
      %3368 = vset.pattern.permute.xlu0 0
      %3369 = vperm.xlu0 %3368, %v3279
      %v3370 = vpop.permute.xlu0 %3369
      %3373 = vset.pattern.permute.xlu0 0
      %3374 = vperm.xlu0 %3373, %v3280
      %v3375 = vpop.permute.xlu0 %3374
      %3378 = vset.pattern.permute.xlu0 0
      %3379 = vperm.xlu0 %3378, %v3281
      %v3380 = vpop.permute.xlu0 %3379
      %3383 = vset.pattern.permute.xlu0 0
      %3384 = vperm.xlu0 %3383, %v3282
      %v3385 = vpop.permute.xlu0 %3384
      %3388 = vset.pattern.permute.xlu0 0
      %3389 = vperm.xlu0 %3388, %v3283
      %v3390 = vpop.permute.xlu0 %3389
      %3393 = vset.pattern.permute.xlu0 0
      %3394 = vperm.xlu0 %3393, %v3284
      %v3395 = vpop.permute.xlu0 %3394
      %3398 = vset.pattern.permute.xlu0 0
      %3399 = vperm.xlu0 %3398, %v3285
      %v3400 = vpop.permute.xlu0 %3399
      %3403 = vset.pattern.permute.xlu0 0
      %3404 = vperm.xlu0 %3403, %v3286
      %v3405 = vpop.permute.xlu0 %3404
      %3408 = vset.pattern.permute.xlu0 0
      %3409 = vperm.xlu0 %3408, %v3287
      %v3410 = vpop.permute.xlu0 %3409
      %3413 = vset.pattern.permute.xlu0 0
      %3414 = vperm.xlu0 %3413, %v3288
      %v3415 = vpop.permute.xlu0 %3414
      %v3417 = vsub.f32 %v3145, %v3340
      %v3418 = vsub.f32 %v3148, %v3345
      %v3419 = vsub.f32 %v3153, %v3350
      %v3420 = vsub.f32 %v3156, %v3355
      %v3421 = vsub.f32 %v3161, %v3360
      %v3422 = vsub.f32 %v3164, %v3365
      %v3423 = vsub.f32 %v3169, %v3370
      %v3424 = vsub.f32 %v3172, %v3375
      %v3425 = vsub.f32 %v3177, %v3380
      %v3426 = vsub.f32 %v3180, %v3385
      %v3427 = vsub.f32 %v3185, %v3390
      %v3428 = vsub.f32 %v3188, %v3395
      %v3429 = vsub.f32 %v3193, %v3400
      %v3430 = vsub.f32 %v3196, %v3405
      %v3431 = vsub.f32 %v3201, %v3410
      %v3432 = vsub.f32 %v3204, %v3415
      %v3433 = vmul.f32 %v3417, 1.442695
      %v3434 = vpow.pop %v3433
      %v3435 = vmul.f32 %v3418, 1.442695
      %v3436 = vpow.pop %v3435
      %v3437 = vmul.f32 %v3419, 1.442695
      %v3438 = vpow.pop %v3437
      %v3439 = vmul.f32 %v3420, 1.442695
      %v3440 = vpow.pop %v3439
      %v3441 = vmul.f32 %v3421, 1.442695
      %v3442 = vpow.pop %v3441
      %v3443 = vmul.f32 %v3422, 1.442695
      %v3444 = vpow.pop %v3443
      %v3445 = vmul.f32 %v3423, 1.442695
      %v3446 = vpow.pop %v3445
      %v3447 = vmul.f32 %v3424, 1.442695
      %v3448 = vpow.pop %v3447
      %v3449 = vmul.f32 %v3425, 1.442695
      %v3450 = vpow.pop %v3449
      %v3451 = vmul.f32 %v3426, 1.442695
      %v3452 = vpow.pop %v3451
      %v3453 = vmul.f32 %v3427, 1.442695
      %v3454 = vpow.pop %v3453
      %v3455 = vmul.f32 %v3428, 1.442695
      %v3456 = vpow.pop %v3455
      %v3457 = vmul.f32 %v3429, 1.442695
      %v3458 = vpow.pop %v3457
      %v3459 = vmul.f32 %v3430, 1.442695
      %v3460 = vpow.pop %v3459
      %v3461 = vmul.f32 %v3431, 1.442695
      %v3462 = vpow.pop %v3461
      %v3463 = vmul.f32 %v3432, 1.442695
      %v3464 = vpow.pop %v3463
      %v3465 = vmul.f32 %v3306, %v3225
      %v3466 = vmul.f32 %v3308, %v3226
      %v3467 = vmul.f32 %v3310, %v3227
      %v3468 = vmul.f32 %v3312, %v3228
      %v3469 = vmul.f32 %v3314, %v3229
      %v3470 = vmul.f32 %v3316, %v3230
      %v3471 = vmul.f32 %v3318, %v3231
      %v3472 = vmul.f32 %v3320, %v3232
      %v3473 = vmul.f32 %v3322, %v3233
      %v3474 = vmul.f32 %v3324, %v3234
      %v3475 = vmul.f32 %v3326, %v3235
      %v3476 = vmul.f32 %v3328, %v3236
      %v3477 = vmul.f32 %v3330, %v3237
      %v3478 = vmul.f32 %v3332, %v3238
      %v3479 = vmul.f32 %v3334, %v3239
      %v3480 = vmul.f32 %v3336, %v3240
      %3481 = vadd.xlane.f32.xlu0 %v3434
      %v3482 = vpop.xlane.xlu0 %3481
      %3483 = vadd.xlane.f32.xlu0 %v3436
      %v3484 = vpop.xlane.xlu0 %3483
      %3485 = vadd.xlane.f32.xlu0 %v3438
      %v3486 = vpop.xlane.xlu0 %3485
      %3487 = vadd.xlane.f32.xlu0 %v3440
      %v3488 = vpop.xlane.xlu0 %3487
      %3489 = vadd.xlane.f32.xlu0 %v3442
      %v3490 = vpop.xlane.xlu0 %3489
      %3491 = vadd.xlane.f32.xlu0 %v3444
      %v3492 = vpop.xlane.xlu0 %3491
      %3493 = vadd.xlane.f32.xlu0 %v3446
      %v3494 = vpop.xlane.xlu0 %3493
      %3495 = vadd.xlane.f32.xlu0 %v3448
      %v3496 = vpop.xlane.xlu0 %3495
      %3497 = vadd.xlane.f32.xlu0 %v3450
      %v3498 = vpop.xlane.xlu0 %3497
      %3499 = vadd.xlane.f32.xlu0 %v3452
      %v3500 = vpop.xlane.xlu0 %3499
      %3501 = vadd.xlane.f32.xlu0 %v3454
      %v3502 = vpop.xlane.xlu0 %3501
      %3503 = vadd.xlane.f32.xlu0 %v3456
      %v3504 = vpop.xlane.xlu0 %3503
      %3505 = vadd.xlane.f32.xlu0 %v3458
      %v3506 = vpop.xlane.xlu0 %3505
      %3507 = vadd.xlane.f32.xlu0 %v3460
      %v3508 = vpop.xlane.xlu0 %3507
      %3509 = vadd.xlane.f32.xlu0 %v3462
      %v3510 = vpop.xlane.xlu0 %3509
      %3511 = vadd.xlane.f32.xlu0 %v3464
      %v3512 = vpop.xlane.xlu0 %3511
      %v3513 = vadd.f32 %v3465, %v3482
      %v3514 = vadd.f32 %v3466, %v3484
      %v3515 = vadd.f32 %v3467, %v3486
      %v3516 = vadd.f32 %v3468, %v3488
      %v3517 = vadd.f32 %v3469, %v3490
      %v3518 = vadd.f32 %v3470, %v3492
      %v3519 = vadd.f32 %v3471, %v3494
      %v3520 = vadd.f32 %v3472, %v3496
      %v3521 = vadd.f32 %v3473, %v3498
      %v3522 = vadd.f32 %v3474, %v3500
      %v3523 = vadd.f32 %v3475, %v3502
      %v3524 = vadd.f32 %v3476, %v3504
      %v3525 = vadd.f32 %v3477, %v3506
      %v3526 = vadd.f32 %v3478, %v3508
      %v3527 = vadd.f32 %v3479, %v3510
      %v3528 = vadd.f32 %v3480, %v3512
      %3529 = vst.msk [vmem:[%s3224] sm:$0xff] %vm1082, %v3513
      %3530 = vst.msk [vmem:[%s3224 + $0x8] sm:$0xff] %vm1082, %v3514
      %3531 = vst.msk [vmem:[%s3224 + $0x10] sm:$0xff] %vm1082, %v3515
      %3532 = vst.msk [vmem:[%s3224 + $0x18] sm:$0xff] %vm1082, %v3516
      %3533 = vst.msk [vmem:[%s3224 + $0x20] sm:$0xff] %vm1082, %v3517
      %3534 = vst.msk [vmem:[%s3224 + $0x28] sm:$0xff] %vm1082, %v3518
      %3535 = vst.msk [vmem:[%s3224 + $0x30] sm:$0xff] %vm1082, %v3519
      %3536 = vst.msk [vmem:[%s3224 + $0x38] sm:$0xff] %vm1082, %v3520
      %3537 = vst.msk [vmem:[%s3224 + $0x40] sm:$0xff] %vm1082, %v3521
      %3538 = vst.msk [vmem:[%s3224 + $0x48] sm:$0xff] %vm1082, %v3522
      %3539 = vst.msk [vmem:[%s3224 + $0x50] sm:$0xff] %vm1082, %v3523
      %3540 = vst.msk [vmem:[%s3224 + $0x58] sm:$0xff] %vm1082, %v3524
      %3541 = vst.msk [vmem:[%s3224 + $0x60] sm:$0xff] %vm1082, %v3525
      %3542 = vst.msk [vmem:[%s3224 + $0x68] sm:$0xff] %vm1082, %v3526
      %3543 = vst.msk [vmem:[%s3224 + $0x70] sm:$0xff] %vm1082, %v3527
      %3544 = vst.msk [vmem:[%s3224 + $0x78] sm:$0xff] %vm1082, %v3528
      %v3545 = vpack.c.bf16 %v3436, %v3434
      %v3546 = vpack.c.bf16 %v3440, %v3438
      %v3547 = vpack.c.bf16 %v3444, %v3442
      %v3548 = vpack.c.bf16 %v3448, %v3446
      %v3549 = vpack.c.bf16 %v3452, %v3450
      %v3550 = vpack.c.bf16 %v3456, %v3454
      %v3551 = vpack.c.bf16 %v3460, %v3458
      %v3552 = vpack.c.bf16 %v3464, %v3462
      %3553 = vrot.lane.b32.xlu0 %v1139, 32
      %v3554 = vpop.permute.xlu0 %3553
      %3555 = vrot.lane.b32.xlu0 %v1140, 32
      %v3556 = vpop.permute.xlu0 %3555
      %3557 = vrot.lane.b32.xlu0 %v1141, 32
      %v3558 = vpop.permute.xlu0 %3557
      %3559 = vrot.lane.b32.xlu0 %v1142, 32
      %v3560 = vpop.permute.xlu0 %3559
      %3561 = vrot.lane.b32.xlu0 %v1143, 32
      %v3562 = vpop.permute.xlu0 %3561
      %3563 = vrot.lane.b32.xlu0 %v1144, 32
      %v3564 = vpop.permute.xlu0 %3563
      %3565 = vrot.lane.b32.xlu0 %v1145, 32
      %v3566 = vpop.permute.xlu0 %3565
      %3567 = vrot.lane.b32.xlu0 %v1146, 32
      %v3568 = vpop.permute.xlu0 %3567
      %3577 = vmatprep.subr.bf16.mxu0 0
      %3578 = vmatpush1.bf16.msra.mxu0 %v3554
      %3579 = vmatprep.subr.bf16.mxu0 0
      %3580 = vmatpush1.bf16.msra.mxu0 %v3556
      %3581 = vmatprep.subr.bf16.mxu0 0
      %3582 = vmatpush1.bf16.msra.mxu0 %v3558
      %3583 = vmatprep.subr.bf16.mxu0 0
      %3584 = vmatpush1.bf16.msra.mxu0 %v3560
      %3585 = vmatprep.subr.bf16.mxu0 0
      %3586 = vmatpush1.bf16.msra.mxu0 %v3562
      %3587 = vmatprep.subr.bf16.mxu0 0
      %3588 = vmatpush1.bf16.msra.mxu0 %v3564
      %3589 = vmatprep.subr.bf16.mxu0 0
      %3590 = vmatpush1.bf16.msra.mxu0 %v3566
      %3591 = vmatprep.subr.bf16.mxu0 0
      %3592 = vmatpush1.bf16.msra.mxu0 %v3568
      %3593 = vmatprep.subr.bf16.mxu0 0
      %3594 = vmatpush1.bf16.msra.mxu0 0
      %3595 = vmatprep.subr.bf16.mxu0 0
      %3596 = vmatpush1.bf16.msra.mxu0 0
      %3597 = vmatprep.subr.bf16.mxu0 0
      %3598 = vmatpush1.bf16.msra.mxu0 0
      %3599 = vmatprep.subr.bf16.mxu0 0
      %3600 = vmatpush1.bf16.msra.mxu0 0
      %3601 = vmatprep.subr.bf16.mxu0 0
      %3602 = vmatpush1.bf16.msra.mxu0 0
      %3603 = vmatprep.subr.bf16.mxu0 0
      %3604 = vmatpush1.bf16.msra.mxu0 0
      %3605 = vmatprep.subr.bf16.mxu0 0
      %3606 = vmatpush1.bf16.msra.mxu0 0
      %3607 = vmatprep.subr.bf16.mxu0 0
      %3608 = vmatpush1.bf16.msra.mxu0 0
      %3609 = vmatprep.mubr.bf16.mxu0 0
      %3610 = vmatmul.mubr.bf16.gmra.mrb[0].mxu0 %v3545
      %v3611 = vpop.f32.mrb[0].mxu0
      %v3612 = vadd.f32 0.0, %v3611
      %v3613 = vpop.f32.mrb[0].mxu0
      %v3614 = vpop.f32.mrb[0].mxu0
      %v3615 = vadd.f32 0.0, %v3614
      %v3616 = vpop.f32.mrb[0].mxu0
      %3617 = vmatprep.mubr.bf16.mxu0 0
      %3618 = vmatmul.mubr.bf16.gmra.mrb[0].mxu0 %v3546
      %v3619 = vpop.f32.mrb[0].mxu0
      %v3620 = vadd.f32 0.0, %v3619
      %v3621 = vpop.f32.mrb[0].mxu0
      %v3622 = vpop.f32.mrb[0].mxu0
      %v3623 = vadd.f32 0.0, %v3622
      %v3624 = vpop.f32.mrb[0].mxu0
      %3625 = vmatprep.mubr.bf16.mxu0 0
      %3626 = vmatmul.mubr.bf16.gmra.mrb[0].mxu0 %v3547
      %v3627 = vpop.f32.mrb[0].mxu0
      %v3628 = vadd.f32 0.0, %v3627
      %v3629 = vpop.f32.mrb[0].mxu0
      %v3630 = vpop.f32.mrb[0].mxu0
      %v3631 = vadd.f32 0.0, %v3630
      %v3632 = vpop.f32.mrb[0].mxu0
      %3633 = vmatprep.mubr.bf16.mxu0 0
      %3634 = vmatmul.mubr.bf16.gmra.mrb[0].mxu0 %v3548
      %v3635 = vpop.f32.mrb[0].mxu0
      %v3636 = vadd.f32 0.0, %v3635
      %v3637 = vpop.f32.mrb[0].mxu0
      %v3638 = vpop.f32.mrb[0].mxu0
      %v3639 = vadd.f32 0.0, %v3638
      %v3640 = vpop.f32.mrb[0].mxu0
      %3641 = vmatprep.mubr.bf16.mxu0 0
      %3642 = vmatmul.mubr.bf16.gmra.mrb[0].mxu0 %v3549
      %v3643 = vpop.f32.mrb[0].mxu0
      %v3644 = vadd.f32 0.0, %v3643
      %v3645 = vpop.f32.mrb[0].mxu0
      %v3646 = vpop.f32.mrb[0].mxu0
      %v3647 = vadd.f32 0.0, %v3646
      %v3648 = vpop.f32.mrb[0].mxu0
      %3649 = vmatprep.mubr.bf16.mxu0 0
      %3650 = vmatmul.mubr.bf16.gmra.mrb[0].mxu0 %v3550
      %v3651 = vpop.f32.mrb[0].mxu0
      %v3652 = vadd.f32 0.0, %v3651
      %v3653 = vpop.f32.mrb[0].mxu0
      %v3654 = vpop.f32.mrb[0].mxu0
      %v3655 = vadd.f32 0.0, %v3654
      %v3656 = vpop.f32.mrb[0].mxu0
      %3657 = vmatprep.mubr.bf16.mxu0 0
      %3658 = vmatmul.mubr.bf16.gmra.mrb[0].mxu0 %v3551
      %v3659 = vpop.f32.mrb[0].mxu0
      %v3660 = vadd.f32 0.0, %v3659
      %v3661 = vpop.f32.mrb[0].mxu0
      %v3662 = vpop.f32.mrb[0].mxu0
      %v3663 = vadd.f32 0.0, %v3662
      %v3664 = vpop.f32.mrb[0].mxu0
      %3665 = vmatprep.mubr.bf16.mxu0 0
      %3666 = vmatmul.mubr.bf16.gmra.mrb[0].mxu0 %v3552
      %v3667 = vpop.f32.mrb[0].mxu0
      %v3668 = vadd.f32 0.0, %v3667
      %v3669 = vpop.f32.mrb[0].mxu0
      %v3670 = vpop.f32.mrb[0].mxu0
      %v3671 = vadd.f32 0.0, %v3670
      %v3672 = vpop.f32.mrb[0].mxu0
      %3673 = vdwg.mxu0
      %s3674 = scalar_lea.vmem [#allocation4], 384
      %v3675 = vld [vmem:[%s3674] sm:$0xff]
      %v3676 = vld [vmem:[%s3674 + $0x8] sm:$0xff]
      %v3677 = vld [vmem:[%s3674 + $0x10] sm:$0xff]
      %v3678 = vld [vmem:[%s3674 + $0x18] sm:$0xff]
      %v3679 = vld [vmem:[%s3674 + $0x20] sm:$0xff]
      %v3680 = vld [vmem:[%s3674 + $0x28] sm:$0xff]
      %v3681 = vld [vmem:[%s3674 + $0x30] sm:$0xff]
      %v3682 = vld [vmem:[%s3674 + $0x38] sm:$0xff]
      %v3683 = vld [vmem:[%s3674 + $0x40] sm:$0xff]
      %v3684 = vld [vmem:[%s3674 + $0x48] sm:$0xff]
      %v3685 = vld [vmem:[%s3674 + $0x50] sm:$0xff]
      %v3686 = vld [vmem:[%s3674 + $0x58] sm:$0xff]
      %v3687 = vld [vmem:[%s3674 + $0x60] sm:$0xff]
      %v3688 = vld [vmem:[%s3674 + $0x68] sm:$0xff]
      %v3689 = vld [vmem:[%s3674 + $0x70] sm:$0xff]
      %v3690 = vld [vmem:[%s3674 + $0x78] sm:$0xff]
      %3692 = vset.pattern.permute.xlu0 0
      %3693 = vperm.xlu0 %3692, %v3306
      %v3694 = vpop.permute.xlu0 %3693
      %3697 = vset.pattern.permute.xlu0 0
      %3698 = vperm.xlu0 %3697, %v3308
      %v3699 = vpop.permute.xlu0 %3698
      %3702 = vset.pattern.permute.xlu0 0
      %3703 = vperm.xlu0 %3702, %v3310
      %v3704 = vpop.permute.xlu0 %3703
      %3707 = vset.pattern.permute.xlu0 0
      %3708 = vperm.xlu0 %3707, %v3312
      %v3709 = vpop.permute.xlu0 %3708
      %3712 = vset.pattern.permute.xlu0 0
      %3713 = vperm.xlu0 %3712, %v3314
      %v3714 = vpop.permute.xlu0 %3713
      %3717 = vset.pattern.permute.xlu0 0
      %3718 = vperm.xlu0 %3717, %v3316
      %v3719 = vpop.permute.xlu0 %3718
      %3722 = vset.pattern.permute.xlu0 0
      %3723 = vperm.xlu0 %3722, %v3318
      %v3724 = vpop.permute.xlu0 %3723
      %3727 = vset.pattern.permute.xlu0 0
      %3728 = vperm.xlu0 %3727, %v3320
      %v3729 = vpop.permute.xlu0 %3728
      %3732 = vset.pattern.permute.xlu0 0
      %3733 = vperm.xlu0 %3732, %v3322
      %v3734 = vpop.permute.xlu0 %3733
      %3737 = vset.pattern.permute.xlu0 0
      %3738 = vperm.xlu0 %3737, %v3324
      %v3739 = vpop.permute.xlu0 %3738
      %3742 = vset.pattern.permute.xlu0 0
      %3743 = vperm.xlu0 %3742, %v3326
      %v3744 = vpop.permute.xlu0 %3743
      %3747 = vset.pattern.permute.xlu0 0
      %3748 = vperm.xlu0 %3747, %v3328
      %v3749 = vpop.permute.xlu0 %3748
      %3752 = vset.pattern.permute.xlu0 0
      %3753 = vperm.xlu0 %3752, %v3330
      %v3754 = vpop.permute.xlu0 %3753
      %3757 = vset.pattern.permute.xlu0 0
      %3758 = vperm.xlu0 %3757, %v3332
      %v3759 = vpop.permute.xlu0 %3758
      %3762 = vset.pattern.permute.xlu0 0
      %3763 = vperm.xlu0 %3762, %v3334
      %v3764 = vpop.permute.xlu0 %3763
      %3767 = vset.pattern.permute.xlu0 0
      %3768 = vperm.xlu0 %3767, %v3336
      %v3769 = vpop.permute.xlu0 %3768
      %v3771 = vmul.f32 %v3694, %v3675
      %v3772 = vmul.f32 %v3699, %v3676
      %v3773 = vmul.f32 %v3704, %v3677
      %v3774 = vmul.f32 %v3709, %v3678
      %v3775 = vmul.f32 %v3714, %v3679
      %v3776 = vmul.f32 %v3719, %v3680
      %v3777 = vmul.f32 %v3724, %v3681
      %v3778 = vmul.f32 %v3729, %v3682
      %v3779 = vmul.f32 %v3734, %v3683
      %v3780 = vmul.f32 %v3739, %v3684
      %v3781 = vmul.f32 %v3744, %v3685
      %v3782 = vmul.f32 %v3749, %v3686
      %v3783 = vmul.f32 %v3754, %v3687
      %v3784 = vmul.f32 %v3759, %v3688
      %v3785 = vmul.f32 %v3764, %v3689
      %v3786 = vmul.f32 %v3769, %v3690
      %v3787 = vadd.f32 %v3771, %v3612
      %v3788 = vadd.f32 %v3772, %v3615
      %v3789 = vadd.f32 %v3773, %v3620
      %v3790 = vadd.f32 %v3774, %v3623
      %v3791 = vadd.f32 %v3775, %v3628
      %v3792 = vadd.f32 %v3776, %v3631
      %v3793 = vadd.f32 %v3777, %v3636
      %v3794 = vadd.f32 %v3778, %v3639
      %v3795 = vadd.f32 %v3779, %v3644
      %v3796 = vadd.f32 %v3780, %v3647
      %v3797 = vadd.f32 %v3781, %v3652
      %v3798 = vadd.f32 %v3782, %v3655
      %v3799 = vadd.f32 %v3783, %v3660
      %v3800 = vadd.f32 %v3784, %v3663
      %v3801 = vadd.f32 %v3785, %v3668
      %v3802 = vadd.f32 %v3786, %v3671
      %3803 = vst.msk [vmem:[%s3674] sm:$0xff] %vm616, %v3787
      %3804 = vst.msk [vmem:[%s3674 + $0x8] sm:$0xff] %vm616, %v3788
      %3805 = vst.msk [vmem:[%s3674 + $0x10] sm:$0xff] %vm616, %v3789
      %3806 = vst.msk [vmem:[%s3674 + $0x18] sm:$0xff] %vm616, %v3790
      %3807 = vst.msk [vmem:[%s3674 + $0x20] sm:$0xff] %vm616, %v3791
      %3808 = vst.msk [vmem:[%s3674 + $0x28] sm:$0xff] %vm616, %v3792
      %3809 = vst.msk [vmem:[%s3674 + $0x30] sm:$0xff] %vm616, %v3793
      %3810 = vst.msk [vmem:[%s3674 + $0x38] sm:$0xff] %vm616, %v3794
      %3811 = vst.msk [vmem:[%s3674 + $0x40] sm:$0xff] %vm616, %v3795
      %3812 = vst.msk [vmem:[%s3674 + $0x48] sm:$0xff] %vm616, %v3796
      %3813 = vst.msk [vmem:[%s3674 + $0x50] sm:$0xff] %vm616, %v3797
      %3814 = vst.msk [vmem:[%s3674 + $0x58] sm:$0xff] %vm616, %v3798
      %3815 = vst.msk [vmem:[%s3674 + $0x60] sm:$0xff] %vm616, %v3799
      %3816 = vst.msk [vmem:[%s3674 + $0x68] sm:$0xff] %vm616, %v3800
      %3817 = vst.msk [vmem:[%s3674 + $0x70] sm:$0xff] %vm616, %v3801
      %3818 = vst.msk [vmem:[%s3674 + $0x78] sm:$0xff] %vm616, %v3802
      %3819 = vst.msk [vmem:[%s3207] sm:$0xff] %vm1082, %v3273
      %3820 = vst.msk [vmem:[%s3207 + $0x8] sm:$0xff] %vm1082, %v3274
      %3821 = vst.msk [vmem:[%s3207 + $0x10] sm:$0xff] %vm1082, %v3275
      %3822 = vst.msk [vmem:[%s3207 + $0x18] sm:$0xff] %vm1082, %v3276
      %3823 = vst.msk [vmem:[%s3207 + $0x20] sm:$0xff] %vm1082, %v3277
      %3824 = vst.msk [vmem:[%s3207 + $0x28] sm:$0xff] %vm1082, %v3278
      %3825 = vst.msk [vmem:[%s3207 + $0x30] sm:$0xff] %vm1082, %v3279
      %3826 = vst.msk [vmem:[%s3207 + $0x38] sm:$0xff] %vm1082, %v3280
      %3827 = vst.msk [vmem:[%s3207 + $0x40] sm:$0xff] %vm1082, %v3281
      %3828 = vst.msk [vmem:[%s3207 + $0x48] sm:$0xff] %vm1082, %v3282
      %3829 = vst.msk [vmem:[%s3207 + $0x50] sm:$0xff] %vm1082, %v3283
      %3830 = vst.msk [vmem:[%s3207 + $0x58] sm:$0xff] %vm1082, %v3284
      %3831 = vst.msk [vmem:[%s3207 + $0x60] sm:$0xff] %vm1082, %v3285
      %3832 = vst.msk [vmem:[%s3207 + $0x68] sm:$0xff] %vm1082, %v3286
      %3833 = vst.msk [vmem:[%s3207 + $0x70] sm:$0xff] %vm1082, %v3287
      %3834 = vst.msk [vmem:[%s3207 + $0x78] sm:$0xff] %vm1082, %v3288
      // Predicated region
      $region37: #{multi_head_attention.4} parent=31 // pred_check
        %p3835 = pneg %p290
      $region38: #{multi_head_attention.4} parent=31 // pred_check_branch
        %3837 = sbr.rel (%p3835) target = $region40
      $region39: #{multi_head_attention.4} parent=31 // pred_region
        %v3838 = vld [vmem:[#allocation4] sm:$0xff]
        %v3839 = vld [vmem:[#allocation4 + $0x8] sm:$0xff]
        %v3840 = vld [vmem:[#allocation4 + $0x10] sm:$0xff]
        %v3841 = vld [vmem:[#allocation4 + $0x18] sm:$0xff]
        %v3842 = vld [vmem:[#allocation4 + $0x20] sm:$0xff]
        %v3843 = vld [vmem:[#allocation4 + $0x28] sm:$0xff]
        %v3844 = vld [vmem:[#allocation4 + $0x30] sm:$0xff]
        %v3845 = vld [vmem:[#allocation4 + $0x38] sm:$0xff]
        %v3846 = vld [vmem:[#allocation4 + $0x40] sm:$0xff]
        %v3847 = vld [vmem:[#allocation4 + $0x48] sm:$0xff]
        %v3848 = vld [vmem:[#allocation4 + $0x50] sm:$0xff]
        %v3849 = vld [vmem:[#allocation4 + $0x58] sm:$0xff]
        %v3850 = vld [vmem:[#allocation4 + $0x60] sm:$0xff]
        %v3851 = vld [vmem:[#allocation4 + $0x68] sm:$0xff]
        %v3852 = vld [vmem:[#allocation4 + $0x70] sm:$0xff]
        %v3853 = vld [vmem:[#allocation4 + $0x78] sm:$0xff]
        %v3854 = vld [vmem:[#allocation3] sm:$0xff]
        %v3855 = vld [vmem:[#allocation3 + $0x8] sm:$0xff]
        %v3856 = vld [vmem:[#allocation3 + $0x10] sm:$0xff]
        %v3857 = vld [vmem:[#allocation3 + $0x18] sm:$0xff]
        %v3858 = vld [vmem:[#allocation3 + $0x20] sm:$0xff]
        %v3859 = vld [vmem:[#allocation3 + $0x28] sm:$0xff]
        %v3860 = vld [vmem:[#allocation3 + $0x30] sm:$0xff]
        %v3861 = vld [vmem:[#allocation3 + $0x38] sm:$0xff]
        %v3862 = vld [vmem:[#allocation3 + $0x40] sm:$0xff]
        %v3863 = vld [vmem:[#allocation3 + $0x48] sm:$0xff]
        %v3864 = vld [vmem:[#allocation3 + $0x50] sm:$0xff]
        %v3865 = vld [vmem:[#allocation3 + $0x58] sm:$0xff]
        %v3866 = vld [vmem:[#allocation3 + $0x60] sm:$0xff]
        %v3867 = vld [vmem:[#allocation3 + $0x68] sm:$0xff]
        %v3868 = vld [vmem:[#allocation3 + $0x70] sm:$0xff]
        %v3869 = vld [vmem:[#allocation3 + $0x78] sm:$0xff]
        %v3870 = vrcp.pop %v3854
        %v3871 = vrcp.pop %v3855
        %v3872 = vrcp.pop %v3856
        %v3873 = vrcp.pop %v3857
        %v3874 = vrcp.pop %v3858
        %v3875 = vrcp.pop %v3859
        %v3876 = vrcp.pop %v3860
        %v3877 = vrcp.pop %v3861
        %v3878 = vrcp.pop %v3862
        %v3879 = vrcp.pop %v3863
        %v3880 = vrcp.pop %v3864
        %v3881 = vrcp.pop %v3865
        %v3882 = vrcp.pop %v3866
        %v3883 = vrcp.pop %v3867
        %v3884 = vrcp.pop %v3868
        %v3885 = vrcp.pop %v3869
        %3887 = vset.pattern.permute.xlu0 0
        %3888 = vperm.xlu0 %3887, %v3870
        %v3889 = vpop.permute.xlu0 %3888
        %3892 = vset.pattern.permute.xlu0 0
        %3893 = vperm.xlu0 %3892, %v3871
        %v3894 = vpop.permute.xlu0 %3893
        %3897 = vset.pattern.permute.xlu0 0
        %3898 = vperm.xlu0 %3897, %v3872
        %v3899 = vpop.permute.xlu0 %3898
        %3902 = vset.pattern.permute.xlu0 0
        %3903 = vperm.xlu0 %3902, %v3873
        %v3904 = vpop.permute.xlu0 %3903
        %3907 = vset.pattern.permute.xlu0 0
        %3908 = vperm.xlu0 %3907, %v3874
        %v3909 = vpop.permute.xlu0 %3908
        %3912 = vset.pattern.permute.xlu0 0
        %3913 = vperm.xlu0 %3912, %v3875
        %v3914 = vpop.permute.xlu0 %3913
        %3917 = vset.pattern.permute.xlu0 0
        %3918 = vperm.xlu0 %3917, %v3876
        %v3919 = vpop.permute.xlu0 %3918
        %3922 = vset.pattern.permute.xlu0 0
        %3923 = vperm.xlu0 %3922, %v3877
        %v3924 = vpop.permute.xlu0 %3923
        %3927 = vset.pattern.permute.xlu0 0
        %3928 = vperm.xlu0 %3927, %v3878
        %v3929 = vpop.permute.xlu0 %3928
        %3932 = vset.pattern.permute.xlu0 0
        %3933 = vperm.xlu0 %3932, %v3879
        %v3934 = vpop.permute.xlu0 %3933
        %3937 = vset.pattern.permute.xlu0 0
        %3938 = vperm.xlu0 %3937, %v3880
        %v3939 = vpop.permute.xlu0 %3938
        %3942 = vset.pattern.permute.xlu0 0
        %3943 = vperm.xlu0 %3942, %v3881
        %v3944 = vpop.permute.xlu0 %3943
        %3947 = vset.pattern.permute.xlu0 0
        %3948 = vperm.xlu0 %3947, %v3882
        %v3949 = vpop.permute.xlu0 %3948
        %3952 = vset.pattern.permute.xlu0 0
        %3953 = vperm.xlu0 %3952, %v3883
        %v3954 = vpop.permute.xlu0 %3953
        %3957 = vset.pattern.permute.xlu0 0
        %3958 = vperm.xlu0 %3957, %v3884
        %v3959 = vpop.permute.xlu0 %3958
        %3962 = vset.pattern.permute.xlu0 0
        %3963 = vperm.xlu0 %3962, %v3885
        %v3964 = vpop.permute.xlu0 %3963
        %v3966 = vmul.f32 %v3838, %v3889
        %v3967 = vmul.f32 %v3839, %v3894
        %v3968 = vmul.f32 %v3840, %v3899
        %v3969 = vmul.f32 %v3841, %v3904
        %v3970 = vmul.f32 %v3842, %v3909
        %v3971 = vmul.f32 %v3843, %v3914
        %v3972 = vmul.f32 %v3844, %v3919
        %v3973 = vmul.f32 %v3845, %v3924
        %v3974 = vmul.f32 %v3846, %v3929
        %v3975 = vmul.f32 %v3847, %v3934
        %v3976 = vmul.f32 %v3848, %v3939
        %v3977 = vmul.f32 %v3849, %v3944
        %v3978 = vmul.f32 %v3850, %v3949
        %v3979 = vmul.f32 %v3851, %v3954
        %v3980 = vmul.f32 %v3852, %v3959
        %v3981 = vmul.f32 %v3853, %v3964
        %v3982 = vld [vmem:[%s2064] sm:$0xff]
        %v3983 = vld [vmem:[%s2064 + $0x8] sm:$0xff]
        %v3984 = vld [vmem:[%s2064 + $0x10] sm:$0xff]
        %v3985 = vld [vmem:[%s2064 + $0x18] sm:$0xff]
        %v3986 = vld [vmem:[%s2064 + $0x20] sm:$0xff]
        %v3987 = vld [vmem:[%s2064 + $0x28] sm:$0xff]
        %v3988 = vld [vmem:[%s2064 + $0x30] sm:$0xff]
        %v3989 = vld [vmem:[%s2064 + $0x38] sm:$0xff]
        %v3990 = vld [vmem:[%s2064 + $0x40] sm:$0xff]
        %v3991 = vld [vmem:[%s2064 + $0x48] sm:$0xff]
        %v3992 = vld [vmem:[%s2064 + $0x50] sm:$0xff]
        %v3993 = vld [vmem:[%s2064 + $0x58] sm:$0xff]
        %v3994 = vld [vmem:[%s2064 + $0x60] sm:$0xff]
        %v3995 = vld [vmem:[%s2064 + $0x68] sm:$0xff]
        %v3996 = vld [vmem:[%s2064 + $0x70] sm:$0xff]
        %v3997 = vld [vmem:[%s2064 + $0x78] sm:$0xff]
        %v3998 = vld [vmem:[%s1614] sm:$0xff]
        %v3999 = vld [vmem:[%s1614 + $0x8] sm:$0xff]
        %v4000 = vld [vmem:[%s1614 + $0x10] sm:$0xff]
        %v4001 = vld [vmem:[%s1614 + $0x18] sm:$0xff]
        %v4002 = vld [vmem:[%s1614 + $0x20] sm:$0xff]
        %v4003 = vld [vmem:[%s1614 + $0x28] sm:$0xff]
        %v4004 = vld [vmem:[%s1614 + $0x30] sm:$0xff]
        %v4005 = vld [vmem:[%s1614 + $0x38] sm:$0xff]
        %v4006 = vld [vmem:[%s1614 + $0x40] sm:$0xff]
        %v4007 = vld [vmem:[%s1614 + $0x48] sm:$0xff]
        %v4008 = vld [vmem:[%s1614 + $0x50] sm:$0xff]
        %v4009 = vld [vmem:[%s1614 + $0x58] sm:$0xff]
        %v4010 = vld [vmem:[%s1614 + $0x60] sm:$0xff]
        %v4011 = vld [vmem:[%s1614 + $0x68] sm:$0xff]
        %v4012 = vld [vmem:[%s1614 + $0x70] sm:$0xff]
        %v4013 = vld [vmem:[%s1614 + $0x78] sm:$0xff]
        %v4014 = vrcp.pop %v3998
        %v4015 = vrcp.pop %v3999
        %v4016 = vrcp.pop %v4000
        %v4017 = vrcp.pop %v4001
        %v4018 = vrcp.pop %v4002
        %v4019 = vrcp.pop %v4003
        %v4020 = vrcp.pop %v4004
        %v4021 = vrcp.pop %v4005
        %v4022 = vrcp.pop %v4006
        %v4023 = vrcp.pop %v4007
        %v4024 = vrcp.pop %v4008
        %v4025 = vrcp.pop %v4009
        %v4026 = vrcp.pop %v4010
        %v4027 = vrcp.pop %v4011
        %v4028 = vrcp.pop %v4012
        %v4029 = vrcp.pop %v4013
        %4031 = vset.pattern.permute.xlu0 0
        %4032 = vperm.xlu0 %4031, %v4014
        %v4033 = vpop.permute.xlu0 %4032
        %4036 = vset.pattern.permute.xlu0 0
        %4037 = vperm.xlu0 %4036, %v4015
        %v4038 = vpop.permute.xlu0 %4037
        %4041 = vset.pattern.permute.xlu0 0
        %4042 = vperm.xlu0 %4041, %v4016
        %v4043 = vpop.permute.xlu0 %4042
        %4046 = vset.pattern.permute.xlu0 0
        %4047 = vperm.xlu0 %4046, %v4017
        %v4048 = vpop.permute.xlu0 %4047
        %4051 = vset.pattern.permute.xlu0 0
        %4052 = vperm.xlu0 %4051, %v4018
        %v4053 = vpop.permute.xlu0 %4052
        %4056 = vset.pattern.permute.xlu0 0
        %4057 = vperm.xlu0 %4056, %v4019
        %v4058 = vpop.permute.xlu0 %4057
        %4061 = vset.pattern.permute.xlu0 0
        %4062 = vperm.xlu0 %4061, %v4020
        %v4063 = vpop.permute.xlu0 %4062
        %4066 = vset.pattern.permute.xlu0 0
        %4067 = vperm.xlu0 %4066, %v4021
        %v4068 = vpop.permute.xlu0 %4067
        %4071 = vset.pattern.permute.xlu0 0
        %4072 = vperm.xlu0 %4071, %v4022
        %v4073 = vpop.permute.xlu0 %4072
        %4076 = vset.pattern.permute.xlu0 0
        %4077 = vperm.xlu0 %4076, %v4023
        %v4078 = vpop.permute.xlu0 %4077
        %4081 = vset.pattern.permute.xlu0 0
        %4082 = vperm.xlu0 %4081, %v4024
        %v4083 = vpop.permute.xlu0 %4082
        %4086 = vset.pattern.permute.xlu0 0
        %4087 = vperm.xlu0 %4086, %v4025
        %v4088 = vpop.permute.xlu0 %4087
        %4091 = vset.pattern.permute.xlu0 0
        %4092 = vperm.xlu0 %4091, %v4026
        %v4093 = vpop.permute.xlu0 %4092
        %4096 = vset.pattern.permute.xlu0 0
        %4097 = vperm.xlu0 %4096, %v4027
        %v4098 = vpop.permute.xlu0 %4097
        %4101 = vset.pattern.permute.xlu0 0
        %4102 = vperm.xlu0 %4101, %v4028
        %v4103 = vpop.permute.xlu0 %4102
        %4106 = vset.pattern.permute.xlu0 0
        %4107 = vperm.xlu0 %4106, %v4029
        %v4108 = vpop.permute.xlu0 %4107
        %v4110 = vmul.f32 %v3982, %v4033
        %v4111 = vmul.f32 %v3983, %v4038
        %v4112 = vmul.f32 %v3984, %v4043
        %v4113 = vmul.f32 %v3985, %v4048
        %v4114 = vmul.f32 %v3986, %v4053
        %v4115 = vmul.f32 %v3987, %v4058
        %v4116 = vmul.f32 %v3988, %v4063
        %v4117 = vmul.f32 %v3989, %v4068
        %v4118 = vmul.f32 %v3990, %v4073
        %v4119 = vmul.f32 %v3991, %v4078
        %v4120 = vmul.f32 %v3992, %v4083
        %v4121 = vmul.f32 %v3993, %v4088
        %v4122 = vmul.f32 %v3994, %v4093
        %v4123 = vmul.f32 %v3995, %v4098
        %v4124 = vmul.f32 %v3996, %v4103
        %v4125 = vmul.f32 %v3997, %v4108
        %v4126 = vld [vmem:[%s2869] sm:$0xff]
        %v4127 = vld [vmem:[%s2869 + $0x8] sm:$0xff]
        %v4128 = vld [vmem:[%s2869 + $0x10] sm:$0xff]
        %v4129 = vld [vmem:[%s2869 + $0x18] sm:$0xff]
        %v4130 = vld [vmem:[%s2869 + $0x20] sm:$0xff]
        %v4131 = vld [vmem:[%s2869 + $0x28] sm:$0xff]
        %v4132 = vld [vmem:[%s2869 + $0x30] sm:$0xff]
        %v4133 = vld [vmem:[%s2869 + $0x38] sm:$0xff]
        %v4134 = vld [vmem:[%s2869 + $0x40] sm:$0xff]
        %v4135 = vld [vmem:[%s2869 + $0x48] sm:$0xff]
        %v4136 = vld [vmem:[%s2869 + $0x50] sm:$0xff]
        %v4137 = vld [vmem:[%s2869 + $0x58] sm:$0xff]
        %v4138 = vld [vmem:[%s2869 + $0x60] sm:$0xff]
        %v4139 = vld [vmem:[%s2869 + $0x68] sm:$0xff]
        %v4140 = vld [vmem:[%s2869 + $0x70] sm:$0xff]
        %v4141 = vld [vmem:[%s2869 + $0x78] sm:$0xff]
        %v4142 = vld [vmem:[%s2419] sm:$0xff]
        %v4143 = vld [vmem:[%s2419 + $0x8] sm:$0xff]
        %v4144 = vld [vmem:[%s2419 + $0x10] sm:$0xff]
        %v4145 = vld [vmem:[%s2419 + $0x18] sm:$0xff]
        %v4146 = vld [vmem:[%s2419 + $0x20] sm:$0xff]
        %v4147 = vld [vmem:[%s2419 + $0x28] sm:$0xff]
        %v4148 = vld [vmem:[%s2419 + $0x30] sm:$0xff]
        %v4149 = vld [vmem:[%s2419 + $0x38] sm:$0xff]
        %v4150 = vld [vmem:[%s2419 + $0x40] sm:$0xff]
        %v4151 = vld [vmem:[%s2419 + $0x48] sm:$0xff]
        %v4152 = vld [vmem:[%s2419 + $0x50] sm:$0xff]
        %v4153 = vld [vmem:[%s2419 + $0x58] sm:$0xff]
        %v4154 = vld [vmem:[%s2419 + $0x60] sm:$0xff]
        %v4155 = vld [vmem:[%s2419 + $0x68] sm:$0xff]
        %v4156 = vld [vmem:[%s2419 + $0x70] sm:$0xff]
        %v4157 = vld [vmem:[%s2419 + $0x78] sm:$0xff]
        %v4158 = vrcp.pop %v4142
        %v4159 = vrcp.pop %v4143
        %v4160 = vrcp.pop %v4144
        %v4161 = vrcp.pop %v4145
        %v4162 = vrcp.pop %v4146
        %v4163 = vrcp.pop %v4147
        %v4164 = vrcp.pop %v4148
        %v4165 = vrcp.pop %v4149
        %v4166 = vrcp.pop %v4150
        %v4167 = vrcp.pop %v4151
        %v4168 = vrcp.pop %v4152
        %v4169 = vrcp.pop %v4153
        %v4170 = vrcp.pop %v4154
        %v4171 = vrcp.pop %v4155
        %v4172 = vrcp.pop %v4156
        %v4173 = vrcp.pop %v4157
        %4175 = vset.pattern.permute.xlu0 0
        %4176 = vperm.xlu0 %4175, %v4158
        %v4177 = vpop.permute.xlu0 %4176
        %4180 = vset.pattern.permute.xlu0 0
        %4181 = vperm.xlu0 %4180, %v4159
        %v4182 = vpop.permute.xlu0 %4181
        %4185 = vset.pattern.permute.xlu0 0
        %4186 = vperm.xlu0 %4185, %v4160
        %v4187 = vpop.permute.xlu0 %4186
        %4190 = vset.pattern.permute.xlu0 0
        %4191 = vperm.xlu0 %4190, %v4161
        %v4192 = vpop.permute.xlu0 %4191
        %4195 = vset.pattern.permute.xlu0 0
        %4196 = vperm.xlu0 %4195, %v4162
        %v4197 = vpop.permute.xlu0 %4196
        %4200 = vset.pattern.permute.xlu0 0
        %4201 = vperm.xlu0 %4200, %v4163
        %v4202 = vpop.permute.xlu0 %4201
        %4205 = vset.pattern.permute.xlu0 0
        %4206 = vperm.xlu0 %4205, %v4164
        %v4207 = vpop.permute.xlu0 %4206
        %4210 = vset.pattern.permute.xlu0 0
        %4211 = vperm.xlu0 %4210, %v4165
        %v4212 = vpop.permute.xlu0 %4211
        %4215 = vset.pattern.permute.xlu0 0
        %4216 = vperm.xlu0 %4215, %v4166
        %v4217 = vpop.permute.xlu0 %4216
        %4220 = vset.pattern.permute.xlu0 0
        %4221 = vperm.xlu0 %4220, %v4167
        %v4222 = vpop.permute.xlu0 %4221
        %4225 = vset.pattern.permute.xlu0 0
        %4226 = vperm.xlu0 %4225, %v4168
        %v4227 = vpop.permute.xlu0 %4226
        %4230 = vset.pattern.permute.xlu0 0
        %4231 = vperm.xlu0 %4230, %v4169
        %v4232 = vpop.permute.xlu0 %4231
        %4235 = vset.pattern.permute.xlu0 0
        %4236 = vperm.xlu0 %4235, %v4170
        %v4237 = vpop.permute.xlu0 %4236
        %4240 = vset.pattern.permute.xlu0 0
        %4241 = vperm.xlu0 %4240, %v4171
        %v4242 = vpop.permute.xlu0 %4241
        %4245 = vset.pattern.permute.xlu0 0
        %4246 = vperm.xlu0 %4245, %v4172
        %v4247 = vpop.permute.xlu0 %4246
        %4250 = vset.pattern.permute.xlu0 0
        %4251 = vperm.xlu0 %4250, %v4173
        %v4252 = vpop.permute.xlu0 %4251
        %v4254 = vmul.f32 %v4126, %v4177
        %v4255 = vmul.f32 %v4127, %v4182
        %v4256 = vmul.f32 %v4128, %v4187
        %v4257 = vmul.f32 %v4129, %v4192
        %v4258 = vmul.f32 %v4130, %v4197
        %v4259 = vmul.f32 %v4131, %v4202
        %v4260 = vmul.f32 %v4132, %v4207
        %v4261 = vmul.f32 %v4133, %v4212
        %v4262 = vmul.f32 %v4134, %v4217
        %v4263 = vmul.f32 %v4135, %v4222
        %v4264 = vmul.f32 %v4136, %v4227
        %v4265 = vmul.f32 %v4137, %v4232
        %v4266 = vmul.f32 %v4138, %v4237
        %v4267 = vmul.f32 %v4139, %v4242
        %v4268 = vmul.f32 %v4140, %v4247
        %v4269 = vmul.f32 %v4141, %v4252
        %v4270 = vld [vmem:[%s3674] sm:$0xff]
        %v4271 = vld [vmem:[%s3674 + $0x8] sm:$0xff]
        %v4272 = vld [vmem:[%s3674 + $0x10] sm:$0xff]
        %v4273 = vld [vmem:[%s3674 + $0x18] sm:$0xff]
        %v4274 = vld [vmem:[%s3674 + $0x20] sm:$0xff]
        %v4275 = vld [vmem:[%s3674 + $0x28] sm:$0xff]
        %v4276 = vld [vmem:[%s3674 + $0x30] sm:$0xff]
        %v4277 = vld [vmem:[%s3674 + $0x38] sm:$0xff]
        %v4278 = vld [vmem:[%s3674 + $0x40] sm:$0xff]
        %v4279 = vld [vmem:[%s3674 + $0x48] sm:$0xff]
        %v4280 = vld [vmem:[%s3674 + $0x50] sm:$0xff]
        %v4281 = vld [vmem:[%s3674 + $0x58] sm:$0xff]
        %v4282 = vld [vmem:[%s3674 + $0x60] sm:$0xff]
        %v4283 = vld [vmem:[%s3674 + $0x68] sm:$0xff]
        %v4284 = vld [vmem:[%s3674 + $0x70] sm:$0xff]
        %v4285 = vld [vmem:[%s3674 + $0x78] sm:$0xff]
        %v4286 = vld [vmem:[%s3224] sm:$0xff]
        %v4287 = vld [vmem:[%s3224 + $0x8] sm:$0xff]
        %v4288 = vld [vmem:[%s3224 + $0x10] sm:$0xff]
        %v4289 = vld [vmem:[%s3224 + $0x18] sm:$0xff]
        %v4290 = vld [vmem:[%s3224 + $0x20] sm:$0xff]
        %v4291 = vld [vmem:[%s3224 + $0x28] sm:$0xff]
        %v4292 = vld [vmem:[%s3224 + $0x30] sm:$0xff]
        %v4293 = vld [vmem:[%s3224 + $0x38] sm:$0xff]
        %v4294 = vld [vmem:[%s3224 + $0x40] sm:$0xff]
        %v4295 = vld [vmem:[%s3224 + $0x48] sm:$0xff]
        %v4296 = vld [vmem:[%s3224 + $0x50] sm:$0xff]
        %v4297 = vld [vmem:[%s3224 + $0x58] sm:$0xff]
        %v4298 = vld [vmem:[%s3224 + $0x60] sm:$0xff]
        %v4299 = vld [vmem:[%s3224 + $0x68] sm:$0xff]
        %v4300 = vld [vmem:[%s3224 + $0x70] sm:$0xff]
        %v4301 = vld [vmem:[%s3224 + $0x78] sm:$0xff]
        %v4302 = vrcp.pop %v4286
        %v4303 = vrcp.pop %v4287
        %v4304 = vrcp.pop %v4288
        %v4305 = vrcp.pop %v4289
        %v4306 = vrcp.pop %v4290
        %v4307 = vrcp.pop %v4291
        %v4308 = vrcp.pop %v4292
        %v4309 = vrcp.pop %v4293
        %v4310 = vrcp.pop %v4294
        %v4311 = vrcp.pop %v4295
        %v4312 = vrcp.pop %v4296
        %v4313 = vrcp.pop %v4297
        %v4314 = vrcp.pop %v4298
        %v4315 = vrcp.pop %v4299
        %v4316 = vrcp.pop %v4300
        %v4317 = vrcp.pop %v4301
        %4319 = vset.pattern.permute.xlu0 0
        %4320 = vperm.xlu0 %4319, %v4302
        %v4321 = vpop.permute.xlu0 %4320
        %4324 = vset.pattern.permute.xlu0 0
        %4325 = vperm.xlu0 %4324, %v4303
        %v4326 = vpop.permute.xlu0 %4325
        %4329 = vset.pattern.permute.xlu0 0
        %4330 = vperm.xlu0 %4329, %v4304
        %v4331 = vpop.permute.xlu0 %4330
        %4334 = vset.pattern.permute.xlu0 0
        %4335 = vperm.xlu0 %4334, %v4305
        %v4336 = vpop.permute.xlu0 %4335
        %4339 = vset.pattern.permute.xlu0 0
        %4340 = vperm.xlu0 %4339, %v4306
        %v4341 = vpop.permute.xlu0 %4340
        %4344 = vset.pattern.permute.xlu0 0
        %4345 = vperm.xlu0 %4344, %v4307
        %v4346 = vpop.permute.xlu0 %4345
        %4349 = vset.pattern.permute.xlu0 0
        %4350 = vperm.xlu0 %4349, %v4308
        %v4351 = vpop.permute.xlu0 %4350
        %4354 = vset.pattern.permute.xlu0 0
        %4355 = vperm.xlu0 %4354, %v4309
        %v4356 = vpop.permute.xlu0 %4355
        %4359 = vset.pattern.permute.xlu0 0
        %4360 = vperm.xlu0 %4359, %v4310
        %v4361 = vpop.permute.xlu0 %4360
        %4364 = vset.pattern.permute.xlu0 0
        %4365 = vperm.xlu0 %4364, %v4311
        %v4366 = vpop.permute.xlu0 %4365
        %4369 = vset.pattern.permute.xlu0 0
        %4370 = vperm.xlu0 %4369, %v4312
        %v4371 = vpop.permute.xlu0 %4370
        %4374 = vset.pattern.permute.xlu0 0
        %4375 = vperm.xlu0 %4374, %v4313
        %v4376 = vpop.permute.xlu0 %4375
        %4379 = vset.pattern.permute.xlu0 0
        %4380 = vperm.xlu0 %4379, %v4314
        %v4381 = vpop.permute.xlu0 %4380
        %4384 = vset.pattern.permute.xlu0 0
        %4385 = vperm.xlu0 %4384, %v4315
        %v4386 = vpop.permute.xlu0 %4385
        %4389 = vset.pattern.permute.xlu0 0
        %4390 = vperm.xlu0 %4389, %v4316
        %v4391 = vpop.permute.xlu0 %4390
        %4394 = vset.pattern.permute.xlu0 0
        %4395 = vperm.xlu0 %4394, %v4317
        %v4396 = vpop.permute.xlu0 %4395
        %v4398 = vmul.f32 %v4270, %v4321
        %v4399 = vmul.f32 %v4271, %v4326
        %v4400 = vmul.f32 %v4272, %v4331
        %v4401 = vmul.f32 %v4273, %v4336
        %v4402 = vmul.f32 %v4274, %v4341
        %v4403 = vmul.f32 %v4275, %v4346
        %v4404 = vmul.f32 %v4276, %v4351
        %v4405 = vmul.f32 %v4277, %v4356
        %v4406 = vmul.f32 %v4278, %v4361
        %v4407 = vmul.f32 %v4279, %v4366
        %v4408 = vmul.f32 %v4280, %v4371
        %v4409 = vmul.f32 %v4281, %v4376
        %v4410 = vmul.f32 %v4282, %v4381
        %v4411 = vmul.f32 %v4283, %v4386
        %v4412 = vmul.f32 %v4284, %v4391
        %v4413 = vmul.f32 %v4285, %v4396
        %4430 = vrot.lane.b32.xlu0 %v4110, 32
        %v4431 = vpop.permute.xlu0 %4430
        %4432 = vrot.lane.b32.xlu0 %v4111, 32
        %v4433 = vpop.permute.xlu0 %4432
        %4434 = vrot.lane.b32.xlu0 %v4112, 32
        %v4435 = vpop.permute.xlu0 %4434
        %4436 = vrot.lane.b32.xlu0 %v4113, 32
        %v4437 = vpop.permute.xlu0 %4436
        %4438 = vrot.lane.b32.xlu0 %v4114, 32
        %v4439 = vpop.permute.xlu0 %4438
        %4440 = vrot.lane.b32.xlu0 %v4115, 32
        %v4441 = vpop.permute.xlu0 %4440
        %4442 = vrot.lane.b32.xlu0 %v4116, 32
        %v4443 = vpop.permute.xlu0 %4442
        %4444 = vrot.lane.b32.xlu0 %v4117, 32
        %v4445 = vpop.permute.xlu0 %4444
        %4446 = vrot.lane.b32.xlu0 %v4118, 32
        %v4447 = vpop.permute.xlu0 %4446
        %4448 = vrot.lane.b32.xlu0 %v4119, 32
        %v4449 = vpop.permute.xlu0 %4448
        %4450 = vrot.lane.b32.xlu0 %v4120, 32
        %v4451 = vpop.permute.xlu0 %4450
        %4452 = vrot.lane.b32.xlu0 %v4121, 32
        %v4453 = vpop.permute.xlu0 %4452
        %4454 = vrot.lane.b32.xlu0 %v4122, 32
        %v4455 = vpop.permute.xlu0 %4454
        %4456 = vrot.lane.b32.xlu0 %v4123, 32
        %v4457 = vpop.permute.xlu0 %4456
        %4458 = vrot.lane.b32.xlu0 %v4124, 32
        %v4459 = vpop.permute.xlu0 %4458
        %4460 = vrot.lane.b32.xlu0 %v4125, 32
        %v4461 = vpop.permute.xlu0 %4460
        %4494 = vrot.lane.b32.xlu0 %v4254, 64
        %v4495 = vpop.permute.xlu0 %4494
        %4496 = vrot.lane.b32.xlu0 %v4255, 64
        %v4497 = vpop.permute.xlu0 %4496
        %4498 = vrot.lane.b32.xlu0 %v4256, 64
        %v4499 = vpop.permute.xlu0 %4498
        %4500 = vrot.lane.b32.xlu0 %v4257, 64
        %v4501 = vpop.permute.xlu0 %4500
        %4502 = vrot.lane.b32.xlu0 %v4258, 64
        %v4503 = vpop.permute.xlu0 %4502
        %4504 = vrot.lane.b32.xlu0 %v4259, 64
        %v4505 = vpop.permute.xlu0 %4504
        %4506 = vrot.lane.b32.xlu0 %v4260, 64
        %v4507 = vpop.permute.xlu0 %4506
        %4508 = vrot.lane.b32.xlu0 %v4261, 64
        %v4509 = vpop.permute.xlu0 %4508
        %4510 = vrot.lane.b32.xlu0 %v4262, 64
        %v4511 = vpop.permute.xlu0 %4510
        %4512 = vrot.lane.b32.xlu0 %v4263, 64
        %v4513 = vpop.permute.xlu0 %4512
        %4514 = vrot.lane.b32.xlu0 %v4264, 64
        %v4515 = vpop.permute.xlu0 %4514
        %4516 = vrot.lane.b32.xlu0 %v4265, 64
        %v4517 = vpop.permute.xlu0 %4516
        %4518 = vrot.lane.b32.xlu0 %v4266, 64
        %v4519 = vpop.permute.xlu0 %4518
        %4520 = vrot.lane.b32.xlu0 %v4267, 64
        %v4521 = vpop.permute.xlu0 %4520
        %4522 = vrot.lane.b32.xlu0 %v4268, 64
        %v4523 = vpop.permute.xlu0 %4522
        %4524 = vrot.lane.b32.xlu0 %v4269, 64
        %v4525 = vpop.permute.xlu0 %4524
        %4558 = vrot.lane.b32.xlu0 %v4398, 96
        %v4559 = vpop.permute.xlu0 %4558
        %4560 = vrot.lane.b32.xlu0 %v4399, 96
        %v4561 = vpop.permute.xlu0 %4560
        %4562 = vrot.lane.b32.xlu0 %v4400, 96
        %v4563 = vpop.permute.xlu0 %4562
        %4564 = vrot.lane.b32.xlu0 %v4401, 96
        %v4565 = vpop.permute.xlu0 %4564
        %4566 = vrot.lane.b32.xlu0 %v4402, 96
        %v4567 = vpop.permute.xlu0 %4566
        %4568 = vrot.lane.b32.xlu0 %v4403, 96
        %v4569 = vpop.permute.xlu0 %4568
        %4570 = vrot.lane.b32.xlu0 %v4404, 96
        %v4571 = vpop.permute.xlu0 %4570
        %4572 = vrot.lane.b32.xlu0 %v4405, 96
        %v4573 = vpop.permute.xlu0 %4572
        %4574 = vrot.lane.b32.xlu0 %v4406, 96
        %v4575 = vpop.permute.xlu0 %4574
        %4576 = vrot.lane.b32.xlu0 %v4407, 96
        %v4577 = vpop.permute.xlu0 %4576
        %4578 = vrot.lane.b32.xlu0 %v4408, 96
        %v4579 = vpop.permute.xlu0 %4578
        %4580 = vrot.lane.b32.xlu0 %v4409, 96
        %v4581 = vpop.permute.xlu0 %4580
        %4582 = vrot.lane.b32.xlu0 %v4410, 96
        %v4583 = vpop.permute.xlu0 %4582
        %4584 = vrot.lane.b32.xlu0 %v4411, 96
        %v4585 = vpop.permute.xlu0 %4584
        %4586 = vrot.lane.b32.xlu0 %v4412, 96
        %v4587 = vpop.permute.xlu0 %4586
        %4588 = vrot.lane.b32.xlu0 %v4413, 96
        %v4589 = vpop.permute.xlu0 %4588
        %v4606 = vsel %vm616, %v3966, %v4431
        %v4607 = vsel %vm616, %v3967, %v4433
        %v4608 = vsel %vm616, %v3968, %v4435
        %v4609 = vsel %vm616, %v3969, %v4437
        %v4610 = vsel %vm616, %v3970, %v4439
        %v4611 = vsel %vm616, %v3971, %v4441
        %v4612 = vsel %vm616, %v3972, %v4443
        %v4613 = vsel %vm616, %v3973, %v4445
        %v4614 = vsel %vm616, %v3974, %v4447
        %v4615 = vsel %vm616, %v3975, %v4449
        %v4616 = vsel %vm616, %v3976, %v4451
        %v4617 = vsel %vm616, %v3977, %v4453
        %v4618 = vsel %vm616, %v3978, %v4455
        %v4619 = vsel %vm616, %v3979, %v4457
        %v4620 = vsel %vm616, %v3980, %v4459
        %v4621 = vsel %vm616, %v3981, %v4461
        %vm4622 = vcmask 523264
        %v4623 = vsel %vm4622, %v4606, %v4495
        %v4624 = vsel %vm4622, %v4607, %v4497
        %v4625 = vsel %vm4622, %v4608, %v4499
        %v4626 = vsel %vm4622, %v4609, %v4501
        %v4627 = vsel %vm4622, %v4610, %v4503
        %v4628 = vsel %vm4622, %v4611, %v4505
        %v4629 = vsel %vm4622, %v4612, %v4507
        %v4630 = vsel %vm4622, %v4613, %v4509
        %v4631 = vsel %vm4622, %v4614, %v4511
        %v4632 = vsel %vm4622, %v4615, %v4513
        %v4633 = vsel %vm4622, %v4616, %v4515
        %v4634 = vsel %vm4622, %v4617, %v4517
        %v4635 = vsel %vm4622, %v4618, %v4519
        %v4636 = vsel %vm4622, %v4619, %v4521
        %v4637 = vsel %vm4622, %v4620, %v4523
        %v4638 = vsel %vm4622, %v4621, %v4525
        %vm4639 = vcmask 785408
        %v4640 = vsel %vm4639, %v4623, %v4559
        %v4641 = vsel %vm4639, %v4624, %v4561
        %v4642 = vsel %vm4639, %v4625, %v4563
        %v4643 = vsel %vm4639, %v4626, %v4565
        %v4644 = vsel %vm4639, %v4627, %v4567
        %v4645 = vsel %vm4639, %v4628, %v4569
        %v4646 = vsel %vm4639, %v4629, %v4571
        %v4647 = vsel %vm4639, %v4630, %v4573
        %v4648 = vsel %vm4639, %v4631, %v4575
        %v4649 = vsel %vm4639, %v4632, %v4577
        %v4650 = vsel %vm4639, %v4633, %v4579
        %v4651 = vsel %vm4639, %v4634, %v4581
        %v4652 = vsel %vm4639, %v4635, %v4583
        %v4653 = vsel %vm4639, %v4636, %v4585
        %v4654 = vsel %vm4639, %v4637, %v4587
        %v4655 = vsel %vm4639, %v4638, %v4589
        %v4656 = vpack.c.bf16 %v4641, %v4640
        %v4657 = vpack.c.bf16 %v4643, %v4642
        %v4658 = vpack.c.bf16 %v4645, %v4644
        %v4659 = vpack.c.bf16 %v4647, %v4646
        %v4660 = vpack.c.bf16 %v4649, %v4648
        %v4661 = vpack.c.bf16 %v4651, %v4650
        %v4662 = vpack.c.bf16 %v4653, %v4652
        %v4663 = vpack.c.bf16 %v4655, %v4654
        %v4672 = vunpack.c.l.b16 %v4656
        %v4673 = vunpack.c.h.b16 %v4656
        %v4674 = vunpack.c.l.b16 %v4657
        %v4675 = vunpack.c.h.b16 %v4657
        %v4676 = vunpack.c.l.b16 %v4658
        %v4677 = vunpack.c.h.b16 %v4658
        %v4678 = vunpack.c.l.b16 %v4659
        %v4679 = vunpack.c.h.b16 %v4659
        %v4680 = vunpack.c.l.b16 %v4660
        %v4681 = vunpack.c.h.b16 %v4660
        %v4682 = vunpack.c.l.b16 %v4661
        %v4683 = vunpack.c.h.b16 %v4661
        %v4684 = vunpack.c.l.b16 %v4662
        %v4685 = vunpack.c.h.b16 %v4662
        %v4686 = vunpack.c.l.b16 %v4663
        %v4687 = vunpack.c.h.b16 %v4663
        %v4688 = vpack.c.b16 %v4672, %v4672
        %v4689 = vpack.c.b16 %v4673, %v4673
        %v4690 = vpack.c.b16 %v4674, %v4674
        %v4691 = vpack.c.b16 %v4675, %v4675
        %v4692 = vpack.c.b16 %v4676, %v4676
        %v4693 = vpack.c.b16 %v4677, %v4677
        %v4694 = vpack.c.b16 %v4678, %v4678
        %v4695 = vpack.c.b16 %v4679, %v4679
        %v4696 = vpack.c.b16 %v4680, %v4680
        %v4697 = vpack.c.b16 %v4681, %v4681
        %v4698 = vpack.c.b16 %v4682, %v4682
        %v4699 = vpack.c.b16 %v4683, %v4683
        %v4700 = vpack.c.b16 %v4684, %v4684
        %v4701 = vpack.c.b16 %v4685, %v4685
        %v4702 = vpack.c.b16 %v4686, %v4686
        %v4703 = vpack.c.b16 %v4687, %v4687
        %4720 = vst [vmem:[%s287] sm:$0xf] %v4688
        %4721 = vst [vmem:[%s287 + $0x4] sm:$0xf] %v4689
        %4722 = vst [vmem:[%s287 + $0x8] sm:$0xf] %v4690
        %4723 = vst [vmem:[%s287 + $0xc] sm:$0xf] %v4691
        %4724 = vst [vmem:[%s287 + $0x10] sm:$0xf] %v4692
        %4725 = vst [vmem:[%s287 + $0x14] sm:$0xf] %v4693
        %4726 = vst [vmem:[%s287 + $0x18] sm:$0xf] %v4694
        %4727 = vst [vmem:[%s287 + $0x1c] sm:$0xf] %v4695
        %4728 = vst [vmem:[%s287 + $0x20] sm:$0xf] %v4696
        %4729 = vst [vmem:[%s287 + $0x24] sm:$0xf] %v4697
        %4730 = vst [vmem:[%s287 + $0x28] sm:$0xf] %v4698
        %4731 = vst [vmem:[%s287 + $0x2c] sm:$0xf] %v4699
        %4732 = vst [vmem:[%s287 + $0x30] sm:$0xf] %v4700
        %4733 = vst [vmem:[%s287 + $0x34] sm:$0xf] %v4701
        %4734 = vst [vmem:[%s287 + $0x38] sm:$0xf] %v4702
        %4735 = vst [vmem:[%s287 + $0x3c] sm:$0xf] %v4703
      $region40: #{multi_head_attention.4} parent=31 // pred_fallthru
        _
      %s4736 = smul.u32 16, %s20
      %p4737 = scmp.lt.s32.totalorder %s19, 1
      %s4738 = scalar_select %p4737, %s19, 1
      %p4739 = scmp.lt.s32.totalorder %s4736, 15
      %s4740 = scalar_select %p4739, %s4736, 15
      %s4741 = smul.addr %s4738, 16
      %s4742 = sadd.s32 %s4740, %s4741
      %s4743 = smul.addr %s4742, 4
      %s4744 = scalar_lea.vmem %s3, %s4743
      // Predicated region
      $region41: #{multi_head_attention.4} parent=31 // pred_check
        %p4745 = pneg %p137
      $region42: #{multi_head_attention.4} parent=31 // pred_check_branch
        %4747 = sbr.rel (%p4745) target = $region44
      $region43: #{multi_head_attention.4} parent=31 // pred_region
        %s4748 = smul.u32 16, %s20
      $region44: #{multi_head_attention.4} parent=31 // pred_fallthru
        _
    $region32: #{multi_head_attention.4} parent=5 // pred_fallthru
      _
    %p4749 = scmp.le.s32.totalorder 2, %s9
    // Predicated region
    $region45: #{multi_head_attention.4} parent=5 // pred_check
      %p4750 = pneg %p4749
    $region46: #{multi_head_attention.4} parent=5 // pred_check_branch
      %4752 = sbr.rel (%p4750) target = $region48
    $region47: #{multi_head_attention.4} parent=5 // pred_region
      %s4753 = ssub.s32 %s9, 2
      // Predicated region
      $region49: #{multi_head_attention.4} parent=47 // pred_check
        %p4754 = pneg %p143
      $region50: #{multi_head_attention.4} parent=47 // pred_check_branch
        %4756 = sbr.rel (%p4754) target = $region52
      $region51: #{multi_head_attention.4} parent=47 // pred_region
        %s4757 = smul.u32 16, %s23
        %p4758 = scmp.lt.s32.totalorder %s22, 1
        %s4759 = scalar_select %p4758, %s22, 1
        %p4760 = scmp.lt.s32.totalorder %s4757, 15
        %s4761 = scalar_select %p4760, %s4757, 15
        %s4762 = smul.addr %s4759, 16
        %s4763 = sadd.s32 %s4761, %s4762
        %s4764 = smul.addr %s4763, 4
        %s4765 = scalar_lea.vmem %s3, %s4764
      $region52: #{multi_head_attention.4} parent=47 // pred_fallthru
        _
    $region48: #{multi_head_attention.4} parent=5 // pred_fallthru
      _
  $region6: #{multi_head_attention.4} parent=0 // loop_footer
    %s13 = sadd.s32 1, %s9
  $region7: #{multi_head_attention.4} parent=0 // loop_footer_branch
    %8 = sbr.rel target = $region3
  $region8: #{multi_head_attention.4} parent=0 // loop_exit
    _

</llo_original>
